<compile_context>
chip_gen: v7x
topology: tpu7x:2x2x1
jax: 0.10.0
libtpu: 0.0.40
codegen_flags: <defaults>
</compile_context>

<pallas_src>
import functools

import jax
import jax.numpy as jnp
from jax import lax
from jax.experimental import pallas as pl
from jax.experimental.pallas import tpu as pltpu

EPS = 1e-5                 # nn.GroupNorm default eps
MXU_DTYPE = jnp.bfloat16   # MXU operand dtype (accumulation / GN / SiLU stay f32)


# ----------------------------------------------------------------------------
# Fused kernel: one grid step = `Nb` batch elements; whole block fused,
# inter-layer activations stay in a bf16 VMEM scratch (`xpad`).
# ----------------------------------------------------------------------------
def _block_kernel(*refs, n, ks, pad, groups, H, W, Cin, Cout, Nb):
    Wp = W + 2 * pad
    L = H * Wp                      # per-image columns in the (H, Wp) padded-width layout
    base = pad * Wp + pad           # offset of output pixel (0,0) inside the padded slab
    cg = Cout // groups
    inv_n = 1.0 / (cg * H * W)
    npix = float(H * W)

    x_ref = refs[0]
    w_refs = refs[1:1 + n]
    ws_ref = refs[1 + n]
    scal_ref = refs[2 + n]          # (Cout, 3n+2): [b_i, gamma_i, beta_i]*n + [gamma_s, beta_s]
    grp_ref = refs[3 + n]           # (Cout, Cout) block-diagonal 1/0 group-combine matrix
    o_ref = refs[4 + n]
    xpad = refs[5 + n]              # (Cmax, L_buf) bf16 padded-activation scratch
    Cmax, L_buf = xpad.shape

    # Validity mask over the (H, Wp) output grid: the 2*pad junk columns per row are 0.
    q = lax.broadcasted_iota(jnp.int32, (1, L), 1)
    valid = ((q % Wp) < W).astype(jnp.float32)

    # Zero ONLY the halo regions (top pad rows + left pad of first row; bottom pad rows +
    # tap-overrun slack).  The interior [base, base+L) is fully overwritten every layer, so
    # this tiny (~2*pad*Wp lanes) zeroing per grid step replaces the old full re-zeroing and
    # is megacore-safe (no reliance on program_id == 0 having run on this core).
    xpad[:, 0:base] = jnp.zeros((Cmax, base), dtype=xpad.dtype)
    xpad[:, base + L:L_buf] = jnp.zeros((Cmax, L_buf - (base + L)), dtype=xpad.dtype)

    def gn_affine(acc, bias, gamma, beta):
        # GroupNorm folded to a per-channel (scale, shift); conv bias folded into the stats,
        # so GN(acc + bias) == acc * scale + shift (no extra (Cout, L) bias pass).
        am = acc * valid
        s1 = jnp.sum(am, axis=1, keepdims=True)           # (C,1) sum over valid pixels
        s2 = jnp.sum(am * acc, axis=1, keepdims=True)     # (C,1) sum of squares (valid only)
        if bias is not None:
            s2 = s2 + (2.0 * bias) * s1 + npix * (bias * bias)
            s1 = s1 + npix * bias
        stats = jnp.concatenate([s1, s2], axis=1)         # (C,2)
        g = jnp.dot(grp_ref[...], stats, preferred_element_type=jnp.float32) * inv_n
        mean = g[:, 0:1]
        # TODO(synk): single-pass variance (E[x^2]-E[x]^2); switch to two-pass if activations
        #             ever develop |mean| >> std.
        var = g[:, 1:2] - mean * mean
        scale = gamma * lax.rsqrt(var + EPS)
        if bias is None:
            shift = beta - mean * scale
        else:
            shift = beta + (bias - mean) * scale
        return scale, shift

    def conv_taps(cin, w_ref):
        # ks*ks per-tap MXU matmuls accumulating in f32 -- no materialized im2col.
        acc = None
        for ky in range(ks):
            for kx in range(ks):
                t = ky * ks + kx
                s0 = ky * Wp + kx
                part = jnp.dot(w_ref[:, t * cin:(t + 1) * cin],
                               xpad[0:cin, s0:s0 + L],
                               preferred_element_type=jnp.float32)
                acc = part if acc is None else acc + part
        return acc                                         # (Cout, L) f32

    for bi in range(Nb):
        # ---- main branch: n x (conv + GN + SiLU); activations never leave VMEM -----------
        xpad[0:Cin, base:base + L] = x_ref[bi]             # ONE lane-dense halo store (bf16)
        h = None
        for i in range(n):
            cin_i = Cin if i == 0 else Cout
            acc = conv_taps(cin_i, w_refs[i])
            b = scal_ref[:, 3 * i:3 * i + 1]
            g = scal_ref[:, 3 * i + 1:3 * i + 2]
            bt = scal_ref[:, 3 * i + 2:3 * i + 3]
            scale, shift = gn_affine(acc, b, g, bt)
            y = acc * scale + shift                        # conv bias + GN in one FMA pass
            h = y * jax.nn.sigmoid(y)                      # SiLU (f32)
            if i + 1 < n:
                # Halo fill for the next conv: masked junk columns land exactly on the
                # right/left pad positions, so ONE lane-dense store replaces H row copies.
                xpad[0:Cout, base:base + L] = (h * valid).astype(xpad.dtype)

        # ---- shortcut: 1x1 conv (no bias) + GroupNorm, same (H, Wp) layout ----------------
        s = jnp.dot(ws_ref[...], x_ref[bi], preferred_element_type=jnp.float32)
        s_scale, s_shift = gn_affine(s, None,
                                     scal_ref[:, 3 * n:3 * n + 1],
                                     scal_ref[:, 3 * n + 1:3 * n + 2])

        # Residual add with no re-striding; junk columns are sliced off in the wrapper.
        o_ref[bi] = (h + (s * s_scale + s_shift)).astype(o_ref.dtype)


# ----------------------------------------------------------------------------
# Wrapper: NCHW in, NCHW out (only cheap pad / reshape / slice plumbing in XLA).
# ----------------------------------------------------------------------------
def _pick_images_per_step(N, Cin, Cout, L):
    # Amortize per-grid-step overhead over several images, but keep >= 2 grid steps so both
    # v7x TensorCores / megacore are fed, and cap the double-buffered I/O block footprint.
    budget = 8 * 1024 * 1024
    best = 1
    for nb in range(1, N + 1):
        if N % nb:
            continue
        blk_bytes = 2 * nb * L * (2 * Cin + 4 * Cout)      # bf16 in + f32 out, x2 buffers
        if blk_bytes > budget:
            continue
        if N // nb >= 2 or N == 1:
            best = nb
    return best


def wide_resnet_block_forward(x_nchw, params, *, n, ks, pad, groups, images_per_step=None):
    N, Cin, H, W = x_nchw.shape
    Cout = params["conv"][0][0].shape[0]
    assert ks == 2 * pad + 1, "fused kernel assumes 'same' convolutions (ks == 2*pad + 1)"
    assert Cout % groups == 0
    Wp = W + 2 * pad
    L = H * Wp
    KK = ks * ks
    Cmax = max(Cin, Cout)
    L_buf = (H + 2 * pad) * Wp + ks                        # padded slab + tap-overrun slack

    Nb = images_per_step or _pick_images_per_step(N, Cin, Cout, L)
    assert N % Nb == 0
    grid = (N // Nb,)

    # Input layout plumbing (fused by XLA): cast to bf16 (x is only ever an MXU operand) and
    # right-pad the width by 2*pad so every in-kernel halo fill / output store is a single
    # lane-dense slab in the (H, Wp) layout.
    x_flat = jnp.pad(x_nchw.astype(MXU_DTYPE),
                     ((0, 0), (0, 0), (0, 0), (0, 2 * pad))).reshape(N, Cin, L)

    # Weights reshaped once (taps folded into K); all tiny per-channel vectors coalesced
    # into ONE (Cout, 3n+2) operand so they ride a single DMA.
    cols, weight_args, weight_shapes = [], [], []
    for i in range(n):
        w, b, g, bt = params["conv"][i]                    # torch OIHW layout
        cin_i = w.shape[1]
        w_mat = jnp.transpose(w, (0, 2, 3, 1)).reshape(Cout, KK * cin_i)
        weight_args.append(w_mat.astype(MXU_DTYPE))
        weight_shapes.append((Cout, KK * cin_i))
        cols += [b, g, bt]
    ws, gs, bts = params["shortcut"]                       # ws: (Cout, Cin, 1, 1)
    cols += [gs, bts]
    scal = jnp.stack(cols, axis=1).astype(jnp.float32)     # (Cout, 3n+2)
    ws_mat = ws.reshape(Cout, Cin).astype(MXU_DTYPE)

    cidx = jnp.arange(Cout) // (Cout // groups)
    grp = (cidx[:, None] == cidx[None, :]).astype(jnp.float32)   # (Cout, Cout) block-diagonal

    kernel = functools.partial(_block_kernel, n=n, ks=ks, pad=pad, groups=groups,
                               H=H, W=W, Cin=Cin, Cout=Cout, Nb=Nb)

    def build(single_buffer):
        def const_spec(shape):
            if single_buffer:
                return pl.BlockSpec(shape, lambda b: (0, 0),
                                    pipeline_mode=pl.Buffered(1))
            return pl.BlockSpec(shape, lambda b: (0, 0))

        in_specs = [pl.BlockSpec((Nb, Cin, L), lambda b: (b, 0, 0))]
        in_specs += [const_spec(s) for s in weight_shapes]
        in_specs += [const_spec((Cout, Cin)),
                     const_spec((Cout, 3 * n + 2)),
                     const_spec((Cout, Cout))]
        return pl.pallas_call(
            kernel,
            out_shape=jax.ShapeDtypeStruct((N, Cout, L), jnp.float32),
            grid=grid,
            in_specs=in_specs,
            out_specs=pl.BlockSpec((Nb, Cout, L), lambda b: (b, 0, 0)),
            scratch_shapes=[pltpu.VMEM((Cmax, L_buf), MXU_DTYPE)],
            compiler_params=pltpu.CompilerParams(
                dimension_semantics=("parallel",),
                # 64 MiB: generous on v5e/v6e (128 MiB physical), still <= v7x's 64 MiB.
                vmem_limit_bytes=64 * 1024 * 1024,
            ),
        )

    args = (x_flat, *weight_args, ws_mat, scal, grp)
    try:
        out = build(single_buffer=hasattr(pl, "Buffered"))(*args)
    except Exception:
        # pl.Buffered(1) not supported by this JAX/Mosaic build: fall back to default
        # double-buffering of the grid-invariant operands.
        out = build(single_buffer=False)(*args)

    # Drop the 2*pad junk columns per row (slice is fused by XLA).
    return out.reshape(N, Cout, H, Wp)[:, :, :, :W]


# ----------------------------------------------------------------------------
# Pure-JAX reference (module semantics), parameterised by MXU operand dtype.
# ----------------------------------------------------------------------------
def _group_norm_nchw(x, gamma, beta, groups):
    N, C, H, W = x.shape
    xg = x.reshape(N, groups, C // groups, H, W)
    mean = jnp.mean(xg, axis=(2, 3, 4), keepdims=True)
    var = jnp.mean((xg - mean) ** 2, axis=(2, 3, 4), keepdims=True)
    xn = ((xg - mean) * lax.rsqrt(var + EPS)).reshape(N, C, H, W)
    return xn * gamma.reshape(1, C, 1, 1) + beta.reshape(1, C, 1, 1)


def reference_forward(x_nchw, params, *, n, ks, pad, groups, mxu_dtype=jnp.float32):
    dn = ("NCHW", "OIHW", "NCHW")
    x = x_nchw.astype(jnp.float32)
    h = x
    for i in range(n):
        w, b, g, bt = params["conv"][i]
        h = lax.conv_general_dilated(
            h.astype(mxu_dtype), w.astype(mxu_dtype), (1, 1),
            [(pad, pad), (pad, pad)], dimension_numbers=dn,
            preferred_element_type=jnp.float32)
        h = h + b.reshape(1, -1, 1, 1)
        h = _group_norm_nchw(h, g, bt, groups)
        h = h * jax.nn.sigmoid(h)
    ws, gs, bts = params["shortcut"]
    s = lax.conv_general_dilated(
        x.astype(mxu_dtype), ws.astype(mxu_dtype), (1, 1), [(0, 0), (0, 0)],
        dimension_numbers=dn, preferred_element_type=jnp.float32)
    s = _group_norm_nchw(s, gs, bts, groups)
    return h + s


# ----------------------------------------------------------------------------
# Deterministic synthetic parameters (PyTorch OIHW layout).
# ----------------------------------------------------------------------------
def make_params(key, in_channels, out_channels, n, ks):
    params = {"conv": [], "shortcut": None}
    cin = in_channels
    for _ in range(n):
        key, kw, kb, kg, kbt = jax.random.split(key, 5)
        w = jax.random.normal(kw, (out_channels, cin, ks, ks), jnp.float32) * 0.1
        b = jax.random.normal(kb, (out_channels,), jnp.float32) * 0.05
        g = 1.0 + 0.1 * jax.random.normal(kg, (out_channels,), jnp.float32)
        bt = 0.05 * jax.random.normal(kbt, (out_channels,), jnp.float32)
        params["conv"].append((w, b, g, bt))
        cin = out_channels
    key, kw, kg, kbt = jax.random.split(key, 4)
    ws = jax.random.normal(kw, (out_channels, in_channels, 1, 1), jnp.float32) * 0.1
    gs = 1.0 + 0.1 * jax.random.normal(kg, (out_channels,), jnp.float32)
    bts = 0.05 * jax.random.normal(kbt, (out_channels,), jnp.float32)
    params["shortcut"] = (ws, gs, bts)
    return params


# ----------------------------------------------------------------------------
if __name__ == "__main__":
    # Small shapes consistent with the module's forward pass.
    N, Cin, Cout, H, W = 2, 4, 8, 16, 16
    n_blocks, ks, pad, groups = 3, 3, 1, 4   # num_groups must divide Cout

    key = jax.random.PRNGKey(0)
    key, kx = jax.random.split(key)
    x = jax.random.normal(kx, (N, Cin, H, W), jnp.float32)   # NCHW like PyTorch
    params = make_params(key, Cin, Cout, n_blocks, ks)

    out = wide_resnet_block_forward(x, params, n=n_blocks, ks=ks, pad=pad,
                                    groups=groups)
    out = jax.block_until_ready(out)
    assert out.shape == (N, Cout, H, W), out.shape

    # (1) bf16-consistent reference (same recipe: bf16 MXU operands, f32 accum/GN/SiLU)
    ref_bf16 = reference_forward(x, params, n=n_blocks, ks=ks, pad=pad,
                                 groups=groups, mxu_dtype=MXU_DTYPE)
    err_bf16 = float(jnp.max(jnp.abs(out - ref_bf16)))
    assert err_bf16 < 1e-2, f"bf16-consistent max abs error {err_bf16}"

    # (2) full-f32 reference (module semantics); loose bound covers bf16 quantisation
    ref_f32 = reference_forward(x, params, n=n_blocks, ks=ks, pad=pad,
                                groups=groups, mxu_dtype=jnp.float32)
    err_f32 = float(jnp.max(jnp.abs(out - ref_f32)))
    assert err_f32 < 0.25, f"f32-reference max abs error {err_f32}"

    print("KERNEL_OK")
</pallas_src>

<mosaic_0001>
module attributes {stable_mosaic.version = 11 : i64} {
  func.func @_block_kernel(%arg0: i32, %arg1: memref<1x4x288xbf16, #tpu.memory_space<vmem>>, %arg2: memref<8x36xbf16, #tpu.memory_space<vmem>>, %arg3: memref<8x72xbf16, #tpu.memory_space<vmem>>, %arg4: memref<8x72xbf16, #tpu.memory_space<vmem>>, %arg5: memref<8x4xbf16, #tpu.memory_space<vmem>>, %arg6: memref<8x11xf32, #tpu.memory_space<vmem>>, %arg7: memref<8x8xf32, #tpu.memory_space<vmem>>, %arg8: memref<1x8x288xf32, #tpu.memory_space<vmem>>, %arg9: memref<8x327xbf16, #tpu.memory_space<vmem>>) attributes {dimension_semantics = [#tpu.dimension_semantics<parallel>], iteration_bounds = array<i64: 2>, scalar_prefetch = 0 : i64, scratch_operands = 1 : i64, tpu.core_type = #tpu.core_type<tc>, window_params = [{transform_indices = @transform_0, window_bounds = array<i64: 1, 4, 288>}, {pipeline_mode = #tpu.pipeline_mode<synchronous>, transform_indices = @transform_1, window_bounds = array<i64: 8, 36>}, {pipeline_mode = #tpu.pipeline_mode<synchronous>, transform_indices = @transform_2, window_bounds = array<i64: 8, 72>}, {pipeline_mode = #tpu.pipeline_mode<synchronous>, transform_indices = @transform_3, window_bounds = array<i64: 8, 72>}, {pipeline_mode = #tpu.pipeline_mode<synchronous>, transform_indices = @transform_4, window_bounds = array<i64: 8, 4>}, {pipeline_mode = #tpu.pipeline_mode<synchronous>, transform_indices = @transform_5, window_bounds = array<i64: 8, 11>}, {pipeline_mode = #tpu.pipeline_mode<synchronous>, transform_indices = @transform_6, window_bounds = array<i64: 8, 8>}, {transform_indices = @transform_7, window_bounds = array<i64: 1, 8, 288>}]} {
    %0 = tpu.iota {dimensions = array<i32: 1>} : vector<1x288xi32>
    %c18_i32 = arith.constant 18 : i32
    %c0_i32 = arith.constant 0 : i32
    %1 = arith.cmpi eq, %c18_i32, %c0_i32 : i32
    %c1_i32 = arith.constant 1 : i32
    %2 = arith.select %1, %c1_i32, %c18_i32 : i32
    %3 = vector.broadcast %2 : i32 to vector<1x288xi32>
    %4 = arith.remsi %0, %3 : vector<1x288xi32>
    %c0_i32_0 = arith.constant 0 : i32
    %5 = vector.broadcast %c0_i32_0 : i32 to vector<1x288xi32>
    %6 = arith.cmpi ne, %4, %5 : vector<1x288xi32>
    %c0_i32_1 = arith.constant 0 : i32
    %7 = vector.broadcast %c0_i32_1 : i32 to vector<1x288xi32>
    %8 = arith.cmpi slt, %4, %7 : vector<1x288xi32>
    %c0_i32_2 = arith.constant 0 : i32
    %9 = arith.cmpi slt, %2, %c0_i32_2 : i32
    %10 = vector.broadcast %9 : i1 to vector<1x288xi1>
    %11 = vector.broadcast %10 : vector<1x288xi1> to vector<1x288xi1>
    %12 = arith.xori %8, %11 : vector<1x288xi1>
    %13 = arith.andi %12, %6 : vector<1x288xi1>
    %14 = vector.broadcast %2 : i32 to vector<1x288xi32>
    %15 = arith.addi %4, %14 : vector<1x288xi32>
    %16 = arith.select %13, %15, %4 : vector<1x288xi1>, vector<1x288xi32>
    %c16_i32 = arith.constant 16 : i32
    %17 = vector.broadcast %c16_i32 : i32 to vector<1x288xi32>
    %18 = arith.cmpi slt, %16, %17 : vector<1x288xi32>
    %19 = arith.extui %18 : vector<1x288xi1> to vector<1x288xi32>
    %20 = arith.sitofp %19 : vector<1x288xi32> to vector<1x288xf32>
    %cst = arith.constant 0.000000e+00 : bf16
    %21 = vector.broadcast %cst : bf16 to vector<8x19xbf16>
    %c0 = arith.constant 0 : index
    %c0_3 = arith.constant 0 : index
    %22 = vector.load %arg9[%c0, %c0_3] : memref<8x327xbf16, #tpu.memory_space<vmem>>, vector<8x19xbf16>
    tpu.vector_store %arg9[%c0, %c0_3], %21 {strides = array<i32>} : memref<8x327xbf16, #tpu.memory_space<vmem>>, vector<8x19xbf16>,
    %cst_4 = arith.constant 0.000000e+00 : bf16
    %23 = vector.broadcast %cst_4 : bf16 to vector<8x20xbf16>
    %c0_5 = arith.constant 0 : index
    %c307 = arith.constant 307 : index
    %24 = vector.load %arg9[%c0_5, %c307] : memref<8x327xbf16, #tpu.memory_space<vmem>>, vector<8x20xbf16>
    tpu.vector_store %arg9[%c0_5, %c307], %23 {strides = array<i32>} : memref<8x327xbf16, #tpu.memory_space<vmem>>, vector<8x20xbf16>,
    %c0_6 = arith.constant 0 : index
    %c0_7 = arith.constant 0 : index
    %c0_8 = arith.constant 0 : index
    %25 = vector.load %arg1[%c0_6, %c0_7, %c0_8] : memref<1x4x288xbf16, #tpu.memory_space<vmem>>, vector<1x4x288xbf16>
    %26 = vector.shape_cast %25 : vector<1x4x288xbf16> to vector<4x288xbf16>
    %c0_9 = arith.constant 0 : index
    %c19 = arith.constant 19 : index
    %27 = vector.load %arg9[%c0_9, %c19] : memref<8x327xbf16, #tpu.memory_space<vmem>>, vector<4x288xbf16>
    tpu.vector_store %arg9[%c0_9, %c19], %26 {strides = array<i32>} : memref<8x327xbf16, #tpu.memory_space<vmem>>, vector<4x288xbf16>,
    %c0_10 = arith.constant 0 : index
    %c0_11 = arith.constant 0 : index
    %28 = vector.load %arg2[%c0_10, %c0_11] : memref<8x36xbf16, #tpu.memory_space<vmem>>, vector<8x4xbf16>
    %c0_12 = arith.constant 0 : index
    %c0_13 = arith.constant 0 : index
    %29 = vector.load %arg9[%c0_12, %c0_13] : memref<8x327xbf16, #tpu.memory_space<vmem>>, vector<4x288xbf16>
    %cst_14 = arith.constant dense<0.000000e+00> : vector<8x288xf32>
    %30 = tpu.matmul %28, %29, %cst_14 {dimension_numbers = #tpu.dot_dimension_numbers<[1], [0], [0], [1], [0, 0, 1, 1], [], []>} : vector<8x4xbf16>, vector<4x288xbf16>, vector<8x288xf32> -> vector<8x288xf32>
    %c0_15 = arith.constant 0 : index
    %c4 = arith.constant 4 : index
    %31 = vector.load %arg2[%c0_15, %c4] : memref<8x36xbf16, #tpu.memory_space<vmem>>, vector<8x4xbf16>
    %c0_16 = arith.constant 0 : index
    %c1 = arith.constant 1 : index
    %32 = vector.load %arg9[%c0_16, %c1] : memref<8x327xbf16, #tpu.memory_space<vmem>>, vector<4x288xbf16>
    %cst_17 = arith.constant dense<0.000000e+00> : vector<8x288xf32>
    %33 = tpu.matmul %31, %32, %cst_17 {dimension_numbers = #tpu.dot_dimension_numbers<[1], [0], [0], [1], [0, 0, 1, 1], [], []>} : vector<8x4xbf16>, vector<4x288xbf16>, vector<8x288xf32> -> vector<8x288xf32>
    %34 = arith.addf %30, %33 : vector<8x288xf32>
    %c0_18 = arith.constant 0 : index
    %c8 = arith.constant 8 : index
    %35 = vector.load %arg2[%c0_18, %c8] : memref<8x36xbf16, #tpu.memory_space<vmem>>, vector<8x4xbf16>
    %c0_19 = arith.constant 0 : index
    %c2 = arith.constant 2 : index
    %36 = vector.load %arg9[%c0_19, %c2] : memref<8x327xbf16, #tpu.memory_space<vmem>>, vector<4x288xbf16>
    %cst_20 = arith.constant dense<0.000000e+00> : vector<8x288xf32>
    %37 = tpu.matmul %35, %36, %cst_20 {dimension_numbers = #tpu.dot_dimension_numbers<[1], [0], [0], [1], [0, 0, 1, 1], [], []>} : vector<8x4xbf16>, vector<4x288xbf16>, vector<8x288xf32> -> vector<8x288xf32>
    %38 = arith.addf %34, %37 : vector<8x288xf32>
    %c0_21 = arith.constant 0 : index
    %c12 = arith.constant 12 : index
    %39 = vector.load %arg2[%c0_21, %c12] : memref<8x36xbf16, #tpu.memory_space<vmem>>, vector<8x4xbf16>
    %c0_22 = arith.constant 0 : index
    %c18 = arith.constant 18 : index
    %40 = vector.load %arg9[%c0_22, %c18] : memref<8x327xbf16, #tpu.memory_space<vmem>>, vector<4x288xbf16>
    %cst_23 = arith.constant dense<0.000000e+00> : vector<8x288xf32>
    %41 = tpu.matmul %39, %40, %cst_23 {dimension_numbers = #tpu.dot_dimension_numbers<[1], [0], [0], [1], [0, 0, 1, 1], [], []>} : vector<8x4xbf16>, vector<4x288xbf16>, vector<8x288xf32> -> vector<8x288xf32>
    %42 = arith.addf %38, %41 : vector<8x288xf32>
    %c0_24 = arith.constant 0 : index
    %c16 = arith.constant 16 : index
    %43 = vector.load %arg2[%c0_24, %c16] : memref<8x36xbf16, #tpu.memory_space<vmem>>, vector<8x4xbf16>
    %c0_25 = arith.constant 0 : index
    %c19_26 = arith.constant 19 : index
    %44 = vector.load %arg9[%c0_25, %c19_26] : memref<8x327xbf16, #tpu.memory_space<vmem>>, vector<4x288xbf16>
    %cst_27 = arith.constant dense<0.000000e+00> : vector<8x288xf32>
    %45 = tpu.matmul %43, %44, %cst_27 {dimension_numbers = #tpu.dot_dimension_numbers<[1], [0], [0], [1], [0, 0, 1, 1], [], []>} : vector<8x4xbf16>, vector<4x288xbf16>, vector<8x288xf32> -> vector<8x288xf32>
    %46 = arith.addf %42, %45 : vector<8x288xf32>
    %c0_28 = arith.constant 0 : index
    %c20 = arith.constant 20 : index
    %47 = vector.load %arg2[%c0_28, %c20] : memref<8x36xbf16, #tpu.memory_space<vmem>>, vector<8x4xbf16>
    %c0_29 = arith.constant 0 : index
    %c20_30 = arith.constant 20 : index
    %48 = vector.load %arg9[%c0_29, %c20_30] : memref<8x327xbf16, #tpu.memory_space<vmem>>, vector<4x288xbf16>
    %cst_31 = arith.constant dense<0.000000e+00> : vector<8x288xf32>
    %49 = tpu.matmul %47, %48, %cst_31 {dimension_numbers = #tpu.dot_dimension_numbers<[1], [0], [0], [1], [0, 0, 1, 1], [], []>} : vector<8x4xbf16>, vector<4x288xbf16>, vector<8x288xf32> -> vector<8x288xf32>
    %50 = arith.addf %46, %49 : vector<8x288xf32>
    %c0_32 = arith.constant 0 : index
    %c24 = arith.constant 24 : index
    %51 = vector.load %arg2[%c0_32, %c24] : memref<8x36xbf16, #tpu.memory_space<vmem>>, vector<8x4xbf16>
    %c0_33 = arith.constant 0 : index
    %c36 = arith.constant 36 : index
    %52 = vector.load %arg9[%c0_33, %c36] : memref<8x327xbf16, #tpu.memory_space<vmem>>, vector<4x288xbf16>
    %cst_34 = arith.constant dense<0.000000e+00> : vector<8x288xf32>
    %53 = tpu.matmul %51, %52, %cst_34 {dimension_numbers = #tpu.dot_dimension_numbers<[1], [0], [0], [1], [0, 0, 1, 1], [], []>} : vector<8x4xbf16>, vector<4x288xbf16>, vector<8x288xf32> -> vector<8x288xf32>
    %54 = arith.addf %50, %53 : vector<8x288xf32>
    %c0_35 = arith.constant 0 : index
    %c28 = arith.constant 28 : index
    %55 = vector.load %arg2[%c0_35, %c28] : memref<8x36xbf16, #tpu.memory_space<vmem>>, vector<8x4xbf16>
    %c0_36 = arith.constant 0 : index
    %c37 = arith.constant 37 : index
    %56 = vector.load %arg9[%c0_36, %c37] : memref<8x327xbf16, #tpu.memory_space<vmem>>, vector<4x288xbf16>
    %cst_37 = arith.constant dense<0.000000e+00> : vector<8x288xf32>
    %57 = tpu.matmul %55, %56, %cst_37 {dimension_numbers = #tpu.dot_dimension_numbers<[1], [0], [0], [1], [0, 0, 1, 1], [], []>} : vector<8x4xbf16>, vector<4x288xbf16>, vector<8x288xf32> -> vector<8x288xf32>
    %58 = arith.addf %54, %57 : vector<8x288xf32>
    %c0_38 = arith.constant 0 : index
    %c32 = arith.constant 32 : index
    %59 = vector.load %arg2[%c0_38, %c32] : memref<8x36xbf16, #tpu.memory_space<vmem>>, vector<8x4xbf16>
    %c0_39 = arith.constant 0 : index
    %c38 = arith.constant 38 : index
    %60 = vector.load %arg9[%c0_39, %c38] : memref<8x327xbf16, #tpu.memory_space<vmem>>, vector<4x288xbf16>
    %cst_40 = arith.constant dense<0.000000e+00> : vector<8x288xf32>
    %61 = tpu.matmul %59, %60, %cst_40 {dimension_numbers = #tpu.dot_dimension_numbers<[1], [0], [0], [1], [0, 0, 1, 1], [], []>} : vector<8x4xbf16>, vector<4x288xbf16>, vector<8x288xf32> -> vector<8x288xf32>
    %62 = arith.addf %58, %61 : vector<8x288xf32>
    %c0_41 = arith.constant 0 : index
    %c0_42 = arith.constant 0 : index
    %63 = vector.load %arg6[%c0_41, %c0_42] : memref<8x11xf32, #tpu.memory_space<vmem>>, vector<8x1xf32>
    %c0_43 = arith.constant 0 : index
    %c1_44 = arith.constant 1 : index
    %64 = vector.load %arg6[%c0_43, %c1_44] : memref<8x11xf32, #tpu.memory_space<vmem>>, vector<8x1xf32>
    %c0_45 = arith.constant 0 : index
    %c2_46 = arith.constant 2 : index
    %65 = vector.load %arg6[%c0_45, %c2_46] : memref<8x11xf32, #tpu.memory_space<vmem>>, vector<8x1xf32>
    %66 = vector.broadcast %20 : vector<1x288xf32> to vector<8x288xf32>
    %67 = arith.mulf %62, %66 : vector<8x288xf32>
    %cst_47 = arith.constant dense<0.000000e+00> : vector<8xf32>
    %68 = vector.multi_reduction <add>, %67, %cst_47 [1] : vector<8x288xf32> to vector<8xf32>
    %69 = vector.shape_cast %68 : vector<8xf32> to vector<8x1xf32>
    %70 = arith.mulf %67, %62 : vector<8x288xf32>
    %cst_48 = arith.constant dense<0.000000e+00> : vector<8xf32>
    %71 = vector.multi_reduction <add>, %70, %cst_48 [1] : vector<8x288xf32> to vector<8xf32>
    %72 = vector.shape_cast %71 : vector<8xf32> to vector<8x1xf32>
    %cst_49 = arith.constant 2.000000e+00 : f32
    %73 = vector.broadcast %cst_49 : f32 to vector<8x1xf32>
    %74 = arith.mulf %73, %63 : vector<8x1xf32>
    %75 = arith.mulf %74, %69 : vector<8x1xf32>
    %76 = arith.addf %72, %75 : vector<8x1xf32>
    %77 = arith.mulf %63, %63 : vector<8x1xf32>
    %cst_50 = arith.constant 2.560000e+02 : f32
    %78 = vector.broadcast %cst_50 : f32 to vector<8x1xf32>
    %79 = arith.mulf %78, %77 : vector<8x1xf32>
    %80 = arith.addf %76, %79 : vector<8x1xf32>
    %cst_51 = arith.constant 2.560000e+02 : f32
    %81 = vector.broadcast %cst_51 : f32 to vector<8x1xf32>
    %82 = arith.mulf %81, %63 : vector<8x1xf32>
    %83 = arith.addf %69, %82 : vector<8x1xf32>
    %84 = tpu.concatenate %83, %80 in 1 : vector<8x1xf32>, vector<8x1xf32> -> vector<8x2xf32>
    %c0_52 = arith.constant 0 : index
    %c0_53 = arith.constant 0 : index
    %85 = vector.load %arg7[%c0_52, %c0_53] : memref<8x8xf32, #tpu.memory_space<vmem>>, vector<8x8xf32>
    %cst_54 = arith.constant dense<0.000000e+00> : vector<8x2xf32>
    %86 = tpu.matmul %85, %84, %cst_54 {dimension_numbers = #tpu.dot_dimension_numbers<[1], [0], [0], [1], [0, 0, 1, 1], [], []>} : vector<8x8xf32>, vector<8x2xf32>, vector<8x2xf32> -> vector<8x2xf32>
    %cst_55 = arith.constant 0.001953125 : f32
    %87 = vector.broadcast %cst_55 : f32 to vector<8x2xf32>
    %88 = arith.mulf %86, %87 : vector<8x2xf32>
    %89 = vector.extract_strided_slice %88 {offsets = [0, 0], sizes = [8, 1], strides = [1, 1]} : vector<8x2xf32> to vector<8x1xf32>
    %90 = vector.extract_strided_slice %88 {offsets = [0, 1], sizes = [8, 1], strides = [1, 1]} : vector<8x2xf32> to vector<8x1xf32>
    %91 = arith.mulf %89, %89 : vector<8x1xf32>
    %92 = arith.subf %90, %91 : vector<8x1xf32>
    %cst_56 = arith.constant 9.99999974E-6 : f32
    %93 = vector.broadcast %cst_56 : f32 to vector<8x1xf32>
    %94 = arith.addf %92, %93 : vector<8x1xf32>
    %95 = math.rsqrt %94 : vector<8x1xf32>
    %96 = arith.mulf %64, %95 : vector<8x1xf32>
    %97 = arith.subf %63, %89 : vector<8x1xf32>
    %98 = arith.mulf %97, %96 : vector<8x1xf32>
    %99 = arith.addf %65, %98 : vector<8x1xf32>
    %100 = vector.broadcast %96 : vector<8x1xf32> to vector<8x288xf32>
    %101 = arith.mulf %62, %100 : vector<8x288xf32>
    %102 = vector.broadcast %99 : vector<8x1xf32> to vector<8x288xf32>
    %103 = arith.addf %101, %102 : vector<8x288xf32>
    %104 = arith.negf %103 : vector<8x288xf32>
    %105 = math.exp %104 : vector<8x288xf32>
    %cst_57 = arith.constant 1.000000e+00 : f32
    %106 = vector.broadcast %cst_57 : f32 to vector<8x288xf32>
    %107 = arith.addf %106, %105 : vector<8x288xf32>
    %108 = arith.divf %106, %107 : vector<8x288xf32>
    %109 = arith.mulf %103, %108 : vector<8x288xf32>
    %110 = vector.broadcast %20 : vector<1x288xf32> to vector<8x288xf32>
    %111 = arith.mulf %109, %110 : vector<8x288xf32>
    %112 = arith.truncf %111 : vector<8x288xf32> to vector<8x288xbf16>
    %c0_58 = arith.constant 0 : index
    %c19_59 = arith.constant 19 : index
    %113 = vector.load %arg9[%c0_58, %c19_59] : memref<8x327xbf16, #tpu.memory_space<vmem>>, vector<8x288xbf16>
    tpu.vector_store %arg9[%c0_58, %c19_59], %112 {strides = array<i32>} : memref<8x327xbf16, #tpu.memory_space<vmem>>, vector<8x288xbf16>,
    %c0_60 = arith.constant 0 : index
    %c0_61 = arith.constant 0 : index
    %114 = vector.load %arg3[%c0_60, %c0_61] : memref<8x72xbf16, #tpu.memory_space<vmem>>, vector<8x8xbf16>
    %c0_62 = arith.constant 0 : index
    %c0_63 = arith.constant 0 : index
    %115 = vector.load %arg9[%c0_62, %c0_63] : memref<8x327xbf16, #tpu.memory_space<vmem>>, vector<8x288xbf16>
    %cst_64 = arith.constant dense<0.000000e+00> : vector<8x288xf32>
    %116 = tpu.matmul %114, %115, %cst_64 {dimension_numbers = #tpu.dot_dimension_numbers<[1], [0], [0], [1], [0, 0, 1, 1], [], []>} : vector<8x8xbf16>, vector<8x288xbf16>, vector<8x288xf32> -> vector<8x288xf32>
    %c0_65 = arith.constant 0 : index
    %c8_66 = arith.constant 8 : index
    %117 = vector.load %arg3[%c0_65, %c8_66] : memref<8x72xbf16, #tpu.memory_space<vmem>>, vector<8x8xbf16>
    %c0_67 = arith.constant 0 : index
    %c1_68 = arith.constant 1 : index
    %118 = vector.load %arg9[%c0_67, %c1_68] : memref<8x327xbf16, #tpu.memory_space<vmem>>, vector<8x288xbf16>
    %cst_69 = arith.constant dense<0.000000e+00> : vector<8x288xf32>
    %119 = tpu.matmul %117, %118, %cst_69 {dimension_numbers = #tpu.dot_dimension_numbers<[1], [0], [0], [1], [0, 0, 1, 1], [], []>} : vector<8x8xbf16>, vector<8x288xbf16>, vector<8x288xf32> -> vector<8x288xf32>
    %120 = arith.addf %116, %119 : vector<8x288xf32>
    %c0_70 = arith.constant 0 : index
    %c16_71 = arith.constant 16 : index
    %121 = vector.load %arg3[%c0_70, %c16_71] : memref<8x72xbf16, #tpu.memory_space<vmem>>, vector<8x8xbf16>
    %c0_72 = arith.constant 0 : index
    %c2_73 = arith.constant 2 : index
    %122 = vector.load %arg9[%c0_72, %c2_73] : memref<8x327xbf16, #tpu.memory_space<vmem>>, vector<8x288xbf16>
    %cst_74 = arith.constant dense<0.000000e+00> : vector<8x288xf32>
    %123 = tpu.matmul %121, %122, %cst_74 {dimension_numbers = #tpu.dot_dimension_numbers<[1], [0], [0], [1], [0, 0, 1, 1], [], []>} : vector<8x8xbf16>, vector<8x288xbf16>, vector<8x288xf32> -> vector<8x288xf32>
    %124 = arith.addf %120, %123 : vector<8x288xf32>
    %c0_75 = arith.constant 0 : index
    %c24_76 = arith.constant 24 : index
    %125 = vector.load %arg3[%c0_75, %c24_76] : memref<8x72xbf16, #tpu.memory_space<vmem>>, vector<8x8xbf16>
    %c0_77 = arith.constant 0 : index
    %c18_78 = arith.constant 18 : index
    %126 = vector.load %arg9[%c0_77, %c18_78] : memref<8x327xbf16, #tpu.memory_space<vmem>>, vector<8x288xbf16>
    %cst_79 = arith.constant dense<0.000000e+00> : vector<8x288xf32>
    %127 = tpu.matmul %125, %126, %cst_79 {dimension_numbers = #tpu.dot_dimension_numbers<[1], [0], [0], [1], [0, 0, 1, 1], [], []>} : vector<8x8xbf16>, vector<8x288xbf16>, vector<8x288xf32> -> vector<8x288xf32>
    %128 = arith.addf %124, %127 : vector<8x288xf32>
    %c0_80 = arith.constant 0 : index
    %c32_81 = arith.constant 32 : index
    %129 = vector.load %arg3[%c0_80, %c32_81] : memref<8x72xbf16, #tpu.memory_space<vmem>>, vector<8x8xbf16>
    %c0_82 = arith.constant 0 : index
    %c19_83 = arith.constant 19 : index
    %130 = vector.load %arg9[%c0_82, %c19_83] : memref<8x327xbf16, #tpu.memory_space<vmem>>, vector<8x288xbf16>
    %cst_84 = arith.constant dense<0.000000e+00> : vector<8x288xf32>
    %131 = tpu.matmul %129, %130, %cst_84 {dimension_numbers = #tpu.dot_dimension_numbers<[1], [0], [0], [1], [0, 0, 1, 1], [], []>} : vector<8x8xbf16>, vector<8x288xbf16>, vector<8x288xf32> -> vector<8x288xf32>
    %132 = arith.addf %128, %131 : vector<8x288xf32>
    %c0_85 = arith.constant 0 : index
    %c40 = arith.constant 40 : index
    %133 = vector.load %arg3[%c0_85, %c40] : memref<8x72xbf16, #tpu.memory_space<vmem>>, vector<8x8xbf16>
    %c0_86 = arith.constant 0 : index
    %c20_87 = arith.constant 20 : index
    %134 = vector.load %arg9[%c0_86, %c20_87] : memref<8x327xbf16, #tpu.memory_space<vmem>>, vector<8x288xbf16>
    %cst_88 = arith.constant dense<0.000000e+00> : vector<8x288xf32>
    %135 = tpu.matmul %133, %134, %cst_88 {dimension_numbers = #tpu.dot_dimension_numbers<[1], [0], [0], [1], [0, 0, 1, 1], [], []>} : vector<8x8xbf16>, vector<8x288xbf16>, vector<8x288xf32> -> vector<8x288xf32>
    %136 = arith.addf %132, %135 : vector<8x288xf32>
    %c0_89 = arith.constant 0 : index
    %c48 = arith.constant 48 : index
    %137 = vector.load %arg3[%c0_89, %c48] : memref<8x72xbf16, #tpu.memory_space<vmem>>, vector<8x8xbf16>
    %c0_90 = arith.constant 0 : index
    %c36_91 = arith.constant 36 : index
    %138 = vector.load %arg9[%c0_90, %c36_91] : memref<8x327xbf16, #tpu.memory_space<vmem>>, vector<8x288xbf16>
    %cst_92 = arith.constant dense<0.000000e+00> : vector<8x288xf32>
    %139 = tpu.matmul %137, %138, %cst_92 {dimension_numbers = #tpu.dot_dimension_numbers<[1], [0], [0], [1], [0, 0, 1, 1], [], []>} : vector<8x8xbf16>, vector<8x288xbf16>, vector<8x288xf32> -> vector<8x288xf32>
    %140 = arith.addf %136, %139 : vector<8x288xf32>
    %c0_93 = arith.constant 0 : index
    %c56 = arith.constant 56 : index
    %141 = vector.load %arg3[%c0_93, %c56] : memref<8x72xbf16, #tpu.memory_space<vmem>>, vector<8x8xbf16>
    %c0_94 = arith.constant 0 : index
    %c37_95 = arith.constant 37 : index
    %142 = vector.load %arg9[%c0_94, %c37_95] : memref<8x327xbf16, #tpu.memory_space<vmem>>, vector<8x288xbf16>
    %cst_96 = arith.constant dense<0.000000e+00> : vector<8x288xf32>
    %143 = tpu.matmul %141, %142, %cst_96 {dimension_numbers = #tpu.dot_dimension_numbers<[1], [0], [0], [1], [0, 0, 1, 1], [], []>} : vector<8x8xbf16>, vector<8x288xbf16>, vector<8x288xf32> -> vector<8x288xf32>
    %144 = arith.addf %140, %143 : vector<8x288xf32>
    %c0_97 = arith.constant 0 : index
    %c64 = arith.constant 64 : index
    %145 = vector.load %arg3[%c0_97, %c64] : memref<8x72xbf16, #tpu.memory_space<vmem>>, vector<8x8xbf16>
    %c0_98 = arith.constant 0 : index
    %c38_99 = arith.constant 38 : index
    %146 = vector.load %arg9[%c0_98, %c38_99] : memref<8x327xbf16, #tpu.memory_space<vmem>>, vector<8x288xbf16>
    %cst_100 = arith.constant dense<0.000000e+00> : vector<8x288xf32>
    %147 = tpu.matmul %145, %146, %cst_100 {dimension_numbers = #tpu.dot_dimension_numbers<[1], [0], [0], [1], [0, 0, 1, 1], [], []>} : vector<8x8xbf16>, vector<8x288xbf16>, vector<8x288xf32> -> vector<8x288xf32>
    %148 = arith.addf %144, %147 : vector<8x288xf32>
    %c0_101 = arith.constant 0 : index
    %c3 = arith.constant 3 : index
    %149 = vector.load %arg6[%c0_101, %c3] : memref<8x11xf32, #tpu.memory_space<vmem>>, vector<8x1xf32>
    %c0_102 = arith.constant 0 : index
    %c4_103 = arith.constant 4 : index
    %150 = vector.load %arg6[%c0_102, %c4_103] : memref<8x11xf32, #tpu.memory_space<vmem>>, vector<8x1xf32>
    %c0_104 = arith.constant 0 : index
    %c5 = arith.constant 5 : index
    %151 = vector.load %arg6[%c0_104, %c5] : memref<8x11xf32, #tpu.memory_space<vmem>>, vector<8x1xf32>
    %152 = vector.broadcast %20 : vector<1x288xf32> to vector<8x288xf32>
    %153 = arith.mulf %148, %152 : vector<8x288xf32>
    %cst_105 = arith.constant dense<0.000000e+00> : vector<8xf32>
    %154 = vector.multi_reduction <add>, %153, %cst_105 [1] : vector<8x288xf32> to vector<8xf32>
    %155 = vector.shape_cast %154 : vector<8xf32> to vector<8x1xf32>
    %156 = arith.mulf %153, %148 : vector<8x288xf32>
    %cst_106 = arith.constant dense<0.000000e+00> : vector<8xf32>
    %157 = vector.multi_reduction <add>, %156, %cst_106 [1] : vector<8x288xf32> to vector<8xf32>
    %158 = vector.shape_cast %157 : vector<8xf32> to vector<8x1xf32>
    %cst_107 = arith.constant 2.000000e+00 : f32
    %159 = vector.broadcast %cst_107 : f32 to vector<8x1xf32>
    %160 = arith.mulf %159, %149 : vector<8x1xf32>
    %161 = arith.mulf %160, %155 : vector<8x1xf32>
    %162 = arith.addf %158, %161 : vector<8x1xf32>
    %163 = arith.mulf %149, %149 : vector<8x1xf32>
    %cst_108 = arith.constant 2.560000e+02 : f32
    %164 = vector.broadcast %cst_108 : f32 to vector<8x1xf32>
    %165 = arith.mulf %164, %163 : vector<8x1xf32>
    %166 = arith.addf %162, %165 : vector<8x1xf32>
    %cst_109 = arith.constant 2.560000e+02 : f32
    %167 = vector.broadcast %cst_109 : f32 to vector<8x1xf32>
    %168 = arith.mulf %167, %149 : vector<8x1xf32>
    %169 = arith.addf %155, %168 : vector<8x1xf32>
    %170 = tpu.concatenate %169, %166 in 1 : vector<8x1xf32>, vector<8x1xf32> -> vector<8x2xf32>
    %c0_110 = arith.constant 0 : index
    %c0_111 = arith.constant 0 : index
    %171 = vector.load %arg7[%c0_110, %c0_111] : memref<8x8xf32, #tpu.memory_space<vmem>>, vector<8x8xf32>
    %cst_112 = arith.constant dense<0.000000e+00> : vector<8x2xf32>
    %172 = tpu.matmul %171, %170, %cst_112 {dimension_numbers = #tpu.dot_dimension_numbers<[1], [0], [0], [1], [0, 0, 1, 1], [], []>} : vector<8x8xf32>, vector<8x2xf32>, vector<8x2xf32> -> vector<8x2xf32>
    %cst_113 = arith.constant 0.001953125 : f32
    %173 = vector.broadcast %cst_113 : f32 to vector<8x2xf32>
    %174 = arith.mulf %172, %173 : vector<8x2xf32>
    %175 = vector.extract_strided_slice %174 {offsets = [0, 0], sizes = [8, 1], strides = [1, 1]} : vector<8x2xf32> to vector<8x1xf32>
    %176 = vector.extract_strided_slice %174 {offsets = [0, 1], sizes = [8, 1], strides = [1, 1]} : vector<8x2xf32> to vector<8x1xf32>
    %177 = arith.mulf %175, %175 : vector<8x1xf32>
    %178 = arith.subf %176, %177 : vector<8x1xf32>
    %cst_114 = arith.constant 9.99999974E-6 : f32
    %179 = vector.broadcast %cst_114 : f32 to vector<8x1xf32>
    %180 = arith.addf %178, %179 : vector<8x1xf32>
    %181 = math.rsqrt %180 : vector<8x1xf32>
    %182 = arith.mulf %150, %181 : vector<8x1xf32>
    %183 = arith.subf %149, %175 : vector<8x1xf32>
    %184 = arith.mulf %183, %182 : vector<8x1xf32>
    %185 = arith.addf %151, %184 : vector<8x1xf32>
    %186 = vector.broadcast %182 : vector<8x1xf32> to vector<8x288xf32>
    %187 = arith.mulf %148, %186 : vector<8x288xf32>
    %188 = vector.broadcast %185 : vector<8x1xf32> to vector<8x288xf32>
    %189 = arith.addf %187, %188 : vector<8x288xf32>
    %190 = arith.negf %189 : vector<8x288xf32>
    %191 = math.exp %190 : vector<8x288xf32>
    %cst_115 = arith.constant 1.000000e+00 : f32
    %192 = vector.broadcast %cst_115 : f32 to vector<8x288xf32>
    %193 = arith.addf %192, %191 : vector<8x288xf32>
    %194 = arith.divf %192, %193 : vector<8x288xf32>
    %195 = arith.mulf %189, %194 : vector<8x288xf32>
    %196 = vector.broadcast %20 : vector<1x288xf32> to vector<8x288xf32>
    %197 = arith.mulf %195, %196 : vector<8x288xf32>
    %198 = arith.truncf %197 : vector<8x288xf32> to vector<8x288xbf16>
    %c0_116 = arith.constant 0 : index
    %c19_117 = arith.constant 19 : index
    %199 = vector.load %arg9[%c0_116, %c19_117] : memref<8x327xbf16, #tpu.memory_space<vmem>>, vector<8x288xbf16>
    tpu.vector_store %arg9[%c0_116, %c19_117], %198 {strides = array<i32>} : memref<8x327xbf16, #tpu.memory_space<vmem>>, vector<8x288xbf16>,
    %c0_118 = arith.constant 0 : index
    %c0_119 = arith.constant 0 : index
    %200 = vector.load %arg4[%c0_118, %c0_119] : memref<8x72xbf16, #tpu.memory_space<vmem>>, vector<8x8xbf16>
    %c0_120 = arith.constant 0 : index
    %c0_121 = arith.constant 0 : index
    %201 = vector.load %arg9[%c0_120, %c0_121] : memref<8x327xbf16, #tpu.memory_space<vmem>>, vector<8x288xbf16>
    %cst_122 = arith.constant dense<0.000000e+00> : vector<8x288xf32>
    %202 = tpu.matmul %200, %201, %cst_122 {dimension_numbers = #tpu.dot_dimension_numbers<[1], [0], [0], [1], [0, 0, 1, 1], [], []>} : vector<8x8xbf16>, vector<8x288xbf16>, vector<8x288xf32> -> vector<8x288xf32>
    %c0_123 = arith.constant 0 : index
    %c8_124 = arith.constant 8 : index
    %203 = vector.load %arg4[%c0_123, %c8_124] : memref<8x72xbf16, #tpu.memory_space<vmem>>, vector<8x8xbf16>
    %c0_125 = arith.constant 0 : index
    %c1_126 = arith.constant 1 : index
    %204 = vector.load %arg9[%c0_125, %c1_126] : memref<8x327xbf16, #tpu.memory_space<vmem>>, vector<8x288xbf16>
    %cst_127 = arith.constant dense<0.000000e+00> : vector<8x288xf32>
    %205 = tpu.matmul %203, %204, %cst_127 {dimension_numbers = #tpu.dot_dimension_numbers<[1], [0], [0], [1], [0, 0, 1, 1], [], []>} : vector<8x8xbf16>, vector<8x288xbf16>, vector<8x288xf32> -> vector<8x288xf32>
    %206 = arith.addf %202, %205 : vector<8x288xf32>
    %c0_128 = arith.constant 0 : index
    %c16_129 = arith.constant 16 : index
    %207 = vector.load %arg4[%c0_128, %c16_129] : memref<8x72xbf16, #tpu.memory_space<vmem>>, vector<8x8xbf16>
    %c0_130 = arith.constant 0 : index
    %c2_131 = arith.constant 2 : index
    %208 = vector.load %arg9[%c0_130, %c2_131] : memref<8x327xbf16, #tpu.memory_space<vmem>>, vector<8x288xbf16>
    %cst_132 = arith.constant dense<0.000000e+00> : vector<8x288xf32>
    %209 = tpu.matmul %207, %208, %cst_132 {dimension_numbers = #tpu.dot_dimension_numbers<[1], [0], [0], [1], [0, 0, 1, 1], [], []>} : vector<8x8xbf16>, vector<8x288xbf16>, vector<8x288xf32> -> vector<8x288xf32>
    %210 = arith.addf %206, %209 : vector<8x288xf32>
    %c0_133 = arith.constant 0 : index
    %c24_134 = arith.constant 24 : index
    %211 = vector.load %arg4[%c0_133, %c24_134] : memref<8x72xbf16, #tpu.memory_space<vmem>>, vector<8x8xbf16>
    %c0_135 = arith.constant 0 : index
    %c18_136 = arith.constant 18 : index
    %212 = vector.load %arg9[%c0_135, %c18_136] : memref<8x327xbf16, #tpu.memory_space<vmem>>, vector<8x288xbf16>
    %cst_137 = arith.constant dense<0.000000e+00> : vector<8x288xf32>
    %213 = tpu.matmul %211, %212, %cst_137 {dimension_numbers = #tpu.dot_dimension_numbers<[1], [0], [0], [1], [0, 0, 1, 1], [], []>} : vector<8x8xbf16>, vector<8x288xbf16>, vector<8x288xf32> -> vector<8x288xf32>
    %214 = arith.addf %210, %213 : vector<8x288xf32>
    %c0_138 = arith.constant 0 : index
    %c32_139 = arith.constant 32 : index
    %215 = vector.load %arg4[%c0_138, %c32_139] : memref<8x72xbf16, #tpu.memory_space<vmem>>, vector<8x8xbf16>
    %c0_140 = arith.constant 0 : index
    %c19_141 = arith.constant 19 : index
    %216 = vector.load %arg9[%c0_140, %c19_141] : memref<8x327xbf16, #tpu.memory_space<vmem>>, vector<8x288xbf16>
    %cst_142 = arith.constant dense<0.000000e+00> : vector<8x288xf32>
    %217 = tpu.matmul %215, %216, %cst_142 {dimension_numbers = #tpu.dot_dimension_numbers<[1], [0], [0], [1], [0, 0, 1, 1], [], []>} : vector<8x8xbf16>, vector<8x288xbf16>, vector<8x288xf32> -> vector<8x288xf32>
    %218 = arith.addf %214, %217 : vector<8x288xf32>
    %c0_143 = arith.constant 0 : index
    %c40_144 = arith.constant 40 : index
    %219 = vector.load %arg4[%c0_143, %c40_144] : memref<8x72xbf16, #tpu.memory_space<vmem>>, vector<8x8xbf16>
    %c0_145 = arith.constant 0 : index
    %c20_146 = arith.constant 20 : index
    %220 = vector.load %arg9[%c0_145, %c20_146] : memref<8x327xbf16, #tpu.memory_space<vmem>>, vector<8x288xbf16>
    %cst_147 = arith.constant dense<0.000000e+00> : vector<8x288xf32>
    %221 = tpu.matmul %219, %220, %cst_147 {dimension_numbers = #tpu.dot_dimension_numbers<[1], [0], [0], [1], [0, 0, 1, 1], [], []>} : vector<8x8xbf16>, vector<8x288xbf16>, vector<8x288xf32> -> vector<8x288xf32>
    %222 = arith.addf %218, %221 : vector<8x288xf32>
    %c0_148 = arith.constant 0 : index
    %c48_149 = arith.constant 48 : index
    %223 = vector.load %arg4[%c0_148, %c48_149] : memref<8x72xbf16, #tpu.memory_space<vmem>>, vector<8x8xbf16>
    %c0_150 = arith.constant 0 : index
    %c36_151 = arith.constant 36 : index
    %224 = vector.load %arg9[%c0_150, %c36_151] : memref<8x327xbf16, #tpu.memory_space<vmem>>, vector<8x288xbf16>
    %cst_152 = arith.constant dense<0.000000e+00> : vector<8x288xf32>
    %225 = tpu.matmul %223, %224, %cst_152 {dimension_numbers = #tpu.dot_dimension_numbers<[1], [0], [0], [1], [0, 0, 1, 1], [], []>} : vector<8x8xbf16>, vector<8x288xbf16>, vector<8x288xf32> -> vector<8x288xf32>
    %226 = arith.addf %222, %225 : vector<8x288xf32>
    %c0_153 = arith.constant 0 : index
    %c56_154 = arith.constant 56 : index
    %227 = vector.load %arg4[%c0_153, %c56_154] : memref<8x72xbf16, #tpu.memory_space<vmem>>, vector<8x8xbf16>
    %c0_155 = arith.constant 0 : index
    %c37_156 = arith.constant 37 : index
    %228 = vector.load %arg9[%c0_155, %c37_156] : memref<8x327xbf16, #tpu.memory_space<vmem>>, vector<8x288xbf16>
    %cst_157 = arith.constant dense<0.000000e+00> : vector<8x288xf32>
    %229 = tpu.matmul %227, %228, %cst_157 {dimension_numbers = #tpu.dot_dimension_numbers<[1], [0], [0], [1], [0, 0, 1, 1], [], []>} : vector<8x8xbf16>, vector<8x288xbf16>, vector<8x288xf32> -> vector<8x288xf32>
    %230 = arith.addf %226, %229 : vector<8x288xf32>
    %c0_158 = arith.constant 0 : index
    %c64_159 = arith.constant 64 : index
    %231 = vector.load %arg4[%c0_158, %c64_159] : memref<8x72xbf16, #tpu.memory_space<vmem>>, vector<8x8xbf16>
    %c0_160 = arith.constant 0 : index
    %c38_161 = arith.constant 38 : index
    %232 = vector.load %arg9[%c0_160, %c38_161] : memref<8x327xbf16, #tpu.memory_space<vmem>>, vector<8x288xbf16>
    %cst_162 = arith.constant dense<0.000000e+00> : vector<8x288xf32>
    %233 = tpu.matmul %231, %232, %cst_162 {dimension_numbers = #tpu.dot_dimension_numbers<[1], [0], [0], [1], [0, 0, 1, 1], [], []>} : vector<8x8xbf16>, vector<8x288xbf16>, vector<8x288xf32> -> vector<8x288xf32>
    %234 = arith.addf %230, %233 : vector<8x288xf32>
    %c0_163 = arith.constant 0 : index
    %c6 = arith.constant 6 : index
    %235 = vector.load %arg6[%c0_163, %c6] : memref<8x11xf32, #tpu.memory_space<vmem>>, vector<8x1xf32>
    %c0_164 = arith.constant 0 : index
    %c7 = arith.constant 7 : index
    %236 = vector.load %arg6[%c0_164, %c7] : memref<8x11xf32, #tpu.memory_space<vmem>>, vector<8x1xf32>
    %c0_165 = arith.constant 0 : index
    %c8_166 = arith.constant 8 : index
    %237 = vector.load %arg6[%c0_165, %c8_166] : memref<8x11xf32, #tpu.memory_space<vmem>>, vector<8x1xf32>
    %238 = vector.broadcast %20 : vector<1x288xf32> to vector<8x288xf32>
    %239 = arith.mulf %234, %238 : vector<8x288xf32>
    %cst_167 = arith.constant dense<0.000000e+00> : vector<8xf32>
    %240 = vector.multi_reduction <add>, %239, %cst_167 [1] : vector<8x288xf32> to vector<8xf32>
    %241 = vector.shape_cast %240 : vector<8xf32> to vector<8x1xf32>
    %242 = arith.mulf %239, %234 : vector<8x288xf32>
    %cst_168 = arith.constant dense<0.000000e+00> : vector<8xf32>
    %243 = vector.multi_reduction <add>, %242, %cst_168 [1] : vector<8x288xf32> to vector<8xf32>
    %244 = vector.shape_cast %243 : vector<8xf32> to vector<8x1xf32>
    %cst_169 = arith.constant 2.000000e+00 : f32
    %245 = vector.broadcast %cst_169 : f32 to vector<8x1xf32>
    %246 = arith.mulf %245, %235 : vector<8x1xf32>
    %247 = arith.mulf %246, %241 : vector<8x1xf32>
    %248 = arith.addf %244, %247 : vector<8x1xf32>
    %249 = arith.mulf %235, %235 : vector<8x1xf32>
    %cst_170 = arith.constant 2.560000e+02 : f32
    %250 = vector.broadcast %cst_170 : f32 to vector<8x1xf32>
    %251 = arith.mulf %250, %249 : vector<8x1xf32>
    %252 = arith.addf %248, %251 : vector<8x1xf32>
    %cst_171 = arith.constant 2.560000e+02 : f32
    %253 = vector.broadcast %cst_171 : f32 to vector<8x1xf32>
    %254 = arith.mulf %253, %235 : vector<8x1xf32>
    %255 = arith.addf %241, %254 : vector<8x1xf32>
    %256 = tpu.concatenate %255, %252 in 1 : vector<8x1xf32>, vector<8x1xf32> -> vector<8x2xf32>
    %c0_172 = arith.constant 0 : index
    %c0_173 = arith.constant 0 : index
    %257 = vector.load %arg7[%c0_172, %c0_173] : memref<8x8xf32, #tpu.memory_space<vmem>>, vector<8x8xf32>
    %cst_174 = arith.constant dense<0.000000e+00> : vector<8x2xf32>
    %258 = tpu.matmul %257, %256, %cst_174 {dimension_numbers = #tpu.dot_dimension_numbers<[1], [0], [0], [1], [0, 0, 1, 1], [], []>} : vector<8x8xf32>, vector<8x2xf32>, vector<8x2xf32> -> vector<8x2xf32>
    %cst_175 = arith.constant 0.001953125 : f32
    %259 = vector.broadcast %cst_175 : f32 to vector<8x2xf32>
    %260 = arith.mulf %258, %259 : vector<8x2xf32>
    %261 = vector.extract_strided_slice %260 {offsets = [0, 0], sizes = [8, 1], strides = [1, 1]} : vector<8x2xf32> to vector<8x1xf32>
    %262 = vector.extract_strided_slice %260 {offsets = [0, 1], sizes = [8, 1], strides = [1, 1]} : vector<8x2xf32> to vector<8x1xf32>
    %263 = arith.mulf %261, %261 : vector<8x1xf32>
    %264 = arith.subf %262, %263 : vector<8x1xf32>
    %cst_176 = arith.constant 9.99999974E-6 : f32
    %265 = vector.broadcast %cst_176 : f32 to vector<8x1xf32>
    %266 = arith.addf %264, %265 : vector<8x1xf32>
    %267 = math.rsqrt %266 : vector<8x1xf32>
    %268 = arith.mulf %236, %267 : vector<8x1xf32>
    %269 = arith.subf %235, %261 : vector<8x1xf32>
    %270 = arith.mulf %269, %268 : vector<8x1xf32>
    %271 = arith.addf %237, %270 : vector<8x1xf32>
    %272 = vector.broadcast %268 : vector<8x1xf32> to vector<8x288xf32>
    %273 = arith.mulf %234, %272 : vector<8x288xf32>
    %274 = vector.broadcast %271 : vector<8x1xf32> to vector<8x288xf32>
    %275 = arith.addf %273, %274 : vector<8x288xf32>
    %276 = arith.negf %275 : vector<8x288xf32>
    %277 = math.exp %276 : vector<8x288xf32>
    %cst_177 = arith.constant 1.000000e+00 : f32
    %278 = vector.broadcast %cst_177 : f32 to vector<8x288xf32>
    %279 = arith.addf %278, %277 : vector<8x288xf32>
    %280 = arith.divf %278, %279 : vector<8x288xf32>
    %281 = arith.mulf %275, %280 : vector<8x288xf32>
    %c0_178 = arith.constant 0 : index
    %c0_179 = arith.constant 0 : index
    %282 = vector.load %arg5[%c0_178, %c0_179] : memref<8x4xbf16, #tpu.memory_space<vmem>>, vector<8x4xbf16>
    %c0_180 = arith.constant 0 : index
    %c0_181 = arith.constant 0 : index
    %c0_182 = arith.constant 0 : index
    %283 = vector.load %arg1[%c0_180, %c0_181, %c0_182] : memref<1x4x288xbf16, #tpu.memory_space<vmem>>, vector<1x4x288xbf16>
    %284 = vector.shape_cast %283 : vector<1x4x288xbf16> to vector<4x288xbf16>
    %cst_183 = arith.constant dense<0.000000e+00> : vector<8x288xf32>
    %285 = tpu.matmul %282, %284, %cst_183 {dimension_numbers = #tpu.dot_dimension_numbers<[1], [0], [0], [1], [0, 0, 1, 1], [], []>} : vector<8x4xbf16>, vector<4x288xbf16>, vector<8x288xf32> -> vector<8x288xf32>
    %c0_184 = arith.constant 0 : index
    %c9 = arith.constant 9 : index
    %286 = vector.load %arg6[%c0_184, %c9] : memref<8x11xf32, #tpu.memory_space<vmem>>, vector<8x1xf32>
    %c0_185 = arith.constant 0 : index
    %c10 = arith.constant 10 : index
    %287 = vector.load %arg6[%c0_185, %c10] : memref<8x11xf32, #tpu.memory_space<vmem>>, vector<8x1xf32>
    %288 = vector.broadcast %20 : vector<1x288xf32> to vector<8x288xf32>
    %289 = arith.mulf %285, %288 : vector<8x288xf32>
    %cst_186 = arith.constant dense<0.000000e+00> : vector<8xf32>
    %290 = vector.multi_reduction <add>, %289, %cst_186 [1] : vector<8x288xf32> to vector<8xf32>
    %291 = vector.shape_cast %290 : vector<8xf32> to vector<8x1xf32>
    %292 = arith.mulf %289, %285 : vector<8x288xf32>
    %cst_187 = arith.constant dense<0.000000e+00> : vector<8xf32>
    %293 = vector.multi_reduction <add>, %292, %cst_187 [1] : vector<8x288xf32> to vector<8xf32>
    %294 = vector.shape_cast %293 : vector<8xf32> to vector<8x1xf32>
    %295 = tpu.concatenate %291, %294 in 1 : vector<8x1xf32>, vector<8x1xf32> -> vector<8x2xf32>
    %c0_188 = arith.constant 0 : index
    %c0_189 = arith.constant 0 : index
    %296 = vector.load %arg7[%c0_188, %c0_189] : memref<8x8xf32, #tpu.memory_space<vmem>>, vector<8x8xf32>
    %cst_190 = arith.constant dense<0.000000e+00> : vector<8x2xf32>
    %297 = tpu.matmul %296, %295, %cst_190 {dimension_numbers = #tpu.dot_dimension_numbers<[1], [0], [0], [1], [0, 0, 1, 1], [], []>} : vector<8x8xf32>, vector<8x2xf32>, vector<8x2xf32> -> vector<8x2xf32>
    %cst_191 = arith.constant 0.001953125 : f32
    %298 = vector.broadcast %cst_191 : f32 to vector<8x2xf32>
    %299 = arith.mulf %297, %298 : vector<8x2xf32>
    %300 = vector.extract_strided_slice %299 {offsets = [0, 0], sizes = [8, 1], strides = [1, 1]} : vector<8x2xf32> to vector<8x1xf32>
    %301 = vector.extract_strided_slice %299 {offsets = [0, 1], sizes = [8, 1], strides = [1, 1]} : vector<8x2xf32> to vector<8x1xf32>
    %302 = arith.mulf %300, %300 : vector<8x1xf32>
    %303 = arith.subf %301, %302 : vector<8x1xf32>
    %cst_192 = arith.constant 9.99999974E-6 : f32
    %304 = vector.broadcast %cst_192 : f32 to vector<8x1xf32>
    %305 = arith.addf %303, %304 : vector<8x1xf32>
    %306 = math.rsqrt %305 : vector<8x1xf32>
    %307 = arith.mulf %286, %306 : vector<8x1xf32>
    %308 = arith.mulf %300, %307 : vector<8x1xf32>
    %309 = arith.subf %287, %308 : vector<8x1xf32>
    %310 = vector.broadcast %307 : vector<8x1xf32> to vector<8x288xf32>
    %311 = arith.mulf %285, %310 : vector<8x288xf32>
    %312 = vector.broadcast %309 : vector<8x1xf32> to vector<8x288xf32>
    %313 = arith.addf %311, %312 : vector<8x288xf32>
    %314 = arith.addf %281, %313 : vector<8x288xf32>
    %c0_193 = arith.constant 0 : index
    %c0_194 = arith.constant 0 : index
    %c0_195 = arith.constant 0 : index
    %315 = vector.load %arg8[%c0_193, %c0_194, %c0_195] : memref<1x8x288xf32, #tpu.memory_space<vmem>>, vector<1x8x288xf32>
    %316 = vector.shape_cast %315 : vector<1x8x288xf32> to vector<8x288xf32>
    %317 = vector.shape_cast %314 : vector<8x288xf32> to vector<1x8x288xf32>
    tpu.vector_store %arg8[%c0_193, %c0_194, %c0_195], %317 {strides = array<i32>} : memref<1x8x288xf32, #tpu.memory_space<vmem>>, vector<1x8x288xf32>,
    return
  }
  func.func @transform_0(%arg0: i32) -> (i32, i32, i32) {
    %c0_i32 = arith.constant 0 : i32
    %c0_i32_0 = arith.constant 0 : i32
    %c0_i32_1 = arith.constant 0 : i32
    return %arg0, %c0_i32, %c0_i32_0 : i32, i32, i32
  }
  func.func @transform_1(%arg0: i32) -> (i32, i32) {
    %c0_i32 = arith.constant 0 : i32
    %c0_i32_0 = arith.constant 0 : i32
    %c0_i32_1 = arith.constant 0 : i32
    return %c0_i32, %c0_i32_0 : i32, i32
  }
  func.func @transform_2(%arg0: i32) -> (i32, i32) {
    %c0_i32 = arith.constant 0 : i32
    %c0_i32_0 = arith.constant 0 : i32
    %c0_i32_1 = arith.constant 0 : i32
    return %c0_i32, %c0_i32_0 : i32, i32
  }
  func.func @transform_3(%arg0: i32) -> (i32, i32) {
    %c0_i32 = arith.constant 0 : i32
    %c0_i32_0 = arith.constant 0 : i32
    %c0_i32_1 = arith.constant 0 : i32
    return %c0_i32, %c0_i32_0 : i32, i32
  }
  func.func @transform_4(%arg0: i32) -> (i32, i32) {
    %c0_i32 = arith.constant 0 : i32
    %c0_i32_0 = arith.constant 0 : i32
    %c0_i32_1 = arith.constant 0 : i32
    return %c0_i32, %c0_i32_0 : i32, i32
  }
  func.func @transform_5(%arg0: i32) -> (i32, i32) {
    %c0_i32 = arith.constant 0 : i32
    %c0_i32_0 = arith.constant 0 : i32
    %c0_i32_1 = arith.constant 0 : i32
    return %c0_i32, %c0_i32_0 : i32, i32
  }
  func.func @transform_6(%arg0: i32) -> (i32, i32) {
    %c0_i32 = arith.constant 0 : i32
    %c0_i32_0 = arith.constant 0 : i32
    %c0_i32_1 = arith.constant 0 : i32
    return %c0_i32, %c0_i32_0 : i32, i32
  }
  func.func @transform_7(%arg0: i32) -> (i32, i32, i32) {
    %c0_i32 = arith.constant 0 : i32
    %c0_i32_0 = arith.constant 0 : i32
    %c0_i32_1 = arith.constant 0 : i32
    return %arg0, %c0_i32, %c0_i32_0 : i32, i32, i32
  }
}

module attributes {stable_mosaic.version = 11 : i64} {
  func.func @_block_kernel(%arg0: i32, %arg1: memref<1x4x288xbf16, #tpu.memory_space<vmem>>, %arg2: memref<8x36xbf16, #tpu.memory_space<vmem>>, %arg3: memref<8x72xbf16, #tpu.memory_space<vmem>>, %arg4: memref<8x72xbf16, #tpu.memory_space<vmem>>, %arg5: memref<8x4xbf16, #tpu.memory_space<vmem>>, %arg6: memref<8x11xf32, #tpu.memory_space<vmem>>, %arg7: memref<8x8xf32, #tpu.memory_space<vmem>>, %arg8: memref<1x8x288xf32, #tpu.memory_space<vmem>>, %arg9: memref<8x327xbf16, #tpu.memory_space<vmem>>) attributes {dimension_semantics = [#tpu.dimension_semantics<parallel>], iteration_bounds = array<i64: 2>, scalar_prefetch = 0 : i64, scratch_operands = 1 : i64, tpu.core_type = #tpu.core_type<tc>, window_params = [{transform_indices = @transform_0, window_bounds = array<i64: 1, 4, 288>}, {pipeline_mode = #tpu.pipeline_mode<synchronous>, transform_indices = @transform_1, window_bounds = array<i64: 8, 36>}, {pipeline_mode = #tpu.pipeline_mode<synchronous>, transform_indices = @transform_2, window_bounds = array<i64: 8, 72>}, {pipeline_mode = #tpu.pipeline_mode<synchronous>, transform_indices = @transform_3, window_bounds = array<i64: 8, 72>}, {pipeline_mode = #tpu.pipeline_mode<synchronous>, transform_indices = @transform_4, window_bounds = array<i64: 8, 4>}, {pipeline_mode = #tpu.pipeline_mode<synchronous>, transform_indices = @transform_5, window_bounds = array<i64: 8, 11>}, {pipeline_mode = #tpu.pipeline_mode<synchronous>, transform_indices = @transform_6, window_bounds = array<i64: 8, 8>}, {transform_indices = @transform_7, window_bounds = array<i64: 1, 8, 288>}]} {
    %0 = tpu.iota {dimensions = array<i32: 1>} : vector<1x288xi32>
    %c18_i32 = arith.constant 18 : i32
    %c0_i32 = arith.constant 0 : i32
    %1 = arith.cmpi eq, %c18_i32, %c0_i32 : i32
    %c1_i32 = arith.constant 1 : i32
    %2 = arith.select %1, %c1_i32, %c18_i32 : i32
    %3 = vector.broadcast %2 : i32 to vector<1x288xi32>
    %4 = arith.remsi %0, %3 : vector<1x288xi32>
    %c0_i32_0 = arith.constant 0 : i32
    %5 = vector.broadcast %c0_i32_0 : i32 to vector<1x288xi32>
    %6 = arith.cmpi ne, %4, %5 : vector<1x288xi32>
    %c0_i32_1 = arith.constant 0 : i32
    %7 = vector.broadcast %c0_i32_1 : i32 to vector<1x288xi32>
    %8 = arith.cmpi slt, %4, %7 : vector<1x288xi32>
    %c0_i32_2 = arith.constant 0 : i32
    %9 = arith.cmpi slt, %2, %c0_i32_2 : i32
    %10 = vector.broadcast %9 : i1 to vector<1x288xi1>
    %11 = vector.broadcast %10 : vector<1x288xi1> to vector<1x288xi1>
    %12 = arith.xori %8, %11 : vector<1x288xi1>
    %13 = arith.andi %12, %6 : vector<1x288xi1>
    %14 = vector.broadcast %2 : i32 to vector<1x288xi32>
    %15 = arith.addi %4, %14 : vector<1x288xi32>
    %16 = arith.select %13, %15, %4 : vector<1x288xi1>, vector<1x288xi32>
    %c16_i32 = arith.constant 16 : i32
    %17 = vector.broadcast %c16_i32 : i32 to vector<1x288xi32>
    %18 = arith.cmpi slt, %16, %17 : vector<1x288xi32>
    %19 = arith.extui %18 : vector<1x288xi1> to vector<1x288xi32>
    %20 = arith.sitofp %19 : vector<1x288xi32> to vector<1x288xf32>
    %cst = arith.constant 0.000000e+00 : bf16
    %21 = vector.broadcast %cst : bf16 to vector<8x19xbf16>
    %c0 = arith.constant 0 : index
    %c0_3 = arith.constant 0 : index
    %22 = vector.load %arg9[%c0, %c0_3] : memref<8x327xbf16, #tpu.memory_space<vmem>>, vector<8x19xbf16>
    tpu.vector_store %arg9[%c0, %c0_3], %21 {strides = array<i32>} : memref<8x327xbf16, #tpu.memory_space<vmem>>, vector<8x19xbf16>,
    %cst_4 = arith.constant 0.000000e+00 : bf16
    %23 = vector.broadcast %cst_4 : bf16 to vector<8x20xbf16>
    %c0_5 = arith.constant 0 : index
    %c307 = arith.constant 307 : index
    %24 = vector.load %arg9[%c0_5, %c307] : memref<8x327xbf16, #tpu.memory_space<vmem>>, vector<8x20xbf16>
    tpu.vector_store %arg9[%c0_5, %c307], %23 {strides = array<i32>} : memref<8x327xbf16, #tpu.memory_space<vmem>>, vector<8x20xbf16>,
    %c0_6 = arith.constant 0 : index
    %c0_7 = arith.constant 0 : index
    %c0_8 = arith.constant 0 : index
    %25 = vector.load %arg1[%c0_6, %c0_7, %c0_8] : memref<1x4x288xbf16, #tpu.memory_space<vmem>>, vector<1x4x288xbf16>
    %26 = vector.shape_cast %25 : vector<1x4x288xbf16> to vector<4x288xbf16>
    %c0_9 = arith.constant 0 : index
    %c19 = arith.constant 19 : index
    %27 = vector.load %arg9[%c0_9, %c19] : memref<8x327xbf16, #tpu.memory_space<vmem>>, vector<4x288xbf16>
    tpu.vector_store %arg9[%c0_9, %c19], %26 {strides = array<i32>} : memref<8x327xbf16, #tpu.memory_space<vmem>>, vector<4x288xbf16>,
    %c0_10 = arith.constant 0 : index
    %c0_11 = arith.constant 0 : index
    %28 = vector.load %arg2[%c0_10, %c0_11] : memref<8x36xbf16, #tpu.memory_space<vmem>>, vector<8x4xbf16>
    %c0_12 = arith.constant 0 : index
    %c0_13 = arith.constant 0 : index
    %29 = vector.load %arg9[%c0_12, %c0_13] : memref<8x327xbf16, #tpu.memory_space<vmem>>, vector<4x288xbf16>
    %cst_14 = arith.constant dense<0.000000e+00> : vector<8x288xf32>
    %30 = tpu.matmul %28, %29, %cst_14 {dimension_numbers = #tpu.dot_dimension_numbers<[1], [0], [0], [1], [0, 0, 1, 1], [], []>} : vector<8x4xbf16>, vector<4x288xbf16>, vector<8x288xf32> -> vector<8x288xf32>
    %c0_15 = arith.constant 0 : index
    %c4 = arith.constant 4 : index
    %31 = vector.load %arg2[%c0_15, %c4] : memref<8x36xbf16, #tpu.memory_space<vmem>>, vector<8x4xbf16>
    %c0_16 = arith.constant 0 : index
    %c1 = arith.constant 1 : index
    %32 = vector.load %arg9[%c0_16, %c1] : memref<8x327xbf16, #tpu.memory_space<vmem>>, vector<4x288xbf16>
    %cst_17 = arith.constant dense<0.000000e+00> : vector<8x288xf32>
    %33 = tpu.matmul %31, %32, %cst_17 {dimension_numbers = #tpu.dot_dimension_numbers<[1], [0], [0], [1], [0, 0, 1, 1], [], []>} : vector<8x4xbf16>, vector<4x288xbf16>, vector<8x288xf32> -> vector<8x288xf32>
    %34 = arith.addf %30, %33 : vector<8x288xf32>
    %c0_18 = arith.constant 0 : index
    %c8 = arith.constant 8 : index
    %35 = vector.load %arg2[%c0_18, %c8] : memref<8x36xbf16, #tpu.memory_space<vmem>>, vector<8x4xbf16>
    %c0_19 = arith.constant 0 : index
    %c2 = arith.constant 2 : index
    %36 = vector.load %arg9[%c0_19, %c2] : memref<8x327xbf16, #tpu.memory_space<vmem>>, vector<4x288xbf16>
    %cst_20 = arith.constant dense<0.000000e+00> : vector<8x288xf32>
    %37 = tpu.matmul %35, %36, %cst_20 {dimension_numbers = #tpu.dot_dimension_numbers<[1], [0], [0], [1], [0, 0, 1, 1], [], []>} : vector<8x4xbf16>, vector<4x288xbf16>, vector<8x288xf32> -> vector<8x288xf32>
    %38 = arith.addf %34, %37 : vector<8x288xf32>
    %c0_21 = arith.constant 0 : index
    %c12 = arith.constant 12 : index
    %39 = vector.load %arg2[%c0_21, %c12] : memref<8x36xbf16, #tpu.memory_space<vmem>>, vector<8x4xbf16>
    %c0_22 = arith.constant 0 : index
    %c18 = arith.constant 18 : index
    %40 = vector.load %arg9[%c0_22, %c18] : memref<8x327xbf16, #tpu.memory_space<vmem>>, vector<4x288xbf16>
    %cst_23 = arith.constant dense<0.000000e+00> : vector<8x288xf32>
    %41 = tpu.matmul %39, %40, %cst_23 {dimension_numbers = #tpu.dot_dimension_numbers<[1], [0], [0], [1], [0, 0, 1, 1], [], []>} : vector<8x4xbf16>, vector<4x288xbf16>, vector<8x288xf32> -> vector<8x288xf32>
    %42 = arith.addf %38, %41 : vector<8x288xf32>
    %c0_24 = arith.constant 0 : index
    %c16 = arith.constant 16 : index
    %43 = vector.load %arg2[%c0_24, %c16] : memref<8x36xbf16, #tpu.memory_space<vmem>>, vector<8x4xbf16>
    %c0_25 = arith.constant 0 : index
    %c19_26 = arith.constant 19 : index
    %44 = vector.load %arg9[%c0_25, %c19_26] : memref<8x327xbf16, #tpu.memory_space<vmem>>, vector<4x288xbf16>
    %cst_27 = arith.constant dense<0.000000e+00> : vector<8x288xf32>
    %45 = tpu.matmul %43, %44, %cst_27 {dimension_numbers = #tpu.dot_dimension_numbers<[1], [0], [0], [1], [0, 0, 1, 1], [], []>} : vector<8x4xbf16>, vector<4x288xbf16>, vector<8x288xf32> -> vector<8x288xf32>
    %46 = arith.addf %42, %45 : vector<8x288xf32>
    %c0_28 = arith.constant 0 : index
    %c20 = arith.constant 20 : index
    %47 = vector.load %arg2[%c0_28, %c20] : memref<8x36xbf16, #tpu.memory_space<vmem>>, vector<8x4xbf16>
    %c0_29 = arith.constant 0 : index
    %c20_30 = arith.constant 20 : index
    %48 = vector.load %arg9[%c0_29, %c20_30] : memref<8x327xbf16, #tpu.memory_space<vmem>>, vector<4x288xbf16>
    %cst_31 = arith.constant dense<0.000000e+00> : vector<8x288xf32>
    %49 = tpu.matmul %47, %48, %cst_31 {dimension_numbers = #tpu.dot_dimension_numbers<[1], [0], [0], [1], [0, 0, 1, 1], [], []>} : vector<8x4xbf16>, vector<4x288xbf16>, vector<8x288xf32> -> vector<8x288xf32>
    %50 = arith.addf %46, %49 : vector<8x288xf32>
    %c0_32 = arith.constant 0 : index
    %c24 = arith.constant 24 : index
    %51 = vector.load %arg2[%c0_32, %c24] : memref<8x36xbf16, #tpu.memory_space<vmem>>, vector<8x4xbf16>
    %c0_33 = arith.constant 0 : index
    %c36 = arith.constant 36 : index
    %52 = vector.load %arg9[%c0_33, %c36] : memref<8x327xbf16, #tpu.memory_space<vmem>>, vector<4x288xbf16>
    %cst_34 = arith.constant dense<0.000000e+00> : vector<8x288xf32>
    %53 = tpu.matmul %51, %52, %cst_34 {dimension_numbers = #tpu.dot_dimension_numbers<[1], [0], [0], [1], [0, 0, 1, 1], [], []>} : vector<8x4xbf16>, vector<4x288xbf16>, vector<8x288xf32> -> vector<8x288xf32>
    %54 = arith.addf %50, %53 : vector<8x288xf32>
    %c0_35 = arith.constant 0 : index
    %c28 = arith.constant 28 : index
    %55 = vector.load %arg2[%c0_35, %c28] : memref<8x36xbf16, #tpu.memory_space<vmem>>, vector<8x4xbf16>
    %c0_36 = arith.constant 0 : index
    %c37 = arith.constant 37 : index
    %56 = vector.load %arg9[%c0_36, %c37] : memref<8x327xbf16, #tpu.memory_space<vmem>>, vector<4x288xbf16>
    %cst_37 = arith.constant dense<0.000000e+00> : vector<8x288xf32>
    %57 = tpu.matmul %55, %56, %cst_37 {dimension_numbers = #tpu.dot_dimension_numbers<[1], [0], [0], [1], [0, 0, 1, 1], [], []>} : vector<8x4xbf16>, vector<4x288xbf16>, vector<8x288xf32> -> vector<8x288xf32>
    %58 = arith.addf %54, %57 : vector<8x288xf32>
    %c0_38 = arith.constant 0 : index
    %c32 = arith.constant 32 : index
    %59 = vector.load %arg2[%c0_38, %c32] : memref<8x36xbf16, #tpu.memory_space<vmem>>, vector<8x4xbf16>
    %c0_39 = arith.constant 0 : index
    %c38 = arith.constant 38 : index
    %60 = vector.load %arg9[%c0_39, %c38] : memref<8x327xbf16, #tpu.memory_space<vmem>>, vector<4x288xbf16>
    %cst_40 = arith.constant dense<0.000000e+00> : vector<8x288xf32>
    %61 = tpu.matmul %59, %60, %cst_40 {dimension_numbers = #tpu.dot_dimension_numbers<[1], [0], [0], [1], [0, 0, 1, 1], [], []>} : vector<8x4xbf16>, vector<4x288xbf16>, vector<8x288xf32> -> vector<8x288xf32>
    %62 = arith.addf %58, %61 : vector<8x288xf32>
    %c0_41 = arith.constant 0 : index
    %c0_42 = arith.constant 0 : index
    %63 = vector.load %arg6[%c0_41, %c0_42] : memref<8x11xf32, #tpu.memory_space<vmem>>, vector<8x1xf32>
    %c0_43 = arith.constant 0 : index
    %c1_44 = arith.constant 1 : index
    %64 = vector.load %arg6[%c0_43, %c1_44] : memref<8x11xf32, #tpu.memory_space<vmem>>, vector<8x1xf32>
    %c0_45 = arith.constant 0 : index
    %c2_46 = arith.constant 2 : index
    %65 = vector.load %arg6[%c0_45, %c2_46] : memref<8x11xf32, #tpu.memory_space<vmem>>, vector<8x1xf32>
    %66 = vector.broadcast %20 : vector<1x288xf32> to vector<8x288xf32>
    %67 = arith.mulf %62, %66 : vector<8x288xf32>
    %cst_47 = arith.constant dense<0.000000e+00> : vector<8xf32>
    %68 = vector.multi_reduction <add>, %67, %cst_47 [1] : vector<8x288xf32> to vector<8xf32>
    %69 = vector.shape_cast %68 : vector<8xf32> to vector<8x1xf32>
    %70 = arith.mulf %67, %62 : vector<8x288xf32>
    %cst_48 = arith.constant dense<0.000000e+00> : vector<8xf32>
    %71 = vector.multi_reduction <add>, %70, %cst_48 [1] : vector<8x288xf32> to vector<8xf32>
    %72 = vector.shape_cast %71 : vector<8xf32> to vector<8x1xf32>
    %cst_49 = arith.constant 2.000000e+00 : f32
    %73 = vector.broadcast %cst_49 : f32 to vector<8x1xf32>
    %74 = arith.mulf %73, %63 : vector<8x1xf32>
    %75 = arith.mulf %74, %69 : vector<8x1xf32>
    %76 = arith.addf %72, %75 : vector<8x1xf32>
    %77 = arith.mulf %63, %63 : vector<8x1xf32>
    %cst_50 = arith.constant 2.560000e+02 : f32
    %78 = vector.broadcast %cst_50 : f32 to vector<8x1xf32>
    %79 = arith.mulf %78, %77 : vector<8x1xf32>
    %80 = arith.addf %76, %79 : vector<8x1xf32>
    %cst_51 = arith.constant 2.560000e+02 : f32
    %81 = vector.broadcast %cst_51 : f32 to vector<8x1xf32>
    %82 = arith.mulf %81, %63 : vector<8x1xf32>
    %83 = arith.addf %69, %82 : vector<8x1xf32>
    %84 = tpu.concatenate %83, %80 in 1 : vector<8x1xf32>, vector<8x1xf32> -> vector<8x2xf32>
    %c0_52 = arith.constant 0 : index
    %c0_53 = arith.constant 0 : index
    %85 = vector.load %arg7[%c0_52, %c0_53] : memref<8x8xf32, #tpu.memory_space<vmem>>, vector<8x8xf32>
    %cst_54 = arith.constant dense<0.000000e+00> : vector<8x2xf32>
    %86 = tpu.matmul %85, %84, %cst_54 {dimension_numbers = #tpu.dot_dimension_numbers<[1], [0], [0], [1], [0, 0, 1, 1], [], []>} : vector<8x8xf32>, vector<8x2xf32>, vector<8x2xf32> -> vector<8x2xf32>
    %cst_55 = arith.constant 0.001953125 : f32
    %87 = vector.broadcast %cst_55 : f32 to vector<8x2xf32>
    %88 = arith.mulf %86, %87 : vector<8x2xf32>
    %89 = vector.extract_strided_slice %88 {offsets = [0, 0], sizes = [8, 1], strides = [1, 1]} : vector<8x2xf32> to vector<8x1xf32>
    %90 = vector.extract_strided_slice %88 {offsets = [0, 1], sizes = [8, 1], strides = [1, 1]} : vector<8x2xf32> to vector<8x1xf32>
    %91 = arith.mulf %89, %89 : vector<8x1xf32>
    %92 = arith.subf %90, %91 : vector<8x1xf32>
    %cst_56 = arith.constant 9.99999974E-6 : f32
    %93 = vector.broadcast %cst_56 : f32 to vector<8x1xf32>
    %94 = arith.addf %92, %93 : vector<8x1xf32>
    %95 = math.rsqrt %94 : vector<8x1xf32>
    %96 = arith.mulf %64, %95 : vector<8x1xf32>
    %97 = arith.subf %63, %89 : vector<8x1xf32>
    %98 = arith.mulf %97, %96 : vector<8x1xf32>
    %99 = arith.addf %65, %98 : vector<8x1xf32>
    %100 = vector.broadcast %96 : vector<8x1xf32> to vector<8x288xf32>
    %101 = arith.mulf %62, %100 : vector<8x288xf32>
    %102 = vector.broadcast %99 : vector<8x1xf32> to vector<8x288xf32>
    %103 = arith.addf %101, %102 : vector<8x288xf32>
    %104 = arith.negf %103 : vector<8x288xf32>
    %105 = math.exp %104 : vector<8x288xf32>
    %cst_57 = arith.constant 1.000000e+00 : f32
    %106 = vector.broadcast %cst_57 : f32 to vector<8x288xf32>
    %107 = arith.addf %106, %105 : vector<8x288xf32>
    %108 = arith.divf %106, %107 : vector<8x288xf32>
    %109 = arith.mulf %103, %108 : vector<8x288xf32>
    %110 = vector.broadcast %20 : vector<1x288xf32> to vector<8x288xf32>
    %111 = arith.mulf %109, %110 : vector<8x288xf32>
    %112 = arith.truncf %111 : vector<8x288xf32> to vector<8x288xbf16>
    %c0_58 = arith.constant 0 : index
    %c19_59 = arith.constant 19 : index
    %113 = vector.load %arg9[%c0_58, %c19_59] : memref<8x327xbf16, #tpu.memory_space<vmem>>, vector<8x288xbf16>
    tpu.vector_store %arg9[%c0_58, %c19_59], %112 {strides = array<i32>} : memref<8x327xbf16, #tpu.memory_space<vmem>>, vector<8x288xbf16>,
    %c0_60 = arith.constant 0 : index
    %c0_61 = arith.constant 0 : index
    %114 = vector.load %arg3[%c0_60, %c0_61] : memref<8x72xbf16, #tpu.memory_space<vmem>>, vector<8x8xbf16>
    %c0_62 = arith.constant 0 : index
    %c0_63 = arith.constant 0 : index
    %115 = vector.load %arg9[%c0_62, %c0_63] : memref<8x327xbf16, #tpu.memory_space<vmem>>, vector<8x288xbf16>
    %cst_64 = arith.constant dense<0.000000e+00> : vector<8x288xf32>
    %116 = tpu.matmul %114, %115, %cst_64 {dimension_numbers = #tpu.dot_dimension_numbers<[1], [0], [0], [1], [0, 0, 1, 1], [], []>} : vector<8x8xbf16>, vector<8x288xbf16>, vector<8x288xf32> -> vector<8x288xf32>
    %c0_65 = arith.constant 0 : index
    %c8_66 = arith.constant 8 : index
    %117 = vector.load %arg3[%c0_65, %c8_66] : memref<8x72xbf16, #tpu.memory_space<vmem>>, vector<8x8xbf16>
    %c0_67 = arith.constant 0 : index
    %c1_68 = arith.constant 1 : index
    %118 = vector.load %arg9[%c0_67, %c1_68] : memref<8x327xbf16, #tpu.memory_space<vmem>>, vector<8x288xbf16>
    %cst_69 = arith.constant dense<0.000000e+00> : vector<8x288xf32>
    %119 = tpu.matmul %117, %118, %cst_69 {dimension_numbers = #tpu.dot_dimension_numbers<[1], [0], [0], [1], [0, 0, 1, 1], [], []>} : vector<8x8xbf16>, vector<8x288xbf16>, vector<8x288xf32> -> vector<8x288xf32>
    %120 = arith.addf %116, %119 : vector<8x288xf32>
    %c0_70 = arith.constant 0 : index
    %c16_71 = arith.constant 16 : index
    %121 = vector.load %arg3[%c0_70, %c16_71] : memref<8x72xbf16, #tpu.memory_space<vmem>>, vector<8x8xbf16>
    %c0_72 = arith.constant 0 : index
    %c2_73 = arith.constant 2 : index
    %122 = vector.load %arg9[%c0_72, %c2_73] : memref<8x327xbf16, #tpu.memory_space<vmem>>, vector<8x288xbf16>
    %cst_74 = arith.constant dense<0.000000e+00> : vector<8x288xf32>
    %123 = tpu.matmul %121, %122, %cst_74 {dimension_numbers = #tpu.dot_dimension_numbers<[1], [0], [0], [1], [0, 0, 1, 1], [], []>} : vector<8x8xbf16>, vector<8x288xbf16>, vector<8x288xf32> -> vector<8x288xf32>
    %124 = arith.addf %120, %123 : vector<8x288xf32>
    %c0_75 = arith.constant 0 : index
    %c24_76 = arith.constant 24 : index
    %125 = vector.load %arg3[%c0_75, %c24_76] : memref<8x72xbf16, #tpu.memory_space<vmem>>, vector<8x8xbf16>
    %c0_77 = arith.constant 0 : index
    %c18_78 = arith.constant 18 : index
    %126 = vector.load %arg9[%c0_77, %c18_78] : memref<8x327xbf16, #tpu.memory_space<vmem>>, vector<8x288xbf16>
    %cst_79 = arith.constant dense<0.000000e+00> : vector<8x288xf32>
    %127 = tpu.matmul %125, %126, %cst_79 {dimension_numbers = #tpu.dot_dimension_numbers<[1], [0], [0], [1], [0, 0, 1, 1], [], []>} : vector<8x8xbf16>, vector<8x288xbf16>, vector<8x288xf32> -> vector<8x288xf32>
    %128 = arith.addf %124, %127 : vector<8x288xf32>
    %c0_80 = arith.constant 0 : index
    %c32_81 = arith.constant 32 : index
    %129 = vector.load %arg3[%c0_80, %c32_81] : memref<8x72xbf16, #tpu.memory_space<vmem>>, vector<8x8xbf16>
    %c0_82 = arith.constant 0 : index
    %c19_83 = arith.constant 19 : index
    %130 = vector.load %arg9[%c0_82, %c19_83] : memref<8x327xbf16, #tpu.memory_space<vmem>>, vector<8x288xbf16>
    %cst_84 = arith.constant dense<0.000000e+00> : vector<8x288xf32>
    %131 = tpu.matmul %129, %130, %cst_84 {dimension_numbers = #tpu.dot_dimension_numbers<[1], [0], [0], [1], [0, 0, 1, 1], [], []>} : vector<8x8xbf16>, vector<8x288xbf16>, vector<8x288xf32> -> vector<8x288xf32>
    %132 = arith.addf %128, %131 : vector<8x288xf32>
    %c0_85 = arith.constant 0 : index
    %c40 = arith.constant 40 : index
    %133 = vector.load %arg3[%c0_85, %c40] : memref<8x72xbf16, #tpu.memory_space<vmem>>, vector<8x8xbf16>
    %c0_86 = arith.constant 0 : index
    %c20_87 = arith.constant 20 : index
    %134 = vector.load %arg9[%c0_86, %c20_87] : memref<8x327xbf16, #tpu.memory_space<vmem>>, vector<8x288xbf16>
    %cst_88 = arith.constant dense<0.000000e+00> : vector<8x288xf32>
    %135 = tpu.matmul %133, %134, %cst_88 {dimension_numbers = #tpu.dot_dimension_numbers<[1], [0], [0], [1], [0, 0, 1, 1], [], []>} : vector<8x8xbf16>, vector<8x288xbf16>, vector<8x288xf32> -> vector<8x288xf32>
    %136 = arith.addf %132, %135 : vector<8x288xf32>
    %c0_89 = arith.constant 0 : index
    %c48 = arith.constant 48 : index
    %137 = vector.load %arg3[%c0_89, %c48] : memref<8x72xbf16, #tpu.memory_space<vmem>>, vector<8x8xbf16>
    %c0_90 = arith.constant 0 : index
    %c36_91 = arith.constant 36 : index
    %138 = vector.load %arg9[%c0_90, %c36_91] : memref<8x327xbf16, #tpu.memory_space<vmem>>, vector<8x288xbf16>
    %cst_92 = arith.constant dense<0.000000e+00> : vector<8x288xf32>
    %139 = tpu.matmul %137, %138, %cst_92 {dimension_numbers = #tpu.dot_dimension_numbers<[1], [0], [0], [1], [0, 0, 1, 1], [], []>} : vector<8x8xbf16>, vector<8x288xbf16>, vector<8x288xf32> -> vector<8x288xf32>
    %140 = arith.addf %136, %139 : vector<8x288xf32>
    %c0_93 = arith.constant 0 : index
    %c56 = arith.constant 56 : index
    %141 = vector.load %arg3[%c0_93, %c56] : memref<8x72xbf16, #tpu.memory_space<vmem>>, vector<8x8xbf16>
    %c0_94 = arith.constant 0 : index
    %c37_95 = arith.constant 37 : index
    %142 = vector.load %arg9[%c0_94, %c37_95] : memref<8x327xbf16, #tpu.memory_space<vmem>>, vector<8x288xbf16>
    %cst_96 = arith.constant dense<0.000000e+00> : vector<8x288xf32>
    %143 = tpu.matmul %141, %142, %cst_96 {dimension_numbers = #tpu.dot_dimension_numbers<[1], [0], [0], [1], [0, 0, 1, 1], [], []>} : vector<8x8xbf16>, vector<8x288xbf16>, vector<8x288xf32> -> vector<8x288xf32>
    %144 = arith.addf %140, %143 : vector<8x288xf32>
    %c0_97 = arith.constant 0 : index
    %c64 = arith.constant 64 : index
    %145 = vector.load %arg3[%c0_97, %c64] : memref<8x72xbf16, #tpu.memory_space<vmem>>, vector<8x8xbf16>
    %c0_98 = arith.constant 0 : index
    %c38_99 = arith.constant 38 : index
    %146 = vector.load %arg9[%c0_98, %c38_99] : memref<8x327xbf16, #tpu.memory_space<vmem>>, vector<8x288xbf16>
    %cst_100 = arith.constant dense<0.000000e+00> : vector<8x288xf32>
    %147 = tpu.matmul %145, %146, %cst_100 {dimension_numbers = #tpu.dot_dimension_numbers<[1], [0], [0], [1], [0, 0, 1, 1], [], []>} : vector<8x8xbf16>, vector<8x288xbf16>, vector<8x288xf32> -> vector<8x288xf32>
    %148 = arith.addf %144, %147 : vector<8x288xf32>
    %c0_101 = arith.constant 0 : index
    %c3 = arith.constant 3 : index
    %149 = vector.load %arg6[%c0_101, %c3] : memref<8x11xf32, #tpu.memory_space<vmem>>, vector<8x1xf32>
    %c0_102 = arith.constant 0 : index
    %c4_103 = arith.constant 4 : index
    %150 = vector.load %arg6[%c0_102, %c4_103] : memref<8x11xf32, #tpu.memory_space<vmem>>, vector<8x1xf32>
    %c0_104 = arith.constant 0 : index
    %c5 = arith.constant 5 : index
    %151 = vector.load %arg6[%c0_104, %c5] : memref<8x11xf32, #tpu.memory_space<vmem>>, vector<8x1xf32>
    %152 = vector.broadcast %20 : vector<1x288xf32> to vector<8x288xf32>
    %153 = arith.mulf %148, %152 : vector<8x288xf32>
    %cst_105 = arith.constant dense<0.000000e+00> : vector<8xf32>
    %154 = vector.multi_reduction <add>, %153, %cst_105 [1] : vector<8x288xf32> to vector<8xf32>
    %155 = vector.shape_cast %154 : vector<8xf32> to vector<8x1xf32>
    %156 = arith.mulf %153, %148 : vector<8x288xf32>
    %cst_106 = arith.constant dense<0.000000e+00> : vector<8xf32>
    %157 = vector.multi_reduction <add>, %156, %cst_106 [1] : vector<8x288xf32> to vector<8xf32>
    %158 = vector.shape_cast %157 : vector<8xf32> to vector<8x1xf32>
    %cst_107 = arith.constant 2.000000e+00 : f32
    %159 = vector.broadcast %cst_107 : f32 to vector<8x1xf32>
    %160 = arith.mulf %159, %149 : vector<8x1xf32>
    %161 = arith.mulf %160, %155 : vector<8x1xf32>
    %162 = arith.addf %158, %161 : vector<8x1xf32>
    %163 = arith.mulf %149, %149 : vector<8x1xf32>
    %cst_108 = arith.constant 2.560000e+02 : f32
    %164 = vector.broadcast %cst_108 : f32 to vector<8x1xf32>
    %165 = arith.mulf %164, %163 : vector<8x1xf32>
    %166 = arith.addf %162, %165 : vector<8x1xf32>
    %cst_109 = arith.constant 2.560000e+02 : f32
    %167 = vector.broadcast %cst_109 : f32 to vector<8x1xf32>
    %168 = arith.mulf %167, %149 : vector<8x1xf32>
    %169 = arith.addf %155, %168 : vector<8x1xf32>
    %170 = tpu.concatenate %169, %166 in 1 : vector<8x1xf32>, vector<8x1xf32> -> vector<8x2xf32>
    %c0_110 = arith.constant 0 : index
    %c0_111 = arith.constant 0 : index
    %171 = vector.load %arg7[%c0_110, %c0_111] : memref<8x8xf32, #tpu.memory_space<vmem>>, vector<8x8xf32>
    %cst_112 = arith.constant dense<0.000000e+00> : vector<8x2xf32>
    %172 = tpu.matmul %171, %170, %cst_112 {dimension_numbers = #tpu.dot_dimension_numbers<[1], [0], [0], [1], [0, 0, 1, 1], [], []>} : vector<8x8xf32>, vector<8x2xf32>, vector<8x2xf32> -> vector<8x2xf32>
    %cst_113 = arith.constant 0.001953125 : f32
    %173 = vector.broadcast %cst_113 : f32 to vector<8x2xf32>
    %174 = arith.mulf %172, %173 : vector<8x2xf32>
    %175 = vector.extract_strided_slice %174 {offsets = [0, 0], sizes = [8, 1], strides = [1, 1]} : vector<8x2xf32> to vector<8x1xf32>
    %176 = vector.extract_strided_slice %174 {offsets = [0, 1], sizes = [8, 1], strides = [1, 1]} : vector<8x2xf32> to vector<8x1xf32>
    %177 = arith.mulf %175, %175 : vector<8x1xf32>
    %178 = arith.subf %176, %177 : vector<8x1xf32>
    %cst_114 = arith.constant 9.99999974E-6 : f32
    %179 = vector.broadcast %cst_114 : f32 to vector<8x1xf32>
    %180 = arith.addf %178, %179 : vector<8x1xf32>
    %181 = math.rsqrt %180 : vector<8x1xf32>
    %182 = arith.mulf %150, %181 : vector<8x1xf32>
    %183 = arith.subf %149, %175 : vector<8x1xf32>
    %184 = arith.mulf %183, %182 : vector<8x1xf32>
    %185 = arith.addf %151, %184 : vector<8x1xf32>
    %186 = vector.broadcast %182 : vector<8x1xf32> to vector<8x288xf32>
    %187 = arith.mulf %148, %186 : vector<8x288xf32>
    %188 = vector.broadcast %185 : vector<8x1xf32> to vector<8x288xf32>
    %189 = arith.addf %187, %188 : vector<8x288xf32>
    %190 = arith.negf %189 : vector<8x288xf32>
    %191 = math.exp %190 : vector<8x288xf32>
    %cst_115 = arith.constant 1.000000e+00 : f32
    %192 = vector.broadcast %cst_115 : f32 to vector<8x288xf32>
    %193 = arith.addf %192, %191 : vector<8x288xf32>
    %194 = arith.divf %192, %193 : vector<8x288xf32>
    %195 = arith.mulf %189, %194 : vector<8x288xf32>
    %196 = vector.broadcast %20 : vector<1x288xf32> to vector<8x288xf32>
    %197 = arith.mulf %195, %196 : vector<8x288xf32>
    %198 = arith.truncf %197 : vector<8x288xf32> to vector<8x288xbf16>
    %c0_116 = arith.constant 0 : index
    %c19_117 = arith.constant 19 : index
    %199 = vector.load %arg9[%c0_116, %c19_117] : memref<8x327xbf16, #tpu.memory_space<vmem>>, vector<8x288xbf16>
    tpu.vector_store %arg9[%c0_116, %c19_117], %198 {strides = array<i32>} : memref<8x327xbf16, #tpu.memory_space<vmem>>, vector<8x288xbf16>,
    %c0_118 = arith.constant 0 : index
    %c0_119 = arith.constant 0 : index
    %200 = vector.load %arg4[%c0_118, %c0_119] : memref<8x72xbf16, #tpu.memory_space<vmem>>, vector<8x8xbf16>
    %c0_120 = arith.constant 0 : index
    %c0_121 = arith.constant 0 : index
    %201 = vector.load %arg9[%c0_120, %c0_121] : memref<8x327xbf16, #tpu.memory_space<vmem>>, vector<8x288xbf16>
    %cst_122 = arith.constant dense<0.000000e+00> : vector<8x288xf32>
    %202 = tpu.matmul %200, %201, %cst_122 {dimension_numbers = #tpu.dot_dimension_numbers<[1], [0], [0], [1], [0, 0, 1, 1], [], []>} : vector<8x8xbf16>, vector<8x288xbf16>, vector<8x288xf32> -> vector<8x288xf32>
    %c0_123 = arith.constant 0 : index
    %c8_124 = arith.constant 8 : index
    %203 = vector.load %arg4[%c0_123, %c8_124] : memref<8x72xbf16, #tpu.memory_space<vmem>>, vector<8x8xbf16>
    %c0_125 = arith.constant 0 : index
    %c1_126 = arith.constant 1 : index
    %204 = vector.load %arg9[%c0_125, %c1_126] : memref<8x327xbf16, #tpu.memory_space<vmem>>, vector<8x288xbf16>
    %cst_127 = arith.constant dense<0.000000e+00> : vector<8x288xf32>
    %205 = tpu.matmul %203, %204, %cst_127 {dimension_numbers = #tpu.dot_dimension_numbers<[1], [0], [0], [1], [0, 0, 1, 1], [], []>} : vector<8x8xbf16>, vector<8x288xbf16>, vector<8x288xf32> -> vector<8x288xf32>
    %206 = arith.addf %202, %205 : vector<8x288xf32>
    %c0_128 = arith.constant 0 : index
    %c16_129 = arith.constant 16 : index
    %207 = vector.load %arg4[%c0_128, %c16_129] : memref<8x72xbf16, #tpu.memory_space<vmem>>, vector<8x8xbf16>
    %c0_130 = arith.constant 0 : index
    %c2_131 = arith.constant 2 : index
    %208 = vector.load %arg9[%c0_130, %c2_131] : memref<8x327xbf16, #tpu.memory_space<vmem>>, vector<8x288xbf16>
    %cst_132 = arith.constant dense<0.000000e+00> : vector<8x288xf32>
    %209 = tpu.matmul %207, %208, %cst_132 {dimension_numbers = #tpu.dot_dimension_numbers<[1], [0], [0], [1], [0, 0, 1, 1], [], []>} : vector<8x8xbf16>, vector<8x288xbf16>, vector<8x288xf32> -> vector<8x288xf32>
    %210 = arith.addf %206, %209 : vector<8x288xf32>
    %c0_133 = arith.constant 0 : index
    %c24_134 = arith.constant 24 : index
    %211 = vector.load %arg4[%c0_133, %c24_134] : memref<8x72xbf16, #tpu.memory_space<vmem>>, vector<8x8xbf16>
    %c0_135 = arith.constant 0 : index
    %c18_136 = arith.constant 18 : index
    %212 = vector.load %arg9[%c0_135, %c18_136] : memref<8x327xbf16, #tpu.memory_space<vmem>>, vector<8x288xbf16>
    %cst_137 = arith.constant dense<0.000000e+00> : vector<8x288xf32>
    %213 = tpu.matmul %211, %212, %cst_137 {dimension_numbers = #tpu.dot_dimension_numbers<[1], [0], [0], [1], [0, 0, 1, 1], [], []>} : vector<8x8xbf16>, vector<8x288xbf16>, vector<8x288xf32> -> vector<8x288xf32>
    %214 = arith.addf %210, %213 : vector<8x288xf32>
    %c0_138 = arith.constant 0 : index
    %c32_139 = arith.constant 32 : index
    %215 = vector.load %arg4[%c0_138, %c32_139] : memref<8x72xbf16, #tpu.memory_space<vmem>>, vector<8x8xbf16>
    %c0_140 = arith.constant 0 : index
    %c19_141 = arith.constant 19 : index
    %216 = vector.load %arg9[%c0_140, %c19_141] : memref<8x327xbf16, #tpu.memory_space<vmem>>, vector<8x288xbf16>
    %cst_142 = arith.constant dense<0.000000e+00> : vector<8x288xf32>
    %217 = tpu.matmul %215, %216, %cst_142 {dimension_numbers = #tpu.dot_dimension_numbers<[1], [0], [0], [1], [0, 0, 1, 1], [], []>} : vector<8x8xbf16>, vector<8x288xbf16>, vector<8x288xf32> -> vector<8x288xf32>
    %218 = arith.addf %214, %217 : vector<8x288xf32>
    %c0_143 = arith.constant 0 : index
    %c40_144 = arith.constant 40 : index
    %219 = vector.load %arg4[%c0_143, %c40_144] : memref<8x72xbf16, #tpu.memory_space<vmem>>, vector<8x8xbf16>
    %c0_145 = arith.constant 0 : index
    %c20_146 = arith.constant 20 : index
    %220 = vector.load %arg9[%c0_145, %c20_146] : memref<8x327xbf16, #tpu.memory_space<vmem>>, vector<8x288xbf16>
    %cst_147 = arith.constant dense<0.000000e+00> : vector<8x288xf32>
    %221 = tpu.matmul %219, %220, %cst_147 {dimension_numbers = #tpu.dot_dimension_numbers<[1], [0], [0], [1], [0, 0, 1, 1], [], []>} : vector<8x8xbf16>, vector<8x288xbf16>, vector<8x288xf32> -> vector<8x288xf32>
    %222 = arith.addf %218, %221 : vector<8x288xf32>
    %c0_148 = arith.constant 0 : index
    %c48_149 = arith.constant 48 : index
    %223 = vector.load %arg4[%c0_148, %c48_149] : memref<8x72xbf16, #tpu.memory_space<vmem>>, vector<8x8xbf16>
    %c0_150 = arith.constant 0 : index
    %c36_151 = arith.constant 36 : index
    %224 = vector.load %arg9[%c0_150, %c36_151] : memref<8x327xbf16, #tpu.memory_space<vmem>>, vector<8x288xbf16>
    %cst_152 = arith.constant dense<0.000000e+00> : vector<8x288xf32>
    %225 = tpu.matmul %223, %224, %cst_152 {dimension_numbers = #tpu.dot_dimension_numbers<[1], [0], [0], [1], [0, 0, 1, 1], [], []>} : vector<8x8xbf16>, vector<8x288xbf16>, vector<8x288xf32> -> vector<8x288xf32>
    %226 = arith.addf %222, %225 : vector<8x288xf32>
    %c0_153 = arith.constant 0 : index
    %c56_154 = arith.constant 56 : index
    %227 = vector.load %arg4[%c0_153, %c56_154] : memref<8x72xbf16, #tpu.memory_space<vmem>>, vector<8x8xbf16>
    %c0_155 = arith.constant 0 : index
    %c37_156 = arith.constant 37 : index
    %228 = vector.load %arg9[%c0_155, %c37_156] : memref<8x327xbf16, #tpu.memory_space<vmem>>, vector<8x288xbf16>
    %cst_157 = arith.constant dense<0.000000e+00> : vector<8x288xf32>
    %229 = tpu.matmul %227, %228, %cst_157 {dimension_numbers = #tpu.dot_dimension_numbers<[1], [0], [0], [1], [0, 0, 1, 1], [], []>} : vector<8x8xbf16>, vector<8x288xbf16>, vector<8x288xf32> -> vector<8x288xf32>
    %230 = arith.addf %226, %229 : vector<8x288xf32>
    %c0_158 = arith.constant 0 : index
    %c64_159 = arith.constant 64 : index
    %231 = vector.load %arg4[%c0_158, %c64_159] : memref<8x72xbf16, #tpu.memory_space<vmem>>, vector<8x8xbf16>
    %c0_160 = arith.constant 0 : index
    %c38_161 = arith.constant 38 : index
    %232 = vector.load %arg9[%c0_160, %c38_161] : memref<8x327xbf16, #tpu.memory_space<vmem>>, vector<8x288xbf16>
    %cst_162 = arith.constant dense<0.000000e+00> : vector<8x288xf32>
    %233 = tpu.matmul %231, %232, %cst_162 {dimension_numbers = #tpu.dot_dimension_numbers<[1], [0], [0], [1], [0, 0, 1, 1], [], []>} : vector<8x8xbf16>, vector<8x288xbf16>, vector<8x288xf32> -> vector<8x288xf32>
    %234 = arith.addf %230, %233 : vector<8x288xf32>
    %c0_163 = arith.constant 0 : index
    %c6 = arith.constant 6 : index
    %235 = vector.load %arg6[%c0_163, %c6] : memref<8x11xf32, #tpu.memory_space<vmem>>, vector<8x1xf32>
    %c0_164 = arith.constant 0 : index
    %c7 = arith.constant 7 : index
    %236 = vector.load %arg6[%c0_164, %c7] : memref<8x11xf32, #tpu.memory_space<vmem>>, vector<8x1xf32>
    %c0_165 = arith.constant 0 : index
    %c8_166 = arith.constant 8 : index
    %237 = vector.load %arg6[%c0_165, %c8_166] : memref<8x11xf32, #tpu.memory_space<vmem>>, vector<8x1xf32>
    %238 = vector.broadcast %20 : vector<1x288xf32> to vector<8x288xf32>
    %239 = arith.mulf %234, %238 : vector<8x288xf32>
    %cst_167 = arith.constant dense<0.000000e+00> : vector<8xf32>
    %240 = vector.multi_reduction <add>, %239, %cst_167 [1] : vector<8x288xf32> to vector<8xf32>
    %241 = vector.shape_cast %240 : vector<8xf32> to vector<8x1xf32>
    %242 = arith.mulf %239, %234 : vector<8x288xf32>
    %cst_168 = arith.constant dense<0.000000e+00> : vector<8xf32>
    %243 = vector.multi_reduction <add>, %242, %cst_168 [1] : vector<8x288xf32> to vector<8xf32>
    %244 = vector.shape_cast %243 : vector<8xf32> to vector<8x1xf32>
    %cst_169 = arith.constant 2.000000e+00 : f32
    %245 = vector.broadcast %cst_169 : f32 to vector<8x1xf32>
    %246 = arith.mulf %245, %235 : vector<8x1xf32>
    %247 = arith.mulf %246, %241 : vector<8x1xf32>
    %248 = arith.addf %244, %247 : vector<8x1xf32>
    %249 = arith.mulf %235, %235 : vector<8x1xf32>
    %cst_170 = arith.constant 2.560000e+02 : f32
    %250 = vector.broadcast %cst_170 : f32 to vector<8x1xf32>
    %251 = arith.mulf %250, %249 : vector<8x1xf32>
    %252 = arith.addf %248, %251 : vector<8x1xf32>
    %cst_171 = arith.constant 2.560000e+02 : f32
    %253 = vector.broadcast %cst_171 : f32 to vector<8x1xf32>
    %254 = arith.mulf %253, %235 : vector<8x1xf32>
    %255 = arith.addf %241, %254 : vector<8x1xf32>
    %256 = tpu.concatenate %255, %252 in 1 : vector<8x1xf32>, vector<8x1xf32> -> vector<8x2xf32>
    %c0_172 = arith.constant 0 : index
    %c0_173 = arith.constant 0 : index
    %257 = vector.load %arg7[%c0_172, %c0_173] : memref<8x8xf32, #tpu.memory_space<vmem>>, vector<8x8xf32>
    %cst_174 = arith.constant dense<0.000000e+00> : vector<8x2xf32>
    %258 = tpu.matmul %257, %256, %cst_174 {dimension_numbers = #tpu.dot_dimension_numbers<[1], [0], [0], [1], [0, 0, 1, 1], [], []>} : vector<8x8xf32>, vector<8x2xf32>, vector<8x2xf32> -> vector<8x2xf32>
    %cst_175 = arith.constant 0.001953125 : f32
    %259 = vector.broadcast %cst_175 : f32 to vector<8x2xf32>
    %260 = arith.mulf %258, %259 : vector<8x2xf32>
    %261 = vector.extract_strided_slice %260 {offsets = [0, 0], sizes = [8, 1], strides = [1, 1]} : vector<8x2xf32> to vector<8x1xf32>
    %262 = vector.extract_strided_slice %260 {offsets = [0, 1], sizes = [8, 1], strides = [1, 1]} : vector<8x2xf32> to vector<8x1xf32>
    %263 = arith.mulf %261, %261 : vector<8x1xf32>
    %264 = arith.subf %262, %263 : vector<8x1xf32>
    %cst_176 = arith.constant 9.99999974E-6 : f32
    %265 = vector.broadcast %cst_176 : f32 to vector<8x1xf32>
    %266 = arith.addf %264, %265 : vector<8x1xf32>
    %267 = math.rsqrt %266 : vector<8x1xf32>
    %268 = arith.mulf %236, %267 : vector<8x1xf32>
    %269 = arith.subf %235, %261 : vector<8x1xf32>
    %270 = arith.mulf %269, %268 : vector<8x1xf32>
    %271 = arith.addf %237, %270 : vector<8x1xf32>
    %272 = vector.broadcast %268 : vector<8x1xf32> to vector<8x288xf32>
    %273 = arith.mulf %234, %272 : vector<8x288xf32>
    %274 = vector.broadcast %271 : vector<8x1xf32> to vector<8x288xf32>
    %275 = arith.addf %273, %274 : vector<8x288xf32>
    %276 = arith.negf %275 : vector<8x288xf32>
    %277 = math.exp %276 : vector<8x288xf32>
    %cst_177 = arith.constant 1.000000e+00 : f32
    %278 = vector.broadcast %cst_177 : f32 to vector<8x288xf32>
    %279 = arith.addf %278, %277 : vector<8x288xf32>
    %280 = arith.divf %278, %279 : vector<8x288xf32>
    %281 = arith.mulf %275, %280 : vector<8x288xf32>
    %c0_178 = arith.constant 0 : index
    %c0_179 = arith.constant 0 : index
    %282 = vector.load %arg5[%c0_178, %c0_179] : memref<8x4xbf16, #tpu.memory_space<vmem>>, vector<8x4xbf16>
    %c0_180 = arith.constant 0 : index
    %c0_181 = arith.constant 0 : index
    %c0_182 = arith.constant 0 : index
    %283 = vector.load %arg1[%c0_180, %c0_181, %c0_182] : memref<1x4x288xbf16, #tpu.memory_space<vmem>>, vector<1x4x288xbf16>
    %284 = vector.shape_cast %283 : vector<1x4x288xbf16> to vector<4x288xbf16>
    %cst_183 = arith.constant dense<0.000000e+00> : vector<8x288xf32>
    %285 = tpu.matmul %282, %284, %cst_183 {dimension_numbers = #tpu.dot_dimension_numbers<[1], [0], [0], [1], [0, 0, 1, 1], [], []>} : vector<8x4xbf16>, vector<4x288xbf16>, vector<8x288xf32> -> vector<8x288xf32>
    %c0_184 = arith.constant 0 : index
    %c9 = arith.constant 9 : index
    %286 = vector.load %arg6[%c0_184, %c9] : memref<8x11xf32, #tpu.memory_space<vmem>>, vector<8x1xf32>
    %c0_185 = arith.constant 0 : index
    %c10 = arith.constant 10 : index
    %287 = vector.load %arg6[%c0_185, %c10] : memref<8x11xf32, #tpu.memory_space<vmem>>, vector<8x1xf32>
    %288 = vector.broadcast %20 : vector<1x288xf32> to vector<8x288xf32>
    %289 = arith.mulf %285, %288 : vector<8x288xf32>
    %cst_186 = arith.constant dense<0.000000e+00> : vector<8xf32>
    %290 = vector.multi_reduction <add>, %289, %cst_186 [1] : vector<8x288xf32> to vector<8xf32>
    %291 = vector.shape_cast %290 : vector<8xf32> to vector<8x1xf32>
    %292 = arith.mulf %289, %285 : vector<8x288xf32>
    %cst_187 = arith.constant dense<0.000000e+00> : vector<8xf32>
    %293 = vector.multi_reduction <add>, %292, %cst_187 [1] : vector<8x288xf32> to vector<8xf32>
    %294 = vector.shape_cast %293 : vector<8xf32> to vector<8x1xf32>
    %295 = tpu.concatenate %291, %294 in 1 : vector<8x1xf32>, vector<8x1xf32> -> vector<8x2xf32>
    %c0_188 = arith.constant 0 : index
    %c0_189 = arith.constant 0 : index
    %296 = vector.load %arg7[%c0_188, %c0_189] : memref<8x8xf32, #tpu.memory_space<vmem>>, vector<8x8xf32>
    %cst_190 = arith.constant dense<0.000000e+00> : vector<8x2xf32>
    %297 = tpu.matmul %296, %295, %cst_190 {dimension_numbers = #tpu.dot_dimension_numbers<[1], [0], [0], [1], [0, 0, 1, 1], [], []>} : vector<8x8xf32>, vector<8x2xf32>, vector<8x2xf32> -> vector<8x2xf32>
    %cst_191 = arith.constant 0.001953125 : f32
    %298 = vector.broadcast %cst_191 : f32 to vector<8x2xf32>
    %299 = arith.mulf %297, %298 : vector<8x2xf32>
    %300 = vector.extract_strided_slice %299 {offsets = [0, 0], sizes = [8, 1], strides = [1, 1]} : vector<8x2xf32> to vector<8x1xf32>
    %301 = vector.extract_strided_slice %299 {offsets = [0, 1], sizes = [8, 1], strides = [1, 1]} : vector<8x2xf32> to vector<8x1xf32>
    %302 = arith.mulf %300, %300 : vector<8x1xf32>
    %303 = arith.subf %301, %302 : vector<8x1xf32>
    %cst_192 = arith.constant 9.99999974E-6 : f32
    %304 = vector.broadcast %cst_192 : f32 to vector<8x1xf32>
    %305 = arith.addf %303, %304 : vector<8x1xf32>
    %306 = math.rsqrt %305 : vector<8x1xf32>
    %307 = arith.mulf %286, %306 : vector<8x1xf32>
    %308 = arith.mulf %300, %307 : vector<8x1xf32>
    %309 = arith.subf %287, %308 : vector<8x1xf32>
    %310 = vector.broadcast %307 : vector<8x1xf32> to vector<8x288xf32>
    %311 = arith.mulf %285, %310 : vector<8x288xf32>
    %312 = vector.broadcast %309 : vector<8x1xf32> to vector<8x288xf32>
    %313 = arith.addf %311, %312 : vector<8x288xf32>
    %314 = arith.addf %281, %313 : vector<8x288xf32>
    %c0_193 = arith.constant 0 : index
    %c0_194 = arith.constant 0 : index
    %c0_195 = arith.constant 0 : index
    %315 = vector.load %arg8[%c0_193, %c0_194, %c0_195] : memref<1x8x288xf32, #tpu.memory_space<vmem>>, vector<1x8x288xf32>
    %316 = vector.shape_cast %315 : vector<1x8x288xf32> to vector<8x288xf32>
    %317 = vector.shape_cast %314 : vector<8x288xf32> to vector<1x8x288xf32>
    tpu.vector_store %arg8[%c0_193, %c0_194, %c0_195], %317 {strides = array<i32>} : memref<1x8x288xf32, #tpu.memory_space<vmem>>, vector<1x8x288xf32>,
    return
  }
  func.func @transform_0(%arg0: i32) -> (i32, i32, i32) {
    %c0_i32 = arith.constant 0 : i32
    %c0_i32_0 = arith.constant 0 : i32
    %c0_i32_1 = arith.constant 0 : i32
    return %arg0, %c0_i32, %c0_i32_0 : i32, i32, i32
  }
  func.func @transform_1(%arg0: i32) -> (i32, i32) {
    %c0_i32 = arith.constant 0 : i32
    %c0_i32_0 = arith.constant 0 : i32
    %c0_i32_1 = arith.constant 0 : i32
    return %c0_i32, %c0_i32_0 : i32, i32
  }
  func.func @transform_2(%arg0: i32) -> (i32, i32) {
    %c0_i32 = arith.constant 0 : i32
    %c0_i32_0 = arith.constant 0 : i32
    %c0_i32_1 = arith.constant 0 : i32
    return %c0_i32, %c0_i32_0 : i32, i32
  }
  func.func @transform_3(%arg0: i32) -> (i32, i32) {
    %c0_i32 = arith.constant 0 : i32
    %c0_i32_0 = arith.constant 0 : i32
    %c0_i32_1 = arith.constant 0 : i32
    return %c0_i32, %c0_i32_0 : i32, i32
  }
  func.func @transform_4(%arg0: i32) -> (i32, i32) {
    %c0_i32 = arith.constant 0 : i32
    %c0_i32_0 = arith.constant 0 : i32
    %c0_i32_1 = arith.constant 0 : i32
    return %c0_i32, %c0_i32_0 : i32, i32
  }
  func.func @transform_5(%arg0: i32) -> (i32, i32) {
    %c0_i32 = arith.constant 0 : i32
    %c0_i32_0 = arith.constant 0 : i32
    %c0_i32_1 = arith.constant 0 : i32
    return %c0_i32, %c0_i32_0 : i32, i32
  }
  func.func @transform_6(%arg0: i32) -> (i32, i32) {
    %c0_i32 = arith.constant 0 : i32
    %c0_i32_0 = arith.constant 0 : i32
    %c0_i32_1 = arith.constant 0 : i32
    return %c0_i32, %c0_i32_0 : i32, i32
  }
  func.func @transform_7(%arg0: i32) -> (i32, i32, i32) {
    %c0_i32 = arith.constant 0 : i32
    %c0_i32_0 = arith.constant 0 : i32
    %c0_i32_1 = arith.constant 0 : i32
    return %arg0, %c0_i32, %c0_i32_0 : i32, i32, i32
  }
}

</mosaic_0001>

<llo_original>
// kernel: tpu_custom_call.1
$region0: #{tpu_custom_call.1}
  #allocation0 [shape = 'u32[]', space=smem, size = 0x4, offset = 0x4, fixed_abs, tag = 'smem constant byte address 0x4 - core index']
  #allocation1 [shape = 'u32[144,128]{1,0:T(1,128)}', space=vmem, size = 0x12000, scoped, tag = 'internal scratch']
  #allocation2 [shape = 'bf16[8,327]{1,0:T(8,128)(2,1)}', space=vmem, size = 0x1800, scoped, tag = 'scratch operand']
  %s0 = inlined_call_operand.hbm [shape: bf16[2,4,288], index: 0, kind: input, shape index: {}]
  %s1 = inlined_call_operand.hbm [shape: bf16[8,36], index: 1, kind: input, shape index: {}]
  %s2 = inlined_call_operand.hbm [shape: bf16[8,72], index: 2, kind: input, shape index: {}]
  %s3 = inlined_call_operand.hbm [shape: bf16[8,72], index: 3, kind: input, shape index: {}]
  %s4 = inlined_call_operand.hbm [shape: bf16[8,4], index: 4, kind: input, shape index: {}]
  %s5 = inlined_call_operand.hbm [shape: f32[8,11], index: 5, kind: input, shape index: {}]
  %s6 = inlined_call_operand.hbm [shape: f32[8,8], index: 6, kind: input, shape index: {}]
  %s7 = inlined_call_operand.hbm [shape: f32[2,8,288], index: 7, kind: output, shape index: {}]
  %s8 = sld [smem:[#allocation0]]
  $region89: #{tpu_custom_call.1} parent=0
    _
  %s10 = ssub.s32 1, %s8
  %s11 = scalar_select 0, %s10, %s8
  $region1: #{tpu_custom_call.1} parent=0
    #allocation3 [shape = 'u8[6144]{0}', space=vmem, size = 0x1800, scoped, tag = 'input window, operand 0']
    #allocation4 [shape = 's32[2]{0}', space=sflag, size = 0x8, scoped, tag = 'scoped memory for tpu_custom_call.1']
    #allocation5 [shape = 's32[2]{0}', space=sflag, size = 0x8, scoped, tag = 'scoped memory for tpu_custom_call.1']
    #allocation6 [shape = 'u8[2048]{0}', space=vmem, size = 0x800, scoped, tag = 'input window, operand 1, single buffered']
    #allocation7 [shape = 's32[1]{0}', space=sflag, size = 0x4, scoped, tag = 'scoped memory for tpu_custom_call.1']
    #allocation8 [shape = 'u8[2048]{0}', space=vmem, size = 0x800, scoped, tag = 'input window, operand 2, single buffered']
    #allocation9 [shape = 'u8[2048]{0}', space=vmem, size = 0x800, scoped, tag = 'input window, operand 3, single buffered']
    #allocation10 [shape = 's32[1]{0}', space=sflag, size = 0x4, scoped, tag = 'scoped memory for tpu_custom_call.1']
    #allocation11 [shape = 'u8[2048]{0}', space=vmem, size = 0x800, scoped, tag = 'input window, operand 4, single buffered']
    #allocation12 [shape = 'u8[4096]{0}', space=vmem, size = 0x1000, scoped, tag = 'input window, operand 5, single buffered']
    #allocation13 [shape = 's32[1]{0}', space=sflag, size = 0x4, scoped, tag = 'scoped memory for tpu_custom_call.1']
    #allocation14 [shape = 'u8[4096]{0}', space=vmem, size = 0x1000, scoped, tag = 'input window, operand 6, single buffered']
    #allocation15 [shape = 'u8[24576]{0}', space=vmem, size = 0x6000, scoped, tag = 'output window, operand 0']
    %12 = vsyncpa [#allocation4], 0
    %s13 = scalar_lea.sflag [#allocation4], 1
    %14 = vsyncpa %s13, 0
    %15 = vsyncpa [#allocation7], 0
    %16 = vsyncpa [#allocation10], 0
    %17 = vsyncpa [#allocation13], 0
    %18 = vsyncpa [#allocation5], 0
    %s19 = scalar_lea.sflag [#allocation5], 1
    %20 = vsyncpa %s19, 0
    loop: start=0, step=1, limit=4
    $region2: #{tpu_custom_call.1} parent=1 // loop_pre_header
      _
    $region3: #{tpu_custom_call.1} parent=1 // loop_header
      %s22 = sphi 0, %s26
      %p23 = scmp.ge.s32.totalorder %s22, 4
      %s32 = sphi 0, %s34
      %s35 = sphi 0, %s32
      %s36 = sphi 0, %s35
      %s52 = sphi 0, %s36
      %s56 = sphi 0, %s56
      %s58 = sphi 0, %s56
      %s59 = sphi 0, %s58
      %s73 = sphi 0, %s59
      %s77 = sphi 0, %s77
      %s79 = sphi 0, %s77
      %s80 = sphi 0, %s79
      %s94 = sphi 0, %s80
      %s98 = sphi 0, %s98
      %s100 = sphi 0, %s98
      %s101 = sphi 0, %s100
      %s115 = sphi 0, %s101
      %s119 = sphi 0, %s119
      %s121 = sphi 0, %s119
      %s122 = sphi 0, %s121
      %s136 = sphi 0, %s122
      %s140 = sphi 0, %s140
      %s142 = sphi 0, %s140
      %s143 = sphi 0, %s142
      %s157 = sphi 0, %s143
      %s161 = sphi 0, %s161
      %s163 = sphi 0, %s161
      %s164 = sphi 0, %s163
      %s178 = sphi 0, %s164
      %s184 = sphi 0, %s186
      %s187 = sphi 0, %s184
      %s188 = sphi 0, %s187
      %s204 = sphi 0, %s188
    $region4: #{tpu_custom_call.1} parent=1 // loop_header_branch
      %25 = sbr.rel (%p23) target = $region8
    $region5: #{tpu_custom_call.1} parent=1 // loop_body
      %s27 = ssub.s32 %s22, 1
      %s28 = ssub.s32 %s22, 2
      %s29 = sadd.s32 %s22, 1
      %s30 = ssub.s32 %s22, %s29
      %p31 = scmp.eq.s32.totalorder %s30, 0
      %s33 = sadd.s32 %s32, 1
      %s34 = scalar_select %p31, %s32, %s33
      %p37 = pneg %p31
      %p38 = scmp.eq.s32.totalorder %s22, 1
      %p39 = por %p37, %p38
      %p40 = scmp.ne.s32.totalorder %s32, %s35
      %p41 = scmp.eq.s32.totalorder %s22, 0
      %p42 = por %p40, %p41
      %p43 = scmp.ne.s32.totalorder %s32, %s35
      %p44 = scmp.eq.s32.totalorder %s27, 1
      %p45 = por %p43, %p44
      %p46 = scmp.ne.s32.totalorder %s35, %s36
      %p47 = scmp.eq.s32.totalorder %s27, 0
      %p48 = por %p46, %p47
      %p49 = scmp.ne.s32.totalorder %s35, %s36
      %p50 = scmp.eq.s32.totalorder %s28, 1
      %p51 = por %p49, %p50
      %p53 = scmp.ne.s32.totalorder %s36, %s52
      %p54 = scmp.eq.s32.totalorder %s28, 0
      %p55 = por %p53, %p54
      %s57 = sadd.s32 %s56, 1
      %p60 = scmp.eq.s32.totalorder %s22, 1
      %p61 = scmp.ne.s32.totalorder %s56, %s58
      %p62 = scmp.eq.s32.totalorder %s22, 0
      %p63 = por %p61, %p62
      %p64 = scmp.ne.s32.totalorder %s56, %s58
      %p65 = scmp.eq.s32.totalorder %s27, 1
      %p66 = por %p64, %p65
      %p67 = scmp.ne.s32.totalorder %s58, %s59
      %p68 = scmp.eq.s32.totalorder %s27, 0
      %p69 = por %p67, %p68
      %p70 = scmp.ne.s32.totalorder %s58, %s59
      %p71 = scmp.eq.s32.totalorder %s28, 1
      %p72 = por %p70, %p71
      %p74 = scmp.ne.s32.totalorder %s59, %s73
      %p75 = scmp.eq.s32.totalorder %s28, 0
      %p76 = por %p74, %p75
      %s78 = sadd.s32 %s77, 1
      %p81 = scmp.eq.s32.totalorder %s22, 1
      %p82 = scmp.ne.s32.totalorder %s77, %s79
      %p83 = scmp.eq.s32.totalorder %s22, 0
      %p84 = por %p82, %p83
      %p85 = scmp.ne.s32.totalorder %s77, %s79
      %p86 = scmp.eq.s32.totalorder %s27, 1
      %p87 = por %p85, %p86
      %p88 = scmp.ne.s32.totalorder %s79, %s80
      %p89 = scmp.eq.s32.totalorder %s27, 0
      %p90 = por %p88, %p89
      %p91 = scmp.ne.s32.totalorder %s79, %s80
      %p92 = scmp.eq.s32.totalorder %s28, 1
      %p93 = por %p91, %p92
      %p95 = scmp.ne.s32.totalorder %s80, %s94
      %p96 = scmp.eq.s32.totalorder %s28, 0
      %p97 = por %p95, %p96
      %s99 = sadd.s32 %s98, 1
      %p102 = scmp.eq.s32.totalorder %s22, 1
      %p103 = scmp.ne.s32.totalorder %s98, %s100
      %p104 = scmp.eq.s32.totalorder %s22, 0
      %p105 = por %p103, %p104
      %p106 = scmp.ne.s32.totalorder %s98, %s100
      %p107 = scmp.eq.s32.totalorder %s27, 1
      %p108 = por %p106, %p107
      %p109 = scmp.ne.s32.totalorder %s100, %s101
      %p110 = scmp.eq.s32.totalorder %s27, 0
      %p111 = por %p109, %p110
      %p112 = scmp.ne.s32.totalorder %s100, %s101
      %p113 = scmp.eq.s32.totalorder %s28, 1
      %p114 = por %p112, %p113
      %p116 = scmp.ne.s32.totalorder %s101, %s115
      %p117 = scmp.eq.s32.totalorder %s28, 0
      %p118 = por %p116, %p117
      %s120 = sadd.s32 %s119, 1
      %p123 = scmp.eq.s32.totalorder %s22, 1
      %p124 = scmp.ne.s32.totalorder %s119, %s121
      %p125 = scmp.eq.s32.totalorder %s22, 0
      %p126 = por %p124, %p125
      %p127 = scmp.ne.s32.totalorder %s119, %s121
      %p128 = scmp.eq.s32.totalorder %s27, 1
      %p129 = por %p127, %p128
      %p130 = scmp.ne.s32.totalorder %s121, %s122
      %p131 = scmp.eq.s32.totalorder %s27, 0
      %p132 = por %p130, %p131
      %p133 = scmp.ne.s32.totalorder %s121, %s122
      %p134 = scmp.eq.s32.totalorder %s28, 1
      %p135 = por %p133, %p134
      %p137 = scmp.ne.s32.totalorder %s122, %s136
      %p138 = scmp.eq.s32.totalorder %s28, 0
      %p139 = por %p137, %p138
      %s141 = sadd.s32 %s140, 1
      %p144 = scmp.eq.s32.totalorder %s22, 1
      %p145 = scmp.ne.s32.totalorder %s140, %s142
      %p146 = scmp.eq.s32.totalorder %s22, 0
      %p147 = por %p145, %p146
      %p148 = scmp.ne.s32.totalorder %s140, %s142
      %p149 = scmp.eq.s32.totalorder %s27, 1
      %p150 = por %p148, %p149
      %p151 = scmp.ne.s32.totalorder %s142, %s143
      %p152 = scmp.eq.s32.totalorder %s27, 0
      %p153 = por %p151, %p152
      %p154 = scmp.ne.s32.totalorder %s142, %s143
      %p155 = scmp.eq.s32.totalorder %s28, 1
      %p156 = por %p154, %p155
      %p158 = scmp.ne.s32.totalorder %s143, %s157
      %p159 = scmp.eq.s32.totalorder %s28, 0
      %p160 = por %p158, %p159
      %s162 = sadd.s32 %s161, 1
      %p165 = scmp.eq.s32.totalorder %s22, 1
      %p166 = scmp.ne.s32.totalorder %s161, %s163
      %p167 = scmp.eq.s32.totalorder %s22, 0
      %p168 = por %p166, %p167
      %p169 = scmp.ne.s32.totalorder %s161, %s163
      %p170 = scmp.eq.s32.totalorder %s27, 1
      %p171 = por %p169, %p170
      %p172 = scmp.ne.s32.totalorder %s163, %s164
      %p173 = scmp.eq.s32.totalorder %s27, 0
      %p174 = por %p172, %p173
      %p175 = scmp.ne.s32.totalorder %s163, %s164
      %p176 = scmp.eq.s32.totalorder %s28, 1
      %p177 = por %p175, %p176
      %p179 = scmp.ne.s32.totalorder %s164, %s178
      %p180 = scmp.eq.s32.totalorder %s28, 0
      %p181 = por %p179, %p180
      %s182 = ssub.s32 %s22, %s29
      %p183 = scmp.eq.s32.totalorder %s182, 0
      %s185 = sadd.s32 %s184, 1
      %s186 = scalar_select %p183, %s184, %s185
      %p189 = pneg %p183
      %p190 = scmp.eq.s32.totalorder %s22, 1
      %p191 = por %p189, %p190
      %p192 = scmp.ne.s32.totalorder %s184, %s187
      %p193 = scmp.eq.s32.totalorder %s22, 0
      %p194 = por %p192, %p193
      %p195 = scmp.ne.s32.totalorder %s184, %s187
      %p196 = scmp.eq.s32.totalorder %s27, 1
      %p197 = por %p195, %p196
      %p198 = scmp.ne.s32.totalorder %s187, %s188
      %p199 = scmp.eq.s32.totalorder %s27, 0
      %p200 = por %p198, %p199
      %p201 = scmp.ne.s32.totalorder %s187, %s188
      %p202 = scmp.eq.s32.totalorder %s28, 1
      %p203 = por %p201, %p202
      %p205 = scmp.ne.s32.totalorder %s188, %s204
      %p206 = scmp.eq.s32.totalorder %s28, 0
      %p207 = por %p205, %p206
      %p208 = scmp.le.s32.totalorder 1, %s22
      %p209 = scmp.lt.s32.totalorder %s22, 3
      %p210 = pnand %p208, %p209
      %p211 = pneg %p210
      // Predicated region
      $region9: #{tpu_custom_call.1} parent=5 // pred_check
        _
      $region10: #{tpu_custom_call.1} parent=5 // pred_check_branch
        %213 = sbr.rel (%p210) target = $region12
      $region11: #{tpu_custom_call.1} parent=5 // pred_region
        %s214 = ssub.s32 %s22, 1
        // Predicated region
        $region13: #{tpu_custom_call.1} parent=11 // pred_check
          %p215 = pneg %p69
        $region14: #{tpu_custom_call.1} parent=11 // pred_check_branch
          %217 = sbr.rel (%p215) target = $region16
        $region15: #{tpu_custom_call.1} parent=11 // pred_region
          %s219 = ssub.s32 64, 64
          %220 = vsyncadd [#allocation7], %s219
          %s222 = sshll.u32 [#allocation6], 4
          %s223 = int_to_ptr.vmem [resolvable:$true] %s222
          %225 = dma.hbm_to_vmem [thread:$0]  %s1, 64, %s223, [#allocation7]
        $region16: #{tpu_custom_call.1} parent=11 // pred_fallthru
          _
        // Predicated region
        $region17: #{tpu_custom_call.1} parent=11 // pred_check
          %p226 = pneg %p90
        $region18: #{tpu_custom_call.1} parent=11 // pred_check_branch
          %228 = sbr.rel (%p226) target = $region20
        $region19: #{tpu_custom_call.1} parent=11 // pred_region
          %s230 = ssub.s32 64, 64
          %231 = vsyncadd [#allocation7], %s230
          %s233 = sshll.u32 [#allocation8], 4
          %s234 = int_to_ptr.vmem [resolvable:$true] %s233
          %236 = dma.hbm_to_vmem [thread:$0]  %s2, 64, %s234, [#allocation7]
        $region20: #{tpu_custom_call.1} parent=11 // pred_fallthru
          _
        // Predicated region
        $region21: #{tpu_custom_call.1} parent=11 // pred_check
          %p237 = pneg %p111
        $region22: #{tpu_custom_call.1} parent=11 // pred_check_branch
          %239 = sbr.rel (%p237) target = $region24
        $region23: #{tpu_custom_call.1} parent=11 // pred_region
          %s241 = ssub.s32 64, 64
          %242 = vsyncadd [#allocation10], %s241
          %s244 = sshll.u32 [#allocation9], 4
          %s245 = int_to_ptr.vmem [resolvable:$true] %s244
          %247 = dma.hbm_to_vmem [thread:$0]  %s3, 64, %s245, [#allocation10]
        $region24: #{tpu_custom_call.1} parent=11 // pred_fallthru
          _
        // Predicated region
        $region25: #{tpu_custom_call.1} parent=11 // pred_check
          %p248 = pneg %p132
        $region26: #{tpu_custom_call.1} parent=11 // pred_check_branch
          %250 = sbr.rel (%p248) target = $region28
        $region27: #{tpu_custom_call.1} parent=11 // pred_region
          %s252 = ssub.s32 64, 64
          %253 = vsyncadd [#allocation10], %s252
          %s255 = sshll.u32 [#allocation11], 4
          %s256 = int_to_ptr.vmem [resolvable:$true] %s255
          %258 = dma.hbm_to_vmem [thread:$0]  %s4, 64, %s256, [#allocation10]
        $region28: #{tpu_custom_call.1} parent=11 // pred_fallthru
          _
        // Predicated region
        $region29: #{tpu_custom_call.1} parent=11 // pred_check
          %p259 = pneg %p153
        $region30: #{tpu_custom_call.1} parent=11 // pred_check_branch
          %261 = sbr.rel (%p259) target = $region32
        $region31: #{tpu_custom_call.1} parent=11 // pred_region
          %s263 = ssub.s32 128, 128
          %264 = vsyncadd [#allocation13], %s263
          %s266 = sshll.u32 [#allocation12], 4
          %s267 = int_to_ptr.vmem [resolvable:$true] %s266
          %269 = dma.hbm_to_vmem [thread:$0]  %s5, 128, %s267, [#allocation13]
        $region32: #{tpu_custom_call.1} parent=11 // pred_fallthru
          _
        // Predicated region
        $region33: #{tpu_custom_call.1} parent=11 // pred_check
          %p270 = pneg %p174
        $region34: #{tpu_custom_call.1} parent=11 // pred_check_branch
          %272 = sbr.rel (%p270) target = $region36
        $region35: #{tpu_custom_call.1} parent=11 // pred_region
          %s274 = ssub.s32 128, 128
          %275 = vsyncadd [#allocation13], %s274
          %s277 = sshll.u32 [#allocation14], 4
          %s278 = int_to_ptr.vmem [resolvable:$true] %s277
          %280 = dma.hbm_to_vmem [thread:$0]  %s6, 128, %s278, [#allocation13]
        $region36: #{tpu_custom_call.1} parent=11 // pred_fallthru
          _
      $region12: #{tpu_custom_call.1} parent=5 // pred_fallthru
        _
      %p281 = scmp.lt.s32.totalorder %s22, 2
      // Predicated region
      $region37: #{tpu_custom_call.1} parent=5 // pred_check
        %p282 = pneg %p281
      $region38: #{tpu_custom_call.1} parent=5 // pred_check_branch
        %284 = sbr.rel (%p282) target = $region40
      $region39: #{tpu_custom_call.1} parent=5 // pred_region
        // Predicated region
        $region41: #{tpu_custom_call.1} parent=39 // pred_check
          %p285 = pneg %p42
        $region42: #{tpu_custom_call.1} parent=39 // pred_check_branch
          %287 = sbr.rel (%p285) target = $region44
        $region43: #{tpu_custom_call.1} parent=39 // pred_region
          %s288 = sand.u32 %s32, 1
          %s289 = scalar_lea.sflag [#allocation4], %s288
          %s290 = sand.u32 %s32, 1
          %s291 = smul.addr %s290, 6
          %s292 = scalar_lea.vmem [#allocation3], %s291
          %s294 = ssub.s32 96, 96
          %295 = vsyncadd %s289, %s294
          %s296 = smul.addr %s22, 3
          %s297 = smul.addr %s296, 32
          %s298 = scalar_lea.hbm %s0, %s297
          %s300 = sshll.u32 %s292, 4
          %s301 = int_to_ptr.vmem [resolvable:$true] %s300
          %303 = dma.hbm_to_vmem [thread:$0]  %s298, 96, %s301, %s289
        $region44: #{tpu_custom_call.1} parent=39 // pred_fallthru
          _
      $region40: #{tpu_custom_call.1} parent=5 // pred_fallthru
        _
      %p304 = scmp.le.s32.totalorder 1, %s22
      %p305 = scmp.lt.s32.totalorder %s22, 3
      %p306 = pnand %p304, %p305
      %p307 = pneg %p306
      // Predicated region
      $region45: #{tpu_custom_call.1} parent=5 // pred_check
        _
      $region46: #{tpu_custom_call.1} parent=5 // pred_check_branch
        %309 = sbr.rel (%p306) target = $region48
      $region47: #{tpu_custom_call.1} parent=5 // pred_region
        %s310 = ssub.s32 %s22, 1
        %s311 = sand.u32 %s35, 1
        %s312 = scalar_lea.sflag [#allocation4], %s311
        %s313 = sand.u32 %s35, 1
        %s314 = smul.addr %s313, 6
        %s315 = scalar_lea.vmem [#allocation3], %s314
        // Predicated region
        $region49: #{tpu_custom_call.1} parent=47 // pred_check
          %p316 = pneg %p48
        $region50: #{tpu_custom_call.1} parent=47 // pred_check_branch
          %318 = sbr.rel (%p316) target = $region52
        $region51: #{tpu_custom_call.1} parent=47 // pred_region
          %319 = dma.done %s312, 96
        $region52: #{tpu_custom_call.1} parent=47 // pred_fallthru
          _
        // Predicated region
        $region53: #{tpu_custom_call.1} parent=47 // pred_check
          %p320 = pneg %p69
        $region54: #{tpu_custom_call.1} parent=47 // pred_check_branch
          %322 = sbr.rel (%p320) target = $region56
        $region55: #{tpu_custom_call.1} parent=47 // pred_region
          %323 = dma.done [#allocation7], 64
        $region56: #{tpu_custom_call.1} parent=47 // pred_fallthru
          _
        // Predicated region
        $region57: #{tpu_custom_call.1} parent=47 // pred_check
          %p324 = pneg %p90
        $region58: #{tpu_custom_call.1} parent=47 // pred_check_branch
          %326 = sbr.rel (%p324) target = $region60
        $region59: #{tpu_custom_call.1} parent=47 // pred_region
          %327 = dma.done [#allocation7], 64
        $region60: #{tpu_custom_call.1} parent=47 // pred_fallthru
          _
        // Predicated region
        $region61: #{tpu_custom_call.1} parent=47 // pred_check
          %p328 = pneg %p111
        $region62: #{tpu_custom_call.1} parent=47 // pred_check_branch
          %330 = sbr.rel (%p328) target = $region64
        $region63: #{tpu_custom_call.1} parent=47 // pred_region
          %331 = dma.done [#allocation10], 64
        $region64: #{tpu_custom_call.1} parent=47 // pred_fallthru
          _
        // Predicated region
        $region65: #{tpu_custom_call.1} parent=47 // pred_check
          %p332 = pneg %p132
        $region66: #{tpu_custom_call.1} parent=47 // pred_check_branch
          %334 = sbr.rel (%p332) target = $region68
        $region67: #{tpu_custom_call.1} parent=47 // pred_region
          %335 = dma.done [#allocation10], 64
        $region68: #{tpu_custom_call.1} parent=47 // pred_fallthru
          _
        // Predicated region
        $region69: #{tpu_custom_call.1} parent=47 // pred_check
          %p336 = pneg %p153
        $region70: #{tpu_custom_call.1} parent=47 // pred_check_branch
          %338 = sbr.rel (%p336) target = $region72
        $region71: #{tpu_custom_call.1} parent=47 // pred_region
          %339 = dma.done [#allocation13], 128
        $region72: #{tpu_custom_call.1} parent=47 // pred_fallthru
          _
        // Predicated region
        $region73: #{tpu_custom_call.1} parent=47 // pred_check
          %p340 = pneg %p174
        $region74: #{tpu_custom_call.1} parent=47 // pred_check_branch
          %342 = sbr.rel (%p340) target = $region76
        $region75: #{tpu_custom_call.1} parent=47 // pred_region
          %343 = dma.done [#allocation13], 128
        $region76: #{tpu_custom_call.1} parent=47 // pred_fallthru
          _
        %s344 = sand.u32 %s35, 1
        %s345 = scalar_lea.sflag [#allocation4], %s344
        %s346 = sand.u32 %s35, 1
        %s347 = smul.addr %s346, 6
        %s348 = scalar_lea.vmem [#allocation3], %s347
        %p349 = pneg %p48
        %p350 = pneg %p45
        %p351 = pneg %p69
        %p352 = pneg %p66
        %p353 = pneg %p90
        %p354 = pneg %p87
        %p355 = pneg %p111
        %p356 = pneg %p108
        %p357 = pneg %p132
        %p358 = pneg %p129
        %p359 = pneg %p153
        %p360 = pneg %p150
        %p361 = pneg %p174
        %p362 = pneg %p171
        %p363 = pneg %p200
        %p364 = pneg %p197
        %s365 = sand.u32 %s187, 1
        %s366 = scalar_lea.sflag [#allocation5], %s365
        %s367 = sand.u32 %s187, 1
        %s368 = smul.addr %s367, 24
        %s369 = scalar_lea.vmem [#allocation15], %s368
        %v371 = vlaneseq
        %v372 = vand.u32 %v371, 127
        %v373 = vadd.s32 %v372, 128
        %v374 = vadd.s32 %v372, 256
        %vm375 = vcmp.lt.s32.totalorder %v372, 0
        %v376 = vsub.s32 0, %v372
        %v377 = vsel %vm375, %v376, %v372
        %v378 = vmul.u32.u64.compose %v377, 3817748708
        %v379 = vextract.low.u32 %v378
        %v380 = vextract.high.u32 %v378
        %v381 = vshrl.u32 %v380, 4
        %v382 = vmul.u32 %v381, 18
        %v383 = vsub.s32 %v377, %v382
        %v384 = vsub.s32 0, %v383
        %v385 = vsel %vm375, %v384, %v383
        %vm386 = vcmp.lt.s32.totalorder %v373, 0
        %v387 = vsub.s32 0, %v373
        %v388 = vsel %vm386, %v387, %v373
        %v389 = vmul.u32.u64.compose %v388, 3817748708
        %v390 = vextract.low.u32 %v389
        %v391 = vextract.high.u32 %v389
        %v392 = vshrl.u32 %v391, 4
        %v393 = vmul.u32 %v392, 18
        %v394 = vsub.s32 %v388, %v393
        %v395 = vsub.s32 0, %v394
        %v396 = vsel %vm386, %v395, %v394
        %vm397 = vcmp.lt.s32.totalorder %v374, 0
        %v398 = vsub.s32 0, %v374
        %v399 = vsel %vm397, %v398, %v374
        %v400 = vmul.u32.u64.compose %v399, 3817748708
        %v401 = vextract.low.u32 %v400
        %v402 = vextract.high.u32 %v400
        %v403 = vshrl.u32 %v402, 4
        %v404 = vmul.u32 %v403, 18
        %v405 = vsub.s32 %v399, %v404
        %v406 = vsub.s32 0, %v405
        %v407 = vsel %vm397, %v406, %v405
        %vm408 = vcmp.ne.s32.totalorder %v385, 0
        %vm409 = vcmp.ne.s32.totalorder %v396, 0
        %vm410 = vcmp.ne.s32.totalorder %v407, 0
        %vm411 = vcmp.lt.s32.totalorder %v385, 0
        %vm412 = vcmp.lt.s32.totalorder %v396, 0
        %vm413 = vcmp.lt.s32.totalorder %v407, 0
        %vm414 = vmand %vm411, %vm408
        %vm415 = vmand %vm412, %vm409
        %vm416 = vmand %vm413, %vm410
        %v417 = vadd.s32 %v385, 18
        %v418 = vadd.s32 %v396, 18
        %v419 = vadd.s32 %v407, 18
        %v420 = vsel %vm414, %v417, %v385
        %v421 = vsel %vm415, %v418, %v396
        %v422 = vsel %vm416, %v419, %v407
        %vm423 = vcmp.lt.s32.totalorder %v420, 16
        %vm424 = vcmp.lt.s32.totalorder %v421, 16
        %vm425 = vcmp.lt.s32.totalorder %v422, 16
        %v426 = vsel %vm423, 1, 0
        %v427 = vsel %vm424, 1, 0
        %v428 = vsel %vm425, 1, 0
        %v429 = vcvt.s32.f32 %v426
        %v430 = vcvt.s32.f32 %v427
        %v431 = vcvt.s32.f32 %v428
        %vm432 = vcmask 150528
        %433 = vst.msk [vmem:[#allocation2] sm:$0xf] %vm432, 0
        %vm434 = vcmask 576920
        %435 = vst.msk [vmem:[#allocation2 + $0x8] sm:$0xf] %vm434, 0
        %v436 = vld [vmem:[%s315] sm:$0x3f]
        %v438 = vcombine.high %v436, %v436
        %v440 = vunpack.c.l.s4 1983009808
        %v441 = vunpack.c.0.s8 %v440
        %v442 = vlaneseq
        %v443 = vshrl.u32 %v442, 7
        %v444 = vsub.s32 %v441, %v443
        %v445 = vrot.slane %v436, %v444
        %v447 = vunpack.c.l.s4 1983009808
        %v448 = vunpack.c.0.s8 %v447
        %v449 = vlaneseq
        %v450 = vshrl.u32 %v449, 7
        %v451 = vsub.s32 %v448, %v450
        %v452 = vrot.slane %v438, %v451
        %453 = vrot.lane.b32.xlu0 %v445, 19
        %v454 = vpop.permute.xlu0 %453
        %455 = vrot.lane.b32.xlu0 %v452, 19
        %v456 = vpop.permute.xlu0 %455
        %v457 = vrot.slane %v454, 4
        %vm458 = vcmask 154624
        %v459 = vsel %vm458, %v457, %v454
        %v460 = vsel %vm458, %v457, %v456
        %vm463 = vcmask 1041560
        %vm464 = vcmask 1045508
        %vm465 = vmor %vm464, %vm463
        %466 = vst.msk [vmem:[#allocation2] sm:$0x33] %vm465, %v459
        %vm467 = vcmask 410624
        %468 = vst.msk [vmem:[#allocation2 + $0x8] sm:$0x3] %vm467, %v460
        %v469 = vld [vmem:[#allocation6] sm:$0xf]
        %v470 = vld [vmem:[#allocation2] sm:$0x33]
        %v471 = vld [vmem:[#allocation2 + $0x8] sm:$0x3]
        %v473 = vunpack.c.l.b16 %v469
        %v474 = vpack.c.b16 %v473, %v473
        %475 = vrot.lane.b32.xlu0 %v474, 124
        %v476 = vpop.permute.xlu0 %475
        %v479 = vunpack.c.l.b16 %v470
        %v480 = vunpack.c.h.b16 %v470
        %v481 = vunpack.c.l.b16 %v471
        %v482 = vpack.c.b16 %v479, %v479
        %v483 = vpack.c.b16 %v480, %v480
        %v484 = vpack.c.b16 %v481, %v481
        %485 = vrot.lane.b32.xlu0 %v482, 127
        %v486 = vpop.permute.xlu0 %485
        %487 = vrot.lane.b32.xlu0 %v483, 127
        %v488 = vpop.permute.xlu0 %487
        %489 = vrot.lane.b32.xlu0 %v484, 127
        %v490 = vpop.permute.xlu0 %489
        %vm491 = vcmask 1039360
        %v492 = vsel %vm491, %v486, %v488
        %v493 = vsel %vm491, %v488, %v490
        %vm494 = vcmask 31744
        %v496 = vsel %vm494, %v476, 0
        %vm498 = vcmask 1041408
        %v500 = vsel %vm498, %v492, 0
        %v503 = vsel %vm498, %v493, 0
        %v506 = vsel %vm498, %v490, 0
        %508 = vmatprep.subr.bf16.mxu0 %v503
        %509 = vmatpush1.bf16.msra.mxu0 %v500
        %510 = vmatprep.subr.bf16.mxu0 0
        %511 = vmatpush1.bf16.msra.mxu0 0
        %512 = vmatprep.subr.bf16.mxu0 0
        %513 = vmatpush1.bf16.msra.mxu0 0
        %514 = vmatprep.subr.bf16.mxu0 0
        %515 = vmatpush1.bf16.msra.mxu0 0
        %516 = vmatprep.subr.bf16.mxu0 0
        %517 = vmatpush1.bf16.msra.mxu0 0
        %518 = vmatprep.subr.bf16.mxu0 0
        %519 = vmatpush1.bf16.msra.mxu0 0
        %520 = vmatprep.subr.bf16.mxu0 0
        %521 = vmatpush1.bf16.msra.mxu0 0
        %522 = vmatprep.subr.bf16.mxu0 0
        %523 = vmatpush1.bf16.msra.mxu0 0
        %524 = vmatprep.subr.bf16.mxu0 0
        %525 = vmatpush1.bf16.msra.mxu0 0
        %526 = vmatprep.subr.bf16.mxu0 0
        %527 = vmatpush1.bf16.msra.mxu0 0
        %528 = vmatprep.subr.bf16.mxu0 0
        %529 = vmatpush1.bf16.msra.mxu0 0
        %530 = vmatprep.subr.bf16.mxu0 0
        %531 = vmatpush1.bf16.msra.mxu0 0
        %532 = vmatprep.subr.bf16.mxu0 0
        %533 = vmatpush1.bf16.msra.mxu0 0
        %534 = vmatprep.subr.bf16.mxu0 0
        %535 = vmatpush1.bf16.msra.mxu0 0
        %536 = vmatprep.subr.bf16.mxu0 0
        %537 = vmatpush1.bf16.msra.mxu0 0
        %538 = vmatprep.subr.bf16.mxu0 0
        %539 = vmatpush1.bf16.msra.mxu0 0
        %540 = vmatprep.mubr.bf16.mxu0 0
        %541 = vmatmul.mubr.bf16.gmra.mrb[0].mxu0 %v496
        %v542 = vpop.f32.mrb[0].mxu0
        %v543 = vadd.f32 0.0, %v542
        %v544 = vpop.f32.mrb[0].mxu0
        %v545 = vadd.f32 0.0, %v544
        %v546 = vpop.f32.mrb[0].mxu0
        %v547 = vpop.f32.mrb[0].mxu0
        %548 = vdwg.mxu0
        %549 = vmatprep.subr.bf16.mxu0 0
        %550 = vmatpush1.bf16.msra.mxu0 %v506
        %551 = vmatprep.subr.bf16.mxu0 0
        %552 = vmatpush1.bf16.msra.mxu0 0
        %553 = vmatprep.subr.bf16.mxu0 0
        %554 = vmatpush1.bf16.msra.mxu0 0
        %555 = vmatprep.subr.bf16.mxu0 0
        %556 = vmatpush1.bf16.msra.mxu0 0
        %557 = vmatprep.subr.bf16.mxu0 0
        %558 = vmatpush1.bf16.msra.mxu0 0
        %559 = vmatprep.subr.bf16.mxu0 0
        %560 = vmatpush1.bf16.msra.mxu0 0
        %561 = vmatprep.subr.bf16.mxu0 0
        %562 = vmatpush1.bf16.msra.mxu0 0
        %563 = vmatprep.subr.bf16.mxu0 0
        %564 = vmatpush1.bf16.msra.mxu0 0
        %565 = vmatprep.subr.bf16.mxu0 0
        %566 = vmatpush1.bf16.msra.mxu0 0
        %567 = vmatprep.subr.bf16.mxu0 0
        %568 = vmatpush1.bf16.msra.mxu0 0
        %569 = vmatprep.subr.bf16.mxu0 0
        %570 = vmatpush1.bf16.msra.mxu0 0
        %571 = vmatprep.subr.bf16.mxu0 0
        %572 = vmatpush1.bf16.msra.mxu0 0
        %573 = vmatprep.subr.bf16.mxu0 0
        %574 = vmatpush1.bf16.msra.mxu0 0
        %575 = vmatprep.subr.bf16.mxu0 0
        %576 = vmatpush1.bf16.msra.mxu0 0
        %577 = vmatprep.subr.bf16.mxu0 0
        %578 = vmatpush1.bf16.msra.mxu0 0
        %579 = vmatprep.subr.bf16.mxu0 0
        %580 = vmatpush1.bf16.msra.mxu0 0
        %581 = vmatprep.mubr.bf16.mxu0 0
        %582 = vmatmul.mubr.bf16.gmra.mrb[0].mxu0 %v496
        %v583 = vpop.f32.mrb[0].mxu0
        %v584 = vadd.f32 0.0, %v583
        %v585 = vpop.f32.mrb[0].mxu0
        %v586 = vpop.f32.mrb[0].mxu0
        %v587 = vpop.f32.mrb[0].mxu0
        %588 = vdwg.mxu0
        %v590 = vsel %vm494, %v469, 0
        %v593 = vsel %vm498, %v482, 0
        %v596 = vsel %vm498, %v483, 0
        %v599 = vsel %vm498, %v484, 0
        %601 = vmatprep.subr.bf16.mxu0 %v596
        %602 = vmatpush1.bf16.msra.mxu0 %v593
        %603 = vmatprep.subr.bf16.mxu0 0
        %604 = vmatpush1.bf16.msra.mxu0 0
        %605 = vmatprep.subr.bf16.mxu0 0
        %606 = vmatpush1.bf16.msra.mxu0 0
        %607 = vmatprep.subr.bf16.mxu0 0
        %608 = vmatpush1.bf16.msra.mxu0 0
        %609 = vmatprep.subr.bf16.mxu0 0
        %610 = vmatpush1.bf16.msra.mxu0 0
        %611 = vmatprep.subr.bf16.mxu0 0
        %612 = vmatpush1.bf16.msra.mxu0 0
        %613 = vmatprep.subr.bf16.mxu0 0
        %614 = vmatpush1.bf16.msra.mxu0 0
        %615 = vmatprep.subr.bf16.mxu0 0
        %616 = vmatpush1.bf16.msra.mxu0 0
        %617 = vmatprep.subr.bf16.mxu0 0
        %618 = vmatpush1.bf16.msra.mxu0 0
        %619 = vmatprep.subr.bf16.mxu0 0
        %620 = vmatpush1.bf16.msra.mxu0 0
        %621 = vmatprep.subr.bf16.mxu0 0
        %622 = vmatpush1.bf16.msra.mxu0 0
        %623 = vmatprep.subr.bf16.mxu0 0
        %624 = vmatpush1.bf16.msra.mxu0 0
        %625 = vmatprep.subr.bf16.mxu0 0
        %626 = vmatpush1.bf16.msra.mxu0 0
        %627 = vmatprep.subr.bf16.mxu0 0
        %628 = vmatpush1.bf16.msra.mxu0 0
        %629 = vmatprep.subr.bf16.mxu0 0
        %630 = vmatpush1.bf16.msra.mxu0 0
        %631 = vmatprep.subr.bf16.mxu0 0
        %632 = vmatpush1.bf16.msra.mxu0 0
        %633 = vmatprep.mubr.bf16.mxu0 0
        %634 = vmatmul.mubr.bf16.gmra.mrb[0].mxu0 %v590
        %v635 = vpop.f32.mrb[0].mxu0
        %v636 = vadd.f32 %v543, %v635
        %v637 = vpop.f32.mrb[0].mxu0
        %v638 = vadd.f32 %v545, %v637
        %v639 = vpop.f32.mrb[0].mxu0
        %v640 = vpop.f32.mrb[0].mxu0
        %641 = vdwg.mxu0
        %642 = vmatprep.subr.bf16.mxu0 0
        %643 = vmatpush1.bf16.msra.mxu0 %v599
        %644 = vmatprep.subr.bf16.mxu0 0
        %645 = vmatpush1.bf16.msra.mxu0 0
        %646 = vmatprep.subr.bf16.mxu0 0
        %647 = vmatpush1.bf16.msra.mxu0 0
        %648 = vmatprep.subr.bf16.mxu0 0
        %649 = vmatpush1.bf16.msra.mxu0 0
        %650 = vmatprep.subr.bf16.mxu0 0
        %651 = vmatpush1.bf16.msra.mxu0 0
        %652 = vmatprep.subr.bf16.mxu0 0
        %653 = vmatpush1.bf16.msra.mxu0 0
        %654 = vmatprep.subr.bf16.mxu0 0
        %655 = vmatpush1.bf16.msra.mxu0 0
        %656 = vmatprep.subr.bf16.mxu0 0
        %657 = vmatpush1.bf16.msra.mxu0 0
        %658 = vmatprep.subr.bf16.mxu0 0
        %659 = vmatpush1.bf16.msra.mxu0 0
        %660 = vmatprep.subr.bf16.mxu0 0
        %661 = vmatpush1.bf16.msra.mxu0 0
        %662 = vmatprep.subr.bf16.mxu0 0
        %663 = vmatpush1.bf16.msra.mxu0 0
        %664 = vmatprep.subr.bf16.mxu0 0
        %665 = vmatpush1.bf16.msra.mxu0 0
        %666 = vmatprep.subr.bf16.mxu0 0
        %667 = vmatpush1.bf16.msra.mxu0 0
        %668 = vmatprep.subr.bf16.mxu0 0
        %669 = vmatpush1.bf16.msra.mxu0 0
        %670 = vmatprep.subr.bf16.mxu0 0
        %671 = vmatpush1.bf16.msra.mxu0 0
        %672 = vmatprep.subr.bf16.mxu0 0
        %673 = vmatpush1.bf16.msra.mxu0 0
        %674 = vmatprep.mubr.bf16.mxu0 0
        %675 = vmatmul.mubr.bf16.gmra.mrb[0].mxu0 %v590
        %v676 = vpop.f32.mrb[0].mxu0
        %v677 = vadd.f32 %v584, %v676
        %v678 = vpop.f32.mrb[0].mxu0
        %v679 = vpop.f32.mrb[0].mxu0
        %v680 = vpop.f32.mrb[0].mxu0
        %681 = vdwg.mxu0
        %682 = vrot.lane.b32.xlu0 %v474, 120
        %v683 = vpop.permute.xlu0 %682
        %684 = vrot.lane.b32.xlu0 %v482, 126
        %v685 = vpop.permute.xlu0 %684
        %686 = vrot.lane.b32.xlu0 %v483, 126
        %v687 = vpop.permute.xlu0 %686
        %688 = vrot.lane.b32.xlu0 %v484, 126
        %v689 = vpop.permute.xlu0 %688
        %vm690 = vcmask 1031168
        %v691 = vsel %vm690, %v685, %v687
        %v692 = vsel %vm690, %v687, %v689
        %v694 = vsel %vm494, %v683, 0
        %v697 = vsel %vm498, %v691, 0
        %v700 = vsel %vm498, %v692, 0
        %v703 = vsel %vm498, %v689, 0
        %705 = vmatprep.subr.bf16.mxu0 %v700
        %706 = vmatpush1.bf16.msra.mxu0 %v697
        %707 = vmatprep.subr.bf16.mxu0 0
        %708 = vmatpush1.bf16.msra.mxu0 0
        %709 = vmatprep.subr.bf16.mxu0 0
        %710 = vmatpush1.bf16.msra.mxu0 0
        %711 = vmatprep.subr.bf16.mxu0 0
        %712 = vmatpush1.bf16.msra.mxu0 0
        %713 = vmatprep.subr.bf16.mxu0 0
        %714 = vmatpush1.bf16.msra.mxu0 0
        %715 = vmatprep.subr.bf16.mxu0 0
        %716 = vmatpush1.bf16.msra.mxu0 0
        %717 = vmatprep.subr.bf16.mxu0 0
        %718 = vmatpush1.bf16.msra.mxu0 0
        %719 = vmatprep.subr.bf16.mxu0 0
        %720 = vmatpush1.bf16.msra.mxu0 0
        %721 = vmatprep.subr.bf16.mxu0 0
        %722 = vmatpush1.bf16.msra.mxu0 0
        %723 = vmatprep.subr.bf16.mxu0 0
        %724 = vmatpush1.bf16.msra.mxu0 0
        %725 = vmatprep.subr.bf16.mxu0 0
        %726 = vmatpush1.bf16.msra.mxu0 0
        %727 = vmatprep.subr.bf16.mxu0 0
        %728 = vmatpush1.bf16.msra.mxu0 0
        %729 = vmatprep.subr.bf16.mxu0 0
        %730 = vmatpush1.bf16.msra.mxu0 0
        %731 = vmatprep.subr.bf16.mxu0 0
        %732 = vmatpush1.bf16.msra.mxu0 0
        %733 = vmatprep.subr.bf16.mxu0 0
        %734 = vmatpush1.bf16.msra.mxu0 0
        %735 = vmatprep.subr.bf16.mxu0 0
        %736 = vmatpush1.bf16.msra.mxu0 0
        %737 = vmatprep.mubr.bf16.mxu0 0
        %738 = vmatmul.mubr.bf16.gmra.mrb[0].mxu0 %v694
        %v739 = vpop.f32.mrb[0].mxu0
        %v740 = vadd.f32 0.0, %v739
        %v741 = vpop.f32.mrb[0].mxu0
        %v742 = vadd.f32 0.0, %v741
        %v743 = vpop.f32.mrb[0].mxu0
        %v744 = vpop.f32.mrb[0].mxu0
        %745 = vdwg.mxu0
        %746 = vmatprep.subr.bf16.mxu0 0
        %747 = vmatpush1.bf16.msra.mxu0 %v703
        %748 = vmatprep.subr.bf16.mxu0 0
        %749 = vmatpush1.bf16.msra.mxu0 0
        %750 = vmatprep.subr.bf16.mxu0 0
        %751 = vmatpush1.bf16.msra.mxu0 0
        %752 = vmatprep.subr.bf16.mxu0 0
        %753 = vmatpush1.bf16.msra.mxu0 0
        %754 = vmatprep.subr.bf16.mxu0 0
        %755 = vmatpush1.bf16.msra.mxu0 0
        %756 = vmatprep.subr.bf16.mxu0 0
        %757 = vmatpush1.bf16.msra.mxu0 0
        %758 = vmatprep.subr.bf16.mxu0 0
        %759 = vmatpush1.bf16.msra.mxu0 0
        %760 = vmatprep.subr.bf16.mxu0 0
        %761 = vmatpush1.bf16.msra.mxu0 0
        %762 = vmatprep.subr.bf16.mxu0 0
        %763 = vmatpush1.bf16.msra.mxu0 0
        %764 = vmatprep.subr.bf16.mxu0 0
        %765 = vmatpush1.bf16.msra.mxu0 0
        %766 = vmatprep.subr.bf16.mxu0 0
        %767 = vmatpush1.bf16.msra.mxu0 0
        %768 = vmatprep.subr.bf16.mxu0 0
        %769 = vmatpush1.bf16.msra.mxu0 0
        %770 = vmatprep.subr.bf16.mxu0 0
        %771 = vmatpush1.bf16.msra.mxu0 0
        %772 = vmatprep.subr.bf16.mxu0 0
        %773 = vmatpush1.bf16.msra.mxu0 0
        %774 = vmatprep.subr.bf16.mxu0 0
        %775 = vmatpush1.bf16.msra.mxu0 0
        %776 = vmatprep.subr.bf16.mxu0 0
        %777 = vmatpush1.bf16.msra.mxu0 0
        %778 = vmatprep.mubr.bf16.mxu0 0
        %779 = vmatmul.mubr.bf16.gmra.mrb[0].mxu0 %v694
        %v780 = vpop.f32.mrb[0].mxu0
        %v781 = vadd.f32 0.0, %v780
        %v782 = vpop.f32.mrb[0].mxu0
        %v783 = vpop.f32.mrb[0].mxu0
        %v784 = vpop.f32.mrb[0].mxu0
        %785 = vdwg.mxu0
        %v786 = vadd.f32 %v636, %v740
        %v787 = vadd.f32 %v638, %v742
        %v788 = vadd.f32 %v677, %v781
        %789 = vrot.lane.b32.xlu0 %v474, 116
        %v790 = vpop.permute.xlu0 %789
        %791 = vrot.lane.b32.xlu0 %v482, 110
        %v792 = vpop.permute.xlu0 %791
        %793 = vrot.lane.b32.xlu0 %v483, 110
        %v794 = vpop.permute.xlu0 %793
        %795 = vrot.lane.b32.xlu0 %v484, 110
        %v796 = vpop.permute.xlu0 %795
        %vm797 = vcmask 900096
        %v798 = vsel %vm797, %v792, %v794
        %v799 = vsel %vm797, %v794, %v796
        %v801 = vsel %vm494, %v790, 0
        %v804 = vsel %vm498, %v798, 0
        %v807 = vsel %vm498, %v799, 0
        %v810 = vsel %vm498, %v796, 0
        %812 = vmatprep.subr.bf16.mxu0 %v807
        %813 = vmatpush1.bf16.msra.mxu0 %v804
        %814 = vmatprep.subr.bf16.mxu0 0
        %815 = vmatpush1.bf16.msra.mxu0 0
        %816 = vmatprep.subr.bf16.mxu0 0
        %817 = vmatpush1.bf16.msra.mxu0 0
        %818 = vmatprep.subr.bf16.mxu0 0
        %819 = vmatpush1.bf16.msra.mxu0 0
        %820 = vmatprep.subr.bf16.mxu0 0
        %821 = vmatpush1.bf16.msra.mxu0 0
        %822 = vmatprep.subr.bf16.mxu0 0
        %823 = vmatpush1.bf16.msra.mxu0 0
        %824 = vmatprep.subr.bf16.mxu0 0
        %825 = vmatpush1.bf16.msra.mxu0 0
        %826 = vmatprep.subr.bf16.mxu0 0
        %827 = vmatpush1.bf16.msra.mxu0 0
        %828 = vmatprep.subr.bf16.mxu0 0
        %829 = vmatpush1.bf16.msra.mxu0 0
        %830 = vmatprep.subr.bf16.mxu0 0
        %831 = vmatpush1.bf16.msra.mxu0 0
        %832 = vmatprep.subr.bf16.mxu0 0
        %833 = vmatpush1.bf16.msra.mxu0 0
        %834 = vmatprep.subr.bf16.mxu0 0
        %835 = vmatpush1.bf16.msra.mxu0 0
        %836 = vmatprep.subr.bf16.mxu0 0
        %837 = vmatpush1.bf16.msra.mxu0 0
        %838 = vmatprep.subr.bf16.mxu0 0
        %839 = vmatpush1.bf16.msra.mxu0 0
        %840 = vmatprep.subr.bf16.mxu0 0
        %841 = vmatpush1.bf16.msra.mxu0 0
        %842 = vmatprep.subr.bf16.mxu0 0
        %843 = vmatpush1.bf16.msra.mxu0 0
        %844 = vmatprep.mubr.bf16.mxu0 0
        %845 = vmatmul.mubr.bf16.gmra.mrb[0].mxu0 %v801
        %v846 = vpop.f32.mrb[0].mxu0
        %v847 = vadd.f32 0.0, %v846
        %v848 = vpop.f32.mrb[0].mxu0
        %v849 = vadd.f32 0.0, %v848
        %v850 = vpop.f32.mrb[0].mxu0
        %v851 = vpop.f32.mrb[0].mxu0
        %852 = vdwg.mxu0
        %853 = vmatprep.subr.bf16.mxu0 0
        %854 = vmatpush1.bf16.msra.mxu0 %v810
        %855 = vmatprep.subr.bf16.mxu0 0
        %856 = vmatpush1.bf16.msra.mxu0 0
        %857 = vmatprep.subr.bf16.mxu0 0
        %858 = vmatpush1.bf16.msra.mxu0 0
        %859 = vmatprep.subr.bf16.mxu0 0
        %860 = vmatpush1.bf16.msra.mxu0 0
        %861 = vmatprep.subr.bf16.mxu0 0
        %862 = vmatpush1.bf16.msra.mxu0 0
        %863 = vmatprep.subr.bf16.mxu0 0
        %864 = vmatpush1.bf16.msra.mxu0 0
        %865 = vmatprep.subr.bf16.mxu0 0
        %866 = vmatpush1.bf16.msra.mxu0 0
        %867 = vmatprep.subr.bf16.mxu0 0
        %868 = vmatpush1.bf16.msra.mxu0 0
        %869 = vmatprep.subr.bf16.mxu0 0
        %870 = vmatpush1.bf16.msra.mxu0 0
        %871 = vmatprep.subr.bf16.mxu0 0
        %872 = vmatpush1.bf16.msra.mxu0 0
        %873 = vmatprep.subr.bf16.mxu0 0
        %874 = vmatpush1.bf16.msra.mxu0 0
        %875 = vmatprep.subr.bf16.mxu0 0
        %876 = vmatpush1.bf16.msra.mxu0 0
        %877 = vmatprep.subr.bf16.mxu0 0
        %878 = vmatpush1.bf16.msra.mxu0 0
        %879 = vmatprep.subr.bf16.mxu0 0
        %880 = vmatpush1.bf16.msra.mxu0 0
        %881 = vmatprep.subr.bf16.mxu0 0
        %882 = vmatpush1.bf16.msra.mxu0 0
        %883 = vmatprep.subr.bf16.mxu0 0
        %884 = vmatpush1.bf16.msra.mxu0 0
        %885 = vmatprep.mubr.bf16.mxu0 0
        %886 = vmatmul.mubr.bf16.gmra.mrb[0].mxu0 %v801
        %v887 = vpop.f32.mrb[0].mxu0
        %v888 = vadd.f32 0.0, %v887
        %v889 = vpop.f32.mrb[0].mxu0
        %v890 = vpop.f32.mrb[0].mxu0
        %v891 = vpop.f32.mrb[0].mxu0
        %892 = vdwg.mxu0
        %v893 = vadd.f32 %v786, %v847
        %v894 = vadd.f32 %v787, %v849
        %v895 = vadd.f32 %v788, %v888
        %896 = vrot.lane.b32.xlu0 %v474, 112
        %v897 = vpop.permute.xlu0 %896
        %898 = vrot.lane.b32.xlu0 %v482, 109
        %v899 = vpop.permute.xlu0 %898
        %900 = vrot.lane.b32.xlu0 %v483, 109
        %v901 = vpop.permute.xlu0 %900
        %902 = vrot.lane.b32.xlu0 %v484, 109
        %v903 = vpop.permute.xlu0 %902
        %vm904 = vcmask 891904
        %v905 = vsel %vm904, %v899, %v901
        %v906 = vsel %vm904, %v901, %v903
        %v908 = vsel %vm494, %v897, 0
        %v911 = vsel %vm498, %v905, 0
        %v914 = vsel %vm498, %v906, 0
        %v917 = vsel %vm498, %v903, 0
        %919 = vmatprep.subr.bf16.mxu0 %v914
        %920 = vmatpush1.bf16.msra.mxu0 %v911
        %921 = vmatprep.subr.bf16.mxu0 0
        %922 = vmatpush1.bf16.msra.mxu0 0
        %923 = vmatprep.subr.bf16.mxu0 0
        %924 = vmatpush1.bf16.msra.mxu0 0
        %925 = vmatprep.subr.bf16.mxu0 0
        %926 = vmatpush1.bf16.msra.mxu0 0
        %927 = vmatprep.subr.bf16.mxu0 0
        %928 = vmatpush1.bf16.msra.mxu0 0
        %929 = vmatprep.subr.bf16.mxu0 0
        %930 = vmatpush1.bf16.msra.mxu0 0
        %931 = vmatprep.subr.bf16.mxu0 0
        %932 = vmatpush1.bf16.msra.mxu0 0
        %933 = vmatprep.subr.bf16.mxu0 0
        %934 = vmatpush1.bf16.msra.mxu0 0
        %935 = vmatprep.subr.bf16.mxu0 0
        %936 = vmatpush1.bf16.msra.mxu0 0
        %937 = vmatprep.subr.bf16.mxu0 0
        %938 = vmatpush1.bf16.msra.mxu0 0
        %939 = vmatprep.subr.bf16.mxu0 0
        %940 = vmatpush1.bf16.msra.mxu0 0
        %941 = vmatprep.subr.bf16.mxu0 0
        %942 = vmatpush1.bf16.msra.mxu0 0
        %943 = vmatprep.subr.bf16.mxu0 0
        %944 = vmatpush1.bf16.msra.mxu0 0
        %945 = vmatprep.subr.bf16.mxu0 0
        %946 = vmatpush1.bf16.msra.mxu0 0
        %947 = vmatprep.subr.bf16.mxu0 0
        %948 = vmatpush1.bf16.msra.mxu0 0
        %949 = vmatprep.subr.bf16.mxu0 0
        %950 = vmatpush1.bf16.msra.mxu0 0
        %951 = vmatprep.mubr.bf16.mxu0 0
        %952 = vmatmul.mubr.bf16.gmra.mrb[0].mxu0 %v908
        %v953 = vpop.f32.mrb[0].mxu0
        %v954 = vadd.f32 0.0, %v953
        %v955 = vpop.f32.mrb[0].mxu0
        %v956 = vadd.f32 0.0, %v955
        %v957 = vpop.f32.mrb[0].mxu0
        %v958 = vpop.f32.mrb[0].mxu0
        %959 = vdwg.mxu0
        %960 = vmatprep.subr.bf16.mxu0 0
        %961 = vmatpush1.bf16.msra.mxu0 %v917
        %962 = vmatprep.subr.bf16.mxu0 0
        %963 = vmatpush1.bf16.msra.mxu0 0
        %964 = vmatprep.subr.bf16.mxu0 0
        %965 = vmatpush1.bf16.msra.mxu0 0
        %966 = vmatprep.subr.bf16.mxu0 0
        %967 = vmatpush1.bf16.msra.mxu0 0
        %968 = vmatprep.subr.bf16.mxu0 0
        %969 = vmatpush1.bf16.msra.mxu0 0
        %970 = vmatprep.subr.bf16.mxu0 0
        %971 = vmatpush1.bf16.msra.mxu0 0
        %972 = vmatprep.subr.bf16.mxu0 0
        %973 = vmatpush1.bf16.msra.mxu0 0
        %974 = vmatprep.subr.bf16.mxu0 0
        %975 = vmatpush1.bf16.msra.mxu0 0
        %976 = vmatprep.subr.bf16.mxu0 0
        %977 = vmatpush1.bf16.msra.mxu0 0
        %978 = vmatprep.subr.bf16.mxu0 0
        %979 = vmatpush1.bf16.msra.mxu0 0
        %980 = vmatprep.subr.bf16.mxu0 0
        %981 = vmatpush1.bf16.msra.mxu0 0
        %982 = vmatprep.subr.bf16.mxu0 0
        %983 = vmatpush1.bf16.msra.mxu0 0
        %984 = vmatprep.subr.bf16.mxu0 0
        %985 = vmatpush1.bf16.msra.mxu0 0
        %986 = vmatprep.subr.bf16.mxu0 0
        %987 = vmatpush1.bf16.msra.mxu0 0
        %988 = vmatprep.subr.bf16.mxu0 0
        %989 = vmatpush1.bf16.msra.mxu0 0
        %990 = vmatprep.subr.bf16.mxu0 0
        %991 = vmatpush1.bf16.msra.mxu0 0
        %992 = vmatprep.mubr.bf16.mxu0 0
        %993 = vmatmul.mubr.bf16.gmra.mrb[0].mxu0 %v908
        %v994 = vpop.f32.mrb[0].mxu0
        %v995 = vadd.f32 0.0, %v994
        %v996 = vpop.f32.mrb[0].mxu0
        %v997 = vpop.f32.mrb[0].mxu0
        %v998 = vpop.f32.mrb[0].mxu0
        %999 = vdwg.mxu0
        %v1000 = vadd.f32 %v893, %v954
        %v1001 = vadd.f32 %v894, %v956
        %v1002 = vadd.f32 %v895, %v995
        %1003 = vrot.lane.b32.xlu0 %v474, 108
        %v1004 = vpop.permute.xlu0 %1003
        %1005 = vrot.lane.b32.xlu0 %v482, 108
        %v1006 = vpop.permute.xlu0 %1005
        %1007 = vrot.lane.b32.xlu0 %v483, 108
        %v1008 = vpop.permute.xlu0 %1007
        %1009 = vrot.lane.b32.xlu0 %v484, 108
        %v1010 = vpop.permute.xlu0 %1009
        %vm1011 = vcmask 883712
        %v1012 = vsel %vm1011, %v1006, %v1008
        %v1013 = vsel %vm1011, %v1008, %v1010
        %v1015 = vsel %vm494, %v1004, 0
        %v1018 = vsel %vm498, %v1012, 0
        %v1021 = vsel %vm498, %v1013, 0
        %v1024 = vsel %vm498, %v1010, 0
        %1026 = vmatprep.subr.bf16.mxu0 %v1021
        %1027 = vmatpush1.bf16.msra.mxu0 %v1018
        %1028 = vmatprep.subr.bf16.mxu0 0
        %1029 = vmatpush1.bf16.msra.mxu0 0
        %1030 = vmatprep.subr.bf16.mxu0 0
        %1031 = vmatpush1.bf16.msra.mxu0 0
        %1032 = vmatprep.subr.bf16.mxu0 0
        %1033 = vmatpush1.bf16.msra.mxu0 0
        %1034 = vmatprep.subr.bf16.mxu0 0
        %1035 = vmatpush1.bf16.msra.mxu0 0
        %1036 = vmatprep.subr.bf16.mxu0 0
        %1037 = vmatpush1.bf16.msra.mxu0 0
        %1038 = vmatprep.subr.bf16.mxu0 0
        %1039 = vmatpush1.bf16.msra.mxu0 0
        %1040 = vmatprep.subr.bf16.mxu0 0
        %1041 = vmatpush1.bf16.msra.mxu0 0
        %1042 = vmatprep.subr.bf16.mxu0 0
        %1043 = vmatpush1.bf16.msra.mxu0 0
        %1044 = vmatprep.subr.bf16.mxu0 0
        %1045 = vmatpush1.bf16.msra.mxu0 0
        %1046 = vmatprep.subr.bf16.mxu0 0
        %1047 = vmatpush1.bf16.msra.mxu0 0
        %1048 = vmatprep.subr.bf16.mxu0 0
        %1049 = vmatpush1.bf16.msra.mxu0 0
        %1050 = vmatprep.subr.bf16.mxu0 0
        %1051 = vmatpush1.bf16.msra.mxu0 0
        %1052 = vmatprep.subr.bf16.mxu0 0
        %1053 = vmatpush1.bf16.msra.mxu0 0
        %1054 = vmatprep.subr.bf16.mxu0 0
        %1055 = vmatpush1.bf16.msra.mxu0 0
        %1056 = vmatprep.subr.bf16.mxu0 0
        %1057 = vmatpush1.bf16.msra.mxu0 0
        %1058 = vmatprep.mubr.bf16.mxu0 0
        %1059 = vmatmul.mubr.bf16.gmra.mrb[0].mxu0 %v1015
        %v1060 = vpop.f32.mrb[0].mxu0
        %v1061 = vadd.f32 0.0, %v1060
        %v1062 = vpop.f32.mrb[0].mxu0
        %v1063 = vadd.f32 0.0, %v1062
        %v1064 = vpop.f32.mrb[0].mxu0
        %v1065 = vpop.f32.mrb[0].mxu0
        %1066 = vdwg.mxu0
        %1067 = vmatprep.subr.bf16.mxu0 0
        %1068 = vmatpush1.bf16.msra.mxu0 %v1024
        %1069 = vmatprep.subr.bf16.mxu0 0
        %1070 = vmatpush1.bf16.msra.mxu0 0
        %1071 = vmatprep.subr.bf16.mxu0 0
        %1072 = vmatpush1.bf16.msra.mxu0 0
        %1073 = vmatprep.subr.bf16.mxu0 0
        %1074 = vmatpush1.bf16.msra.mxu0 0
        %1075 = vmatprep.subr.bf16.mxu0 0
        %1076 = vmatpush1.bf16.msra.mxu0 0
        %1077 = vmatprep.subr.bf16.mxu0 0
        %1078 = vmatpush1.bf16.msra.mxu0 0
        %1079 = vmatprep.subr.bf16.mxu0 0
        %1080 = vmatpush1.bf16.msra.mxu0 0
        %1081 = vmatprep.subr.bf16.mxu0 0
        %1082 = vmatpush1.bf16.msra.mxu0 0
        %1083 = vmatprep.subr.bf16.mxu0 0
        %1084 = vmatpush1.bf16.msra.mxu0 0
        %1085 = vmatprep.subr.bf16.mxu0 0
        %1086 = vmatpush1.bf16.msra.mxu0 0
        %1087 = vmatprep.subr.bf16.mxu0 0
        %1088 = vmatpush1.bf16.msra.mxu0 0
        %1089 = vmatprep.subr.bf16.mxu0 0
        %1090 = vmatpush1.bf16.msra.mxu0 0
        %1091 = vmatprep.subr.bf16.mxu0 0
        %1092 = vmatpush1.bf16.msra.mxu0 0
        %1093 = vmatprep.subr.bf16.mxu0 0
        %1094 = vmatpush1.bf16.msra.mxu0 0
        %1095 = vmatprep.subr.bf16.mxu0 0
        %1096 = vmatpush1.bf16.msra.mxu0 0
        %1097 = vmatprep.subr.bf16.mxu0 0
        %1098 = vmatpush1.bf16.msra.mxu0 0
        %1099 = vmatprep.mubr.bf16.mxu0 0
        %1100 = vmatmul.mubr.bf16.gmra.mrb[0].mxu0 %v1015
        %v1101 = vpop.f32.mrb[0].mxu0
        %v1102 = vadd.f32 0.0, %v1101
        %v1103 = vpop.f32.mrb[0].mxu0
        %v1104 = vpop.f32.mrb[0].mxu0
        %v1105 = vpop.f32.mrb[0].mxu0
        %1106 = vdwg.mxu0
        %v1107 = vadd.f32 %v1000, %v1061
        %v1108 = vadd.f32 %v1001, %v1063
        %v1109 = vadd.f32 %v1002, %v1102
        %1110 = vrot.lane.b32.xlu0 %v474, 104
        %v1111 = vpop.permute.xlu0 %1110
        %1112 = vrot.lane.b32.xlu0 %v482, 92
        %v1113 = vpop.permute.xlu0 %1112
        %1114 = vrot.lane.b32.xlu0 %v483, 92
        %v1115 = vpop.permute.xlu0 %1114
        %1116 = vrot.lane.b32.xlu0 %v484, 92
        %v1117 = vpop.permute.xlu0 %1116
        %vm1118 = vcmask 752640
        %v1119 = vsel %vm1118, %v1113, %v1115
        %v1120 = vsel %vm1118, %v1115, %v1117
        %v1122 = vsel %vm494, %v1111, 0
        %v1125 = vsel %vm498, %v1119, 0
        %v1128 = vsel %vm498, %v1120, 0
        %v1131 = vsel %vm498, %v1117, 0
        %1133 = vmatprep.subr.bf16.mxu0 %v1128
        %1134 = vmatpush1.bf16.msra.mxu0 %v1125
        %1135 = vmatprep.subr.bf16.mxu0 0
        %1136 = vmatpush1.bf16.msra.mxu0 0
        %1137 = vmatprep.subr.bf16.mxu0 0
        %1138 = vmatpush1.bf16.msra.mxu0 0
        %1139 = vmatprep.subr.bf16.mxu0 0
        %1140 = vmatpush1.bf16.msra.mxu0 0
        %1141 = vmatprep.subr.bf16.mxu0 0
        %1142 = vmatpush1.bf16.msra.mxu0 0
        %1143 = vmatprep.subr.bf16.mxu0 0
        %1144 = vmatpush1.bf16.msra.mxu0 0
        %1145 = vmatprep.subr.bf16.mxu0 0
        %1146 = vmatpush1.bf16.msra.mxu0 0
        %1147 = vmatprep.subr.bf16.mxu0 0
        %1148 = vmatpush1.bf16.msra.mxu0 0
        %1149 = vmatprep.subr.bf16.mxu0 0
        %1150 = vmatpush1.bf16.msra.mxu0 0
        %1151 = vmatprep.subr.bf16.mxu0 0
        %1152 = vmatpush1.bf16.msra.mxu0 0
        %1153 = vmatprep.subr.bf16.mxu0 0
        %1154 = vmatpush1.bf16.msra.mxu0 0
        %1155 = vmatprep.subr.bf16.mxu0 0
        %1156 = vmatpush1.bf16.msra.mxu0 0
        %1157 = vmatprep.subr.bf16.mxu0 0
        %1158 = vmatpush1.bf16.msra.mxu0 0
        %1159 = vmatprep.subr.bf16.mxu0 0
        %1160 = vmatpush1.bf16.msra.mxu0 0
        %1161 = vmatprep.subr.bf16.mxu0 0
        %1162 = vmatpush1.bf16.msra.mxu0 0
        %1163 = vmatprep.subr.bf16.mxu0 0
        %1164 = vmatpush1.bf16.msra.mxu0 0
        %1165 = vmatprep.mubr.bf16.mxu0 0
        %1166 = vmatmul.mubr.bf16.gmra.mrb[0].mxu0 %v1122
        %v1167 = vpop.f32.mrb[0].mxu0
        %v1168 = vadd.f32 0.0, %v1167
        %v1169 = vpop.f32.mrb[0].mxu0
        %v1170 = vadd.f32 0.0, %v1169
        %v1171 = vpop.f32.mrb[0].mxu0
        %v1172 = vpop.f32.mrb[0].mxu0
        %1173 = vdwg.mxu0
        %1174 = vmatprep.subr.bf16.mxu0 0
        %1175 = vmatpush1.bf16.msra.mxu0 %v1131
        %1176 = vmatprep.subr.bf16.mxu0 0
        %1177 = vmatpush1.bf16.msra.mxu0 0
        %1178 = vmatprep.subr.bf16.mxu0 0
        %1179 = vmatpush1.bf16.msra.mxu0 0
        %1180 = vmatprep.subr.bf16.mxu0 0
        %1181 = vmatpush1.bf16.msra.mxu0 0
        %1182 = vmatprep.subr.bf16.mxu0 0
        %1183 = vmatpush1.bf16.msra.mxu0 0
        %1184 = vmatprep.subr.bf16.mxu0 0
        %1185 = vmatpush1.bf16.msra.mxu0 0
        %1186 = vmatprep.subr.bf16.mxu0 0
        %1187 = vmatpush1.bf16.msra.mxu0 0
        %1188 = vmatprep.subr.bf16.mxu0 0
        %1189 = vmatpush1.bf16.msra.mxu0 0
        %1190 = vmatprep.subr.bf16.mxu0 0
        %1191 = vmatpush1.bf16.msra.mxu0 0
        %1192 = vmatprep.subr.bf16.mxu0 0
        %1193 = vmatpush1.bf16.msra.mxu0 0
        %1194 = vmatprep.subr.bf16.mxu0 0
        %1195 = vmatpush1.bf16.msra.mxu0 0
        %1196 = vmatprep.subr.bf16.mxu0 0
        %1197 = vmatpush1.bf16.msra.mxu0 0
        %1198 = vmatprep.subr.bf16.mxu0 0
        %1199 = vmatpush1.bf16.msra.mxu0 0
        %1200 = vmatprep.subr.bf16.mxu0 0
        %1201 = vmatpush1.bf16.msra.mxu0 0
        %1202 = vmatprep.subr.bf16.mxu0 0
        %1203 = vmatpush1.bf16.msra.mxu0 0
        %1204 = vmatprep.subr.bf16.mxu0 0
        %1205 = vmatpush1.bf16.msra.mxu0 0
        %1206 = vmatprep.mubr.bf16.mxu0 0
        %1207 = vmatmul.mubr.bf16.gmra.mrb[0].mxu0 %v1122
        %v1208 = vpop.f32.mrb[0].mxu0
        %v1209 = vadd.f32 0.0, %v1208
        %v1210 = vpop.f32.mrb[0].mxu0
        %v1211 = vpop.f32.mrb[0].mxu0
        %v1212 = vpop.f32.mrb[0].mxu0
        %1213 = vdwg.mxu0
        %v1214 = vadd.f32 %v1107, %v1168
        %v1215 = vadd.f32 %v1108, %v1170
        %v1216 = vadd.f32 %v1109, %v1209
        %1217 = vrot.lane.b32.xlu0 %v474, 100
        %v1218 = vpop.permute.xlu0 %1217
        %1219 = vrot.lane.b32.xlu0 %v482, 91
        %v1220 = vpop.permute.xlu0 %1219
        %1221 = vrot.lane.b32.xlu0 %v483, 91
        %v1222 = vpop.permute.xlu0 %1221
        %1223 = vrot.lane.b32.xlu0 %v484, 91
        %v1224 = vpop.permute.xlu0 %1223
        %vm1225 = vcmask 744448
        %v1226 = vsel %vm1225, %v1220, %v1222
        %v1227 = vsel %vm1225, %v1222, %v1224
        %v1229 = vsel %vm494, %v1218, 0
        %v1232 = vsel %vm498, %v1226, 0
        %v1235 = vsel %vm498, %v1227, 0
        %v1238 = vsel %vm498, %v1224, 0
        %1240 = vmatprep.subr.bf16.mxu0 %v1235
        %1241 = vmatpush1.bf16.msra.mxu0 %v1232
        %1242 = vmatprep.subr.bf16.mxu0 0
        %1243 = vmatpush1.bf16.msra.mxu0 0
        %1244 = vmatprep.subr.bf16.mxu0 0
        %1245 = vmatpush1.bf16.msra.mxu0 0
        %1246 = vmatprep.subr.bf16.mxu0 0
        %1247 = vmatpush1.bf16.msra.mxu0 0
        %1248 = vmatprep.subr.bf16.mxu0 0
        %1249 = vmatpush1.bf16.msra.mxu0 0
        %1250 = vmatprep.subr.bf16.mxu0 0
        %1251 = vmatpush1.bf16.msra.mxu0 0
        %1252 = vmatprep.subr.bf16.mxu0 0
        %1253 = vmatpush1.bf16.msra.mxu0 0
        %1254 = vmatprep.subr.bf16.mxu0 0
        %1255 = vmatpush1.bf16.msra.mxu0 0
        %1256 = vmatprep.subr.bf16.mxu0 0
        %1257 = vmatpush1.bf16.msra.mxu0 0
        %1258 = vmatprep.subr.bf16.mxu0 0
        %1259 = vmatpush1.bf16.msra.mxu0 0
        %1260 = vmatprep.subr.bf16.mxu0 0
        %1261 = vmatpush1.bf16.msra.mxu0 0
        %1262 = vmatprep.subr.bf16.mxu0 0
        %1263 = vmatpush1.bf16.msra.mxu0 0
        %1264 = vmatprep.subr.bf16.mxu0 0
        %1265 = vmatpush1.bf16.msra.mxu0 0
        %1266 = vmatprep.subr.bf16.mxu0 0
        %1267 = vmatpush1.bf16.msra.mxu0 0
        %1268 = vmatprep.subr.bf16.mxu0 0
        %1269 = vmatpush1.bf16.msra.mxu0 0
        %1270 = vmatprep.subr.bf16.mxu0 0
        %1271 = vmatpush1.bf16.msra.mxu0 0
        %1272 = vmatprep.mubr.bf16.mxu0 0
        %1273 = vmatmul.mubr.bf16.gmra.mrb[0].mxu0 %v1229
        %v1274 = vpop.f32.mrb[0].mxu0
        %v1275 = vadd.f32 0.0, %v1274
        %v1276 = vpop.f32.mrb[0].mxu0
        %v1277 = vadd.f32 0.0, %v1276
        %v1278 = vpop.f32.mrb[0].mxu0
        %v1279 = vpop.f32.mrb[0].mxu0
        %1280 = vdwg.mxu0
        %1281 = vmatprep.subr.bf16.mxu0 0
        %1282 = vmatpush1.bf16.msra.mxu0 %v1238
        %1283 = vmatprep.subr.bf16.mxu0 0
        %1284 = vmatpush1.bf16.msra.mxu0 0
        %1285 = vmatprep.subr.bf16.mxu0 0
        %1286 = vmatpush1.bf16.msra.mxu0 0
        %1287 = vmatprep.subr.bf16.mxu0 0
        %1288 = vmatpush1.bf16.msra.mxu0 0
        %1289 = vmatprep.subr.bf16.mxu0 0
        %1290 = vmatpush1.bf16.msra.mxu0 0
        %1291 = vmatprep.subr.bf16.mxu0 0
        %1292 = vmatpush1.bf16.msra.mxu0 0
        %1293 = vmatprep.subr.bf16.mxu0 0
        %1294 = vmatpush1.bf16.msra.mxu0 0
        %1295 = vmatprep.subr.bf16.mxu0 0
        %1296 = vmatpush1.bf16.msra.mxu0 0
        %1297 = vmatprep.subr.bf16.mxu0 0
        %1298 = vmatpush1.bf16.msra.mxu0 0
        %1299 = vmatprep.subr.bf16.mxu0 0
        %1300 = vmatpush1.bf16.msra.mxu0 0
        %1301 = vmatprep.subr.bf16.mxu0 0
        %1302 = vmatpush1.bf16.msra.mxu0 0
        %1303 = vmatprep.subr.bf16.mxu0 0
        %1304 = vmatpush1.bf16.msra.mxu0 0
        %1305 = vmatprep.subr.bf16.mxu0 0
        %1306 = vmatpush1.bf16.msra.mxu0 0
        %1307 = vmatprep.subr.bf16.mxu0 0
        %1308 = vmatpush1.bf16.msra.mxu0 0
        %1309 = vmatprep.subr.bf16.mxu0 0
        %1310 = vmatpush1.bf16.msra.mxu0 0
        %1311 = vmatprep.subr.bf16.mxu0 0
        %1312 = vmatpush1.bf16.msra.mxu0 0
        %1313 = vmatprep.mubr.bf16.mxu0 0
        %1314 = vmatmul.mubr.bf16.gmra.mrb[0].mxu0 %v1229
        %v1315 = vpop.f32.mrb[0].mxu0
        %v1316 = vadd.f32 0.0, %v1315
        %v1317 = vpop.f32.mrb[0].mxu0
        %v1318 = vpop.f32.mrb[0].mxu0
        %v1319 = vpop.f32.mrb[0].mxu0
        %1320 = vdwg.mxu0
        %v1321 = vadd.f32 %v1214, %v1275
        %v1322 = vadd.f32 %v1215, %v1277
        %v1323 = vadd.f32 %v1216, %v1316
        %1324 = vrot.lane.b32.xlu0 %v474, 96
        %v1325 = vpop.permute.xlu0 %1324
        %1326 = vrot.lane.b32.xlu0 %v482, 90
        %v1327 = vpop.permute.xlu0 %1326
        %1328 = vrot.lane.b32.xlu0 %v483, 90
        %v1329 = vpop.permute.xlu0 %1328
        %1330 = vrot.lane.b32.xlu0 %v484, 90
        %v1331 = vpop.permute.xlu0 %1330
        %vm1332 = vcmask 736256
        %v1333 = vsel %vm1332, %v1327, %v1329
        %v1334 = vsel %vm1332, %v1329, %v1331
        %v1336 = vsel %vm494, %v1325, 0
        %v1339 = vsel %vm498, %v1333, 0
        %v1342 = vsel %vm498, %v1334, 0
        %v1345 = vsel %vm498, %v1331, 0
        %1347 = vmatprep.subr.bf16.mxu0 %v1342
        %1348 = vmatpush1.bf16.msra.mxu0 %v1339
        %1349 = vmatprep.subr.bf16.mxu0 0
        %1350 = vmatpush1.bf16.msra.mxu0 0
        %1351 = vmatprep.subr.bf16.mxu0 0
        %1352 = vmatpush1.bf16.msra.mxu0 0
        %1353 = vmatprep.subr.bf16.mxu0 0
        %1354 = vmatpush1.bf16.msra.mxu0 0
        %1355 = vmatprep.subr.bf16.mxu0 0
        %1356 = vmatpush1.bf16.msra.mxu0 0
        %1357 = vmatprep.subr.bf16.mxu0 0
        %1358 = vmatpush1.bf16.msra.mxu0 0
        %1359 = vmatprep.subr.bf16.mxu0 0
        %1360 = vmatpush1.bf16.msra.mxu0 0
        %1361 = vmatprep.subr.bf16.mxu0 0
        %1362 = vmatpush1.bf16.msra.mxu0 0
        %1363 = vmatprep.subr.bf16.mxu0 0
        %1364 = vmatpush1.bf16.msra.mxu0 0
        %1365 = vmatprep.subr.bf16.mxu0 0
        %1366 = vmatpush1.bf16.msra.mxu0 0
        %1367 = vmatprep.subr.bf16.mxu0 0
        %1368 = vmatpush1.bf16.msra.mxu0 0
        %1369 = vmatprep.subr.bf16.mxu0 0
        %1370 = vmatpush1.bf16.msra.mxu0 0
        %1371 = vmatprep.subr.bf16.mxu0 0
        %1372 = vmatpush1.bf16.msra.mxu0 0
        %1373 = vmatprep.subr.bf16.mxu0 0
        %1374 = vmatpush1.bf16.msra.mxu0 0
        %1375 = vmatprep.subr.bf16.mxu0 0
        %1376 = vmatpush1.bf16.msra.mxu0 0
        %1377 = vmatprep.subr.bf16.mxu0 0
        %1378 = vmatpush1.bf16.msra.mxu0 0
        %1379 = vmatprep.mubr.bf16.mxu0 0
        %1380 = vmatmul.mubr.bf16.gmra.mrb[0].mxu0 %v1336
        %v1381 = vpop.f32.mrb[0].mxu0
        %v1382 = vadd.f32 0.0, %v1381
        %v1383 = vpop.f32.mrb[0].mxu0
        %v1384 = vadd.f32 0.0, %v1383
        %v1385 = vpop.f32.mrb[0].mxu0
        %v1386 = vpop.f32.mrb[0].mxu0
        %1387 = vdwg.mxu0
        %1388 = vmatprep.subr.bf16.mxu0 0
        %1389 = vmatpush1.bf16.msra.mxu0 %v1345
        %1390 = vmatprep.subr.bf16.mxu0 0
        %1391 = vmatpush1.bf16.msra.mxu0 0
        %1392 = vmatprep.subr.bf16.mxu0 0
        %1393 = vmatpush1.bf16.msra.mxu0 0
        %1394 = vmatprep.subr.bf16.mxu0 0
        %1395 = vmatpush1.bf16.msra.mxu0 0
        %1396 = vmatprep.subr.bf16.mxu0 0
        %1397 = vmatpush1.bf16.msra.mxu0 0
        %1398 = vmatprep.subr.bf16.mxu0 0
        %1399 = vmatpush1.bf16.msra.mxu0 0
        %1400 = vmatprep.subr.bf16.mxu0 0
        %1401 = vmatpush1.bf16.msra.mxu0 0
        %1402 = vmatprep.subr.bf16.mxu0 0
        %1403 = vmatpush1.bf16.msra.mxu0 0
        %1404 = vmatprep.subr.bf16.mxu0 0
        %1405 = vmatpush1.bf16.msra.mxu0 0
        %1406 = vmatprep.subr.bf16.mxu0 0
        %1407 = vmatpush1.bf16.msra.mxu0 0
        %1408 = vmatprep.subr.bf16.mxu0 0
        %1409 = vmatpush1.bf16.msra.mxu0 0
        %1410 = vmatprep.subr.bf16.mxu0 0
        %1411 = vmatpush1.bf16.msra.mxu0 0
        %1412 = vmatprep.subr.bf16.mxu0 0
        %1413 = vmatpush1.bf16.msra.mxu0 0
        %1414 = vmatprep.subr.bf16.mxu0 0
        %1415 = vmatpush1.bf16.msra.mxu0 0
        %1416 = vmatprep.subr.bf16.mxu0 0
        %1417 = vmatpush1.bf16.msra.mxu0 0
        %1418 = vmatprep.subr.bf16.mxu0 0
        %1419 = vmatpush1.bf16.msra.mxu0 0
        %1420 = vmatprep.mubr.bf16.mxu0 0
        %1421 = vmatmul.mubr.bf16.gmra.mrb[0].mxu0 %v1336
        %v1422 = vpop.f32.mrb[0].mxu0
        %v1423 = vadd.f32 0.0, %v1422
        %v1424 = vpop.f32.mrb[0].mxu0
        %v1425 = vpop.f32.mrb[0].mxu0
        %v1426 = vpop.f32.mrb[0].mxu0
        %1427 = vdwg.mxu0
        %v1428 = vadd.f32 %v1321, %v1382
        %v1429 = vadd.f32 %v1322, %v1384
        %v1430 = vadd.f32 %v1323, %v1423
        %v1431 = vld [vmem:[#allocation12] sm:$0xff]
        %v1432 = vmul.f32 %v1428, %v429
        %v1433 = vmul.f32 %v1429, %v430
        %v1434 = vmul.f32 %v1430, %v431
        %v1435 = vadd.f32 %v1432, %v1433
        %vm1436 = vcmask 261120
        %v1437 = vsel %vm1436, %v1434, 0.0
        %v1438 = vadd.f32 %v1435, %v1437
        %1439 = vadd.xlane.f32.xlu0 %v1438
        %v1440 = vpop.xlane.xlu0 %1439
        %v1441 = vmul.f32 %v1432, %v1428
        %v1442 = vmul.f32 %v1433, %v1429
        %v1443 = vmul.f32 %v1434, %v1430
        %v1444 = vadd.f32 %v1441, %v1442
        %v1445 = vsel %vm1436, %v1443, 0.0
        %v1446 = vadd.f32 %v1444, %v1445
        %1447 = vadd.xlane.f32.xlu0 %v1446
        %v1448 = vpop.xlane.xlu0 %1447
        %v1449 = vmul.f32 %v1431, 2.0
        %v1450 = vmul.f32 %v1449, %v1440
        %v1451 = vadd.f32 %v1448, %v1450
        %v1452 = vmul.f32 %v1431, %v1431
        %v1453 = vmul.f32 %v1452, 256.0
        %v1454 = vadd.f32 %v1451, %v1453
        %v1455 = vmul.f32 %v1431, 256.0
        %v1456 = vadd.f32 %v1440, %v1455
        %1458 = vrot.lane.b32.xlu0 %v1454, 1
        %v1459 = vpop.permute.xlu0 %1458
        %vm1461 = vcmask 7168
        %v1462 = vsel %vm1461, %v1456, %v1459
        %v1463 = vld [vmem:[#allocation14] sm:$0xff]
        %vm1464 = vcmask 64512
        %v1466 = vsel %vm1464, %v1463, 0
        %1468 = vmatprep.subr.mxu0 0.0
        %1469 = vmatpush1.msra.mxu0 %v1462
        %1470 = vmatprep.subr.mxu0 0.0
        %1471 = vmatpush1.msra.mxu0 0.0
        %1472 = vmatprep.subr.mxu0 0.0
        %1473 = vmatpush1.msra.mxu0 0.0
        %1474 = vmatprep.subr.mxu0 0.0
        %1475 = vmatpush1.msra.mxu0 0.0
        %1476 = vmatprep.subr.mxu0 0.0
        %1477 = vmatpush1.msra.mxu0 0.0
        %1478 = vmatprep.subr.mxu0 0.0
        %1479 = vmatpush1.msra.mxu0 0.0
        %1480 = vmatprep.subr.mxu0 0.0
        %1481 = vmatpush1.msra.mxu0 0.0
        %1482 = vmatprep.subr.mxu0 0.0
        %1483 = vmatpush1.msra.mxu0 0.0
        %1484 = vmatprep.subr.mxu0 0.0
        %1485 = vmatpush1.msra.mxu0 0.0
        %1486 = vmatprep.subr.mxu0 0.0
        %1487 = vmatpush1.msra.mxu0 0.0
        %1488 = vmatprep.subr.mxu0 0.0
        %1489 = vmatpush1.msra.mxu0 0.0
        %1490 = vmatprep.subr.mxu0 0.0
        %1491 = vmatpush1.msra.mxu0 0.0
        %1492 = vmatprep.subr.mxu0 0.0
        %1493 = vmatpush1.msra.mxu0 0.0
        %1494 = vmatprep.subr.mxu0 0.0
        %1495 = vmatpush1.msra.mxu0 0.0
        %1496 = vmatprep.subr.mxu0 0.0
        %1497 = vmatpush1.msra.mxu0 0.0
        %1498 = vmatprep.subr.mxu0 0.0
        %1499 = vmatpush1.msra.mxu0 0.0
        %1500 = vmatprep.subr.mxu0 0.0
        %1501 = vmatpush1.msra.mxu0 0.0
        %1502 = vmatprep.subr.mxu0 0.0
        %1503 = vmatpush1.msra.mxu0 0.0
        %1504 = vmatprep.subr.mxu0 0.0
        %1505 = vmatpush1.msra.mxu0 0.0
        %1506 = vmatprep.subr.mxu0 0.0
        %1507 = vmatpush1.msra.mxu0 0.0
        %1508 = vmatprep.subr.mxu0 0.0
        %1509 = vmatpush1.msra.mxu0 0.0
        %1510 = vmatprep.subr.mxu0 0.0
        %1511 = vmatpush1.msra.mxu0 0.0
        %1512 = vmatprep.subr.mxu0 0.0
        %1513 = vmatpush1.msra.mxu0 0.0
        %1514 = vmatprep.subr.mxu0 0.0
        %1515 = vmatpush1.msra.mxu0 0.0
        %1516 = vmatprep.subr.mxu0 0.0
        %1517 = vmatpush1.msra.mxu0 0.0
        %1518 = vmatprep.subr.mxu0 0.0
        %1519 = vmatpush1.msra.mxu0 0.0
        %1520 = vmatprep.subr.mxu0 0.0
        %1521 = vmatpush1.msra.mxu0 0.0
        %1522 = vmatprep.subr.mxu0 0.0
        %1523 = vmatpush1.msra.mxu0 0.0
        %1524 = vmatprep.subr.mxu0 0.0
        %1525 = vmatpush1.msra.mxu0 0.0
        %1526 = vmatprep.subr.mxu0 0.0
        %1527 = vmatpush1.msra.mxu0 0.0
        %1528 = vmatprep.subr.mxu0 0.0
        %1529 = vmatpush1.msra.mxu0 0.0
        %1530 = vmatprep.subr.mxu0 0.0
        %1531 = vmatpush1.msra.mxu0 0.0
        %1532 = vmatprep.mubr.f32.mxu0 0.0
        %1533 = vmatmul.mubr.f32.gmra.mrb[0].mxu0 %v1466
        %v1534 = vpop.f32.mrb[0].mxu0
        %v1535 = vadd.f32 0.0, %v1534
        %v1536 = vpop.f32.mrb[0].mxu0
        %1537 = vdwg.mxu0
        %v1538 = vmul.f32 %v1535, 0.001953125
        %v1539 = vmul.f32 %v1538, %v1538
        %1541 = vrot.lane.b32.xlu0 %v1539, 1
        %v1542 = vpop.permute.xlu0 %1541
        %v1544 = vsub.f32 %v1538, %v1542
        %v1545 = vadd.f32 %v1544, 1e-05
        %v1546 = vrsqrt.pop %v1545
        %v1547 = vmul.f32 %v1431, %v1546
        %v1548 = vsub.f32 %v1431, %v1538
        %1550 = vrot.lane.b32.xlu0 %v1547, 127
        %v1551 = vpop.permute.xlu0 %1550
        %v1553 = vmul.f32 %v1548, %v1551
        %1555 = vrot.lane.b32.xlu0 %v1553, 2
        %v1556 = vpop.permute.xlu0 %1555
        %v1558 = vadd.f32 %v1431, %v1556
        %1559 = vset.pattern.permute.xlu0 1
        %1560 = vperm.xlu0 %1559, %v1547
        %v1561 = vpop.permute.xlu0 %1560
        %v1563 = vmul.f32 %v1428, %v1561
        %v1564 = vmul.f32 %v1429, %v1561
        %v1565 = vmul.f32 %v1430, %v1561
        %1567 = vset.pattern.permute.xlu0 2
        %1568 = vperm.xlu0 %1567, %v1558
        %v1569 = vpop.permute.xlu0 %1568
        %v1571 = vadd.f32 %v1563, %v1569
        %v1572 = vadd.f32 %v1564, %v1569
        %v1573 = vadd.f32 %v1565, %v1569
        %v1574 = vxor.u32 %v1571, 2147483648
        %v1575 = vxor.u32 %v1572, 2147483648
        %v1576 = vxor.u32 %v1573, 2147483648
        %v1577 = vmul.f32 %v1574, 1.442695
        %v1578 = vpow.pop %v1577
        %v1579 = vmul.f32 %v1575, 1.442695
        %v1580 = vpow.pop %v1579
        %v1581 = vmul.f32 %v1576, 1.442695
        %v1582 = vpow.pop %v1581
        %v1583 = vadd.f32 %v1578, 1.0
        %v1584 = vadd.f32 %v1580, 1.0
        %v1585 = vadd.f32 %v1582, 1.0
        %v1586 = vrcp.pop %v1583
        %v1587 = vmul.f32 1.0, %v1586
        %v1588 = vrcp.pop %v1584
        %v1589 = vmul.f32 1.0, %v1588
        %v1590 = vrcp.pop %v1585
        %v1591 = vmul.f32 1.0, %v1590
        %v1592 = vmul.f32 %v1571, %v1587
        %v1593 = vmul.f32 %v1572, %v1589
        %v1594 = vmul.f32 %v1573, %v1591
        %v1595 = vmul.f32 %v1592, %v429
        %v1596 = vmul.f32 %v1593, %v430
        %v1597 = vmul.f32 %v1594, %v431
        %v1598 = vpack.c.bf16 %v1595, %v1595
        %v1599 = vpack.c.bf16 %v1596, %v1596
        %v1600 = vpack.c.bf16 %v1597, %v1597
        %v1604 = vunpack.c.l.b16 %v1598
        %v1605 = vunpack.c.l.b16 %v1599
        %v1606 = vunpack.c.l.b16 %v1600
        %v1607 = vpack.c.b16 %v1605, %v1604
        %v1608 = vpack.c.b16 %v1606, %v1606
        %1609 = vrot.lane.b32.xlu0 %v1607, 19
        %v1610 = vpop.permute.xlu0 %1609
        %1611 = vrot.lane.b32.xlu0 %v1608, 19
        %v1612 = vpop.permute.xlu0 %1611
        %v1613 = vrot.slane %v1610, 4
        %v1614 = vsel %vm458, %v1613, %v1610
        %v1615 = vsel %vm458, %v1613, %v1612
        %vm1618 = vcmask 1043608
        %vm1619 = vcmask 1047556
        %vm1620 = vmor %vm1619, %vm1618
        %1621 = vst.msk [vmem:[#allocation2] sm:$0xff] %vm1620, %v1614
        %vm1622 = vcmask 412672
        %1623 = vst.msk [vmem:[#allocation2 + $0x8] sm:$0xf] %vm1622, %v1615
        %v1624 = vld [vmem:[#allocation8] sm:$0xf]
        %v1625 = vld [vmem:[#allocation2] sm:$0xff]
        %v1626 = vld [vmem:[#allocation2 + $0x8] sm:$0xf]
        %v1628 = vunpack.c.l.b16 %v1624
        %v1629 = vpack.c.b16 %v1628, %v1628
        %1630 = vrot.lane.b32.xlu0 %v1629, 120
        %v1631 = vpop.permute.xlu0 %1630
        %v1634 = vunpack.c.l.b16 %v1625
        %v1635 = vunpack.c.h.b16 %v1625
        %v1636 = vunpack.c.l.b16 %v1626
        %v1637 = vpack.c.b16 %v1634, %v1634
        %v1638 = vpack.c.b16 %v1635, %v1635
        %v1639 = vpack.c.b16 %v1636, %v1636
        %1640 = vrot.lane.b32.xlu0 %v1637, 127
        %v1641 = vpop.permute.xlu0 %1640
        %1642 = vrot.lane.b32.xlu0 %v1638, 127
        %v1643 = vpop.permute.xlu0 %1642
        %1644 = vrot.lane.b32.xlu0 %v1639, 127
        %v1645 = vpop.permute.xlu0 %1644
        %v1646 = vsel %vm491, %v1641, %v1643
        %v1647 = vsel %vm491, %v1643, %v1645
        %v1649 = vsel %vm1464, %v1631, 0
        %vm1651 = vcmask 1043456
        %v1653 = vsel %vm1651, %v1646, 0
        %v1656 = vsel %vm1651, %v1647, 0
        %v1659 = vsel %vm1651, %v1645, 0
        %1661 = vmatprep.subr.bf16.mxu0 %v1656
        %1662 = vmatpush1.bf16.msra.mxu0 %v1653
        %1663 = vmatprep.subr.bf16.mxu0 0
        %1664 = vmatpush1.bf16.msra.mxu0 0
        %1665 = vmatprep.subr.bf16.mxu0 0
        %1666 = vmatpush1.bf16.msra.mxu0 0
        %1667 = vmatprep.subr.bf16.mxu0 0
        %1668 = vmatpush1.bf16.msra.mxu0 0
        %1669 = vmatprep.subr.bf16.mxu0 0
        %1670 = vmatpush1.bf16.msra.mxu0 0
        %1671 = vmatprep.subr.bf16.mxu0 0
        %1672 = vmatpush1.bf16.msra.mxu0 0
        %1673 = vmatprep.subr.bf16.mxu0 0
        %1674 = vmatpush1.bf16.msra.mxu0 0
        %1675 = vmatprep.subr.bf16.mxu0 0
        %1676 = vmatpush1.bf16.msra.mxu0 0
        %1677 = vmatprep.subr.bf16.mxu0 0
        %1678 = vmatpush1.bf16.msra.mxu0 0
        %1679 = vmatprep.subr.bf16.mxu0 0
        %1680 = vmatpush1.bf16.msra.mxu0 0
        %1681 = vmatprep.subr.bf16.mxu0 0
        %1682 = vmatpush1.bf16.msra.mxu0 0
        %1683 = vmatprep.subr.bf16.mxu0 0
        %1684 = vmatpush1.bf16.msra.mxu0 0
        %1685 = vmatprep.subr.bf16.mxu0 0
        %1686 = vmatpush1.bf16.msra.mxu0 0
        %1687 = vmatprep.subr.bf16.mxu0 0
        %1688 = vmatpush1.bf16.msra.mxu0 0
        %1689 = vmatprep.subr.bf16.mxu0 0
        %1690 = vmatpush1.bf16.msra.mxu0 0
        %1691 = vmatprep.subr.bf16.mxu0 0
        %1692 = vmatpush1.bf16.msra.mxu0 0
        %1693 = vmatprep.mubr.bf16.mxu0 0
        %1694 = vmatmul.mubr.bf16.gmra.mrb[0].mxu0 %v1649
        %v1695 = vpop.f32.mrb[0].mxu0
        %v1696 = vadd.f32 0.0, %v1695
        %v1697 = vpop.f32.mrb[0].mxu0
        %v1698 = vadd.f32 0.0, %v1697
        %v1699 = vpop.f32.mrb[0].mxu0
        %v1700 = vpop.f32.mrb[0].mxu0
        %1701 = vdwg.mxu0
        %1702 = vmatprep.subr.bf16.mxu0 0
        %1703 = vmatpush1.bf16.msra.mxu0 %v1659
        %1704 = vmatprep.subr.bf16.mxu0 0
        %1705 = vmatpush1.bf16.msra.mxu0 0
        %1706 = vmatprep.subr.bf16.mxu0 0
        %1707 = vmatpush1.bf16.msra.mxu0 0
        %1708 = vmatprep.subr.bf16.mxu0 0
        %1709 = vmatpush1.bf16.msra.mxu0 0
        %1710 = vmatprep.subr.bf16.mxu0 0
        %1711 = vmatpush1.bf16.msra.mxu0 0
        %1712 = vmatprep.subr.bf16.mxu0 0
        %1713 = vmatpush1.bf16.msra.mxu0 0
        %1714 = vmatprep.subr.bf16.mxu0 0
        %1715 = vmatpush1.bf16.msra.mxu0 0
        %1716 = vmatprep.subr.bf16.mxu0 0
        %1717 = vmatpush1.bf16.msra.mxu0 0
        %1718 = vmatprep.subr.bf16.mxu0 0
        %1719 = vmatpush1.bf16.msra.mxu0 0
        %1720 = vmatprep.subr.bf16.mxu0 0
        %1721 = vmatpush1.bf16.msra.mxu0 0
        %1722 = vmatprep.subr.bf16.mxu0 0
        %1723 = vmatpush1.bf16.msra.mxu0 0
        %1724 = vmatprep.subr.bf16.mxu0 0
        %1725 = vmatpush1.bf16.msra.mxu0 0
        %1726 = vmatprep.subr.bf16.mxu0 0
        %1727 = vmatpush1.bf16.msra.mxu0 0
        %1728 = vmatprep.subr.bf16.mxu0 0
        %1729 = vmatpush1.bf16.msra.mxu0 0
        %1730 = vmatprep.subr.bf16.mxu0 0
        %1731 = vmatpush1.bf16.msra.mxu0 0
        %1732 = vmatprep.subr.bf16.mxu0 0
        %1733 = vmatpush1.bf16.msra.mxu0 0
        %1734 = vmatprep.mubr.bf16.mxu0 0
        %1735 = vmatmul.mubr.bf16.gmra.mrb[0].mxu0 %v1649
        %v1736 = vpop.f32.mrb[0].mxu0
        %v1737 = vadd.f32 0.0, %v1736
        %v1738 = vpop.f32.mrb[0].mxu0
        %v1739 = vpop.f32.mrb[0].mxu0
        %v1740 = vpop.f32.mrb[0].mxu0
        %1741 = vdwg.mxu0
        %v1743 = vsel %vm1464, %v1624, 0
        %v1746 = vsel %vm1651, %v1637, 0
        %v1749 = vsel %vm1651, %v1638, 0
        %v1752 = vsel %vm1651, %v1639, 0
        %1754 = vmatprep.subr.bf16.mxu0 %v1749
        %1755 = vmatpush1.bf16.msra.mxu0 %v1746
        %1756 = vmatprep.subr.bf16.mxu0 0
        %1757 = vmatpush1.bf16.msra.mxu0 0
        %1758 = vmatprep.subr.bf16.mxu0 0
        %1759 = vmatpush1.bf16.msra.mxu0 0
        %1760 = vmatprep.subr.bf16.mxu0 0
        %1761 = vmatpush1.bf16.msra.mxu0 0
        %1762 = vmatprep.subr.bf16.mxu0 0
        %1763 = vmatpush1.bf16.msra.mxu0 0
        %1764 = vmatprep.subr.bf16.mxu0 0
        %1765 = vmatpush1.bf16.msra.mxu0 0
        %1766 = vmatprep.subr.bf16.mxu0 0
        %1767 = vmatpush1.bf16.msra.mxu0 0
        %1768 = vmatprep.subr.bf16.mxu0 0
        %1769 = vmatpush1.bf16.msra.mxu0 0
        %1770 = vmatprep.subr.bf16.mxu0 0
        %1771 = vmatpush1.bf16.msra.mxu0 0
        %1772 = vmatprep.subr.bf16.mxu0 0
        %1773 = vmatpush1.bf16.msra.mxu0 0
        %1774 = vmatprep.subr.bf16.mxu0 0
        %1775 = vmatpush1.bf16.msra.mxu0 0
        %1776 = vmatprep.subr.bf16.mxu0 0
        %1777 = vmatpush1.bf16.msra.mxu0 0
        %1778 = vmatprep.subr.bf16.mxu0 0
        %1779 = vmatpush1.bf16.msra.mxu0 0
        %1780 = vmatprep.subr.bf16.mxu0 0
        %1781 = vmatpush1.bf16.msra.mxu0 0
        %1782 = vmatprep.subr.bf16.mxu0 0
        %1783 = vmatpush1.bf16.msra.mxu0 0
        %1784 = vmatprep.subr.bf16.mxu0 0
        %1785 = vmatpush1.bf16.msra.mxu0 0
        %1786 = vmatprep.mubr.bf16.mxu0 0
        %1787 = vmatmul.mubr.bf16.gmra.mrb[0].mxu0 %v1743
        %v1788 = vpop.f32.mrb[0].mxu0
        %v1789 = vadd.f32 %v1696, %v1788
        %v1790 = vpop.f32.mrb[0].mxu0
        %v1791 = vadd.f32 %v1698, %v1790
        %v1792 = vpop.f32.mrb[0].mxu0
        %v1793 = vpop.f32.mrb[0].mxu0
        %1794 = vdwg.mxu0
        %1795 = vmatprep.subr.bf16.mxu0 0
        %1796 = vmatpush1.bf16.msra.mxu0 %v1752
        %1797 = vmatprep.subr.bf16.mxu0 0
        %1798 = vmatpush1.bf16.msra.mxu0 0
        %1799 = vmatprep.subr.bf16.mxu0 0
        %1800 = vmatpush1.bf16.msra.mxu0 0
        %1801 = vmatprep.subr.bf16.mxu0 0
        %1802 = vmatpush1.bf16.msra.mxu0 0
        %1803 = vmatprep.subr.bf16.mxu0 0
        %1804 = vmatpush1.bf16.msra.mxu0 0
        %1805 = vmatprep.subr.bf16.mxu0 0
        %1806 = vmatpush1.bf16.msra.mxu0 0
        %1807 = vmatprep.subr.bf16.mxu0 0
        %1808 = vmatpush1.bf16.msra.mxu0 0
        %1809 = vmatprep.subr.bf16.mxu0 0
        %1810 = vmatpush1.bf16.msra.mxu0 0
        %1811 = vmatprep.subr.bf16.mxu0 0
        %1812 = vmatpush1.bf16.msra.mxu0 0
        %1813 = vmatprep.subr.bf16.mxu0 0
        %1814 = vmatpush1.bf16.msra.mxu0 0
        %1815 = vmatprep.subr.bf16.mxu0 0
        %1816 = vmatpush1.bf16.msra.mxu0 0
        %1817 = vmatprep.subr.bf16.mxu0 0
        %1818 = vmatpush1.bf16.msra.mxu0 0
        %1819 = vmatprep.subr.bf16.mxu0 0
        %1820 = vmatpush1.bf16.msra.mxu0 0
        %1821 = vmatprep.subr.bf16.mxu0 0
        %1822 = vmatpush1.bf16.msra.mxu0 0
        %1823 = vmatprep.subr.bf16.mxu0 0
        %1824 = vmatpush1.bf16.msra.mxu0 0
        %1825 = vmatprep.subr.bf16.mxu0 0
        %1826 = vmatpush1.bf16.msra.mxu0 0
        %1827 = vmatprep.mubr.bf16.mxu0 0
        %1828 = vmatmul.mubr.bf16.gmra.mrb[0].mxu0 %v1743
        %v1829 = vpop.f32.mrb[0].mxu0
        %v1830 = vadd.f32 %v1737, %v1829
        %v1831 = vpop.f32.mrb[0].mxu0
        %v1832 = vpop.f32.mrb[0].mxu0
        %v1833 = vpop.f32.mrb[0].mxu0
        %1834 = vdwg.mxu0
        %1835 = vrot.lane.b32.xlu0 %v1629, 112
        %v1836 = vpop.permute.xlu0 %1835
        %1837 = vrot.lane.b32.xlu0 %v1637, 126
        %v1838 = vpop.permute.xlu0 %1837
        %1839 = vrot.lane.b32.xlu0 %v1638, 126
        %v1840 = vpop.permute.xlu0 %1839
        %1841 = vrot.lane.b32.xlu0 %v1639, 126
        %v1842 = vpop.permute.xlu0 %1841
        %v1843 = vsel %vm690, %v1838, %v1840
        %v1844 = vsel %vm690, %v1840, %v1842
        %v1846 = vsel %vm1464, %v1836, 0
        %v1849 = vsel %vm1651, %v1843, 0
        %v1852 = vsel %vm1651, %v1844, 0
        %v1855 = vsel %vm1651, %v1842, 0
        %1857 = vmatprep.subr.bf16.mxu0 %v1852
        %1858 = vmatpush1.bf16.msra.mxu0 %v1849
        %1859 = vmatprep.subr.bf16.mxu0 0
        %1860 = vmatpush1.bf16.msra.mxu0 0
        %1861 = vmatprep.subr.bf16.mxu0 0
        %1862 = vmatpush1.bf16.msra.mxu0 0
        %1863 = vmatprep.subr.bf16.mxu0 0
        %1864 = vmatpush1.bf16.msra.mxu0 0
        %1865 = vmatprep.subr.bf16.mxu0 0
        %1866 = vmatpush1.bf16.msra.mxu0 0
        %1867 = vmatprep.subr.bf16.mxu0 0
        %1868 = vmatpush1.bf16.msra.mxu0 0
        %1869 = vmatprep.subr.bf16.mxu0 0
        %1870 = vmatpush1.bf16.msra.mxu0 0
        %1871 = vmatprep.subr.bf16.mxu0 0
        %1872 = vmatpush1.bf16.msra.mxu0 0
        %1873 = vmatprep.subr.bf16.mxu0 0
        %1874 = vmatpush1.bf16.msra.mxu0 0
        %1875 = vmatprep.subr.bf16.mxu0 0
        %1876 = vmatpush1.bf16.msra.mxu0 0
        %1877 = vmatprep.subr.bf16.mxu0 0
        %1878 = vmatpush1.bf16.msra.mxu0 0
        %1879 = vmatprep.subr.bf16.mxu0 0
        %1880 = vmatpush1.bf16.msra.mxu0 0
        %1881 = vmatprep.subr.bf16.mxu0 0
        %1882 = vmatpush1.bf16.msra.mxu0 0
        %1883 = vmatprep.subr.bf16.mxu0 0
        %1884 = vmatpush1.bf16.msra.mxu0 0
        %1885 = vmatprep.subr.bf16.mxu0 0
        %1886 = vmatpush1.bf16.msra.mxu0 0
        %1887 = vmatprep.subr.bf16.mxu0 0
        %1888 = vmatpush1.bf16.msra.mxu0 0
        %1889 = vmatprep.mubr.bf16.mxu0 0
        %1890 = vmatmul.mubr.bf16.gmra.mrb[0].mxu0 %v1846
        %v1891 = vpop.f32.mrb[0].mxu0
        %v1892 = vadd.f32 0.0, %v1891
        %v1893 = vpop.f32.mrb[0].mxu0
        %v1894 = vadd.f32 0.0, %v1893
        %v1895 = vpop.f32.mrb[0].mxu0
        %v1896 = vpop.f32.mrb[0].mxu0
        %1897 = vdwg.mxu0
        %1898 = vmatprep.subr.bf16.mxu0 0
        %1899 = vmatpush1.bf16.msra.mxu0 %v1855
        %1900 = vmatprep.subr.bf16.mxu0 0
        %1901 = vmatpush1.bf16.msra.mxu0 0
        %1902 = vmatprep.subr.bf16.mxu0 0
        %1903 = vmatpush1.bf16.msra.mxu0 0
        %1904 = vmatprep.subr.bf16.mxu0 0
        %1905 = vmatpush1.bf16.msra.mxu0 0
        %1906 = vmatprep.subr.bf16.mxu0 0
        %1907 = vmatpush1.bf16.msra.mxu0 0
        %1908 = vmatprep.subr.bf16.mxu0 0
        %1909 = vmatpush1.bf16.msra.mxu0 0
        %1910 = vmatprep.subr.bf16.mxu0 0
        %1911 = vmatpush1.bf16.msra.mxu0 0
        %1912 = vmatprep.subr.bf16.mxu0 0
        %1913 = vmatpush1.bf16.msra.mxu0 0
        %1914 = vmatprep.subr.bf16.mxu0 0
        %1915 = vmatpush1.bf16.msra.mxu0 0
        %1916 = vmatprep.subr.bf16.mxu0 0
        %1917 = vmatpush1.bf16.msra.mxu0 0
        %1918 = vmatprep.subr.bf16.mxu0 0
        %1919 = vmatpush1.bf16.msra.mxu0 0
        %1920 = vmatprep.subr.bf16.mxu0 0
        %1921 = vmatpush1.bf16.msra.mxu0 0
        %1922 = vmatprep.subr.bf16.mxu0 0
        %1923 = vmatpush1.bf16.msra.mxu0 0
        %1924 = vmatprep.subr.bf16.mxu0 0
        %1925 = vmatpush1.bf16.msra.mxu0 0
        %1926 = vmatprep.subr.bf16.mxu0 0
        %1927 = vmatpush1.bf16.msra.mxu0 0
        %1928 = vmatprep.subr.bf16.mxu0 0
        %1929 = vmatpush1.bf16.msra.mxu0 0
        %1930 = vmatprep.mubr.bf16.mxu0 0
        %1931 = vmatmul.mubr.bf16.gmra.mrb[0].mxu0 %v1846
        %v1932 = vpop.f32.mrb[0].mxu0
        %v1933 = vadd.f32 0.0, %v1932
        %v1934 = vpop.f32.mrb[0].mxu0
        %v1935 = vpop.f32.mrb[0].mxu0
        %v1936 = vpop.f32.mrb[0].mxu0
        %1937 = vdwg.mxu0
        %v1938 = vadd.f32 %v1789, %v1892
        %v1939 = vadd.f32 %v1791, %v1894
        %v1940 = vadd.f32 %v1830, %v1933
        %1941 = vrot.lane.b32.xlu0 %v1629, 104
        %v1942 = vpop.permute.xlu0 %1941
        %1943 = vrot.lane.b32.xlu0 %v1637, 110
        %v1944 = vpop.permute.xlu0 %1943
        %1945 = vrot.lane.b32.xlu0 %v1638, 110
        %v1946 = vpop.permute.xlu0 %1945
        %1947 = vrot.lane.b32.xlu0 %v1639, 110
        %v1948 = vpop.permute.xlu0 %1947
        %v1949 = vsel %vm797, %v1944, %v1946
        %v1950 = vsel %vm797, %v1946, %v1948
        %v1952 = vsel %vm1464, %v1942, 0
        %v1955 = vsel %vm1651, %v1949, 0
        %v1958 = vsel %vm1651, %v1950, 0
        %v1961 = vsel %vm1651, %v1948, 0
        %1963 = vmatprep.subr.bf16.mxu0 %v1958
        %1964 = vmatpush1.bf16.msra.mxu0 %v1955
        %1965 = vmatprep.subr.bf16.mxu0 0
        %1966 = vmatpush1.bf16.msra.mxu0 0
        %1967 = vmatprep.subr.bf16.mxu0 0
        %1968 = vmatpush1.bf16.msra.mxu0 0
        %1969 = vmatprep.subr.bf16.mxu0 0
        %1970 = vmatpush1.bf16.msra.mxu0 0
        %1971 = vmatprep.subr.bf16.mxu0 0
        %1972 = vmatpush1.bf16.msra.mxu0 0
        %1973 = vmatprep.subr.bf16.mxu0 0
        %1974 = vmatpush1.bf16.msra.mxu0 0
        %1975 = vmatprep.subr.bf16.mxu0 0
        %1976 = vmatpush1.bf16.msra.mxu0 0
        %1977 = vmatprep.subr.bf16.mxu0 0
        %1978 = vmatpush1.bf16.msra.mxu0 0
        %1979 = vmatprep.subr.bf16.mxu0 0
        %1980 = vmatpush1.bf16.msra.mxu0 0
        %1981 = vmatprep.subr.bf16.mxu0 0
        %1982 = vmatpush1.bf16.msra.mxu0 0
        %1983 = vmatprep.subr.bf16.mxu0 0
        %1984 = vmatpush1.bf16.msra.mxu0 0
        %1985 = vmatprep.subr.bf16.mxu0 0
        %1986 = vmatpush1.bf16.msra.mxu0 0
        %1987 = vmatprep.subr.bf16.mxu0 0
        %1988 = vmatpush1.bf16.msra.mxu0 0
        %1989 = vmatprep.subr.bf16.mxu0 0
        %1990 = vmatpush1.bf16.msra.mxu0 0
        %1991 = vmatprep.subr.bf16.mxu0 0
        %1992 = vmatpush1.bf16.msra.mxu0 0
        %1993 = vmatprep.subr.bf16.mxu0 0
        %1994 = vmatpush1.bf16.msra.mxu0 0
        %1995 = vmatprep.mubr.bf16.mxu0 0
        %1996 = vmatmul.mubr.bf16.gmra.mrb[0].mxu0 %v1952
        %v1997 = vpop.f32.mrb[0].mxu0
        %v1998 = vadd.f32 0.0, %v1997
        %v1999 = vpop.f32.mrb[0].mxu0
        %v2000 = vadd.f32 0.0, %v1999
        %v2001 = vpop.f32.mrb[0].mxu0
        %v2002 = vpop.f32.mrb[0].mxu0
        %2003 = vdwg.mxu0
        %2004 = vmatprep.subr.bf16.mxu0 0
        %2005 = vmatpush1.bf16.msra.mxu0 %v1961
        %2006 = vmatprep.subr.bf16.mxu0 0
        %2007 = vmatpush1.bf16.msra.mxu0 0
        %2008 = vmatprep.subr.bf16.mxu0 0
        %2009 = vmatpush1.bf16.msra.mxu0 0
        %2010 = vmatprep.subr.bf16.mxu0 0
        %2011 = vmatpush1.bf16.msra.mxu0 0
        %2012 = vmatprep.subr.bf16.mxu0 0
        %2013 = vmatpush1.bf16.msra.mxu0 0
        %2014 = vmatprep.subr.bf16.mxu0 0
        %2015 = vmatpush1.bf16.msra.mxu0 0
        %2016 = vmatprep.subr.bf16.mxu0 0
        %2017 = vmatpush1.bf16.msra.mxu0 0
        %2018 = vmatprep.subr.bf16.mxu0 0
        %2019 = vmatpush1.bf16.msra.mxu0 0
        %2020 = vmatprep.subr.bf16.mxu0 0
        %2021 = vmatpush1.bf16.msra.mxu0 0
        %2022 = vmatprep.subr.bf16.mxu0 0
        %2023 = vmatpush1.bf16.msra.mxu0 0
        %2024 = vmatprep.subr.bf16.mxu0 0
        %2025 = vmatpush1.bf16.msra.mxu0 0
        %2026 = vmatprep.subr.bf16.mxu0 0
        %2027 = vmatpush1.bf16.msra.mxu0 0
        %2028 = vmatprep.subr.bf16.mxu0 0
        %2029 = vmatpush1.bf16.msra.mxu0 0
        %2030 = vmatprep.subr.bf16.mxu0 0
        %2031 = vmatpush1.bf16.msra.mxu0 0
        %2032 = vmatprep.subr.bf16.mxu0 0
        %2033 = vmatpush1.bf16.msra.mxu0 0
        %2034 = vmatprep.subr.bf16.mxu0 0
        %2035 = vmatpush1.bf16.msra.mxu0 0
        %2036 = vmatprep.mubr.bf16.mxu0 0
        %2037 = vmatmul.mubr.bf16.gmra.mrb[0].mxu0 %v1952
        %v2038 = vpop.f32.mrb[0].mxu0
        %v2039 = vadd.f32 0.0, %v2038
        %v2040 = vpop.f32.mrb[0].mxu0
        %v2041 = vpop.f32.mrb[0].mxu0
        %v2042 = vpop.f32.mrb[0].mxu0
        %2043 = vdwg.mxu0
        %v2044 = vadd.f32 %v1938, %v1998
        %v2045 = vadd.f32 %v1939, %v2000
        %v2046 = vadd.f32 %v1940, %v2039
        %2047 = vrot.lane.b32.xlu0 %v1629, 96
        %v2048 = vpop.permute.xlu0 %2047
        %2049 = vrot.lane.b32.xlu0 %v1637, 109
        %v2050 = vpop.permute.xlu0 %2049
        %2051 = vrot.lane.b32.xlu0 %v1638, 109
        %v2052 = vpop.permute.xlu0 %2051
        %2053 = vrot.lane.b32.xlu0 %v1639, 109
        %v2054 = vpop.permute.xlu0 %2053
        %v2055 = vsel %vm904, %v2050, %v2052
        %v2056 = vsel %vm904, %v2052, %v2054
        %v2058 = vsel %vm1464, %v2048, 0
        %v2061 = vsel %vm1651, %v2055, 0
        %v2064 = vsel %vm1651, %v2056, 0
        %v2067 = vsel %vm1651, %v2054, 0
        %2069 = vmatprep.subr.bf16.mxu0 %v2064
        %2070 = vmatpush1.bf16.msra.mxu0 %v2061
        %2071 = vmatprep.subr.bf16.mxu0 0
        %2072 = vmatpush1.bf16.msra.mxu0 0
        %2073 = vmatprep.subr.bf16.mxu0 0
        %2074 = vmatpush1.bf16.msra.mxu0 0
        %2075 = vmatprep.subr.bf16.mxu0 0
        %2076 = vmatpush1.bf16.msra.mxu0 0
        %2077 = vmatprep.subr.bf16.mxu0 0
        %2078 = vmatpush1.bf16.msra.mxu0 0
        %2079 = vmatprep.subr.bf16.mxu0 0
        %2080 = vmatpush1.bf16.msra.mxu0 0
        %2081 = vmatprep.subr.bf16.mxu0 0
        %2082 = vmatpush1.bf16.msra.mxu0 0
        %2083 = vmatprep.subr.bf16.mxu0 0
        %2084 = vmatpush1.bf16.msra.mxu0 0
        %2085 = vmatprep.subr.bf16.mxu0 0
        %2086 = vmatpush1.bf16.msra.mxu0 0
        %2087 = vmatprep.subr.bf16.mxu0 0
        %2088 = vmatpush1.bf16.msra.mxu0 0
        %2089 = vmatprep.subr.bf16.mxu0 0
        %2090 = vmatpush1.bf16.msra.mxu0 0
        %2091 = vmatprep.subr.bf16.mxu0 0
        %2092 = vmatpush1.bf16.msra.mxu0 0
        %2093 = vmatprep.subr.bf16.mxu0 0
        %2094 = vmatpush1.bf16.msra.mxu0 0
        %2095 = vmatprep.subr.bf16.mxu0 0
        %2096 = vmatpush1.bf16.msra.mxu0 0
        %2097 = vmatprep.subr.bf16.mxu0 0
        %2098 = vmatpush1.bf16.msra.mxu0 0
        %2099 = vmatprep.subr.bf16.mxu0 0
        %2100 = vmatpush1.bf16.msra.mxu0 0
        %2101 = vmatprep.mubr.bf16.mxu0 0
        %2102 = vmatmul.mubr.bf16.gmra.mrb[0].mxu0 %v2058
        %v2103 = vpop.f32.mrb[0].mxu0
        %v2104 = vadd.f32 0.0, %v2103
        %v2105 = vpop.f32.mrb[0].mxu0
        %v2106 = vadd.f32 0.0, %v2105
        %v2107 = vpop.f32.mrb[0].mxu0
        %v2108 = vpop.f32.mrb[0].mxu0
        %2109 = vdwg.mxu0
        %2110 = vmatprep.subr.bf16.mxu0 0
        %2111 = vmatpush1.bf16.msra.mxu0 %v2067
        %2112 = vmatprep.subr.bf16.mxu0 0
        %2113 = vmatpush1.bf16.msra.mxu0 0
        %2114 = vmatprep.subr.bf16.mxu0 0
        %2115 = vmatpush1.bf16.msra.mxu0 0
        %2116 = vmatprep.subr.bf16.mxu0 0
        %2117 = vmatpush1.bf16.msra.mxu0 0
        %2118 = vmatprep.subr.bf16.mxu0 0
        %2119 = vmatpush1.bf16.msra.mxu0 0
        %2120 = vmatprep.subr.bf16.mxu0 0
        %2121 = vmatpush1.bf16.msra.mxu0 0
        %2122 = vmatprep.subr.bf16.mxu0 0
        %2123 = vmatpush1.bf16.msra.mxu0 0
        %2124 = vmatprep.subr.bf16.mxu0 0
        %2125 = vmatpush1.bf16.msra.mxu0 0
        %2126 = vmatprep.subr.bf16.mxu0 0
        %2127 = vmatpush1.bf16.msra.mxu0 0
        %2128 = vmatprep.subr.bf16.mxu0 0
        %2129 = vmatpush1.bf16.msra.mxu0 0
        %2130 = vmatprep.subr.bf16.mxu0 0
        %2131 = vmatpush1.bf16.msra.mxu0 0
        %2132 = vmatprep.subr.bf16.mxu0 0
        %2133 = vmatpush1.bf16.msra.mxu0 0
        %2134 = vmatprep.subr.bf16.mxu0 0
        %2135 = vmatpush1.bf16.msra.mxu0 0
        %2136 = vmatprep.subr.bf16.mxu0 0
        %2137 = vmatpush1.bf16.msra.mxu0 0
        %2138 = vmatprep.subr.bf16.mxu0 0
        %2139 = vmatpush1.bf16.msra.mxu0 0
        %2140 = vmatprep.subr.bf16.mxu0 0
        %2141 = vmatpush1.bf16.msra.mxu0 0
        %2142 = vmatprep.mubr.bf16.mxu0 0
        %2143 = vmatmul.mubr.bf16.gmra.mrb[0].mxu0 %v2058
        %v2144 = vpop.f32.mrb[0].mxu0
        %v2145 = vadd.f32 0.0, %v2144
        %v2146 = vpop.f32.mrb[0].mxu0
        %v2147 = vpop.f32.mrb[0].mxu0
        %v2148 = vpop.f32.mrb[0].mxu0
        %2149 = vdwg.mxu0
        %v2150 = vadd.f32 %v2044, %v2104
        %v2151 = vadd.f32 %v2045, %v2106
        %v2152 = vadd.f32 %v2046, %v2145
        %2153 = vrot.lane.b32.xlu0 %v1629, 88
        %v2154 = vpop.permute.xlu0 %2153
        %2155 = vrot.lane.b32.xlu0 %v1637, 108
        %v2156 = vpop.permute.xlu0 %2155
        %2157 = vrot.lane.b32.xlu0 %v1638, 108
        %v2158 = vpop.permute.xlu0 %2157
        %2159 = vrot.lane.b32.xlu0 %v1639, 108
        %v2160 = vpop.permute.xlu0 %2159
        %v2161 = vsel %vm1011, %v2156, %v2158
        %v2162 = vsel %vm1011, %v2158, %v2160
        %v2164 = vsel %vm1464, %v2154, 0
        %v2167 = vsel %vm1651, %v2161, 0
        %v2170 = vsel %vm1651, %v2162, 0
        %v2173 = vsel %vm1651, %v2160, 0
        %2175 = vmatprep.subr.bf16.mxu0 %v2170
        %2176 = vmatpush1.bf16.msra.mxu0 %v2167
        %2177 = vmatprep.subr.bf16.mxu0 0
        %2178 = vmatpush1.bf16.msra.mxu0 0
        %2179 = vmatprep.subr.bf16.mxu0 0
        %2180 = vmatpush1.bf16.msra.mxu0 0
        %2181 = vmatprep.subr.bf16.mxu0 0
        %2182 = vmatpush1.bf16.msra.mxu0 0
        %2183 = vmatprep.subr.bf16.mxu0 0
        %2184 = vmatpush1.bf16.msra.mxu0 0
        %2185 = vmatprep.subr.bf16.mxu0 0
        %2186 = vmatpush1.bf16.msra.mxu0 0
        %2187 = vmatprep.subr.bf16.mxu0 0
        %2188 = vmatpush1.bf16.msra.mxu0 0
        %2189 = vmatprep.subr.bf16.mxu0 0
        %2190 = vmatpush1.bf16.msra.mxu0 0
        %2191 = vmatprep.subr.bf16.mxu0 0
        %2192 = vmatpush1.bf16.msra.mxu0 0
        %2193 = vmatprep.subr.bf16.mxu0 0
        %2194 = vmatpush1.bf16.msra.mxu0 0
        %2195 = vmatprep.subr.bf16.mxu0 0
        %2196 = vmatpush1.bf16.msra.mxu0 0
        %2197 = vmatprep.subr.bf16.mxu0 0
        %2198 = vmatpush1.bf16.msra.mxu0 0
        %2199 = vmatprep.subr.bf16.mxu0 0
        %2200 = vmatpush1.bf16.msra.mxu0 0
        %2201 = vmatprep.subr.bf16.mxu0 0
        %2202 = vmatpush1.bf16.msra.mxu0 0
        %2203 = vmatprep.subr.bf16.mxu0 0
        %2204 = vmatpush1.bf16.msra.mxu0 0
        %2205 = vmatprep.subr.bf16.mxu0 0
        %2206 = vmatpush1.bf16.msra.mxu0 0
        %2207 = vmatprep.mubr.bf16.mxu0 0
        %2208 = vmatmul.mubr.bf16.gmra.mrb[0].mxu0 %v2164
        %v2209 = vpop.f32.mrb[0].mxu0
        %v2210 = vadd.f32 0.0, %v2209
        %v2211 = vpop.f32.mrb[0].mxu0
        %v2212 = vadd.f32 0.0, %v2211
        %v2213 = vpop.f32.mrb[0].mxu0
        %v2214 = vpop.f32.mrb[0].mxu0
        %2215 = vdwg.mxu0
        %2216 = vmatprep.subr.bf16.mxu0 0
        %2217 = vmatpush1.bf16.msra.mxu0 %v2173
        %2218 = vmatprep.subr.bf16.mxu0 0
        %2219 = vmatpush1.bf16.msra.mxu0 0
        %2220 = vmatprep.subr.bf16.mxu0 0
        %2221 = vmatpush1.bf16.msra.mxu0 0
        %2222 = vmatprep.subr.bf16.mxu0 0
        %2223 = vmatpush1.bf16.msra.mxu0 0
        %2224 = vmatprep.subr.bf16.mxu0 0
        %2225 = vmatpush1.bf16.msra.mxu0 0
        %2226 = vmatprep.subr.bf16.mxu0 0
        %2227 = vmatpush1.bf16.msra.mxu0 0
        %2228 = vmatprep.subr.bf16.mxu0 0
        %2229 = vmatpush1.bf16.msra.mxu0 0
        %2230 = vmatprep.subr.bf16.mxu0 0
        %2231 = vmatpush1.bf16.msra.mxu0 0
        %2232 = vmatprep.subr.bf16.mxu0 0
        %2233 = vmatpush1.bf16.msra.mxu0 0
        %2234 = vmatprep.subr.bf16.mxu0 0
        %2235 = vmatpush1.bf16.msra.mxu0 0
        %2236 = vmatprep.subr.bf16.mxu0 0
        %2237 = vmatpush1.bf16.msra.mxu0 0
        %2238 = vmatprep.subr.bf16.mxu0 0
        %2239 = vmatpush1.bf16.msra.mxu0 0
        %2240 = vmatprep.subr.bf16.mxu0 0
        %2241 = vmatpush1.bf16.msra.mxu0 0
        %2242 = vmatprep.subr.bf16.mxu0 0
        %2243 = vmatpush1.bf16.msra.mxu0 0
        %2244 = vmatprep.subr.bf16.mxu0 0
        %2245 = vmatpush1.bf16.msra.mxu0 0
        %2246 = vmatprep.subr.bf16.mxu0 0
        %2247 = vmatpush1.bf16.msra.mxu0 0
        %2248 = vmatprep.mubr.bf16.mxu0 0
        %2249 = vmatmul.mubr.bf16.gmra.mrb[0].mxu0 %v2164
        %v2250 = vpop.f32.mrb[0].mxu0
        %v2251 = vadd.f32 0.0, %v2250
        %v2252 = vpop.f32.mrb[0].mxu0
        %v2253 = vpop.f32.mrb[0].mxu0
        %v2254 = vpop.f32.mrb[0].mxu0
        %2255 = vdwg.mxu0
        %v2256 = vadd.f32 %v2150, %v2210
        %v2257 = vadd.f32 %v2151, %v2212
        %v2258 = vadd.f32 %v2152, %v2251
        %2259 = vrot.lane.b32.xlu0 %v1629, 80
        %v2260 = vpop.permute.xlu0 %2259
        %2261 = vrot.lane.b32.xlu0 %v1637, 92
        %v2262 = vpop.permute.xlu0 %2261
        %2263 = vrot.lane.b32.xlu0 %v1638, 92
        %v2264 = vpop.permute.xlu0 %2263
        %2265 = vrot.lane.b32.xlu0 %v1639, 92
        %v2266 = vpop.permute.xlu0 %2265
        %v2267 = vsel %vm1118, %v2262, %v2264
        %v2268 = vsel %vm1118, %v2264, %v2266
        %v2270 = vsel %vm1464, %v2260, 0
        %v2273 = vsel %vm1651, %v2267, 0
        %v2276 = vsel %vm1651, %v2268, 0
        %v2279 = vsel %vm1651, %v2266, 0
        %2281 = vmatprep.subr.bf16.mxu0 %v2276
        %2282 = vmatpush1.bf16.msra.mxu0 %v2273
        %2283 = vmatprep.subr.bf16.mxu0 0
        %2284 = vmatpush1.bf16.msra.mxu0 0
        %2285 = vmatprep.subr.bf16.mxu0 0
        %2286 = vmatpush1.bf16.msra.mxu0 0
        %2287 = vmatprep.subr.bf16.mxu0 0
        %2288 = vmatpush1.bf16.msra.mxu0 0
        %2289 = vmatprep.subr.bf16.mxu0 0
        %2290 = vmatpush1.bf16.msra.mxu0 0
        %2291 = vmatprep.subr.bf16.mxu0 0
        %2292 = vmatpush1.bf16.msra.mxu0 0
        %2293 = vmatprep.subr.bf16.mxu0 0
        %2294 = vmatpush1.bf16.msra.mxu0 0
        %2295 = vmatprep.subr.bf16.mxu0 0
        %2296 = vmatpush1.bf16.msra.mxu0 0
        %2297 = vmatprep.subr.bf16.mxu0 0
        %2298 = vmatpush1.bf16.msra.mxu0 0
        %2299 = vmatprep.subr.bf16.mxu0 0
        %2300 = vmatpush1.bf16.msra.mxu0 0
        %2301 = vmatprep.subr.bf16.mxu0 0
        %2302 = vmatpush1.bf16.msra.mxu0 0
        %2303 = vmatprep.subr.bf16.mxu0 0
        %2304 = vmatpush1.bf16.msra.mxu0 0
        %2305 = vmatprep.subr.bf16.mxu0 0
        %2306 = vmatpush1.bf16.msra.mxu0 0
        %2307 = vmatprep.subr.bf16.mxu0 0
        %2308 = vmatpush1.bf16.msra.mxu0 0
        %2309 = vmatprep.subr.bf16.mxu0 0
        %2310 = vmatpush1.bf16.msra.mxu0 0
        %2311 = vmatprep.subr.bf16.mxu0 0
        %2312 = vmatpush1.bf16.msra.mxu0 0
        %2313 = vmatprep.mubr.bf16.mxu0 0
        %2314 = vmatmul.mubr.bf16.gmra.mrb[0].mxu0 %v2270
        %v2315 = vpop.f32.mrb[0].mxu0
        %v2316 = vadd.f32 0.0, %v2315
        %v2317 = vpop.f32.mrb[0].mxu0
        %v2318 = vadd.f32 0.0, %v2317
        %v2319 = vpop.f32.mrb[0].mxu0
        %v2320 = vpop.f32.mrb[0].mxu0
        %2321 = vdwg.mxu0
        %2322 = vmatprep.subr.bf16.mxu0 0
        %2323 = vmatpush1.bf16.msra.mxu0 %v2279
        %2324 = vmatprep.subr.bf16.mxu0 0
        %2325 = vmatpush1.bf16.msra.mxu0 0
        %2326 = vmatprep.subr.bf16.mxu0 0
        %2327 = vmatpush1.bf16.msra.mxu0 0
        %2328 = vmatprep.subr.bf16.mxu0 0
        %2329 = vmatpush1.bf16.msra.mxu0 0
        %2330 = vmatprep.subr.bf16.mxu0 0
        %2331 = vmatpush1.bf16.msra.mxu0 0
        %2332 = vmatprep.subr.bf16.mxu0 0
        %2333 = vmatpush1.bf16.msra.mxu0 0
        %2334 = vmatprep.subr.bf16.mxu0 0
        %2335 = vmatpush1.bf16.msra.mxu0 0
        %2336 = vmatprep.subr.bf16.mxu0 0
        %2337 = vmatpush1.bf16.msra.mxu0 0
        %2338 = vmatprep.subr.bf16.mxu0 0
        %2339 = vmatpush1.bf16.msra.mxu0 0
        %2340 = vmatprep.subr.bf16.mxu0 0
        %2341 = vmatpush1.bf16.msra.mxu0 0
        %2342 = vmatprep.subr.bf16.mxu0 0
        %2343 = vmatpush1.bf16.msra.mxu0 0
        %2344 = vmatprep.subr.bf16.mxu0 0
        %2345 = vmatpush1.bf16.msra.mxu0 0
        %2346 = vmatprep.subr.bf16.mxu0 0
        %2347 = vmatpush1.bf16.msra.mxu0 0
        %2348 = vmatprep.subr.bf16.mxu0 0
        %2349 = vmatpush1.bf16.msra.mxu0 0
        %2350 = vmatprep.subr.bf16.mxu0 0
        %2351 = vmatpush1.bf16.msra.mxu0 0
        %2352 = vmatprep.subr.bf16.mxu0 0
        %2353 = vmatpush1.bf16.msra.mxu0 0
        %2354 = vmatprep.mubr.bf16.mxu0 0
        %2355 = vmatmul.mubr.bf16.gmra.mrb[0].mxu0 %v2270
        %v2356 = vpop.f32.mrb[0].mxu0
        %v2357 = vadd.f32 0.0, %v2356
        %v2358 = vpop.f32.mrb[0].mxu0
        %v2359 = vpop.f32.mrb[0].mxu0
        %v2360 = vpop.f32.mrb[0].mxu0
        %2361 = vdwg.mxu0
        %v2362 = vadd.f32 %v2256, %v2316
        %v2363 = vadd.f32 %v2257, %v2318
        %v2364 = vadd.f32 %v2258, %v2357
        %2365 = vrot.lane.b32.xlu0 %v1629, 72
        %v2366 = vpop.permute.xlu0 %2365
        %2367 = vrot.lane.b32.xlu0 %v1637, 91
        %v2368 = vpop.permute.xlu0 %2367
        %2369 = vrot.lane.b32.xlu0 %v1638, 91
        %v2370 = vpop.permute.xlu0 %2369
        %2371 = vrot.lane.b32.xlu0 %v1639, 91
        %v2372 = vpop.permute.xlu0 %2371
        %v2373 = vsel %vm1225, %v2368, %v2370
        %v2374 = vsel %vm1225, %v2370, %v2372
        %v2376 = vsel %vm1464, %v2366, 0
        %v2379 = vsel %vm1651, %v2373, 0
        %v2382 = vsel %vm1651, %v2374, 0
        %v2385 = vsel %vm1651, %v2372, 0
        %2387 = vmatprep.subr.bf16.mxu0 %v2382
        %2388 = vmatpush1.bf16.msra.mxu0 %v2379
        %2389 = vmatprep.subr.bf16.mxu0 0
        %2390 = vmatpush1.bf16.msra.mxu0 0
        %2391 = vmatprep.subr.bf16.mxu0 0
        %2392 = vmatpush1.bf16.msra.mxu0 0
        %2393 = vmatprep.subr.bf16.mxu0 0
        %2394 = vmatpush1.bf16.msra.mxu0 0
        %2395 = vmatprep.subr.bf16.mxu0 0
        %2396 = vmatpush1.bf16.msra.mxu0 0
        %2397 = vmatprep.subr.bf16.mxu0 0
        %2398 = vmatpush1.bf16.msra.mxu0 0
        %2399 = vmatprep.subr.bf16.mxu0 0
        %2400 = vmatpush1.bf16.msra.mxu0 0
        %2401 = vmatprep.subr.bf16.mxu0 0
        %2402 = vmatpush1.bf16.msra.mxu0 0
        %2403 = vmatprep.subr.bf16.mxu0 0
        %2404 = vmatpush1.bf16.msra.mxu0 0
        %2405 = vmatprep.subr.bf16.mxu0 0
        %2406 = vmatpush1.bf16.msra.mxu0 0
        %2407 = vmatprep.subr.bf16.mxu0 0
        %2408 = vmatpush1.bf16.msra.mxu0 0
        %2409 = vmatprep.subr.bf16.mxu0 0
        %2410 = vmatpush1.bf16.msra.mxu0 0
        %2411 = vmatprep.subr.bf16.mxu0 0
        %2412 = vmatpush1.bf16.msra.mxu0 0
        %2413 = vmatprep.subr.bf16.mxu0 0
        %2414 = vmatpush1.bf16.msra.mxu0 0
        %2415 = vmatprep.subr.bf16.mxu0 0
        %2416 = vmatpush1.bf16.msra.mxu0 0
        %2417 = vmatprep.subr.bf16.mxu0 0
        %2418 = vmatpush1.bf16.msra.mxu0 0
        %2419 = vmatprep.mubr.bf16.mxu0 0
        %2420 = vmatmul.mubr.bf16.gmra.mrb[0].mxu0 %v2376
        %v2421 = vpop.f32.mrb[0].mxu0
        %v2422 = vadd.f32 0.0, %v2421
        %v2423 = vpop.f32.mrb[0].mxu0
        %v2424 = vadd.f32 0.0, %v2423
        %v2425 = vpop.f32.mrb[0].mxu0
        %v2426 = vpop.f32.mrb[0].mxu0
        %2427 = vdwg.mxu0
        %2428 = vmatprep.subr.bf16.mxu0 0
        %2429 = vmatpush1.bf16.msra.mxu0 %v2385
        %2430 = vmatprep.subr.bf16.mxu0 0
        %2431 = vmatpush1.bf16.msra.mxu0 0
        %2432 = vmatprep.subr.bf16.mxu0 0
        %2433 = vmatpush1.bf16.msra.mxu0 0
        %2434 = vmatprep.subr.bf16.mxu0 0
        %2435 = vmatpush1.bf16.msra.mxu0 0
        %2436 = vmatprep.subr.bf16.mxu0 0
        %2437 = vmatpush1.bf16.msra.mxu0 0
        %2438 = vmatprep.subr.bf16.mxu0 0
        %2439 = vmatpush1.bf16.msra.mxu0 0
        %2440 = vmatprep.subr.bf16.mxu0 0
        %2441 = vmatpush1.bf16.msra.mxu0 0
        %2442 = vmatprep.subr.bf16.mxu0 0
        %2443 = vmatpush1.bf16.msra.mxu0 0
        %2444 = vmatprep.subr.bf16.mxu0 0
        %2445 = vmatpush1.bf16.msra.mxu0 0
        %2446 = vmatprep.subr.bf16.mxu0 0
        %2447 = vmatpush1.bf16.msra.mxu0 0
        %2448 = vmatprep.subr.bf16.mxu0 0
        %2449 = vmatpush1.bf16.msra.mxu0 0
        %2450 = vmatprep.subr.bf16.mxu0 0
        %2451 = vmatpush1.bf16.msra.mxu0 0
        %2452 = vmatprep.subr.bf16.mxu0 0
        %2453 = vmatpush1.bf16.msra.mxu0 0
        %2454 = vmatprep.subr.bf16.mxu0 0
        %2455 = vmatpush1.bf16.msra.mxu0 0
        %2456 = vmatprep.subr.bf16.mxu0 0
        %2457 = vmatpush1.bf16.msra.mxu0 0
        %2458 = vmatprep.subr.bf16.mxu0 0
        %2459 = vmatpush1.bf16.msra.mxu0 0
        %2460 = vmatprep.mubr.bf16.mxu0 0
        %2461 = vmatmul.mubr.bf16.gmra.mrb[0].mxu0 %v2376
        %v2462 = vpop.f32.mrb[0].mxu0
        %v2463 = vadd.f32 0.0, %v2462
        %v2464 = vpop.f32.mrb[0].mxu0
        %v2465 = vpop.f32.mrb[0].mxu0
        %v2466 = vpop.f32.mrb[0].mxu0
        %2467 = vdwg.mxu0
        %v2468 = vadd.f32 %v2362, %v2422
        %v2469 = vadd.f32 %v2363, %v2424
        %v2470 = vadd.f32 %v2364, %v2463
        %2471 = vrot.lane.b32.xlu0 %v1629, 64
        %v2472 = vpop.permute.xlu0 %2471
        %2473 = vrot.lane.b32.xlu0 %v1637, 90
        %v2474 = vpop.permute.xlu0 %2473
        %2475 = vrot.lane.b32.xlu0 %v1638, 90
        %v2476 = vpop.permute.xlu0 %2475
        %2477 = vrot.lane.b32.xlu0 %v1639, 90
        %v2478 = vpop.permute.xlu0 %2477
        %v2479 = vsel %vm1332, %v2474, %v2476
        %v2480 = vsel %vm1332, %v2476, %v2478
        %v2482 = vsel %vm1464, %v2472, 0
        %v2485 = vsel %vm1651, %v2479, 0
        %v2488 = vsel %vm1651, %v2480, 0
        %v2491 = vsel %vm1651, %v2478, 0
        %2493 = vmatprep.subr.bf16.mxu0 %v2488
        %2494 = vmatpush1.bf16.msra.mxu0 %v2485
        %2495 = vmatprep.subr.bf16.mxu0 0
        %2496 = vmatpush1.bf16.msra.mxu0 0
        %2497 = vmatprep.subr.bf16.mxu0 0
        %2498 = vmatpush1.bf16.msra.mxu0 0
        %2499 = vmatprep.subr.bf16.mxu0 0
        %2500 = vmatpush1.bf16.msra.mxu0 0
        %2501 = vmatprep.subr.bf16.mxu0 0
        %2502 = vmatpush1.bf16.msra.mxu0 0
        %2503 = vmatprep.subr.bf16.mxu0 0
        %2504 = vmatpush1.bf16.msra.mxu0 0
        %2505 = vmatprep.subr.bf16.mxu0 0
        %2506 = vmatpush1.bf16.msra.mxu0 0
        %2507 = vmatprep.subr.bf16.mxu0 0
        %2508 = vmatpush1.bf16.msra.mxu0 0
        %2509 = vmatprep.subr.bf16.mxu0 0
        %2510 = vmatpush1.bf16.msra.mxu0 0
        %2511 = vmatprep.subr.bf16.mxu0 0
        %2512 = vmatpush1.bf16.msra.mxu0 0
        %2513 = vmatprep.subr.bf16.mxu0 0
        %2514 = vmatpush1.bf16.msra.mxu0 0
        %2515 = vmatprep.subr.bf16.mxu0 0
        %2516 = vmatpush1.bf16.msra.mxu0 0
        %2517 = vmatprep.subr.bf16.mxu0 0
        %2518 = vmatpush1.bf16.msra.mxu0 0
        %2519 = vmatprep.subr.bf16.mxu0 0
        %2520 = vmatpush1.bf16.msra.mxu0 0
        %2521 = vmatprep.subr.bf16.mxu0 0
        %2522 = vmatpush1.bf16.msra.mxu0 0
        %2523 = vmatprep.subr.bf16.mxu0 0
        %2524 = vmatpush1.bf16.msra.mxu0 0
        %2525 = vmatprep.mubr.bf16.mxu0 0
        %2526 = vmatmul.mubr.bf16.gmra.mrb[0].mxu0 %v2482
        %v2527 = vpop.f32.mrb[0].mxu0
        %v2528 = vadd.f32 0.0, %v2527
        %v2529 = vpop.f32.mrb[0].mxu0
        %v2530 = vadd.f32 0.0, %v2529
        %v2531 = vpop.f32.mrb[0].mxu0
        %v2532 = vpop.f32.mrb[0].mxu0
        %2533 = vdwg.mxu0
        %2534 = vmatprep.subr.bf16.mxu0 0
        %2535 = vmatpush1.bf16.msra.mxu0 %v2491
        %2536 = vmatprep.subr.bf16.mxu0 0
        %2537 = vmatpush1.bf16.msra.mxu0 0
        %2538 = vmatprep.subr.bf16.mxu0 0
        %2539 = vmatpush1.bf16.msra.mxu0 0
        %2540 = vmatprep.subr.bf16.mxu0 0
        %2541 = vmatpush1.bf16.msra.mxu0 0
        %2542 = vmatprep.subr.bf16.mxu0 0
        %2543 = vmatpush1.bf16.msra.mxu0 0
        %2544 = vmatprep.subr.bf16.mxu0 0
        %2545 = vmatpush1.bf16.msra.mxu0 0
        %2546 = vmatprep.subr.bf16.mxu0 0
        %2547 = vmatpush1.bf16.msra.mxu0 0
        %2548 = vmatprep.subr.bf16.mxu0 0
        %2549 = vmatpush1.bf16.msra.mxu0 0
        %2550 = vmatprep.subr.bf16.mxu0 0
        %2551 = vmatpush1.bf16.msra.mxu0 0
        %2552 = vmatprep.subr.bf16.mxu0 0
        %2553 = vmatpush1.bf16.msra.mxu0 0
        %2554 = vmatprep.subr.bf16.mxu0 0
        %2555 = vmatpush1.bf16.msra.mxu0 0
        %2556 = vmatprep.subr.bf16.mxu0 0
        %2557 = vmatpush1.bf16.msra.mxu0 0
        %2558 = vmatprep.subr.bf16.mxu0 0
        %2559 = vmatpush1.bf16.msra.mxu0 0
        %2560 = vmatprep.subr.bf16.mxu0 0
        %2561 = vmatpush1.bf16.msra.mxu0 0
        %2562 = vmatprep.subr.bf16.mxu0 0
        %2563 = vmatpush1.bf16.msra.mxu0 0
        %2564 = vmatprep.subr.bf16.mxu0 0
        %2565 = vmatpush1.bf16.msra.mxu0 0
        %2566 = vmatprep.mubr.bf16.mxu0 0
        %2567 = vmatmul.mubr.bf16.gmra.mrb[0].mxu0 %v2482
        %v2568 = vpop.f32.mrb[0].mxu0
        %v2569 = vadd.f32 0.0, %v2568
        %v2570 = vpop.f32.mrb[0].mxu0
        %v2571 = vpop.f32.mrb[0].mxu0
        %v2572 = vpop.f32.mrb[0].mxu0
        %2573 = vdwg.mxu0
        %v2574 = vadd.f32 %v2468, %v2528
        %v2575 = vadd.f32 %v2469, %v2530
        %v2576 = vadd.f32 %v2470, %v2569
        %v2577 = vld [vmem:[#allocation12] sm:$0xff]
        %v2578 = vmul.f32 %v2574, %v429
        %v2579 = vmul.f32 %v2575, %v430
        %v2580 = vmul.f32 %v2576, %v431
        %v2581 = vadd.f32 %v2578, %v2579
        %v2582 = vsel %vm1436, %v2580, 0.0
        %v2583 = vadd.f32 %v2581, %v2582
        %2584 = vadd.xlane.f32.xlu0 %v2583
        %v2585 = vpop.xlane.xlu0 %2584
        %v2586 = vmul.f32 %v2578, %v2574
        %v2587 = vmul.f32 %v2579, %v2575
        %v2588 = vmul.f32 %v2580, %v2576
        %v2589 = vadd.f32 %v2586, %v2587
        %v2590 = vsel %vm1436, %v2588, 0.0
        %v2591 = vadd.f32 %v2589, %v2590
        %2592 = vadd.xlane.f32.xlu0 %v2591
        %v2593 = vpop.xlane.xlu0 %2592
        %v2594 = vmul.f32 %v2577, 2.0
        %v2595 = vmul.f32 %v2594, %v2585
        %v2596 = vadd.f32 %v2593, %v2595
        %v2597 = vmul.f32 %v2577, %v2577
        %v2598 = vmul.f32 %v2597, 256.0
        %v2599 = vadd.f32 %v2596, %v2598
        %v2600 = vmul.f32 %v2577, 256.0
        %v2601 = vadd.f32 %v2585, %v2600
        %2603 = vrot.lane.b32.xlu0 %v2601, 125
        %v2604 = vpop.permute.xlu0 %2603
        %2607 = vrot.lane.b32.xlu0 %v2599, 126
        %v2608 = vpop.permute.xlu0 %2607
        %v2610 = vsel %vm1461, %v2604, %v2608
        %v2611 = vld [vmem:[#allocation14] sm:$0xff]
        %v2613 = vsel %vm1464, %v2611, 0
        %2615 = vmatprep.subr.mxu0 0.0
        %2616 = vmatpush1.msra.mxu0 %v2610
        %2617 = vmatprep.subr.mxu0 0.0
        %2618 = vmatpush1.msra.mxu0 0.0
        %2619 = vmatprep.subr.mxu0 0.0
        %2620 = vmatpush1.msra.mxu0 0.0
        %2621 = vmatprep.subr.mxu0 0.0
        %2622 = vmatpush1.msra.mxu0 0.0
        %2623 = vmatprep.subr.mxu0 0.0
        %2624 = vmatpush1.msra.mxu0 0.0
        %2625 = vmatprep.subr.mxu0 0.0
        %2626 = vmatpush1.msra.mxu0 0.0
        %2627 = vmatprep.subr.mxu0 0.0
        %2628 = vmatpush1.msra.mxu0 0.0
        %2629 = vmatprep.subr.mxu0 0.0
        %2630 = vmatpush1.msra.mxu0 0.0
        %2631 = vmatprep.subr.mxu0 0.0
        %2632 = vmatpush1.msra.mxu0 0.0
        %2633 = vmatprep.subr.mxu0 0.0
        %2634 = vmatpush1.msra.mxu0 0.0
        %2635 = vmatprep.subr.mxu0 0.0
        %2636 = vmatpush1.msra.mxu0 0.0
        %2637 = vmatprep.subr.mxu0 0.0
        %2638 = vmatpush1.msra.mxu0 0.0
        %2639 = vmatprep.subr.mxu0 0.0
        %2640 = vmatpush1.msra.mxu0 0.0
        %2641 = vmatprep.subr.mxu0 0.0
        %2642 = vmatpush1.msra.mxu0 0.0
        %2643 = vmatprep.subr.mxu0 0.0
        %2644 = vmatpush1.msra.mxu0 0.0
        %2645 = vmatprep.subr.mxu0 0.0
        %2646 = vmatpush1.msra.mxu0 0.0
        %2647 = vmatprep.subr.mxu0 0.0
        %2648 = vmatpush1.msra.mxu0 0.0
        %2649 = vmatprep.subr.mxu0 0.0
        %2650 = vmatpush1.msra.mxu0 0.0
        %2651 = vmatprep.subr.mxu0 0.0
        %2652 = vmatpush1.msra.mxu0 0.0
        %2653 = vmatprep.subr.mxu0 0.0
        %2654 = vmatpush1.msra.mxu0 0.0
        %2655 = vmatprep.subr.mxu0 0.0
        %2656 = vmatpush1.msra.mxu0 0.0
        %2657 = vmatprep.subr.mxu0 0.0
        %2658 = vmatpush1.msra.mxu0 0.0
        %2659 = vmatprep.subr.mxu0 0.0
        %2660 = vmatpush1.msra.mxu0 0.0
        %2661 = vmatprep.subr.mxu0 0.0
        %2662 = vmatpush1.msra.mxu0 0.0
        %2663 = vmatprep.subr.mxu0 0.0
        %2664 = vmatpush1.msra.mxu0 0.0
        %2665 = vmatprep.subr.mxu0 0.0
        %2666 = vmatpush1.msra.mxu0 0.0
        %2667 = vmatprep.subr.mxu0 0.0
        %2668 = vmatpush1.msra.mxu0 0.0
        %2669 = vmatprep.subr.mxu0 0.0
        %2670 = vmatpush1.msra.mxu0 0.0
        %2671 = vmatprep.subr.mxu0 0.0
        %2672 = vmatpush1.msra.mxu0 0.0
        %2673 = vmatprep.subr.mxu0 0.0
        %2674 = vmatpush1.msra.mxu0 0.0
        %2675 = vmatprep.subr.mxu0 0.0
        %2676 = vmatpush1.msra.mxu0 0.0
        %2677 = vmatprep.subr.mxu0 0.0
        %2678 = vmatpush1.msra.mxu0 0.0
        %2679 = vmatprep.mubr.f32.mxu0 0.0
        %2680 = vmatmul.mubr.f32.gmra.mrb[0].mxu0 %v2613
        %v2681 = vpop.f32.mrb[0].mxu0
        %v2682 = vadd.f32 0.0, %v2681
        %v2683 = vpop.f32.mrb[0].mxu0
        %2684 = vdwg.mxu0
        %v2685 = vmul.f32 %v2682, 0.001953125
        %v2686 = vmul.f32 %v2685, %v2685
        %2688 = vrot.lane.b32.xlu0 %v2686, 1
        %v2689 = vpop.permute.xlu0 %2688
        %v2691 = vsub.f32 %v2685, %v2689
        %v2692 = vadd.f32 %v2691, 1e-05
        %v2693 = vrsqrt.pop %v2692
        %2695 = vrot.lane.b32.xlu0 %v2693, 3
        %v2696 = vpop.permute.xlu0 %2695
        %v2698 = vmul.f32 %v2577, %v2696
        %2700 = vrot.lane.b32.xlu0 %v2685, 3
        %v2701 = vpop.permute.xlu0 %2700
        %v2703 = vsub.f32 %v2577, %v2701
        %2705 = vrot.lane.b32.xlu0 %v2698, 127
        %v2706 = vpop.permute.xlu0 %2705
        %v2708 = vmul.f32 %v2703, %v2706
        %2710 = vrot.lane.b32.xlu0 %v2708, 2
        %v2711 = vpop.permute.xlu0 %2710
        %v2713 = vadd.f32 %v2577, %v2711
        %2714 = vset.pattern.permute.xlu0 4
        %2715 = vperm.xlu0 %2714, %v2698
        %v2716 = vpop.permute.xlu0 %2715
        %v2718 = vmul.f32 %v2574, %v2716
        %v2719 = vmul.f32 %v2575, %v2716
        %v2720 = vmul.f32 %v2576, %v2716
        %2722 = vset.pattern.permute.xlu0 5
        %2723 = vperm.xlu0 %2722, %v2713
        %v2724 = vpop.permute.xlu0 %2723
        %v2726 = vadd.f32 %v2718, %v2724
        %v2727 = vadd.f32 %v2719, %v2724
        %v2728 = vadd.f32 %v2720, %v2724
        %v2729 = vxor.u32 %v2726, 2147483648
        %v2730 = vxor.u32 %v2727, 2147483648
        %v2731 = vxor.u32 %v2728, 2147483648
        %v2732 = vmul.f32 %v2729, 1.442695
        %v2733 = vpow.pop %v2732
        %v2734 = vmul.f32 %v2730, 1.442695
        %v2735 = vpow.pop %v2734
        %v2736 = vmul.f32 %v2731, 1.442695
        %v2737 = vpow.pop %v2736
        %v2738 = vadd.f32 %v2733, 1.0
        %v2739 = vadd.f32 %v2735, 1.0
        %v2740 = vadd.f32 %v2737, 1.0
        %v2741 = vrcp.pop %v2738
        %v2742 = vmul.f32 1.0, %v2741
        %v2743 = vrcp.pop %v2739
        %v2744 = vmul.f32 1.0, %v2743
        %v2745 = vrcp.pop %v2740
        %v2746 = vmul.f32 1.0, %v2745
        %v2747 = vmul.f32 %v2726, %v2742
        %v2748 = vmul.f32 %v2727, %v2744
        %v2749 = vmul.f32 %v2728, %v2746
        %v2750 = vmul.f32 %v2747, %v429
        %v2751 = vmul.f32 %v2748, %v430
        %v2752 = vmul.f32 %v2749, %v431
        %v2753 = vpack.c.bf16 %v2750, %v2750
        %v2754 = vpack.c.bf16 %v2751, %v2751
        %v2755 = vpack.c.bf16 %v2752, %v2752
        %v2759 = vunpack.c.l.b16 %v2753
        %v2760 = vunpack.c.l.b16 %v2754
        %v2761 = vunpack.c.l.b16 %v2755
        %v2762 = vpack.c.b16 %v2760, %v2759
        %v2763 = vpack.c.b16 %v2761, %v2761
        %2764 = vrot.lane.b32.xlu0 %v2762, 19
        %v2765 = vpop.permute.xlu0 %2764
        %2766 = vrot.lane.b32.xlu0 %v2763, 19
        %v2767 = vpop.permute.xlu0 %2766
        %v2768 = vrot.slane %v2765, 4
        %v2769 = vsel %vm458, %v2768, %v2765
        %v2770 = vsel %vm458, %v2768, %v2767
        %2773 = vst.msk [vmem:[#allocation2] sm:$0xff] %vm1620, %v2769
        %2774 = vst.msk [vmem:[#allocation2 + $0x8] sm:$0xf] %vm1622, %v2770
        %v2775 = vld [vmem:[#allocation9] sm:$0xf]
        %v2776 = vld [vmem:[#allocation2] sm:$0xff]
        %v2777 = vld [vmem:[#allocation2 + $0x8] sm:$0xf]
        %v2779 = vunpack.c.l.b16 %v2775
        %v2780 = vpack.c.b16 %v2779, %v2779
        %2781 = vrot.lane.b32.xlu0 %v2780, 120
        %v2782 = vpop.permute.xlu0 %2781
        %v2785 = vunpack.c.l.b16 %v2776
        %v2786 = vunpack.c.h.b16 %v2776
        %v2787 = vunpack.c.l.b16 %v2777
        %v2788 = vpack.c.b16 %v2785, %v2785
        %v2789 = vpack.c.b16 %v2786, %v2786
        %v2790 = vpack.c.b16 %v2787, %v2787
        %2791 = vrot.lane.b32.xlu0 %v2788, 127
        %v2792 = vpop.permute.xlu0 %2791
        %2793 = vrot.lane.b32.xlu0 %v2789, 127
        %v2794 = vpop.permute.xlu0 %2793
        %2795 = vrot.lane.b32.xlu0 %v2790, 127
        %v2796 = vpop.permute.xlu0 %2795
        %v2797 = vsel %vm491, %v2792, %v2794
        %v2798 = vsel %vm491, %v2794, %v2796
        %v2800 = vsel %vm1464, %v2782, 0
        %v2803 = vsel %vm1651, %v2797, 0
        %v2806 = vsel %vm1651, %v2798, 0
        %v2809 = vsel %vm1651, %v2796, 0
        %2811 = vmatprep.subr.bf16.mxu0 %v2806
        %2812 = vmatpush1.bf16.msra.mxu0 %v2803
        %2813 = vmatprep.subr.bf16.mxu0 0
        %2814 = vmatpush1.bf16.msra.mxu0 0
        %2815 = vmatprep.subr.bf16.mxu0 0
        %2816 = vmatpush1.bf16.msra.mxu0 0
        %2817 = vmatprep.subr.bf16.mxu0 0
        %2818 = vmatpush1.bf16.msra.mxu0 0
        %2819 = vmatprep.subr.bf16.mxu0 0
        %2820 = vmatpush1.bf16.msra.mxu0 0
        %2821 = vmatprep.subr.bf16.mxu0 0
        %2822 = vmatpush1.bf16.msra.mxu0 0
        %2823 = vmatprep.subr.bf16.mxu0 0
        %2824 = vmatpush1.bf16.msra.mxu0 0
        %2825 = vmatprep.subr.bf16.mxu0 0
        %2826 = vmatpush1.bf16.msra.mxu0 0
        %2827 = vmatprep.subr.bf16.mxu0 0
        %2828 = vmatpush1.bf16.msra.mxu0 0
        %2829 = vmatprep.subr.bf16.mxu0 0
        %2830 = vmatpush1.bf16.msra.mxu0 0
        %2831 = vmatprep.subr.bf16.mxu0 0
        %2832 = vmatpush1.bf16.msra.mxu0 0
        %2833 = vmatprep.subr.bf16.mxu0 0
        %2834 = vmatpush1.bf16.msra.mxu0 0
        %2835 = vmatprep.subr.bf16.mxu0 0
        %2836 = vmatpush1.bf16.msra.mxu0 0
        %2837 = vmatprep.subr.bf16.mxu0 0
        %2838 = vmatpush1.bf16.msra.mxu0 0
        %2839 = vmatprep.subr.bf16.mxu0 0
        %2840 = vmatpush1.bf16.msra.mxu0 0
        %2841 = vmatprep.subr.bf16.mxu0 0
        %2842 = vmatpush1.bf16.msra.mxu0 0
        %2843 = vmatprep.mubr.bf16.mxu0 0
        %2844 = vmatmul.mubr.bf16.gmra.mrb[0].mxu0 %v2800
        %v2845 = vpop.f32.mrb[0].mxu0
        %v2846 = vadd.f32 0.0, %v2845
        %v2847 = vpop.f32.mrb[0].mxu0
        %v2848 = vadd.f32 0.0, %v2847
        %v2849 = vpop.f32.mrb[0].mxu0
        %v2850 = vpop.f32.mrb[0].mxu0
        %2851 = vdwg.mxu0
        %2852 = vmatprep.subr.bf16.mxu0 0
        %2853 = vmatpush1.bf16.msra.mxu0 %v2809
        %2854 = vmatprep.subr.bf16.mxu0 0
        %2855 = vmatpush1.bf16.msra.mxu0 0
        %2856 = vmatprep.subr.bf16.mxu0 0
        %2857 = vmatpush1.bf16.msra.mxu0 0
        %2858 = vmatprep.subr.bf16.mxu0 0
        %2859 = vmatpush1.bf16.msra.mxu0 0
        %2860 = vmatprep.subr.bf16.mxu0 0
        %2861 = vmatpush1.bf16.msra.mxu0 0
        %2862 = vmatprep.subr.bf16.mxu0 0
        %2863 = vmatpush1.bf16.msra.mxu0 0
        %2864 = vmatprep.subr.bf16.mxu0 0
        %2865 = vmatpush1.bf16.msra.mxu0 0
        %2866 = vmatprep.subr.bf16.mxu0 0
        %2867 = vmatpush1.bf16.msra.mxu0 0
        %2868 = vmatprep.subr.bf16.mxu0 0
        %2869 = vmatpush1.bf16.msra.mxu0 0
        %2870 = vmatprep.subr.bf16.mxu0 0
        %2871 = vmatpush1.bf16.msra.mxu0 0
        %2872 = vmatprep.subr.bf16.mxu0 0
        %2873 = vmatpush1.bf16.msra.mxu0 0
        %2874 = vmatprep.subr.bf16.mxu0 0
        %2875 = vmatpush1.bf16.msra.mxu0 0
        %2876 = vmatprep.subr.bf16.mxu0 0
        %2877 = vmatpush1.bf16.msra.mxu0 0
        %2878 = vmatprep.subr.bf16.mxu0 0
        %2879 = vmatpush1.bf16.msra.mxu0 0
        %2880 = vmatprep.subr.bf16.mxu0 0
        %2881 = vmatpush1.bf16.msra.mxu0 0
        %2882 = vmatprep.subr.bf16.mxu0 0
        %2883 = vmatpush1.bf16.msra.mxu0 0
        %2884 = vmatprep.mubr.bf16.mxu0 0
        %2885 = vmatmul.mubr.bf16.gmra.mrb[0].mxu0 %v2800
        %v2886 = vpop.f32.mrb[0].mxu0
        %v2887 = vadd.f32 0.0, %v2886
        %v2888 = vpop.f32.mrb[0].mxu0
        %v2889 = vpop.f32.mrb[0].mxu0
        %v2890 = vpop.f32.mrb[0].mxu0
        %2891 = vdwg.mxu0
        %v2893 = vsel %vm1464, %v2775, 0
        %v2896 = vsel %vm1651, %v2788, 0
        %v2899 = vsel %vm1651, %v2789, 0
        %v2902 = vsel %vm1651, %v2790, 0
        %2904 = vmatprep.subr.bf16.mxu0 %v2899
        %2905 = vmatpush1.bf16.msra.mxu0 %v2896
        %2906 = vmatprep.subr.bf16.mxu0 0
        %2907 = vmatpush1.bf16.msra.mxu0 0
        %2908 = vmatprep.subr.bf16.mxu0 0
        %2909 = vmatpush1.bf16.msra.mxu0 0
        %2910 = vmatprep.subr.bf16.mxu0 0
        %2911 = vmatpush1.bf16.msra.mxu0 0
        %2912 = vmatprep.subr.bf16.mxu0 0
        %2913 = vmatpush1.bf16.msra.mxu0 0
        %2914 = vmatprep.subr.bf16.mxu0 0
        %2915 = vmatpush1.bf16.msra.mxu0 0
        %2916 = vmatprep.subr.bf16.mxu0 0
        %2917 = vmatpush1.bf16.msra.mxu0 0
        %2918 = vmatprep.subr.bf16.mxu0 0
        %2919 = vmatpush1.bf16.msra.mxu0 0
        %2920 = vmatprep.subr.bf16.mxu0 0
        %2921 = vmatpush1.bf16.msra.mxu0 0
        %2922 = vmatprep.subr.bf16.mxu0 0
        %2923 = vmatpush1.bf16.msra.mxu0 0
        %2924 = vmatprep.subr.bf16.mxu0 0
        %2925 = vmatpush1.bf16.msra.mxu0 0
        %2926 = vmatprep.subr.bf16.mxu0 0
        %2927 = vmatpush1.bf16.msra.mxu0 0
        %2928 = vmatprep.subr.bf16.mxu0 0
        %2929 = vmatpush1.bf16.msra.mxu0 0
        %2930 = vmatprep.subr.bf16.mxu0 0
        %2931 = vmatpush1.bf16.msra.mxu0 0
        %2932 = vmatprep.subr.bf16.mxu0 0
        %2933 = vmatpush1.bf16.msra.mxu0 0
        %2934 = vmatprep.subr.bf16.mxu0 0
        %2935 = vmatpush1.bf16.msra.mxu0 0
        %2936 = vmatprep.mubr.bf16.mxu0 0
        %2937 = vmatmul.mubr.bf16.gmra.mrb[0].mxu0 %v2893
        %v2938 = vpop.f32.mrb[0].mxu0
        %v2939 = vadd.f32 %v2846, %v2938
        %v2940 = vpop.f32.mrb[0].mxu0
        %v2941 = vadd.f32 %v2848, %v2940
        %v2942 = vpop.f32.mrb[0].mxu0
        %v2943 = vpop.f32.mrb[0].mxu0
        %2944 = vdwg.mxu0
        %2945 = vmatprep.subr.bf16.mxu0 0
        %2946 = vmatpush1.bf16.msra.mxu0 %v2902
        %2947 = vmatprep.subr.bf16.mxu0 0
        %2948 = vmatpush1.bf16.msra.mxu0 0
        %2949 = vmatprep.subr.bf16.mxu0 0
        %2950 = vmatpush1.bf16.msra.mxu0 0
        %2951 = vmatprep.subr.bf16.mxu0 0
        %2952 = vmatpush1.bf16.msra.mxu0 0
        %2953 = vmatprep.subr.bf16.mxu0 0
        %2954 = vmatpush1.bf16.msra.mxu0 0
        %2955 = vmatprep.subr.bf16.mxu0 0
        %2956 = vmatpush1.bf16.msra.mxu0 0
        %2957 = vmatprep.subr.bf16.mxu0 0
        %2958 = vmatpush1.bf16.msra.mxu0 0
        %2959 = vmatprep.subr.bf16.mxu0 0
        %2960 = vmatpush1.bf16.msra.mxu0 0
        %2961 = vmatprep.subr.bf16.mxu0 0
        %2962 = vmatpush1.bf16.msra.mxu0 0
        %2963 = vmatprep.subr.bf16.mxu0 0
        %2964 = vmatpush1.bf16.msra.mxu0 0
        %2965 = vmatprep.subr.bf16.mxu0 0
        %2966 = vmatpush1.bf16.msra.mxu0 0
        %2967 = vmatprep.subr.bf16.mxu0 0
        %2968 = vmatpush1.bf16.msra.mxu0 0
        %2969 = vmatprep.subr.bf16.mxu0 0
        %2970 = vmatpush1.bf16.msra.mxu0 0
        %2971 = vmatprep.subr.bf16.mxu0 0
        %2972 = vmatpush1.bf16.msra.mxu0 0
        %2973 = vmatprep.subr.bf16.mxu0 0
        %2974 = vmatpush1.bf16.msra.mxu0 0
        %2975 = vmatprep.subr.bf16.mxu0 0
        %2976 = vmatpush1.bf16.msra.mxu0 0
        %2977 = vmatprep.mubr.bf16.mxu0 0
        %2978 = vmatmul.mubr.bf16.gmra.mrb[0].mxu0 %v2893
        %v2979 = vpop.f32.mrb[0].mxu0
        %v2980 = vadd.f32 %v2887, %v2979
        %v2981 = vpop.f32.mrb[0].mxu0
        %v2982 = vpop.f32.mrb[0].mxu0
        %v2983 = vpop.f32.mrb[0].mxu0
        %2984 = vdwg.mxu0
        %2985 = vrot.lane.b32.xlu0 %v2780, 112
        %v2986 = vpop.permute.xlu0 %2985
        %2987 = vrot.lane.b32.xlu0 %v2788, 126
        %v2988 = vpop.permute.xlu0 %2987
        %2989 = vrot.lane.b32.xlu0 %v2789, 126
        %v2990 = vpop.permute.xlu0 %2989
        %2991 = vrot.lane.b32.xlu0 %v2790, 126
        %v2992 = vpop.permute.xlu0 %2991
        %v2993 = vsel %vm690, %v2988, %v2990
        %v2994 = vsel %vm690, %v2990, %v2992
        %v2996 = vsel %vm1464, %v2986, 0
        %v2999 = vsel %vm1651, %v2993, 0
        %v3002 = vsel %vm1651, %v2994, 0
        %v3005 = vsel %vm1651, %v2992, 0
        %3007 = vmatprep.subr.bf16.mxu0 %v3002
        %3008 = vmatpush1.bf16.msra.mxu0 %v2999
        %3009 = vmatprep.subr.bf16.mxu0 0
        %3010 = vmatpush1.bf16.msra.mxu0 0
        %3011 = vmatprep.subr.bf16.mxu0 0
        %3012 = vmatpush1.bf16.msra.mxu0 0
        %3013 = vmatprep.subr.bf16.mxu0 0
        %3014 = vmatpush1.bf16.msra.mxu0 0
        %3015 = vmatprep.subr.bf16.mxu0 0
        %3016 = vmatpush1.bf16.msra.mxu0 0
        %3017 = vmatprep.subr.bf16.mxu0 0
        %3018 = vmatpush1.bf16.msra.mxu0 0
        %3019 = vmatprep.subr.bf16.mxu0 0
        %3020 = vmatpush1.bf16.msra.mxu0 0
        %3021 = vmatprep.subr.bf16.mxu0 0
        %3022 = vmatpush1.bf16.msra.mxu0 0
        %3023 = vmatprep.subr.bf16.mxu0 0
        %3024 = vmatpush1.bf16.msra.mxu0 0
        %3025 = vmatprep.subr.bf16.mxu0 0
        %3026 = vmatpush1.bf16.msra.mxu0 0
        %3027 = vmatprep.subr.bf16.mxu0 0
        %3028 = vmatpush1.bf16.msra.mxu0 0
        %3029 = vmatprep.subr.bf16.mxu0 0
        %3030 = vmatpush1.bf16.msra.mxu0 0
        %3031 = vmatprep.subr.bf16.mxu0 0
        %3032 = vmatpush1.bf16.msra.mxu0 0
        %3033 = vmatprep.subr.bf16.mxu0 0
        %3034 = vmatpush1.bf16.msra.mxu0 0
        %3035 = vmatprep.subr.bf16.mxu0 0
        %3036 = vmatpush1.bf16.msra.mxu0 0
        %3037 = vmatprep.subr.bf16.mxu0 0
        %3038 = vmatpush1.bf16.msra.mxu0 0
        %3039 = vmatprep.mubr.bf16.mxu0 0
        %3040 = vmatmul.mubr.bf16.gmra.mrb[0].mxu0 %v2996
        %v3041 = vpop.f32.mrb[0].mxu0
        %v3042 = vadd.f32 0.0, %v3041
        %v3043 = vpop.f32.mrb[0].mxu0
        %v3044 = vadd.f32 0.0, %v3043
        %v3045 = vpop.f32.mrb[0].mxu0
        %v3046 = vpop.f32.mrb[0].mxu0
        %3047 = vdwg.mxu0
        %3048 = vmatprep.subr.bf16.mxu0 0
        %3049 = vmatpush1.bf16.msra.mxu0 %v3005
        %3050 = vmatprep.subr.bf16.mxu0 0
        %3051 = vmatpush1.bf16.msra.mxu0 0
        %3052 = vmatprep.subr.bf16.mxu0 0
        %3053 = vmatpush1.bf16.msra.mxu0 0
        %3054 = vmatprep.subr.bf16.mxu0 0
        %3055 = vmatpush1.bf16.msra.mxu0 0
        %3056 = vmatprep.subr.bf16.mxu0 0
        %3057 = vmatpush1.bf16.msra.mxu0 0
        %3058 = vmatprep.subr.bf16.mxu0 0
        %3059 = vmatpush1.bf16.msra.mxu0 0
        %3060 = vmatprep.subr.bf16.mxu0 0
        %3061 = vmatpush1.bf16.msra.mxu0 0
        %3062 = vmatprep.subr.bf16.mxu0 0
        %3063 = vmatpush1.bf16.msra.mxu0 0
        %3064 = vmatprep.subr.bf16.mxu0 0
        %3065 = vmatpush1.bf16.msra.mxu0 0
        %3066 = vmatprep.subr.bf16.mxu0 0
        %3067 = vmatpush1.bf16.msra.mxu0 0
        %3068 = vmatprep.subr.bf16.mxu0 0
        %3069 = vmatpush1.bf16.msra.mxu0 0
        %3070 = vmatprep.subr.bf16.mxu0 0
        %3071 = vmatpush1.bf16.msra.mxu0 0
        %3072 = vmatprep.subr.bf16.mxu0 0
        %3073 = vmatpush1.bf16.msra.mxu0 0
        %3074 = vmatprep.subr.bf16.mxu0 0
        %3075 = vmatpush1.bf16.msra.mxu0 0
        %3076 = vmatprep.subr.bf16.mxu0 0
        %3077 = vmatpush1.bf16.msra.mxu0 0
        %3078 = vmatprep.subr.bf16.mxu0 0
        %3079 = vmatpush1.bf16.msra.mxu0 0
        %3080 = vmatprep.mubr.bf16.mxu0 0
        %3081 = vmatmul.mubr.bf16.gmra.mrb[0].mxu0 %v2996
        %v3082 = vpop.f32.mrb[0].mxu0
        %v3083 = vadd.f32 0.0, %v3082
        %v3084 = vpop.f32.mrb[0].mxu0
        %v3085 = vpop.f32.mrb[0].mxu0
        %v3086 = vpop.f32.mrb[0].mxu0
        %3087 = vdwg.mxu0
        %v3088 = vadd.f32 %v2939, %v3042
        %v3089 = vadd.f32 %v2941, %v3044
        %v3090 = vadd.f32 %v2980, %v3083
        %3091 = vrot.lane.b32.xlu0 %v2780, 104
        %v3092 = vpop.permute.xlu0 %3091
        %3093 = vrot.lane.b32.xlu0 %v2788, 110
        %v3094 = vpop.permute.xlu0 %3093
        %3095 = vrot.lane.b32.xlu0 %v2789, 110
        %v3096 = vpop.permute.xlu0 %3095
        %3097 = vrot.lane.b32.xlu0 %v2790, 110
        %v3098 = vpop.permute.xlu0 %3097
        %v3099 = vsel %vm797, %v3094, %v3096
        %v3100 = vsel %vm797, %v3096, %v3098
        %v3102 = vsel %vm1464, %v3092, 0
        %v3105 = vsel %vm1651, %v3099, 0
        %v3108 = vsel %vm1651, %v3100, 0
        %v3111 = vsel %vm1651, %v3098, 0
        %3113 = vmatprep.subr.bf16.mxu0 %v3108
        %3114 = vmatpush1.bf16.msra.mxu0 %v3105
        %3115 = vmatprep.subr.bf16.mxu0 0
        %3116 = vmatpush1.bf16.msra.mxu0 0
        %3117 = vmatprep.subr.bf16.mxu0 0
        %3118 = vmatpush1.bf16.msra.mxu0 0
        %3119 = vmatprep.subr.bf16.mxu0 0
        %3120 = vmatpush1.bf16.msra.mxu0 0
        %3121 = vmatprep.subr.bf16.mxu0 0
        %3122 = vmatpush1.bf16.msra.mxu0 0
        %3123 = vmatprep.subr.bf16.mxu0 0
        %3124 = vmatpush1.bf16.msra.mxu0 0
        %3125 = vmatprep.subr.bf16.mxu0 0
        %3126 = vmatpush1.bf16.msra.mxu0 0
        %3127 = vmatprep.subr.bf16.mxu0 0
        %3128 = vmatpush1.bf16.msra.mxu0 0
        %3129 = vmatprep.subr.bf16.mxu0 0
        %3130 = vmatpush1.bf16.msra.mxu0 0
        %3131 = vmatprep.subr.bf16.mxu0 0
        %3132 = vmatpush1.bf16.msra.mxu0 0
        %3133 = vmatprep.subr.bf16.mxu0 0
        %3134 = vmatpush1.bf16.msra.mxu0 0
        %3135 = vmatprep.subr.bf16.mxu0 0
        %3136 = vmatpush1.bf16.msra.mxu0 0
        %3137 = vmatprep.subr.bf16.mxu0 0
        %3138 = vmatpush1.bf16.msra.mxu0 0
        %3139 = vmatprep.subr.bf16.mxu0 0
        %3140 = vmatpush1.bf16.msra.mxu0 0
        %3141 = vmatprep.subr.bf16.mxu0 0
        %3142 = vmatpush1.bf16.msra.mxu0 0
        %3143 = vmatprep.subr.bf16.mxu0 0
        %3144 = vmatpush1.bf16.msra.mxu0 0
        %3145 = vmatprep.mubr.bf16.mxu0 0
        %3146 = vmatmul.mubr.bf16.gmra.mrb[0].mxu0 %v3102
        %v3147 = vpop.f32.mrb[0].mxu0
        %v3148 = vadd.f32 0.0, %v3147
        %v3149 = vpop.f32.mrb[0].mxu0
        %v3150 = vadd.f32 0.0, %v3149
        %v3151 = vpop.f32.mrb[0].mxu0
        %v3152 = vpop.f32.mrb[0].mxu0
        %3153 = vdwg.mxu0
        %3154 = vmatprep.subr.bf16.mxu0 0
        %3155 = vmatpush1.bf16.msra.mxu0 %v3111
        %3156 = vmatprep.subr.bf16.mxu0 0
        %3157 = vmatpush1.bf16.msra.mxu0 0
        %3158 = vmatprep.subr.bf16.mxu0 0
        %3159 = vmatpush1.bf16.msra.mxu0 0
        %3160 = vmatprep.subr.bf16.mxu0 0
        %3161 = vmatpush1.bf16.msra.mxu0 0
        %3162 = vmatprep.subr.bf16.mxu0 0
        %3163 = vmatpush1.bf16.msra.mxu0 0
        %3164 = vmatprep.subr.bf16.mxu0 0
        %3165 = vmatpush1.bf16.msra.mxu0 0
        %3166 = vmatprep.subr.bf16.mxu0 0
        %3167 = vmatpush1.bf16.msra.mxu0 0
        %3168 = vmatprep.subr.bf16.mxu0 0
        %3169 = vmatpush1.bf16.msra.mxu0 0
        %3170 = vmatprep.subr.bf16.mxu0 0
        %3171 = vmatpush1.bf16.msra.mxu0 0
        %3172 = vmatprep.subr.bf16.mxu0 0
        %3173 = vmatpush1.bf16.msra.mxu0 0
        %3174 = vmatprep.subr.bf16.mxu0 0
        %3175 = vmatpush1.bf16.msra.mxu0 0
        %3176 = vmatprep.subr.bf16.mxu0 0
        %3177 = vmatpush1.bf16.msra.mxu0 0
        %3178 = vmatprep.subr.bf16.mxu0 0
        %3179 = vmatpush1.bf16.msra.mxu0 0
        %3180 = vmatprep.subr.bf16.mxu0 0
        %3181 = vmatpush1.bf16.msra.mxu0 0
        %3182 = vmatprep.subr.bf16.mxu0 0
        %3183 = vmatpush1.bf16.msra.mxu0 0
        %3184 = vmatprep.subr.bf16.mxu0 0
        %3185 = vmatpush1.bf16.msra.mxu0 0
        %3186 = vmatprep.mubr.bf16.mxu0 0
        %3187 = vmatmul.mubr.bf16.gmra.mrb[0].mxu0 %v3102
        %v3188 = vpop.f32.mrb[0].mxu0
        %v3189 = vadd.f32 0.0, %v3188
        %v3190 = vpop.f32.mrb[0].mxu0
        %v3191 = vpop.f32.mrb[0].mxu0
        %v3192 = vpop.f32.mrb[0].mxu0
        %3193 = vdwg.mxu0
        %v3194 = vadd.f32 %v3088, %v3148
        %v3195 = vadd.f32 %v3089, %v3150
        %v3196 = vadd.f32 %v3090, %v3189
        %3197 = vrot.lane.b32.xlu0 %v2780, 96
        %v3198 = vpop.permute.xlu0 %3197
        %3199 = vrot.lane.b32.xlu0 %v2788, 109
        %v3200 = vpop.permute.xlu0 %3199
        %3201 = vrot.lane.b32.xlu0 %v2789, 109
        %v3202 = vpop.permute.xlu0 %3201
        %3203 = vrot.lane.b32.xlu0 %v2790, 109
        %v3204 = vpop.permute.xlu0 %3203
        %v3205 = vsel %vm904, %v3200, %v3202
        %v3206 = vsel %vm904, %v3202, %v3204
        %v3208 = vsel %vm1464, %v3198, 0
        %v3211 = vsel %vm1651, %v3205, 0
        %v3214 = vsel %vm1651, %v3206, 0
        %v3217 = vsel %vm1651, %v3204, 0
        %3219 = vmatprep.subr.bf16.mxu0 %v3214
        %3220 = vmatpush1.bf16.msra.mxu0 %v3211
        %3221 = vmatprep.subr.bf16.mxu0 0
        %3222 = vmatpush1.bf16.msra.mxu0 0
        %3223 = vmatprep.subr.bf16.mxu0 0
        %3224 = vmatpush1.bf16.msra.mxu0 0
        %3225 = vmatprep.subr.bf16.mxu0 0
        %3226 = vmatpush1.bf16.msra.mxu0 0
        %3227 = vmatprep.subr.bf16.mxu0 0
        %3228 = vmatpush1.bf16.msra.mxu0 0
        %3229 = vmatprep.subr.bf16.mxu0 0
        %3230 = vmatpush1.bf16.msra.mxu0 0
        %3231 = vmatprep.subr.bf16.mxu0 0
        %3232 = vmatpush1.bf16.msra.mxu0 0
        %3233 = vmatprep.subr.bf16.mxu0 0
        %3234 = vmatpush1.bf16.msra.mxu0 0
        %3235 = vmatprep.subr.bf16.mxu0 0
        %3236 = vmatpush1.bf16.msra.mxu0 0
        %3237 = vmatprep.subr.bf16.mxu0 0
        %3238 = vmatpush1.bf16.msra.mxu0 0
        %3239 = vmatprep.subr.bf16.mxu0 0
        %3240 = vmatpush1.bf16.msra.mxu0 0
        %3241 = vmatprep.subr.bf16.mxu0 0
        %3242 = vmatpush1.bf16.msra.mxu0 0
        %3243 = vmatprep.subr.bf16.mxu0 0
        %3244 = vmatpush1.bf16.msra.mxu0 0
        %3245 = vmatprep.subr.bf16.mxu0 0
        %3246 = vmatpush1.bf16.msra.mxu0 0
        %3247 = vmatprep.subr.bf16.mxu0 0
        %3248 = vmatpush1.bf16.msra.mxu0 0
        %3249 = vmatprep.subr.bf16.mxu0 0
        %3250 = vmatpush1.bf16.msra.mxu0 0
        %3251 = vmatprep.mubr.bf16.mxu0 0
        %3252 = vmatmul.mubr.bf16.gmra.mrb[0].mxu0 %v3208
        %v3253 = vpop.f32.mrb[0].mxu0
        %v3254 = vadd.f32 0.0, %v3253
        %v3255 = vpop.f32.mrb[0].mxu0
        %v3256 = vadd.f32 0.0, %v3255
        %v3257 = vpop.f32.mrb[0].mxu0
        %v3258 = vpop.f32.mrb[0].mxu0
        %3259 = vdwg.mxu0
        %3260 = vmatprep.subr.bf16.mxu0 0
        %3261 = vmatpush1.bf16.msra.mxu0 %v3217
        %3262 = vmatprep.subr.bf16.mxu0 0
        %3263 = vmatpush1.bf16.msra.mxu0 0
        %3264 = vmatprep.subr.bf16.mxu0 0
        %3265 = vmatpush1.bf16.msra.mxu0 0
        %3266 = vmatprep.subr.bf16.mxu0 0
        %3267 = vmatpush1.bf16.msra.mxu0 0
        %3268 = vmatprep.subr.bf16.mxu0 0
        %3269 = vmatpush1.bf16.msra.mxu0 0
        %3270 = vmatprep.subr.bf16.mxu0 0
        %3271 = vmatpush1.bf16.msra.mxu0 0
        %3272 = vmatprep.subr.bf16.mxu0 0
        %3273 = vmatpush1.bf16.msra.mxu0 0
        %3274 = vmatprep.subr.bf16.mxu0 0
        %3275 = vmatpush1.bf16.msra.mxu0 0
        %3276 = vmatprep.subr.bf16.mxu0 0
        %3277 = vmatpush1.bf16.msra.mxu0 0
        %3278 = vmatprep.subr.bf16.mxu0 0
        %3279 = vmatpush1.bf16.msra.mxu0 0
        %3280 = vmatprep.subr.bf16.mxu0 0
        %3281 = vmatpush1.bf16.msra.mxu0 0
        %3282 = vmatprep.subr.bf16.mxu0 0
        %3283 = vmatpush1.bf16.msra.mxu0 0
        %3284 = vmatprep.subr.bf16.mxu0 0
        %3285 = vmatpush1.bf16.msra.mxu0 0
        %3286 = vmatprep.subr.bf16.mxu0 0
        %3287 = vmatpush1.bf16.msra.mxu0 0
        %3288 = vmatprep.subr.bf16.mxu0 0
        %3289 = vmatpush1.bf16.msra.mxu0 0
        %3290 = vmatprep.subr.bf16.mxu0 0
        %3291 = vmatpush1.bf16.msra.mxu0 0
        %3292 = vmatprep.mubr.bf16.mxu0 0
        %3293 = vmatmul.mubr.bf16.gmra.mrb[0].mxu0 %v3208
        %v3294 = vpop.f32.mrb[0].mxu0
        %v3295 = vadd.f32 0.0, %v3294
        %v3296 = vpop.f32.mrb[0].mxu0
        %v3297 = vpop.f32.mrb[0].mxu0
        %v3298 = vpop.f32.mrb[0].mxu0
        %3299 = vdwg.mxu0
        %v3300 = vadd.f32 %v3194, %v3254
        %v3301 = vadd.f32 %v3195, %v3256
        %v3302 = vadd.f32 %v3196, %v3295
        %3303 = vrot.lane.b32.xlu0 %v2780, 88
        %v3304 = vpop.permute.xlu0 %3303
        %3305 = vrot.lane.b32.xlu0 %v2788, 108
        %v3306 = vpop.permute.xlu0 %3305
        %3307 = vrot.lane.b32.xlu0 %v2789, 108
        %v3308 = vpop.permute.xlu0 %3307
        %3309 = vrot.lane.b32.xlu0 %v2790, 108
        %v3310 = vpop.permute.xlu0 %3309
        %v3311 = vsel %vm1011, %v3306, %v3308
        %v3312 = vsel %vm1011, %v3308, %v3310
        %v3314 = vsel %vm1464, %v3304, 0
        %v3317 = vsel %vm1651, %v3311, 0
        %v3320 = vsel %vm1651, %v3312, 0
        %v3323 = vsel %vm1651, %v3310, 0
        %3325 = vmatprep.subr.bf16.mxu0 %v3320
        %3326 = vmatpush1.bf16.msra.mxu0 %v3317
        %3327 = vmatprep.subr.bf16.mxu0 0
        %3328 = vmatpush1.bf16.msra.mxu0 0
        %3329 = vmatprep.subr.bf16.mxu0 0
        %3330 = vmatpush1.bf16.msra.mxu0 0
        %3331 = vmatprep.subr.bf16.mxu0 0
        %3332 = vmatpush1.bf16.msra.mxu0 0
        %3333 = vmatprep.subr.bf16.mxu0 0
        %3334 = vmatpush1.bf16.msra.mxu0 0
        %3335 = vmatprep.subr.bf16.mxu0 0
        %3336 = vmatpush1.bf16.msra.mxu0 0
        %3337 = vmatprep.subr.bf16.mxu0 0
        %3338 = vmatpush1.bf16.msra.mxu0 0
        %3339 = vmatprep.subr.bf16.mxu0 0
        %3340 = vmatpush1.bf16.msra.mxu0 0
        %3341 = vmatprep.subr.bf16.mxu0 0
        %3342 = vmatpush1.bf16.msra.mxu0 0
        %3343 = vmatprep.subr.bf16.mxu0 0
        %3344 = vmatpush1.bf16.msra.mxu0 0
        %3345 = vmatprep.subr.bf16.mxu0 0
        %3346 = vmatpush1.bf16.msra.mxu0 0
        %3347 = vmatprep.subr.bf16.mxu0 0
        %3348 = vmatpush1.bf16.msra.mxu0 0
        %3349 = vmatprep.subr.bf16.mxu0 0
        %3350 = vmatpush1.bf16.msra.mxu0 0
        %3351 = vmatprep.subr.bf16.mxu0 0
        %3352 = vmatpush1.bf16.msra.mxu0 0
        %3353 = vmatprep.subr.bf16.mxu0 0
        %3354 = vmatpush1.bf16.msra.mxu0 0
        %3355 = vmatprep.subr.bf16.mxu0 0
        %3356 = vmatpush1.bf16.msra.mxu0 0
        %3357 = vmatprep.mubr.bf16.mxu0 0
        %3358 = vmatmul.mubr.bf16.gmra.mrb[0].mxu0 %v3314
        %v3359 = vpop.f32.mrb[0].mxu0
        %v3360 = vadd.f32 0.0, %v3359
        %v3361 = vpop.f32.mrb[0].mxu0
        %v3362 = vadd.f32 0.0, %v3361
        %v3363 = vpop.f32.mrb[0].mxu0
        %v3364 = vpop.f32.mrb[0].mxu0
        %3365 = vdwg.mxu0
        %3366 = vmatprep.subr.bf16.mxu0 0
        %3367 = vmatpush1.bf16.msra.mxu0 %v3323
        %3368 = vmatprep.subr.bf16.mxu0 0
        %3369 = vmatpush1.bf16.msra.mxu0 0
        %3370 = vmatprep.subr.bf16.mxu0 0
        %3371 = vmatpush1.bf16.msra.mxu0 0
        %3372 = vmatprep.subr.bf16.mxu0 0
        %3373 = vmatpush1.bf16.msra.mxu0 0
        %3374 = vmatprep.subr.bf16.mxu0 0
        %3375 = vmatpush1.bf16.msra.mxu0 0
        %3376 = vmatprep.subr.bf16.mxu0 0
        %3377 = vmatpush1.bf16.msra.mxu0 0
        %3378 = vmatprep.subr.bf16.mxu0 0
        %3379 = vmatpush1.bf16.msra.mxu0 0
        %3380 = vmatprep.subr.bf16.mxu0 0
        %3381 = vmatpush1.bf16.msra.mxu0 0
        %3382 = vmatprep.subr.bf16.mxu0 0
        %3383 = vmatpush1.bf16.msra.mxu0 0
        %3384 = vmatprep.subr.bf16.mxu0 0
        %3385 = vmatpush1.bf16.msra.mxu0 0
        %3386 = vmatprep.subr.bf16.mxu0 0
        %3387 = vmatpush1.bf16.msra.mxu0 0
        %3388 = vmatprep.subr.bf16.mxu0 0
        %3389 = vmatpush1.bf16.msra.mxu0 0
        %3390 = vmatprep.subr.bf16.mxu0 0
        %3391 = vmatpush1.bf16.msra.mxu0 0
        %3392 = vmatprep.subr.bf16.mxu0 0
        %3393 = vmatpush1.bf16.msra.mxu0 0
        %3394 = vmatprep.subr.bf16.mxu0 0
        %3395 = vmatpush1.bf16.msra.mxu0 0
        %3396 = vmatprep.subr.bf16.mxu0 0
        %3397 = vmatpush1.bf16.msra.mxu0 0
        %3398 = vmatprep.mubr.bf16.mxu0 0
        %3399 = vmatmul.mubr.bf16.gmra.mrb[0].mxu0 %v3314
        %v3400 = vpop.f32.mrb[0].mxu0
        %v3401 = vadd.f32 0.0, %v3400
        %v3402 = vpop.f32.mrb[0].mxu0
        %v3403 = vpop.f32.mrb[0].mxu0
        %v3404 = vpop.f32.mrb[0].mxu0
        %3405 = vdwg.mxu0
        %v3406 = vadd.f32 %v3300, %v3360
        %v3407 = vadd.f32 %v3301, %v3362
        %v3408 = vadd.f32 %v3302, %v3401
        %3409 = vrot.lane.b32.xlu0 %v2780, 80
        %v3410 = vpop.permute.xlu0 %3409
        %3411 = vrot.lane.b32.xlu0 %v2788, 92
        %v3412 = vpop.permute.xlu0 %3411
        %3413 = vrot.lane.b32.xlu0 %v2789, 92
        %v3414 = vpop.permute.xlu0 %3413
        %3415 = vrot.lane.b32.xlu0 %v2790, 92
        %v3416 = vpop.permute.xlu0 %3415
        %v3417 = vsel %vm1118, %v3412, %v3414
        %v3418 = vsel %vm1118, %v3414, %v3416
        %v3420 = vsel %vm1464, %v3410, 0
        %v3423 = vsel %vm1651, %v3417, 0
        %v3426 = vsel %vm1651, %v3418, 0
        %v3429 = vsel %vm1651, %v3416, 0
        %3431 = vmatprep.subr.bf16.mxu0 %v3426
        %3432 = vmatpush1.bf16.msra.mxu0 %v3423
        %3433 = vmatprep.subr.bf16.mxu0 0
        %3434 = vmatpush1.bf16.msra.mxu0 0
        %3435 = vmatprep.subr.bf16.mxu0 0
        %3436 = vmatpush1.bf16.msra.mxu0 0
        %3437 = vmatprep.subr.bf16.mxu0 0
        %3438 = vmatpush1.bf16.msra.mxu0 0
        %3439 = vmatprep.subr.bf16.mxu0 0
        %3440 = vmatpush1.bf16.msra.mxu0 0
        %3441 = vmatprep.subr.bf16.mxu0 0
        %3442 = vmatpush1.bf16.msra.mxu0 0
        %3443 = vmatprep.subr.bf16.mxu0 0
        %3444 = vmatpush1.bf16.msra.mxu0 0
        %3445 = vmatprep.subr.bf16.mxu0 0
        %3446 = vmatpush1.bf16.msra.mxu0 0
        %3447 = vmatprep.subr.bf16.mxu0 0
        %3448 = vmatpush1.bf16.msra.mxu0 0
        %3449 = vmatprep.subr.bf16.mxu0 0
        %3450 = vmatpush1.bf16.msra.mxu0 0
        %3451 = vmatprep.subr.bf16.mxu0 0
        %3452 = vmatpush1.bf16.msra.mxu0 0
        %3453 = vmatprep.subr.bf16.mxu0 0
        %3454 = vmatpush1.bf16.msra.mxu0 0
        %3455 = vmatprep.subr.bf16.mxu0 0
        %3456 = vmatpush1.bf16.msra.mxu0 0
        %3457 = vmatprep.subr.bf16.mxu0 0
        %3458 = vmatpush1.bf16.msra.mxu0 0
        %3459 = vmatprep.subr.bf16.mxu0 0
        %3460 = vmatpush1.bf16.msra.mxu0 0
        %3461 = vmatprep.subr.bf16.mxu0 0
        %3462 = vmatpush1.bf16.msra.mxu0 0
        %3463 = vmatprep.mubr.bf16.mxu0 0
        %3464 = vmatmul.mubr.bf16.gmra.mrb[0].mxu0 %v3420
        %v3465 = vpop.f32.mrb[0].mxu0
        %v3466 = vadd.f32 0.0, %v3465
        %v3467 = vpop.f32.mrb[0].mxu0
        %v3468 = vadd.f32 0.0, %v3467
        %v3469 = vpop.f32.mrb[0].mxu0
        %v3470 = vpop.f32.mrb[0].mxu0
        %3471 = vdwg.mxu0
        %3472 = vmatprep.subr.bf16.mxu0 0
        %3473 = vmatpush1.bf16.msra.mxu0 %v3429
        %3474 = vmatprep.subr.bf16.mxu0 0
        %3475 = vmatpush1.bf16.msra.mxu0 0
        %3476 = vmatprep.subr.bf16.mxu0 0
        %3477 = vmatpush1.bf16.msra.mxu0 0
        %3478 = vmatprep.subr.bf16.mxu0 0
        %3479 = vmatpush1.bf16.msra.mxu0 0
        %3480 = vmatprep.subr.bf16.mxu0 0
        %3481 = vmatpush1.bf16.msra.mxu0 0
        %3482 = vmatprep.subr.bf16.mxu0 0
        %3483 = vmatpush1.bf16.msra.mxu0 0
        %3484 = vmatprep.subr.bf16.mxu0 0
        %3485 = vmatpush1.bf16.msra.mxu0 0
        %3486 = vmatprep.subr.bf16.mxu0 0
        %3487 = vmatpush1.bf16.msra.mxu0 0
        %3488 = vmatprep.subr.bf16.mxu0 0
        %3489 = vmatpush1.bf16.msra.mxu0 0
        %3490 = vmatprep.subr.bf16.mxu0 0
        %3491 = vmatpush1.bf16.msra.mxu0 0
        %3492 = vmatprep.subr.bf16.mxu0 0
        %3493 = vmatpush1.bf16.msra.mxu0 0
        %3494 = vmatprep.subr.bf16.mxu0 0
        %3495 = vmatpush1.bf16.msra.mxu0 0
        %3496 = vmatprep.subr.bf16.mxu0 0
        %3497 = vmatpush1.bf16.msra.mxu0 0
        %3498 = vmatprep.subr.bf16.mxu0 0
        %3499 = vmatpush1.bf16.msra.mxu0 0
        %3500 = vmatprep.subr.bf16.mxu0 0
        %3501 = vmatpush1.bf16.msra.mxu0 0
        %3502 = vmatprep.subr.bf16.mxu0 0
        %3503 = vmatpush1.bf16.msra.mxu0 0
        %3504 = vmatprep.mubr.bf16.mxu0 0
        %3505 = vmatmul.mubr.bf16.gmra.mrb[0].mxu0 %v3420
        %v3506 = vpop.f32.mrb[0].mxu0
        %v3507 = vadd.f32 0.0, %v3506
        %v3508 = vpop.f32.mrb[0].mxu0
        %v3509 = vpop.f32.mrb[0].mxu0
        %v3510 = vpop.f32.mrb[0].mxu0
        %3511 = vdwg.mxu0
        %v3512 = vadd.f32 %v3406, %v3466
        %v3513 = vadd.f32 %v3407, %v3468
        %v3514 = vadd.f32 %v3408, %v3507
        %3515 = vrot.lane.b32.xlu0 %v2780, 72
        %v3516 = vpop.permute.xlu0 %3515
        %3517 = vrot.lane.b32.xlu0 %v2788, 91
        %v3518 = vpop.permute.xlu0 %3517
        %3519 = vrot.lane.b32.xlu0 %v2789, 91
        %v3520 = vpop.permute.xlu0 %3519
        %3521 = vrot.lane.b32.xlu0 %v2790, 91
        %v3522 = vpop.permute.xlu0 %3521
        %v3523 = vsel %vm1225, %v3518, %v3520
        %v3524 = vsel %vm1225, %v3520, %v3522
        %v3526 = vsel %vm1464, %v3516, 0
        %v3529 = vsel %vm1651, %v3523, 0
        %v3532 = vsel %vm1651, %v3524, 0
        %v3535 = vsel %vm1651, %v3522, 0
        %3537 = vmatprep.subr.bf16.mxu0 %v3532
        %3538 = vmatpush1.bf16.msra.mxu0 %v3529
        %3539 = vmatprep.subr.bf16.mxu0 0
        %3540 = vmatpush1.bf16.msra.mxu0 0
        %3541 = vmatprep.subr.bf16.mxu0 0
        %3542 = vmatpush1.bf16.msra.mxu0 0
        %3543 = vmatprep.subr.bf16.mxu0 0
        %3544 = vmatpush1.bf16.msra.mxu0 0
        %3545 = vmatprep.subr.bf16.mxu0 0
        %3546 = vmatpush1.bf16.msra.mxu0 0
        %3547 = vmatprep.subr.bf16.mxu0 0
        %3548 = vmatpush1.bf16.msra.mxu0 0
        %3549 = vmatprep.subr.bf16.mxu0 0
        %3550 = vmatpush1.bf16.msra.mxu0 0
        %3551 = vmatprep.subr.bf16.mxu0 0
        %3552 = vmatpush1.bf16.msra.mxu0 0
        %3553 = vmatprep.subr.bf16.mxu0 0
        %3554 = vmatpush1.bf16.msra.mxu0 0
        %3555 = vmatprep.subr.bf16.mxu0 0
        %3556 = vmatpush1.bf16.msra.mxu0 0
        %3557 = vmatprep.subr.bf16.mxu0 0
        %3558 = vmatpush1.bf16.msra.mxu0 0
        %3559 = vmatprep.subr.bf16.mxu0 0
        %3560 = vmatpush1.bf16.msra.mxu0 0
        %3561 = vmatprep.subr.bf16.mxu0 0
        %3562 = vmatpush1.bf16.msra.mxu0 0
        %3563 = vmatprep.subr.bf16.mxu0 0
        %3564 = vmatpush1.bf16.msra.mxu0 0
        %3565 = vmatprep.subr.bf16.mxu0 0
        %3566 = vmatpush1.bf16.msra.mxu0 0
        %3567 = vmatprep.subr.bf16.mxu0 0
        %3568 = vmatpush1.bf16.msra.mxu0 0
        %3569 = vmatprep.mubr.bf16.mxu0 0
        %3570 = vmatmul.mubr.bf16.gmra.mrb[0].mxu0 %v3526
        %v3571 = vpop.f32.mrb[0].mxu0
        %v3572 = vadd.f32 0.0, %v3571
        %v3573 = vpop.f32.mrb[0].mxu0
        %v3574 = vadd.f32 0.0, %v3573
        %v3575 = vpop.f32.mrb[0].mxu0
        %v3576 = vpop.f32.mrb[0].mxu0
        %3577 = vdwg.mxu0
        %3578 = vmatprep.subr.bf16.mxu0 0
        %3579 = vmatpush1.bf16.msra.mxu0 %v3535
        %3580 = vmatprep.subr.bf16.mxu0 0
        %3581 = vmatpush1.bf16.msra.mxu0 0
        %3582 = vmatprep.subr.bf16.mxu0 0
        %3583 = vmatpush1.bf16.msra.mxu0 0
        %3584 = vmatprep.subr.bf16.mxu0 0
        %3585 = vmatpush1.bf16.msra.mxu0 0
        %3586 = vmatprep.subr.bf16.mxu0 0
        %3587 = vmatpush1.bf16.msra.mxu0 0
        %3588 = vmatprep.subr.bf16.mxu0 0
        %3589 = vmatpush1.bf16.msra.mxu0 0
        %3590 = vmatprep.subr.bf16.mxu0 0
        %3591 = vmatpush1.bf16.msra.mxu0 0
        %3592 = vmatprep.subr.bf16.mxu0 0
        %3593 = vmatpush1.bf16.msra.mxu0 0
        %3594 = vmatprep.subr.bf16.mxu0 0
        %3595 = vmatpush1.bf16.msra.mxu0 0
        %3596 = vmatprep.subr.bf16.mxu0 0
        %3597 = vmatpush1.bf16.msra.mxu0 0
        %3598 = vmatprep.subr.bf16.mxu0 0
        %3599 = vmatpush1.bf16.msra.mxu0 0
        %3600 = vmatprep.subr.bf16.mxu0 0
        %3601 = vmatpush1.bf16.msra.mxu0 0
        %3602 = vmatprep.subr.bf16.mxu0 0
        %3603 = vmatpush1.bf16.msra.mxu0 0
        %3604 = vmatprep.subr.bf16.mxu0 0
        %3605 = vmatpush1.bf16.msra.mxu0 0
        %3606 = vmatprep.subr.bf16.mxu0 0
        %3607 = vmatpush1.bf16.msra.mxu0 0
        %3608 = vmatprep.subr.bf16.mxu0 0
        %3609 = vmatpush1.bf16.msra.mxu0 0
        %3610 = vmatprep.mubr.bf16.mxu0 0
        %3611 = vmatmul.mubr.bf16.gmra.mrb[0].mxu0 %v3526
        %v3612 = vpop.f32.mrb[0].mxu0
        %v3613 = vadd.f32 0.0, %v3612
        %v3614 = vpop.f32.mrb[0].mxu0
        %v3615 = vpop.f32.mrb[0].mxu0
        %v3616 = vpop.f32.mrb[0].mxu0
        %3617 = vdwg.mxu0
        %v3618 = vadd.f32 %v3512, %v3572
        %v3619 = vadd.f32 %v3513, %v3574
        %v3620 = vadd.f32 %v3514, %v3613
        %3621 = vrot.lane.b32.xlu0 %v2780, 64
        %v3622 = vpop.permute.xlu0 %3621
        %3623 = vrot.lane.b32.xlu0 %v2788, 90
        %v3624 = vpop.permute.xlu0 %3623
        %3625 = vrot.lane.b32.xlu0 %v2789, 90
        %v3626 = vpop.permute.xlu0 %3625
        %3627 = vrot.lane.b32.xlu0 %v2790, 90
        %v3628 = vpop.permute.xlu0 %3627
        %v3629 = vsel %vm1332, %v3624, %v3626
        %v3630 = vsel %vm1332, %v3626, %v3628
        %v3632 = vsel %vm1464, %v3622, 0
        %v3635 = vsel %vm1651, %v3629, 0
        %v3638 = vsel %vm1651, %v3630, 0
        %v3641 = vsel %vm1651, %v3628, 0
        %3643 = vmatprep.subr.bf16.mxu0 %v3638
        %3644 = vmatpush1.bf16.msra.mxu0 %v3635
        %3645 = vmatprep.subr.bf16.mxu0 0
        %3646 = vmatpush1.bf16.msra.mxu0 0
        %3647 = vmatprep.subr.bf16.mxu0 0
        %3648 = vmatpush1.bf16.msra.mxu0 0
        %3649 = vmatprep.subr.bf16.mxu0 0
        %3650 = vmatpush1.bf16.msra.mxu0 0
        %3651 = vmatprep.subr.bf16.mxu0 0
        %3652 = vmatpush1.bf16.msra.mxu0 0
        %3653 = vmatprep.subr.bf16.mxu0 0
        %3654 = vmatpush1.bf16.msra.mxu0 0
        %3655 = vmatprep.subr.bf16.mxu0 0
        %3656 = vmatpush1.bf16.msra.mxu0 0
        %3657 = vmatprep.subr.bf16.mxu0 0
        %3658 = vmatpush1.bf16.msra.mxu0 0
        %3659 = vmatprep.subr.bf16.mxu0 0
        %3660 = vmatpush1.bf16.msra.mxu0 0
        %3661 = vmatprep.subr.bf16.mxu0 0
        %3662 = vmatpush1.bf16.msra.mxu0 0
        %3663 = vmatprep.subr.bf16.mxu0 0
        %3664 = vmatpush1.bf16.msra.mxu0 0
        %3665 = vmatprep.subr.bf16.mxu0 0
        %3666 = vmatpush1.bf16.msra.mxu0 0
        %3667 = vmatprep.subr.bf16.mxu0 0
        %3668 = vmatpush1.bf16.msra.mxu0 0
        %3669 = vmatprep.subr.bf16.mxu0 0
        %3670 = vmatpush1.bf16.msra.mxu0 0
        %3671 = vmatprep.subr.bf16.mxu0 0
        %3672 = vmatpush1.bf16.msra.mxu0 0
        %3673 = vmatprep.subr.bf16.mxu0 0
        %3674 = vmatpush1.bf16.msra.mxu0 0
        %3675 = vmatprep.mubr.bf16.mxu0 0
        %3676 = vmatmul.mubr.bf16.gmra.mrb[0].mxu0 %v3632
        %v3677 = vpop.f32.mrb[0].mxu0
        %v3678 = vadd.f32 0.0, %v3677
        %v3679 = vpop.f32.mrb[0].mxu0
        %v3680 = vadd.f32 0.0, %v3679
        %v3681 = vpop.f32.mrb[0].mxu0
        %v3682 = vpop.f32.mrb[0].mxu0
        %3683 = vdwg.mxu0
        %3684 = vmatprep.subr.bf16.mxu0 0
        %3685 = vmatpush1.bf16.msra.mxu0 %v3641
        %3686 = vmatprep.subr.bf16.mxu0 0
        %3687 = vmatpush1.bf16.msra.mxu0 0
        %3688 = vmatprep.subr.bf16.mxu0 0
        %3689 = vmatpush1.bf16.msra.mxu0 0
        %3690 = vmatprep.subr.bf16.mxu0 0
        %3691 = vmatpush1.bf16.msra.mxu0 0
        %3692 = vmatprep.subr.bf16.mxu0 0
        %3693 = vmatpush1.bf16.msra.mxu0 0
        %3694 = vmatprep.subr.bf16.mxu0 0
        %3695 = vmatpush1.bf16.msra.mxu0 0
        %3696 = vmatprep.subr.bf16.mxu0 0
        %3697 = vmatpush1.bf16.msra.mxu0 0
        %3698 = vmatprep.subr.bf16.mxu0 0
        %3699 = vmatpush1.bf16.msra.mxu0 0
        %3700 = vmatprep.subr.bf16.mxu0 0
        %3701 = vmatpush1.bf16.msra.mxu0 0
        %3702 = vmatprep.subr.bf16.mxu0 0
        %3703 = vmatpush1.bf16.msra.mxu0 0
        %3704 = vmatprep.subr.bf16.mxu0 0
        %3705 = vmatpush1.bf16.msra.mxu0 0
        %3706 = vmatprep.subr.bf16.mxu0 0
        %3707 = vmatpush1.bf16.msra.mxu0 0
        %3708 = vmatprep.subr.bf16.mxu0 0
        %3709 = vmatpush1.bf16.msra.mxu0 0
        %3710 = vmatprep.subr.bf16.mxu0 0
        %3711 = vmatpush1.bf16.msra.mxu0 0
        %3712 = vmatprep.subr.bf16.mxu0 0
        %3713 = vmatpush1.bf16.msra.mxu0 0
        %3714 = vmatprep.subr.bf16.mxu0 0
        %3715 = vmatpush1.bf16.msra.mxu0 0
        %3716 = vmatprep.mubr.bf16.mxu0 0
        %3717 = vmatmul.mubr.bf16.gmra.mrb[0].mxu0 %v3632
        %v3718 = vpop.f32.mrb[0].mxu0
        %v3719 = vadd.f32 0.0, %v3718
        %v3720 = vpop.f32.mrb[0].mxu0
        %v3721 = vpop.f32.mrb[0].mxu0
        %v3722 = vpop.f32.mrb[0].mxu0
        %3723 = vdwg.mxu0
        %v3724 = vadd.f32 %v3618, %v3678
        %v3725 = vadd.f32 %v3619, %v3680
        %v3726 = vadd.f32 %v3620, %v3719
        %v3727 = vld [vmem:[#allocation12] sm:$0xff]
        %v3728 = vmul.f32 %v3724, %v429
        %v3729 = vmul.f32 %v3725, %v430
        %v3730 = vmul.f32 %v3726, %v431
        %v3731 = vadd.f32 %v3728, %v3729
        %v3732 = vsel %vm1436, %v3730, 0.0
        %v3733 = vadd.f32 %v3731, %v3732
        %3734 = vadd.xlane.f32.xlu0 %v3733
        %v3735 = vpop.xlane.xlu0 %3734
        %v3736 = vmul.f32 %v3728, %v3724
        %v3737 = vmul.f32 %v3729, %v3725
        %v3738 = vmul.f32 %v3730, %v3726
        %v3739 = vadd.f32 %v3736, %v3737
        %v3740 = vsel %vm1436, %v3738, 0.0
        %v3741 = vadd.f32 %v3739, %v3740
        %3742 = vadd.xlane.f32.xlu0 %v3741
        %v3743 = vpop.xlane.xlu0 %3742
        %v3744 = vmul.f32 %v3727, 2.0
        %v3745 = vmul.f32 %v3744, %v3735
        %v3746 = vadd.f32 %v3743, %v3745
        %v3747 = vmul.f32 %v3727, %v3727
        %v3748 = vmul.f32 %v3747, 256.0
        %v3749 = vadd.f32 %v3746, %v3748
        %v3750 = vmul.f32 %v3727, 256.0
        %v3751 = vadd.f32 %v3735, %v3750
        %3753 = vrot.lane.b32.xlu0 %v3751, 122
        %v3754 = vpop.permute.xlu0 %3753
        %3757 = vrot.lane.b32.xlu0 %v3749, 123
        %v3758 = vpop.permute.xlu0 %3757
        %v3760 = vsel %vm1461, %v3754, %v3758
        %v3761 = vld [vmem:[#allocation14] sm:$0xff]
        %v3763 = vsel %vm1464, %v3761, 0
        %3765 = vmatprep.subr.mxu0 0.0
        %3766 = vmatpush1.msra.mxu0 %v3760
        %3767 = vmatprep.subr.mxu0 0.0
        %3768 = vmatpush1.msra.mxu0 0.0
        %3769 = vmatprep.subr.mxu0 0.0
        %3770 = vmatpush1.msra.mxu0 0.0
        %3771 = vmatprep.subr.mxu0 0.0
        %3772 = vmatpush1.msra.mxu0 0.0
        %3773 = vmatprep.subr.mxu0 0.0
        %3774 = vmatpush1.msra.mxu0 0.0
        %3775 = vmatprep.subr.mxu0 0.0
        %3776 = vmatpush1.msra.mxu0 0.0
        %3777 = vmatprep.subr.mxu0 0.0
        %3778 = vmatpush1.msra.mxu0 0.0
        %3779 = vmatprep.subr.mxu0 0.0
        %3780 = vmatpush1.msra.mxu0 0.0
        %3781 = vmatprep.subr.mxu0 0.0
        %3782 = vmatpush1.msra.mxu0 0.0
        %3783 = vmatprep.subr.mxu0 0.0
        %3784 = vmatpush1.msra.mxu0 0.0
        %3785 = vmatprep.subr.mxu0 0.0
        %3786 = vmatpush1.msra.mxu0 0.0
        %3787 = vmatprep.subr.mxu0 0.0
        %3788 = vmatpush1.msra.mxu0 0.0
        %3789 = vmatprep.subr.mxu0 0.0
        %3790 = vmatpush1.msra.mxu0 0.0
        %3791 = vmatprep.subr.mxu0 0.0
        %3792 = vmatpush1.msra.mxu0 0.0
        %3793 = vmatprep.subr.mxu0 0.0
        %3794 = vmatpush1.msra.mxu0 0.0
        %3795 = vmatprep.subr.mxu0 0.0
        %3796 = vmatpush1.msra.mxu0 0.0
        %3797 = vmatprep.subr.mxu0 0.0
        %3798 = vmatpush1.msra.mxu0 0.0
        %3799 = vmatprep.subr.mxu0 0.0
        %3800 = vmatpush1.msra.mxu0 0.0
        %3801 = vmatprep.subr.mxu0 0.0
        %3802 = vmatpush1.msra.mxu0 0.0
        %3803 = vmatprep.subr.mxu0 0.0
        %3804 = vmatpush1.msra.mxu0 0.0
        %3805 = vmatprep.subr.mxu0 0.0
        %3806 = vmatpush1.msra.mxu0 0.0
        %3807 = vmatprep.subr.mxu0 0.0
        %3808 = vmatpush1.msra.mxu0 0.0
        %3809 = vmatprep.subr.mxu0 0.0
        %3810 = vmatpush1.msra.mxu0 0.0
        %3811 = vmatprep.subr.mxu0 0.0
        %3812 = vmatpush1.msra.mxu0 0.0
        %3813 = vmatprep.subr.mxu0 0.0
        %3814 = vmatpush1.msra.mxu0 0.0
        %3815 = vmatprep.subr.mxu0 0.0
        %3816 = vmatpush1.msra.mxu0 0.0
        %3817 = vmatprep.subr.mxu0 0.0
        %3818 = vmatpush1.msra.mxu0 0.0
        %3819 = vmatprep.subr.mxu0 0.0
        %3820 = vmatpush1.msra.mxu0 0.0
        %3821 = vmatprep.subr.mxu0 0.0
        %3822 = vmatpush1.msra.mxu0 0.0
        %3823 = vmatprep.subr.mxu0 0.0
        %3824 = vmatpush1.msra.mxu0 0.0
        %3825 = vmatprep.subr.mxu0 0.0
        %3826 = vmatpush1.msra.mxu0 0.0
        %3827 = vmatprep.subr.mxu0 0.0
        %3828 = vmatpush1.msra.mxu0 0.0
        %3829 = vmatprep.mubr.f32.mxu0 0.0
        %3830 = vmatmul.mubr.f32.gmra.mrb[0].mxu0 %v3763
        %v3831 = vpop.f32.mrb[0].mxu0
        %v3832 = vadd.f32 0.0, %v3831
        %v3833 = vpop.f32.mrb[0].mxu0
        %3834 = vdwg.mxu0
        %v3835 = vmul.f32 %v3832, 0.001953125
        %v3836 = vmul.f32 %v3835, %v3835
        %3838 = vrot.lane.b32.xlu0 %v3836, 1
        %v3839 = vpop.permute.xlu0 %3838
        %v3841 = vsub.f32 %v3835, %v3839
        %v3842 = vadd.f32 %v3841, 1e-05
        %v3843 = vrsqrt.pop %v3842
        %3845 = vrot.lane.b32.xlu0 %v3843, 6
        %v3846 = vpop.permute.xlu0 %3845
        %v3848 = vmul.f32 %v3727, %v3846
        %3850 = vrot.lane.b32.xlu0 %v3835, 6
        %v3851 = vpop.permute.xlu0 %3850
        %v3853 = vsub.f32 %v3727, %v3851
        %3855 = vrot.lane.b32.xlu0 %v3848, 127
        %v3856 = vpop.permute.xlu0 %3855
        %v3858 = vmul.f32 %v3853, %v3856
        %3860 = vrot.lane.b32.xlu0 %v3858, 2
        %v3861 = vpop.permute.xlu0 %3860
        %v3863 = vadd.f32 %v3727, %v3861
        %3864 = vset.pattern.permute.xlu0 7
        %3865 = vperm.xlu0 %3864, %v3848
        %v3866 = vpop.permute.xlu0 %3865
        %v3868 = vmul.f32 %v3724, %v3866
        %v3869 = vmul.f32 %v3725, %v3866
        %v3870 = vmul.f32 %v3726, %v3866
        %3872 = vset.pattern.permute.xlu0 8
        %3873 = vperm.xlu0 %3872, %v3863
        %v3874 = vpop.permute.xlu0 %3873
        %v3876 = vadd.f32 %v3868, %v3874
        %v3877 = vadd.f32 %v3869, %v3874
        %v3878 = vadd.f32 %v3870, %v3874
        %v3879 = vxor.u32 %v3876, 2147483648
        %v3880 = vxor.u32 %v3877, 2147483648
        %v3881 = vxor.u32 %v3878, 2147483648
        %v3882 = vmul.f32 %v3879, 1.442695
        %v3883 = vpow.pop %v3882
        %v3884 = vmul.f32 %v3880, 1.442695
        %v3885 = vpow.pop %v3884
        %v3886 = vmul.f32 %v3881, 1.442695
        %v3887 = vpow.pop %v3886
        %v3888 = vadd.f32 %v3883, 1.0
        %v3889 = vadd.f32 %v3885, 1.0
        %v3890 = vadd.f32 %v3887, 1.0
        %v3891 = vrcp.pop %v3888
        %v3892 = vmul.f32 1.0, %v3891
        %v3893 = vrcp.pop %v3889
        %v3894 = vmul.f32 1.0, %v3893
        %v3895 = vrcp.pop %v3890
        %v3896 = vmul.f32 1.0, %v3895
        %v3897 = vmul.f32 %v3876, %v3892
        %v3898 = vmul.f32 %v3877, %v3894
        %v3899 = vmul.f32 %v3878, %v3896
        %v3900 = vld [vmem:[#allocation11] sm:$0xf]
        %v3901 = vld [vmem:[%s315] sm:$0x3f]
        %v3903 = vcombine.high %v3901, %v3901
        %v3905 = vunpack.c.l.s4 1983009808
        %v3906 = vunpack.c.0.s8 %v3905
        %v3907 = vlaneseq
        %v3908 = vshrl.u32 %v3907, 7
        %v3909 = vsub.s32 %v3906, %v3908
        %v3910 = vrot.slane %v3901, %v3909
        %v3912 = vunpack.c.l.s4 1983009808
        %v3913 = vunpack.c.0.s8 %v3912
        %v3914 = vlaneseq
        %v3915 = vshrl.u32 %v3914, 7
        %v3916 = vsub.s32 %v3913, %v3915
        %v3917 = vrot.slane %v3903, %v3916
        %v3918 = vcombine.high %v3910, %v3910
        %v3920 = vsel %vm494, %v3900, 0
        %v3923 = vsel %vm498, %v3910, 0
        %v3926 = vsel %vm498, %v3918, 0
        %v3929 = vsel %vm498, %v3917, 0
        %3931 = vmatprep.subr.bf16.mxu0 %v3926
        %3932 = vmatpush1.bf16.msra.mxu0 %v3923
        %3933 = vmatprep.subr.bf16.mxu0 0
        %3934 = vmatpush1.bf16.msra.mxu0 0
        %3935 = vmatprep.subr.bf16.mxu0 0
        %3936 = vmatpush1.bf16.msra.mxu0 0
        %3937 = vmatprep.subr.bf16.mxu0 0
        %3938 = vmatpush1.bf16.msra.mxu0 0
        %3939 = vmatprep.subr.bf16.mxu0 0
        %3940 = vmatpush1.bf16.msra.mxu0 0
        %3941 = vmatprep.subr.bf16.mxu0 0
        %3942 = vmatpush1.bf16.msra.mxu0 0
        %3943 = vmatprep.subr.bf16.mxu0 0
        %3944 = vmatpush1.bf16.msra.mxu0 0
        %3945 = vmatprep.subr.bf16.mxu0 0
        %3946 = vmatpush1.bf16.msra.mxu0 0
        %3947 = vmatprep.subr.bf16.mxu0 0
        %3948 = vmatpush1.bf16.msra.mxu0 0
        %3949 = vmatprep.subr.bf16.mxu0 0
        %3950 = vmatpush1.bf16.msra.mxu0 0
        %3951 = vmatprep.subr.bf16.mxu0 0
        %3952 = vmatpush1.bf16.msra.mxu0 0
        %3953 = vmatprep.subr.bf16.mxu0 0
        %3954 = vmatpush1.bf16.msra.mxu0 0
        %3955 = vmatprep.subr.bf16.mxu0 0
        %3956 = vmatpush1.bf16.msra.mxu0 0
        %3957 = vmatprep.subr.bf16.mxu0 0
        %3958 = vmatpush1.bf16.msra.mxu0 0
        %3959 = vmatprep.subr.bf16.mxu0 0
        %3960 = vmatpush1.bf16.msra.mxu0 0
        %3961 = vmatprep.subr.bf16.mxu0 0
        %3962 = vmatpush1.bf16.msra.mxu0 0
        %3963 = vmatprep.mubr.bf16.mxu0 0
        %3964 = vmatmul.mubr.bf16.gmra.mrb[0].mxu0 %v3920
        %v3965 = vpop.f32.mrb[0].mxu0
        %v3966 = vadd.f32 0.0, %v3965
        %v3967 = vpop.f32.mrb[0].mxu0
        %v3968 = vadd.f32 0.0, %v3967
        %v3969 = vpop.f32.mrb[0].mxu0
        %v3970 = vpop.f32.mrb[0].mxu0
        %3971 = vdwg.mxu0
        %3972 = vmatprep.subr.bf16.mxu0 0
        %3973 = vmatpush1.bf16.msra.mxu0 %v3929
        %3974 = vmatprep.subr.bf16.mxu0 0
        %3975 = vmatpush1.bf16.msra.mxu0 0
        %3976 = vmatprep.subr.bf16.mxu0 0
        %3977 = vmatpush1.bf16.msra.mxu0 0
        %3978 = vmatprep.subr.bf16.mxu0 0
        %3979 = vmatpush1.bf16.msra.mxu0 0
        %3980 = vmatprep.subr.bf16.mxu0 0
        %3981 = vmatpush1.bf16.msra.mxu0 0
        %3982 = vmatprep.subr.bf16.mxu0 0
        %3983 = vmatpush1.bf16.msra.mxu0 0
        %3984 = vmatprep.subr.bf16.mxu0 0
        %3985 = vmatpush1.bf16.msra.mxu0 0
        %3986 = vmatprep.subr.bf16.mxu0 0
        %3987 = vmatpush1.bf16.msra.mxu0 0
        %3988 = vmatprep.subr.bf16.mxu0 0
        %3989 = vmatpush1.bf16.msra.mxu0 0
        %3990 = vmatprep.subr.bf16.mxu0 0
        %3991 = vmatpush1.bf16.msra.mxu0 0
        %3992 = vmatprep.subr.bf16.mxu0 0
        %3993 = vmatpush1.bf16.msra.mxu0 0
        %3994 = vmatprep.subr.bf16.mxu0 0
        %3995 = vmatpush1.bf16.msra.mxu0 0
        %3996 = vmatprep.subr.bf16.mxu0 0
        %3997 = vmatpush1.bf16.msra.mxu0 0
        %3998 = vmatprep.subr.bf16.mxu0 0
        %3999 = vmatpush1.bf16.msra.mxu0 0
        %4000 = vmatprep.subr.bf16.mxu0 0
        %4001 = vmatpush1.bf16.msra.mxu0 0
        %4002 = vmatprep.subr.bf16.mxu0 0
        %4003 = vmatpush1.bf16.msra.mxu0 0
        %4004 = vmatprep.mubr.bf16.mxu0 0
        %4005 = vmatmul.mubr.bf16.gmra.mrb[0].mxu0 %v3920
        %v4006 = vpop.f32.mrb[0].mxu0
        %v4007 = vadd.f32 0.0, %v4006
        %v4008 = vpop.f32.mrb[0].mxu0
        %v4009 = vpop.f32.mrb[0].mxu0
        %v4010 = vpop.f32.mrb[0].mxu0
        %4011 = vdwg.mxu0
        %v4012 = vld [vmem:[#allocation12] sm:$0xff]
        %v4013 = vmul.f32 %v3966, %v429
        %v4014 = vmul.f32 %v3968, %v430
        %v4015 = vmul.f32 %v4007, %v431
        %v4016 = vadd.f32 %v4013, %v4014
        %v4017 = vsel %vm1436, %v4015, 0.0
        %v4018 = vadd.f32 %v4016, %v4017
        %4019 = vadd.xlane.f32.xlu0 %v4018
        %v4020 = vpop.xlane.xlu0 %4019
        %v4021 = vmul.f32 %v4013, %v3966
        %v4022 = vmul.f32 %v4014, %v3968
        %v4023 = vmul.f32 %v4015, %v4007
        %v4024 = vadd.f32 %v4021, %v4022
        %v4025 = vsel %vm1436, %v4023, 0.0
        %v4026 = vadd.f32 %v4024, %v4025
        %4027 = vadd.xlane.f32.xlu0 %v4026
        %v4028 = vpop.xlane.xlu0 %4027
        %v4029 = vsel %vm1461, %v4020, %v4028
        %4030 = vmatprep.subr.mxu0 0.0
        %4031 = vmatpush1.msra.mxu0 %v4029
        %4032 = vmatprep.subr.mxu0 0.0
        %4033 = vmatpush1.msra.mxu0 0.0
        %4034 = vmatprep.subr.mxu0 0.0
        %4035 = vmatpush1.msra.mxu0 0.0
        %4036 = vmatprep.subr.mxu0 0.0
        %4037 = vmatpush1.msra.mxu0 0.0
        %4038 = vmatprep.subr.mxu0 0.0
        %4039 = vmatpush1.msra.mxu0 0.0
        %4040 = vmatprep.subr.mxu0 0.0
        %4041 = vmatpush1.msra.mxu0 0.0
        %4042 = vmatprep.subr.mxu0 0.0
        %4043 = vmatpush1.msra.mxu0 0.0
        %4044 = vmatprep.subr.mxu0 0.0
        %4045 = vmatpush1.msra.mxu0 0.0
        %4046 = vmatprep.subr.mxu0 0.0
        %4047 = vmatpush1.msra.mxu0 0.0
        %4048 = vmatprep.subr.mxu0 0.0
        %4049 = vmatpush1.msra.mxu0 0.0
        %4050 = vmatprep.subr.mxu0 0.0
        %4051 = vmatpush1.msra.mxu0 0.0
        %4052 = vmatprep.subr.mxu0 0.0
        %4053 = vmatpush1.msra.mxu0 0.0
        %4054 = vmatprep.subr.mxu0 0.0
        %4055 = vmatpush1.msra.mxu0 0.0
        %4056 = vmatprep.subr.mxu0 0.0
        %4057 = vmatpush1.msra.mxu0 0.0
        %4058 = vmatprep.subr.mxu0 0.0
        %4059 = vmatpush1.msra.mxu0 0.0
        %4060 = vmatprep.subr.mxu0 0.0
        %4061 = vmatpush1.msra.mxu0 0.0
        %4062 = vmatprep.subr.mxu0 0.0
        %4063 = vmatpush1.msra.mxu0 0.0
        %4064 = vmatprep.subr.mxu0 0.0
        %4065 = vmatpush1.msra.mxu0 0.0
        %4066 = vmatprep.subr.mxu0 0.0
        %4067 = vmatpush1.msra.mxu0 0.0
        %4068 = vmatprep.subr.mxu0 0.0
        %4069 = vmatpush1.msra.mxu0 0.0
        %4070 = vmatprep.subr.mxu0 0.0
        %4071 = vmatpush1.msra.mxu0 0.0
        %4072 = vmatprep.subr.mxu0 0.0
        %4073 = vmatpush1.msra.mxu0 0.0
        %4074 = vmatprep.subr.mxu0 0.0
        %4075 = vmatpush1.msra.mxu0 0.0
        %4076 = vmatprep.subr.mxu0 0.0
        %4077 = vmatpush1.msra.mxu0 0.0
        %4078 = vmatprep.subr.mxu0 0.0
        %4079 = vmatpush1.msra.mxu0 0.0
        %4080 = vmatprep.subr.mxu0 0.0
        %4081 = vmatpush1.msra.mxu0 0.0
        %4082 = vmatprep.subr.mxu0 0.0
        %4083 = vmatpush1.msra.mxu0 0.0
        %4084 = vmatprep.subr.mxu0 0.0
        %4085 = vmatpush1.msra.mxu0 0.0
        %4086 = vmatprep.subr.mxu0 0.0
        %4087 = vmatpush1.msra.mxu0 0.0
        %4088 = vmatprep.subr.mxu0 0.0
        %4089 = vmatpush1.msra.mxu0 0.0
        %4090 = vmatprep.subr.mxu0 0.0
        %4091 = vmatpush1.msra.mxu0 0.0
        %4092 = vmatprep.subr.mxu0 0.0
        %4093 = vmatpush1.msra.mxu0 0.0
        %4094 = vmatprep.mubr.f32.mxu0 0.0
        %4095 = vmatmul.mubr.f32.gmra.mrb[0].mxu0 %v3763
        %v4096 = vpop.f32.mrb[0].mxu0
        %v4097 = vadd.f32 0.0, %v4096
        %v4098 = vpop.f32.mrb[0].mxu0
        %4099 = vdwg.mxu0
        %v4100 = vmul.f32 %v4097, 0.001953125
        %v4101 = vmul.f32 %v4100, %v4100
        %4103 = vrot.lane.b32.xlu0 %v4101, 1
        %v4104 = vpop.permute.xlu0 %4103
        %v4106 = vsub.f32 %v4100, %v4104
        %v4107 = vadd.f32 %v4106, 1e-05
        %v4108 = vrsqrt.pop %v4107
        %4110 = vrot.lane.b32.xlu0 %v4108, 8
        %v4111 = vpop.permute.xlu0 %4110
        %v4113 = vmul.f32 %v4012, %v4111
        %4115 = vrot.lane.b32.xlu0 %v4113, 119
        %v4116 = vpop.permute.xlu0 %4115
        %v4118 = vmul.f32 %v4100, %v4116
        %4120 = vrot.lane.b32.xlu0 %v4118, 10
        %v4121 = vpop.permute.xlu0 %4120
        %v4123 = vsub.f32 %v4012, %v4121
        %4124 = vset.pattern.permute.xlu0 9
        %4125 = vperm.xlu0 %4124, %v4113
        %v4126 = vpop.permute.xlu0 %4125
        %v4128 = vmul.f32 %v3966, %v4126
        %v4129 = vmul.f32 %v3968, %v4126
        %v4130 = vmul.f32 %v4007, %v4126
        %4132 = vset.pattern.permute.xlu0 10
        %4133 = vperm.xlu0 %4132, %v4123
        %v4134 = vpop.permute.xlu0 %4133
        %v4136 = vadd.f32 %v4128, %v4134
        %v4137 = vadd.f32 %v4129, %v4134
        %v4138 = vadd.f32 %v4130, %v4134
        %v4139 = vadd.f32 %v3897, %v4136
        %v4140 = vadd.f32 %v3898, %v4137
        %v4141 = vadd.f32 %v3899, %v4138
        %4142 = vst [vmem:[%s369] sm:$0xff] %v4139
        %4143 = vst [vmem:[%s369 + $0x8] sm:$0xff] %v4140
        %4144 = vst.msk [vmem:[%s369 + $0x10] sm:$0xff] %vm1436, %v4141
        %s4145 = sand.u32 %s187, 1
        %s4146 = scalar_lea.sflag [#allocation5], %s4145
        %s4147 = sand.u32 %s187, 1
        %s4148 = smul.addr %s4147, 24
        %s4149 = scalar_lea.vmem [#allocation15], %s4148
        // Predicated region
        $region77: #{tpu_custom_call.1} parent=47 // pred_check
          %p4150 = pneg %p197
        $region78: #{tpu_custom_call.1} parent=47 // pred_check_branch
          %4152 = sbr.rel (%p4150) target = $region80
        $region79: #{tpu_custom_call.1} parent=47 // pred_region
          %s4154 = ssub.s32 384, 384
          %4155 = vsyncadd %s4146, %s4154
          %s4156 = smul.addr %s27, 3
          %s4157 = smul.addr %s4156, 128
          %s4158 = scalar_lea.hbm %s7, %s4157
          %s4160 = sshll.u32 %s4149, 4
          %s4161 = int_to_ptr.vmem [resolvable:$true] %s4160
          %4163 = dma.vmem_to_hbm [thread:$0]  %s4161, 384, %s4158, %s4146
        $region80: #{tpu_custom_call.1} parent=47 // pred_fallthru
          _
      $region48: #{tpu_custom_call.1} parent=5 // pred_fallthru
        _
      %p4164 = scmp.le.s32.totalorder 2, %s22
      // Predicated region
      $region81: #{tpu_custom_call.1} parent=5 // pred_check
        %p4165 = pneg %p4164
      $region82: #{tpu_custom_call.1} parent=5 // pred_check_branch
        %4167 = sbr.rel (%p4165) target = $region84
      $region83: #{tpu_custom_call.1} parent=5 // pred_region
        %s4168 = ssub.s32 %s22, 2
        // Predicated region
        $region85: #{tpu_custom_call.1} parent=83 // pred_check
          %p4169 = pneg %p203
        $region86: #{tpu_custom_call.1} parent=83 // pred_check_branch
          %4171 = sbr.rel (%p4169) target = $region88
        $region87: #{tpu_custom_call.1} parent=83 // pred_region
          %s4172 = sand.u32 %s188, 1
          %s4173 = scalar_lea.sflag [#allocation5], %s4172
          %s4174 = sand.u32 %s188, 1
          %s4175 = smul.addr %s4174, 24
          %s4176 = scalar_lea.vmem [#allocation15], %s4175
          %4177 = dma.done %s4173, 384
        $region88: #{tpu_custom_call.1} parent=83 // pred_fallthru
          _
      $region84: #{tpu_custom_call.1} parent=5 // pred_fallthru
        _
    $region6: #{tpu_custom_call.1} parent=1 // loop_footer
      %s26 = sadd.s32 1, %s22
    $region7: #{tpu_custom_call.1} parent=1 // loop_footer_branch
      %21 = sbr.rel target = $region3
    $region8: #{tpu_custom_call.1} parent=1 // loop_exit
      _
    %4178 = vsyncpa [#allocation4], 1
    %s4179 = scalar_lea.sflag [#allocation4], 1
    %4180 = vsyncpa %s4179, 1
    %4181 = vsyncpa [#allocation7], 1
    %4182 = vsyncpa [#allocation10], 1
    %4183 = vsyncpa [#allocation13], 1
    %4184 = vsyncpa [#allocation5], 1
    %s4185 = scalar_lea.sflag [#allocation5], 1
    %4186 = vsyncpa %s4185, 1

// kernel: tpu_custom_call.1
$region0: #{tpu_custom_call.1}
  #allocation0 [shape = 'u32[]', space=smem, size = 0x4, offset = 0x4, fixed_abs, tag = 'smem constant byte address 0x4 - core index']
  #allocation1 [shape = 'u32[144,128]{1,0:T(1,128)}', space=vmem, size = 0x12000, scoped, tag = 'internal scratch']
  #allocation2 [shape = 'bf16[8,327]{1,0:T(8,128)(2,1)}', space=vmem, size = 0x1800, scoped, tag = 'scratch operand']
  %s0 = inlined_call_operand.hbm [shape: bf16[2,4,288], index: 0, kind: input, shape index: {}]
  %s1 = inlined_call_operand.hbm [shape: bf16[8,36], index: 1, kind: input, shape index: {}]
  %s2 = inlined_call_operand.hbm [shape: bf16[8,72], index: 2, kind: input, shape index: {}]
  %s3 = inlined_call_operand.hbm [shape: bf16[8,72], index: 3, kind: input, shape index: {}]
  %s4 = inlined_call_operand.hbm [shape: bf16[8,4], index: 4, kind: input, shape index: {}]
  %s5 = inlined_call_operand.hbm [shape: f32[8,11], index: 5, kind: input, shape index: {}]
  %s6 = inlined_call_operand.hbm [shape: f32[8,8], index: 6, kind: input, shape index: {}]
  %s7 = inlined_call_operand.hbm [shape: f32[2,8,288], index: 7, kind: output, shape index: {}]
  %s8 = sld [smem:[#allocation0]]
  $region89: #{tpu_custom_call.1} parent=0
    _
  %s10 = ssub.s32 1, %s8
  %s11 = scalar_select 0, %s10, %s8
  $region1: #{tpu_custom_call.1} parent=0
    #allocation3 [shape = 'u8[6144]{0}', space=vmem, size = 0x1800, scoped, tag = 'input window, operand 0']
    #allocation4 [shape = 's32[2]{0}', space=sflag, size = 0x8, scoped, tag = 'scoped memory for tpu_custom_call.1']
    #allocation5 [shape = 's32[2]{0}', space=sflag, size = 0x8, scoped, tag = 'scoped memory for tpu_custom_call.1']
    #allocation6 [shape = 'u8[2048]{0}', space=vmem, size = 0x800, scoped, tag = 'input window, operand 1, single buffered']
    #allocation7 [shape = 's32[1]{0}', space=sflag, size = 0x4, scoped, tag = 'scoped memory for tpu_custom_call.1']
    #allocation8 [shape = 'u8[2048]{0}', space=vmem, size = 0x800, scoped, tag = 'input window, operand 2, single buffered']
    #allocation9 [shape = 'u8[2048]{0}', space=vmem, size = 0x800, scoped, tag = 'input window, operand 3, single buffered']
    #allocation10 [shape = 's32[1]{0}', space=sflag, size = 0x4, scoped, tag = 'scoped memory for tpu_custom_call.1']
    #allocation11 [shape = 'u8[2048]{0}', space=vmem, size = 0x800, scoped, tag = 'input window, operand 4, single buffered']
    #allocation12 [shape = 'u8[4096]{0}', space=vmem, size = 0x1000, scoped, tag = 'input window, operand 5, single buffered']
    #allocation13 [shape = 's32[1]{0}', space=sflag, size = 0x4, scoped, tag = 'scoped memory for tpu_custom_call.1']
    #allocation14 [shape = 'u8[4096]{0}', space=vmem, size = 0x1000, scoped, tag = 'input window, operand 6, single buffered']
    #allocation15 [shape = 'u8[24576]{0}', space=vmem, size = 0x6000, scoped, tag = 'output window, operand 0']
    %12 = vsyncpa [#allocation4], 0
    %s13 = scalar_lea.sflag [#allocation4], 1
    %14 = vsyncpa %s13, 0
    %15 = vsyncpa [#allocation7], 0
    %16 = vsyncpa [#allocation10], 0
    %17 = vsyncpa [#allocation13], 0
    %18 = vsyncpa [#allocation5], 0
    %s19 = scalar_lea.sflag [#allocation5], 1
    %20 = vsyncpa %s19, 0
    loop: start=0, step=1, limit=4
    $region2: #{tpu_custom_call.1} parent=1 // loop_pre_header
      _
    $region3: #{tpu_custom_call.1} parent=1 // loop_header
      %s22 = sphi 0, %s26
      %p23 = scmp.ge.s32.totalorder %s22, 4
      %s32 = sphi 0, %s34
      %s35 = sphi 0, %s32
      %s36 = sphi 0, %s35
      %s52 = sphi 0, %s36
      %s56 = sphi 0, %s56
      %s58 = sphi 0, %s56
      %s59 = sphi 0, %s58
      %s73 = sphi 0, %s59
      %s77 = sphi 0, %s77
      %s79 = sphi 0, %s77
      %s80 = sphi 0, %s79
      %s94 = sphi 0, %s80
      %s98 = sphi 0, %s98
      %s100 = sphi 0, %s98
      %s101 = sphi 0, %s100
      %s115 = sphi 0, %s101
      %s119 = sphi 0, %s119
      %s121 = sphi 0, %s119
      %s122 = sphi 0, %s121
      %s136 = sphi 0, %s122
      %s140 = sphi 0, %s140
      %s142 = sphi 0, %s140
      %s143 = sphi 0, %s142
      %s157 = sphi 0, %s143
      %s161 = sphi 0, %s161
      %s163 = sphi 0, %s161
      %s164 = sphi 0, %s163
      %s178 = sphi 0, %s164
      %s184 = sphi 0, %s186
      %s187 = sphi 0, %s184
      %s188 = sphi 0, %s187
      %s204 = sphi 0, %s188
    $region4: #{tpu_custom_call.1} parent=1 // loop_header_branch
      %25 = sbr.rel (%p23) target = $region8
    $region5: #{tpu_custom_call.1} parent=1 // loop_body
      %s27 = ssub.s32 %s22, 1
      %s28 = ssub.s32 %s22, 2
      %s29 = sadd.s32 %s22, 1
      %s30 = ssub.s32 %s22, %s29
      %p31 = scmp.eq.s32.totalorder %s30, 0
      %s33 = sadd.s32 %s32, 1
      %s34 = scalar_select %p31, %s32, %s33
      %p37 = pneg %p31
      %p38 = scmp.eq.s32.totalorder %s22, 1
      %p39 = por %p37, %p38
      %p40 = scmp.ne.s32.totalorder %s32, %s35
      %p41 = scmp.eq.s32.totalorder %s22, 0
      %p42 = por %p40, %p41
      %p43 = scmp.ne.s32.totalorder %s32, %s35
      %p44 = scmp.eq.s32.totalorder %s27, 1
      %p45 = por %p43, %p44
      %p46 = scmp.ne.s32.totalorder %s35, %s36
      %p47 = scmp.eq.s32.totalorder %s27, 0
      %p48 = por %p46, %p47
      %p49 = scmp.ne.s32.totalorder %s35, %s36
      %p50 = scmp.eq.s32.totalorder %s28, 1
      %p51 = por %p49, %p50
      %p53 = scmp.ne.s32.totalorder %s36, %s52
      %p54 = scmp.eq.s32.totalorder %s28, 0
      %p55 = por %p53, %p54
      %s57 = sadd.s32 %s56, 1
      %p60 = scmp.eq.s32.totalorder %s22, 1
      %p61 = scmp.ne.s32.totalorder %s56, %s58
      %p62 = scmp.eq.s32.totalorder %s22, 0
      %p63 = por %p61, %p62
      %p64 = scmp.ne.s32.totalorder %s56, %s58
      %p65 = scmp.eq.s32.totalorder %s27, 1
      %p66 = por %p64, %p65
      %p67 = scmp.ne.s32.totalorder %s58, %s59
      %p68 = scmp.eq.s32.totalorder %s27, 0
      %p69 = por %p67, %p68
      %p70 = scmp.ne.s32.totalorder %s58, %s59
      %p71 = scmp.eq.s32.totalorder %s28, 1
      %p72 = por %p70, %p71
      %p74 = scmp.ne.s32.totalorder %s59, %s73
      %p75 = scmp.eq.s32.totalorder %s28, 0
      %p76 = por %p74, %p75
      %s78 = sadd.s32 %s77, 1
      %p81 = scmp.eq.s32.totalorder %s22, 1
      %p82 = scmp.ne.s32.totalorder %s77, %s79
      %p83 = scmp.eq.s32.totalorder %s22, 0
      %p84 = por %p82, %p83
      %p85 = scmp.ne.s32.totalorder %s77, %s79
      %p86 = scmp.eq.s32.totalorder %s27, 1
      %p87 = por %p85, %p86
      %p88 = scmp.ne.s32.totalorder %s79, %s80
      %p89 = scmp.eq.s32.totalorder %s27, 0
      %p90 = por %p88, %p89
      %p91 = scmp.ne.s32.totalorder %s79, %s80
      %p92 = scmp.eq.s32.totalorder %s28, 1
      %p93 = por %p91, %p92
      %p95 = scmp.ne.s32.totalorder %s80, %s94
      %p96 = scmp.eq.s32.totalorder %s28, 0
      %p97 = por %p95, %p96
      %s99 = sadd.s32 %s98, 1
      %p102 = scmp.eq.s32.totalorder %s22, 1
      %p103 = scmp.ne.s32.totalorder %s98, %s100
      %p104 = scmp.eq.s32.totalorder %s22, 0
      %p105 = por %p103, %p104
      %p106 = scmp.ne.s32.totalorder %s98, %s100
      %p107 = scmp.eq.s32.totalorder %s27, 1
      %p108 = por %p106, %p107
      %p109 = scmp.ne.s32.totalorder %s100, %s101
      %p110 = scmp.eq.s32.totalorder %s27, 0
      %p111 = por %p109, %p110
      %p112 = scmp.ne.s32.totalorder %s100, %s101
      %p113 = scmp.eq.s32.totalorder %s28, 1
      %p114 = por %p112, %p113
      %p116 = scmp.ne.s32.totalorder %s101, %s115
      %p117 = scmp.eq.s32.totalorder %s28, 0
      %p118 = por %p116, %p117
      %s120 = sadd.s32 %s119, 1
      %p123 = scmp.eq.s32.totalorder %s22, 1
      %p124 = scmp.ne.s32.totalorder %s119, %s121
      %p125 = scmp.eq.s32.totalorder %s22, 0
      %p126 = por %p124, %p125
      %p127 = scmp.ne.s32.totalorder %s119, %s121
      %p128 = scmp.eq.s32.totalorder %s27, 1
      %p129 = por %p127, %p128
      %p130 = scmp.ne.s32.totalorder %s121, %s122
      %p131 = scmp.eq.s32.totalorder %s27, 0
      %p132 = por %p130, %p131
      %p133 = scmp.ne.s32.totalorder %s121, %s122
      %p134 = scmp.eq.s32.totalorder %s28, 1
      %p135 = por %p133, %p134
      %p137 = scmp.ne.s32.totalorder %s122, %s136
      %p138 = scmp.eq.s32.totalorder %s28, 0
      %p139 = por %p137, %p138
      %s141 = sadd.s32 %s140, 1
      %p144 = scmp.eq.s32.totalorder %s22, 1
      %p145 = scmp.ne.s32.totalorder %s140, %s142
      %p146 = scmp.eq.s32.totalorder %s22, 0
      %p147 = por %p145, %p146
      %p148 = scmp.ne.s32.totalorder %s140, %s142
      %p149 = scmp.eq.s32.totalorder %s27, 1
      %p150 = por %p148, %p149
      %p151 = scmp.ne.s32.totalorder %s142, %s143
      %p152 = scmp.eq.s32.totalorder %s27, 0
      %p153 = por %p151, %p152
      %p154 = scmp.ne.s32.totalorder %s142, %s143
      %p155 = scmp.eq.s32.totalorder %s28, 1
      %p156 = por %p154, %p155
      %p158 = scmp.ne.s32.totalorder %s143, %s157
      %p159 = scmp.eq.s32.totalorder %s28, 0
      %p160 = por %p158, %p159
      %s162 = sadd.s32 %s161, 1
      %p165 = scmp.eq.s32.totalorder %s22, 1
      %p166 = scmp.ne.s32.totalorder %s161, %s163
      %p167 = scmp.eq.s32.totalorder %s22, 0
      %p168 = por %p166, %p167
      %p169 = scmp.ne.s32.totalorder %s161, %s163
      %p170 = scmp.eq.s32.totalorder %s27, 1
      %p171 = por %p169, %p170
      %p172 = scmp.ne.s32.totalorder %s163, %s164
      %p173 = scmp.eq.s32.totalorder %s27, 0
      %p174 = por %p172, %p173
      %p175 = scmp.ne.s32.totalorder %s163, %s164
      %p176 = scmp.eq.s32.totalorder %s28, 1
      %p177 = por %p175, %p176
      %p179 = scmp.ne.s32.totalorder %s164, %s178
      %p180 = scmp.eq.s32.totalorder %s28, 0
      %p181 = por %p179, %p180
      %s182 = ssub.s32 %s22, %s29
      %p183 = scmp.eq.s32.totalorder %s182, 0
      %s185 = sadd.s32 %s184, 1
      %s186 = scalar_select %p183, %s184, %s185
      %p189 = pneg %p183
      %p190 = scmp.eq.s32.totalorder %s22, 1
      %p191 = por %p189, %p190
      %p192 = scmp.ne.s32.totalorder %s184, %s187
      %p193 = scmp.eq.s32.totalorder %s22, 0
      %p194 = por %p192, %p193
      %p195 = scmp.ne.s32.totalorder %s184, %s187
      %p196 = scmp.eq.s32.totalorder %s27, 1
      %p197 = por %p195, %p196
      %p198 = scmp.ne.s32.totalorder %s187, %s188
      %p199 = scmp.eq.s32.totalorder %s27, 0
      %p200 = por %p198, %p199
      %p201 = scmp.ne.s32.totalorder %s187, %s188
      %p202 = scmp.eq.s32.totalorder %s28, 1
      %p203 = por %p201, %p202
      %p205 = scmp.ne.s32.totalorder %s188, %s204
      %p206 = scmp.eq.s32.totalorder %s28, 0
      %p207 = por %p205, %p206
      %p208 = scmp.le.s32.totalorder 1, %s22
      %p209 = scmp.lt.s32.totalorder %s22, 3
      %p210 = pnand %p208, %p209
      %p211 = pneg %p210
      // Predicated region
      $region9: #{tpu_custom_call.1} parent=5 // pred_check
        _
      $region10: #{tpu_custom_call.1} parent=5 // pred_check_branch
        %213 = sbr.rel (%p210) target = $region12
      $region11: #{tpu_custom_call.1} parent=5 // pred_region
        %s214 = ssub.s32 %s22, 1
        // Predicated region
        $region13: #{tpu_custom_call.1} parent=11 // pred_check
          %p215 = pneg %p69
        $region14: #{tpu_custom_call.1} parent=11 // pred_check_branch
          %217 = sbr.rel (%p215) target = $region16
        $region15: #{tpu_custom_call.1} parent=11 // pred_region
          %s219 = ssub.s32 64, 64
          %220 = vsyncadd [#allocation7], %s219
          %s222 = sshll.u32 [#allocation6], 4
          %s223 = int_to_ptr.vmem [resolvable:$true] %s222
          %225 = dma.hbm_to_vmem [thread:$0]  %s1, 64, %s223, [#allocation7]
        $region16: #{tpu_custom_call.1} parent=11 // pred_fallthru
          _
        // Predicated region
        $region17: #{tpu_custom_call.1} parent=11 // pred_check
          %p226 = pneg %p90
        $region18: #{tpu_custom_call.1} parent=11 // pred_check_branch
          %228 = sbr.rel (%p226) target = $region20
        $region19: #{tpu_custom_call.1} parent=11 // pred_region
          %s230 = ssub.s32 64, 64
          %231 = vsyncadd [#allocation7], %s230
          %s233 = sshll.u32 [#allocation8], 4
          %s234 = int_to_ptr.vmem [resolvable:$true] %s233
          %236 = dma.hbm_to_vmem [thread:$0]  %s2, 64, %s234, [#allocation7]
        $region20: #{tpu_custom_call.1} parent=11 // pred_fallthru
          _
        // Predicated region
        $region21: #{tpu_custom_call.1} parent=11 // pred_check
          %p237 = pneg %p111
        $region22: #{tpu_custom_call.1} parent=11 // pred_check_branch
          %239 = sbr.rel (%p237) target = $region24
        $region23: #{tpu_custom_call.1} parent=11 // pred_region
          %s241 = ssub.s32 64, 64
          %242 = vsyncadd [#allocation10], %s241
          %s244 = sshll.u32 [#allocation9], 4
          %s245 = int_to_ptr.vmem [resolvable:$true] %s244
          %247 = dma.hbm_to_vmem [thread:$0]  %s3, 64, %s245, [#allocation10]
        $region24: #{tpu_custom_call.1} parent=11 // pred_fallthru
          _
        // Predicated region
        $region25: #{tpu_custom_call.1} parent=11 // pred_check
          %p248 = pneg %p132
        $region26: #{tpu_custom_call.1} parent=11 // pred_check_branch
          %250 = sbr.rel (%p248) target = $region28
        $region27: #{tpu_custom_call.1} parent=11 // pred_region
          %s252 = ssub.s32 64, 64
          %253 = vsyncadd [#allocation10], %s252
          %s255 = sshll.u32 [#allocation11], 4
          %s256 = int_to_ptr.vmem [resolvable:$true] %s255
          %258 = dma.hbm_to_vmem [thread:$0]  %s4, 64, %s256, [#allocation10]
        $region28: #{tpu_custom_call.1} parent=11 // pred_fallthru
          _
        // Predicated region
        $region29: #{tpu_custom_call.1} parent=11 // pred_check
          %p259 = pneg %p153
        $region30: #{tpu_custom_call.1} parent=11 // pred_check_branch
          %261 = sbr.rel (%p259) target = $region32
        $region31: #{tpu_custom_call.1} parent=11 // pred_region
          %s263 = ssub.s32 128, 128
          %264 = vsyncadd [#allocation13], %s263
          %s266 = sshll.u32 [#allocation12], 4
          %s267 = int_to_ptr.vmem [resolvable:$true] %s266
          %269 = dma.hbm_to_vmem [thread:$0]  %s5, 128, %s267, [#allocation13]
        $region32: #{tpu_custom_call.1} parent=11 // pred_fallthru
          _
        // Predicated region
        $region33: #{tpu_custom_call.1} parent=11 // pred_check
          %p270 = pneg %p174
        $region34: #{tpu_custom_call.1} parent=11 // pred_check_branch
          %272 = sbr.rel (%p270) target = $region36
        $region35: #{tpu_custom_call.1} parent=11 // pred_region
          %s274 = ssub.s32 128, 128
          %275 = vsyncadd [#allocation13], %s274
          %s277 = sshll.u32 [#allocation14], 4
          %s278 = int_to_ptr.vmem [resolvable:$true] %s277
          %280 = dma.hbm_to_vmem [thread:$0]  %s6, 128, %s278, [#allocation13]
        $region36: #{tpu_custom_call.1} parent=11 // pred_fallthru
          _
      $region12: #{tpu_custom_call.1} parent=5 // pred_fallthru
        _
      %p281 = scmp.lt.s32.totalorder %s22, 2
      // Predicated region
      $region37: #{tpu_custom_call.1} parent=5 // pred_check
        %p282 = pneg %p281
      $region38: #{tpu_custom_call.1} parent=5 // pred_check_branch
        %284 = sbr.rel (%p282) target = $region40
      $region39: #{tpu_custom_call.1} parent=5 // pred_region
        // Predicated region
        $region41: #{tpu_custom_call.1} parent=39 // pred_check
          %p285 = pneg %p42
        $region42: #{tpu_custom_call.1} parent=39 // pred_check_branch
          %287 = sbr.rel (%p285) target = $region44
        $region43: #{tpu_custom_call.1} parent=39 // pred_region
          %s288 = sand.u32 %s32, 1
          %s289 = scalar_lea.sflag [#allocation4], %s288
          %s290 = sand.u32 %s32, 1
          %s291 = smul.addr %s290, 6
          %s292 = scalar_lea.vmem [#allocation3], %s291
          %s294 = ssub.s32 96, 96
          %295 = vsyncadd %s289, %s294
          %s296 = smul.addr %s22, 3
          %s297 = smul.addr %s296, 32
          %s298 = scalar_lea.hbm %s0, %s297
          %s300 = sshll.u32 %s292, 4
          %s301 = int_to_ptr.vmem [resolvable:$true] %s300
          %303 = dma.hbm_to_vmem [thread:$0]  %s298, 96, %s301, %s289
        $region44: #{tpu_custom_call.1} parent=39 // pred_fallthru
          _
      $region40: #{tpu_custom_call.1} parent=5 // pred_fallthru
        _
      %p304 = scmp.le.s32.totalorder 1, %s22
      %p305 = scmp.lt.s32.totalorder %s22, 3
      %p306 = pnand %p304, %p305
      %p307 = pneg %p306
      // Predicated region
      $region45: #{tpu_custom_call.1} parent=5 // pred_check
        _
      $region46: #{tpu_custom_call.1} parent=5 // pred_check_branch
        %309 = sbr.rel (%p306) target = $region48
      $region47: #{tpu_custom_call.1} parent=5 // pred_region
        %s310 = ssub.s32 %s22, 1
        %s311 = sand.u32 %s35, 1
        %s312 = scalar_lea.sflag [#allocation4], %s311
        %s313 = sand.u32 %s35, 1
        %s314 = smul.addr %s313, 6
        %s315 = scalar_lea.vmem [#allocation3], %s314
        // Predicated region
        $region49: #{tpu_custom_call.1} parent=47 // pred_check
          %p316 = pneg %p48
        $region50: #{tpu_custom_call.1} parent=47 // pred_check_branch
          %318 = sbr.rel (%p316) target = $region52
        $region51: #{tpu_custom_call.1} parent=47 // pred_region
          %319 = dma.done %s312, 96
        $region52: #{tpu_custom_call.1} parent=47 // pred_fallthru
          _
        // Predicated region
        $region53: #{tpu_custom_call.1} parent=47 // pred_check
          %p320 = pneg %p69
        $region54: #{tpu_custom_call.1} parent=47 // pred_check_branch
          %322 = sbr.rel (%p320) target = $region56
        $region55: #{tpu_custom_call.1} parent=47 // pred_region
          %323 = dma.done [#allocation7], 64
        $region56: #{tpu_custom_call.1} parent=47 // pred_fallthru
          _
        // Predicated region
        $region57: #{tpu_custom_call.1} parent=47 // pred_check
          %p324 = pneg %p90
        $region58: #{tpu_custom_call.1} parent=47 // pred_check_branch
          %326 = sbr.rel (%p324) target = $region60
        $region59: #{tpu_custom_call.1} parent=47 // pred_region
          %327 = dma.done [#allocation7], 64
        $region60: #{tpu_custom_call.1} parent=47 // pred_fallthru
          _
        // Predicated region
        $region61: #{tpu_custom_call.1} parent=47 // pred_check
          %p328 = pneg %p111
        $region62: #{tpu_custom_call.1} parent=47 // pred_check_branch
          %330 = sbr.rel (%p328) target = $region64
        $region63: #{tpu_custom_call.1} parent=47 // pred_region
          %331 = dma.done [#allocation10], 64
        $region64: #{tpu_custom_call.1} parent=47 // pred_fallthru
          _
        // Predicated region
        $region65: #{tpu_custom_call.1} parent=47 // pred_check
          %p332 = pneg %p132
        $region66: #{tpu_custom_call.1} parent=47 // pred_check_branch
          %334 = sbr.rel (%p332) target = $region68
        $region67: #{tpu_custom_call.1} parent=47 // pred_region
          %335 = dma.done [#allocation10], 64
        $region68: #{tpu_custom_call.1} parent=47 // pred_fallthru
          _
        // Predicated region
        $region69: #{tpu_custom_call.1} parent=47 // pred_check
          %p336 = pneg %p153
        $region70: #{tpu_custom_call.1} parent=47 // pred_check_branch
          %338 = sbr.rel (%p336) target = $region72
        $region71: #{tpu_custom_call.1} parent=47 // pred_region
          %339 = dma.done [#allocation13], 128
        $region72: #{tpu_custom_call.1} parent=47 // pred_fallthru
          _
        // Predicated region
        $region73: #{tpu_custom_call.1} parent=47 // pred_check
          %p340 = pneg %p174
        $region74: #{tpu_custom_call.1} parent=47 // pred_check_branch
          %342 = sbr.rel (%p340) target = $region76
        $region75: #{tpu_custom_call.1} parent=47 // pred_region
          %343 = dma.done [#allocation13], 128
        $region76: #{tpu_custom_call.1} parent=47 // pred_fallthru
          _
        %s344 = sand.u32 %s35, 1
        %s345 = scalar_lea.sflag [#allocation4], %s344
        %s346 = sand.u32 %s35, 1
        %s347 = smul.addr %s346, 6
        %s348 = scalar_lea.vmem [#allocation3], %s347
        %p349 = pneg %p48
        %p350 = pneg %p45
        %p351 = pneg %p69
        %p352 = pneg %p66
        %p353 = pneg %p90
        %p354 = pneg %p87
        %p355 = pneg %p111
        %p356 = pneg %p108
        %p357 = pneg %p132
        %p358 = pneg %p129
        %p359 = pneg %p153
        %p360 = pneg %p150
        %p361 = pneg %p174
        %p362 = pneg %p171
        %p363 = pneg %p200
        %p364 = pneg %p197
        %s365 = sand.u32 %s187, 1
        %s366 = scalar_lea.sflag [#allocation5], %s365
        %s367 = sand.u32 %s187, 1
        %s368 = smul.addr %s367, 24
        %s369 = scalar_lea.vmem [#allocation15], %s368
        %v371 = vlaneseq
        %v372 = vand.u32 %v371, 127
        %v373 = vadd.s32 %v372, 128
        %v374 = vadd.s32 %v372, 256
        %vm375 = vcmp.lt.s32.totalorder %v372, 0
        %v376 = vsub.s32 0, %v372
        %v377 = vsel %vm375, %v376, %v372
        %v378 = vmul.u32.u64.compose %v377, 3817748708
        %v379 = vextract.low.u32 %v378
        %v380 = vextract.high.u32 %v378
        %v381 = vshrl.u32 %v380, 4
        %v382 = vmul.u32 %v381, 18
        %v383 = vsub.s32 %v377, %v382
        %v384 = vsub.s32 0, %v383
        %v385 = vsel %vm375, %v384, %v383
        %vm386 = vcmp.lt.s32.totalorder %v373, 0
        %v387 = vsub.s32 0, %v373
        %v388 = vsel %vm386, %v387, %v373
        %v389 = vmul.u32.u64.compose %v388, 3817748708
        %v390 = vextract.low.u32 %v389
        %v391 = vextract.high.u32 %v389
        %v392 = vshrl.u32 %v391, 4
        %v393 = vmul.u32 %v392, 18
        %v394 = vsub.s32 %v388, %v393
        %v395 = vsub.s32 0, %v394
        %v396 = vsel %vm386, %v395, %v394
        %vm397 = vcmp.lt.s32.totalorder %v374, 0
        %v398 = vsub.s32 0, %v374
        %v399 = vsel %vm397, %v398, %v374
        %v400 = vmul.u32.u64.compose %v399, 3817748708
        %v401 = vextract.low.u32 %v400
        %v402 = vextract.high.u32 %v400
        %v403 = vshrl.u32 %v402, 4
        %v404 = vmul.u32 %v403, 18
        %v405 = vsub.s32 %v399, %v404
        %v406 = vsub.s32 0, %v405
        %v407 = vsel %vm397, %v406, %v405
        %vm408 = vcmp.ne.s32.totalorder %v385, 0
        %vm409 = vcmp.ne.s32.totalorder %v396, 0
        %vm410 = vcmp.ne.s32.totalorder %v407, 0
        %vm411 = vcmp.lt.s32.totalorder %v385, 0
        %vm412 = vcmp.lt.s32.totalorder %v396, 0
        %vm413 = vcmp.lt.s32.totalorder %v407, 0
        %vm414 = vmand %vm411, %vm408
        %vm415 = vmand %vm412, %vm409
        %vm416 = vmand %vm413, %vm410
        %v417 = vadd.s32 %v385, 18
        %v418 = vadd.s32 %v396, 18
        %v419 = vadd.s32 %v407, 18
        %v420 = vsel %vm414, %v417, %v385
        %v421 = vsel %vm415, %v418, %v396
        %v422 = vsel %vm416, %v419, %v407
        %vm423 = vcmp.lt.s32.totalorder %v420, 16
        %vm424 = vcmp.lt.s32.totalorder %v421, 16
        %vm425 = vcmp.lt.s32.totalorder %v422, 16
        %v426 = vsel %vm423, 1, 0
        %v427 = vsel %vm424, 1, 0
        %v428 = vsel %vm425, 1, 0
        %v429 = vcvt.s32.f32 %v426
        %v430 = vcvt.s32.f32 %v427
        %v431 = vcvt.s32.f32 %v428
        %vm432 = vcmask 150528
        %433 = vst.msk [vmem:[#allocation2] sm:$0xf] %vm432, 0
        %vm434 = vcmask 576920
        %435 = vst.msk [vmem:[#allocation2 + $0x8] sm:$0xf] %vm434, 0
        %v436 = vld [vmem:[%s315] sm:$0x3f]
        %v438 = vcombine.high %v436, %v436
        %v440 = vunpack.c.l.s4 1983009808
        %v441 = vunpack.c.0.s8 %v440
        %v442 = vlaneseq
        %v443 = vshrl.u32 %v442, 7
        %v444 = vsub.s32 %v441, %v443
        %v445 = vrot.slane %v436, %v444
        %v447 = vunpack.c.l.s4 1983009808
        %v448 = vunpack.c.0.s8 %v447
        %v449 = vlaneseq
        %v450 = vshrl.u32 %v449, 7
        %v451 = vsub.s32 %v448, %v450
        %v452 = vrot.slane %v438, %v451
        %453 = vrot.lane.b32.xlu0 %v445, 19
        %v454 = vpop.permute.xlu0 %453
        %455 = vrot.lane.b32.xlu0 %v452, 19
        %v456 = vpop.permute.xlu0 %455
        %v457 = vrot.slane %v454, 4
        %vm458 = vcmask 154624
        %v459 = vsel %vm458, %v457, %v454
        %v460 = vsel %vm458, %v457, %v456
        %vm463 = vcmask 1041560
        %vm464 = vcmask 1045508
        %vm465 = vmor %vm464, %vm463
        %466 = vst.msk [vmem:[#allocation2] sm:$0x33] %vm465, %v459
        %vm467 = vcmask 410624
        %468 = vst.msk [vmem:[#allocation2 + $0x8] sm:$0x3] %vm467, %v460
        %v469 = vld [vmem:[#allocation6] sm:$0xf]
        %v470 = vld [vmem:[#allocation2] sm:$0x33]
        %v471 = vld [vmem:[#allocation2 + $0x8] sm:$0x3]
        %v473 = vunpack.c.l.b16 %v469
        %v474 = vpack.c.b16 %v473, %v473
        %475 = vrot.lane.b32.xlu0 %v474, 124
        %v476 = vpop.permute.xlu0 %475
        %v479 = vunpack.c.l.b16 %v470
        %v480 = vunpack.c.h.b16 %v470
        %v481 = vunpack.c.l.b16 %v471
        %v482 = vpack.c.b16 %v479, %v479
        %v483 = vpack.c.b16 %v480, %v480
        %v484 = vpack.c.b16 %v481, %v481
        %485 = vrot.lane.b32.xlu0 %v482, 127
        %v486 = vpop.permute.xlu0 %485
        %487 = vrot.lane.b32.xlu0 %v483, 127
        %v488 = vpop.permute.xlu0 %487
        %489 = vrot.lane.b32.xlu0 %v484, 127
        %v490 = vpop.permute.xlu0 %489
        %vm491 = vcmask 1039360
        %v492 = vsel %vm491, %v486, %v488
        %v493 = vsel %vm491, %v488, %v490
        %vm494 = vcmask 31744
        %v496 = vsel %vm494, %v476, 0
        %vm498 = vcmask 1041408
        %v500 = vsel %vm498, %v492, 0
        %v503 = vsel %vm498, %v493, 0
        %v506 = vsel %vm498, %v490, 0
        %508 = vmatprep.subr.bf16.mxu0 %v503
        %509 = vmatpush1.bf16.msra.mxu0 %v500
        %510 = vmatprep.subr.bf16.mxu0 0
        %511 = vmatpush1.bf16.msra.mxu0 0
        %512 = vmatprep.subr.bf16.mxu0 0
        %513 = vmatpush1.bf16.msra.mxu0 0
        %514 = vmatprep.subr.bf16.mxu0 0
        %515 = vmatpush1.bf16.msra.mxu0 0
        %516 = vmatprep.subr.bf16.mxu0 0
        %517 = vmatpush1.bf16.msra.mxu0 0
        %518 = vmatprep.subr.bf16.mxu0 0
        %519 = vmatpush1.bf16.msra.mxu0 0
        %520 = vmatprep.subr.bf16.mxu0 0
        %521 = vmatpush1.bf16.msra.mxu0 0
        %522 = vmatprep.subr.bf16.mxu0 0
        %523 = vmatpush1.bf16.msra.mxu0 0
        %524 = vmatprep.subr.bf16.mxu0 0
        %525 = vmatpush1.bf16.msra.mxu0 0
        %526 = vmatprep.subr.bf16.mxu0 0
        %527 = vmatpush1.bf16.msra.mxu0 0
        %528 = vmatprep.subr.bf16.mxu0 0
        %529 = vmatpush1.bf16.msra.mxu0 0
        %530 = vmatprep.subr.bf16.mxu0 0
        %531 = vmatpush1.bf16.msra.mxu0 0
        %532 = vmatprep.subr.bf16.mxu0 0
        %533 = vmatpush1.bf16.msra.mxu0 0
        %534 = vmatprep.subr.bf16.mxu0 0
        %535 = vmatpush1.bf16.msra.mxu0 0
        %536 = vmatprep.subr.bf16.mxu0 0
        %537 = vmatpush1.bf16.msra.mxu0 0
        %538 = vmatprep.subr.bf16.mxu0 0
        %539 = vmatpush1.bf16.msra.mxu0 0
        %540 = vmatprep.mubr.bf16.mxu0 0
        %541 = vmatmul.mubr.bf16.gmra.mrb[0].mxu0 %v496
        %v542 = vpop.f32.mrb[0].mxu0
        %v543 = vadd.f32 0.0, %v542
        %v544 = vpop.f32.mrb[0].mxu0
        %v545 = vadd.f32 0.0, %v544
        %v546 = vpop.f32.mrb[0].mxu0
        %v547 = vpop.f32.mrb[0].mxu0
        %548 = vdwg.mxu0
        %549 = vmatprep.subr.bf16.mxu0 0
        %550 = vmatpush1.bf16.msra.mxu0 %v506
        %551 = vmatprep.subr.bf16.mxu0 0
        %552 = vmatpush1.bf16.msra.mxu0 0
        %553 = vmatprep.subr.bf16.mxu0 0
        %554 = vmatpush1.bf16.msra.mxu0 0
        %555 = vmatprep.subr.bf16.mxu0 0
        %556 = vmatpush1.bf16.msra.mxu0 0
        %557 = vmatprep.subr.bf16.mxu0 0
        %558 = vmatpush1.bf16.msra.mxu0 0
        %559 = vmatprep.subr.bf16.mxu0 0
        %560 = vmatpush1.bf16.msra.mxu0 0
        %561 = vmatprep.subr.bf16.mxu0 0
        %562 = vmatpush1.bf16.msra.mxu0 0
        %563 = vmatprep.subr.bf16.mxu0 0
        %564 = vmatpush1.bf16.msra.mxu0 0
        %565 = vmatprep.subr.bf16.mxu0 0
        %566 = vmatpush1.bf16.msra.mxu0 0
        %567 = vmatprep.subr.bf16.mxu0 0
        %568 = vmatpush1.bf16.msra.mxu0 0
        %569 = vmatprep.subr.bf16.mxu0 0
        %570 = vmatpush1.bf16.msra.mxu0 0
        %571 = vmatprep.subr.bf16.mxu0 0
        %572 = vmatpush1.bf16.msra.mxu0 0
        %573 = vmatprep.subr.bf16.mxu0 0
        %574 = vmatpush1.bf16.msra.mxu0 0
        %575 = vmatprep.subr.bf16.mxu0 0
        %576 = vmatpush1.bf16.msra.mxu0 0
        %577 = vmatprep.subr.bf16.mxu0 0
        %578 = vmatpush1.bf16.msra.mxu0 0
        %579 = vmatprep.subr.bf16.mxu0 0
        %580 = vmatpush1.bf16.msra.mxu0 0
        %581 = vmatprep.mubr.bf16.mxu0 0
        %582 = vmatmul.mubr.bf16.gmra.mrb[0].mxu0 %v496
        %v583 = vpop.f32.mrb[0].mxu0
        %v584 = vadd.f32 0.0, %v583
        %v585 = vpop.f32.mrb[0].mxu0
        %v586 = vpop.f32.mrb[0].mxu0
        %v587 = vpop.f32.mrb[0].mxu0
        %588 = vdwg.mxu0
        %v590 = vsel %vm494, %v469, 0
        %v593 = vsel %vm498, %v482, 0
        %v596 = vsel %vm498, %v483, 0
        %v599 = vsel %vm498, %v484, 0
        %601 = vmatprep.subr.bf16.mxu0 %v596
        %602 = vmatpush1.bf16.msra.mxu0 %v593
        %603 = vmatprep.subr.bf16.mxu0 0
        %604 = vmatpush1.bf16.msra.mxu0 0
        %605 = vmatprep.subr.bf16.mxu0 0
        %606 = vmatpush1.bf16.msra.mxu0 0
        %607 = vmatprep.subr.bf16.mxu0 0
        %608 = vmatpush1.bf16.msra.mxu0 0
        %609 = vmatprep.subr.bf16.mxu0 0
        %610 = vmatpush1.bf16.msra.mxu0 0
        %611 = vmatprep.subr.bf16.mxu0 0
        %612 = vmatpush1.bf16.msra.mxu0 0
        %613 = vmatprep.subr.bf16.mxu0 0
        %614 = vmatpush1.bf16.msra.mxu0 0
        %615 = vmatprep.subr.bf16.mxu0 0
        %616 = vmatpush1.bf16.msra.mxu0 0
        %617 = vmatprep.subr.bf16.mxu0 0
        %618 = vmatpush1.bf16.msra.mxu0 0
        %619 = vmatprep.subr.bf16.mxu0 0
        %620 = vmatpush1.bf16.msra.mxu0 0
        %621 = vmatprep.subr.bf16.mxu0 0
        %622 = vmatpush1.bf16.msra.mxu0 0
        %623 = vmatprep.subr.bf16.mxu0 0
        %624 = vmatpush1.bf16.msra.mxu0 0
        %625 = vmatprep.subr.bf16.mxu0 0
        %626 = vmatpush1.bf16.msra.mxu0 0
        %627 = vmatprep.subr.bf16.mxu0 0
        %628 = vmatpush1.bf16.msra.mxu0 0
        %629 = vmatprep.subr.bf16.mxu0 0
        %630 = vmatpush1.bf16.msra.mxu0 0
        %631 = vmatprep.subr.bf16.mxu0 0
        %632 = vmatpush1.bf16.msra.mxu0 0
        %633 = vmatprep.mubr.bf16.mxu0 0
        %634 = vmatmul.mubr.bf16.gmra.mrb[0].mxu0 %v590
        %v635 = vpop.f32.mrb[0].mxu0
        %v636 = vadd.f32 %v543, %v635
        %v637 = vpop.f32.mrb[0].mxu0
        %v638 = vadd.f32 %v545, %v637
        %v639 = vpop.f32.mrb[0].mxu0
        %v640 = vpop.f32.mrb[0].mxu0
        %641 = vdwg.mxu0
        %642 = vmatprep.subr.bf16.mxu0 0
        %643 = vmatpush1.bf16.msra.mxu0 %v599
        %644 = vmatprep.subr.bf16.mxu0 0
        %645 = vmatpush1.bf16.msra.mxu0 0
        %646 = vmatprep.subr.bf16.mxu0 0
        %647 = vmatpush1.bf16.msra.mxu0 0
        %648 = vmatprep.subr.bf16.mxu0 0
        %649 = vmatpush1.bf16.msra.mxu0 0
        %650 = vmatprep.subr.bf16.mxu0 0
        %651 = vmatpush1.bf16.msra.mxu0 0
        %652 = vmatprep.subr.bf16.mxu0 0
        %653 = vmatpush1.bf16.msra.mxu0 0
        %654 = vmatprep.subr.bf16.mxu0 0
        %655 = vmatpush1.bf16.msra.mxu0 0
        %656 = vmatprep.subr.bf16.mxu0 0
        %657 = vmatpush1.bf16.msra.mxu0 0
        %658 = vmatprep.subr.bf16.mxu0 0
        %659 = vmatpush1.bf16.msra.mxu0 0
        %660 = vmatprep.subr.bf16.mxu0 0
        %661 = vmatpush1.bf16.msra.mxu0 0
        %662 = vmatprep.subr.bf16.mxu0 0
        %663 = vmatpush1.bf16.msra.mxu0 0
        %664 = vmatprep.subr.bf16.mxu0 0
        %665 = vmatpush1.bf16.msra.mxu0 0
        %666 = vmatprep.subr.bf16.mxu0 0
        %667 = vmatpush1.bf16.msra.mxu0 0
        %668 = vmatprep.subr.bf16.mxu0 0
        %669 = vmatpush1.bf16.msra.mxu0 0
        %670 = vmatprep.subr.bf16.mxu0 0
        %671 = vmatpush1.bf16.msra.mxu0 0
        %672 = vmatprep.subr.bf16.mxu0 0
        %673 = vmatpush1.bf16.msra.mxu0 0
        %674 = vmatprep.mubr.bf16.mxu0 0
        %675 = vmatmul.mubr.bf16.gmra.mrb[0].mxu0 %v590
        %v676 = vpop.f32.mrb[0].mxu0
        %v677 = vadd.f32 %v584, %v676
        %v678 = vpop.f32.mrb[0].mxu0
        %v679 = vpop.f32.mrb[0].mxu0
        %v680 = vpop.f32.mrb[0].mxu0
        %681 = vdwg.mxu0
        %682 = vrot.lane.b32.xlu0 %v474, 120
        %v683 = vpop.permute.xlu0 %682
        %684 = vrot.lane.b32.xlu0 %v482, 126
        %v685 = vpop.permute.xlu0 %684
        %686 = vrot.lane.b32.xlu0 %v483, 126
        %v687 = vpop.permute.xlu0 %686
        %688 = vrot.lane.b32.xlu0 %v484, 126
        %v689 = vpop.permute.xlu0 %688
        %vm690 = vcmask 1031168
        %v691 = vsel %vm690, %v685, %v687
        %v692 = vsel %vm690, %v687, %v689
        %v694 = vsel %vm494, %v683, 0
        %v697 = vsel %vm498, %v691, 0
        %v700 = vsel %vm498, %v692, 0
        %v703 = vsel %vm498, %v689, 0
        %705 = vmatprep.subr.bf16.mxu0 %v700
        %706 = vmatpush1.bf16.msra.mxu0 %v697
        %707 = vmatprep.subr.bf16.mxu0 0
        %708 = vmatpush1.bf16.msra.mxu0 0
        %709 = vmatprep.subr.bf16.mxu0 0
        %710 = vmatpush1.bf16.msra.mxu0 0
        %711 = vmatprep.subr.bf16.mxu0 0
        %712 = vmatpush1.bf16.msra.mxu0 0
        %713 = vmatprep.subr.bf16.mxu0 0
        %714 = vmatpush1.bf16.msra.mxu0 0
        %715 = vmatprep.subr.bf16.mxu0 0
        %716 = vmatpush1.bf16.msra.mxu0 0
        %717 = vmatprep.subr.bf16.mxu0 0
        %718 = vmatpush1.bf16.msra.mxu0 0
        %719 = vmatprep.subr.bf16.mxu0 0
        %720 = vmatpush1.bf16.msra.mxu0 0
        %721 = vmatprep.subr.bf16.mxu0 0
        %722 = vmatpush1.bf16.msra.mxu0 0
        %723 = vmatprep.subr.bf16.mxu0 0
        %724 = vmatpush1.bf16.msra.mxu0 0
        %725 = vmatprep.subr.bf16.mxu0 0
        %726 = vmatpush1.bf16.msra.mxu0 0
        %727 = vmatprep.subr.bf16.mxu0 0
        %728 = vmatpush1.bf16.msra.mxu0 0
        %729 = vmatprep.subr.bf16.mxu0 0
        %730 = vmatpush1.bf16.msra.mxu0 0
        %731 = vmatprep.subr.bf16.mxu0 0
        %732 = vmatpush1.bf16.msra.mxu0 0
        %733 = vmatprep.subr.bf16.mxu0 0
        %734 = vmatpush1.bf16.msra.mxu0 0
        %735 = vmatprep.subr.bf16.mxu0 0
        %736 = vmatpush1.bf16.msra.mxu0 0
        %737 = vmatprep.mubr.bf16.mxu0 0
        %738 = vmatmul.mubr.bf16.gmra.mrb[0].mxu0 %v694
        %v739 = vpop.f32.mrb[0].mxu0
        %v740 = vadd.f32 0.0, %v739
        %v741 = vpop.f32.mrb[0].mxu0
        %v742 = vadd.f32 0.0, %v741
        %v743 = vpop.f32.mrb[0].mxu0
        %v744 = vpop.f32.mrb[0].mxu0
        %745 = vdwg.mxu0
        %746 = vmatprep.subr.bf16.mxu0 0
        %747 = vmatpush1.bf16.msra.mxu0 %v703
        %748 = vmatprep.subr.bf16.mxu0 0
        %749 = vmatpush1.bf16.msra.mxu0 0
        %750 = vmatprep.subr.bf16.mxu0 0
        %751 = vmatpush1.bf16.msra.mxu0 0
        %752 = vmatprep.subr.bf16.mxu0 0
        %753 = vmatpush1.bf16.msra.mxu0 0
        %754 = vmatprep.subr.bf16.mxu0 0
        %755 = vmatpush1.bf16.msra.mxu0 0
        %756 = vmatprep.subr.bf16.mxu0 0
        %757 = vmatpush1.bf16.msra.mxu0 0
        %758 = vmatprep.subr.bf16.mxu0 0
        %759 = vmatpush1.bf16.msra.mxu0 0
        %760 = vmatprep.subr.bf16.mxu0 0
        %761 = vmatpush1.bf16.msra.mxu0 0
        %762 = vmatprep.subr.bf16.mxu0 0
        %763 = vmatpush1.bf16.msra.mxu0 0
        %764 = vmatprep.subr.bf16.mxu0 0
        %765 = vmatpush1.bf16.msra.mxu0 0
        %766 = vmatprep.subr.bf16.mxu0 0
        %767 = vmatpush1.bf16.msra.mxu0 0
        %768 = vmatprep.subr.bf16.mxu0 0
        %769 = vmatpush1.bf16.msra.mxu0 0
        %770 = vmatprep.subr.bf16.mxu0 0
        %771 = vmatpush1.bf16.msra.mxu0 0
        %772 = vmatprep.subr.bf16.mxu0 0
        %773 = vmatpush1.bf16.msra.mxu0 0
        %774 = vmatprep.subr.bf16.mxu0 0
        %775 = vmatpush1.bf16.msra.mxu0 0
        %776 = vmatprep.subr.bf16.mxu0 0
        %777 = vmatpush1.bf16.msra.mxu0 0
        %778 = vmatprep.mubr.bf16.mxu0 0
        %779 = vmatmul.mubr.bf16.gmra.mrb[0].mxu0 %v694
        %v780 = vpop.f32.mrb[0].mxu0
        %v781 = vadd.f32 0.0, %v780
        %v782 = vpop.f32.mrb[0].mxu0
        %v783 = vpop.f32.mrb[0].mxu0
        %v784 = vpop.f32.mrb[0].mxu0
        %785 = vdwg.mxu0
        %v786 = vadd.f32 %v636, %v740
        %v787 = vadd.f32 %v638, %v742
        %v788 = vadd.f32 %v677, %v781
        %789 = vrot.lane.b32.xlu0 %v474, 116
        %v790 = vpop.permute.xlu0 %789
        %791 = vrot.lane.b32.xlu0 %v482, 110
        %v792 = vpop.permute.xlu0 %791
        %793 = vrot.lane.b32.xlu0 %v483, 110
        %v794 = vpop.permute.xlu0 %793
        %795 = vrot.lane.b32.xlu0 %v484, 110
        %v796 = vpop.permute.xlu0 %795
        %vm797 = vcmask 900096
        %v798 = vsel %vm797, %v792, %v794
        %v799 = vsel %vm797, %v794, %v796
        %v801 = vsel %vm494, %v790, 0
        %v804 = vsel %vm498, %v798, 0
        %v807 = vsel %vm498, %v799, 0
        %v810 = vsel %vm498, %v796, 0
        %812 = vmatprep.subr.bf16.mxu0 %v807
        %813 = vmatpush1.bf16.msra.mxu0 %v804
        %814 = vmatprep.subr.bf16.mxu0 0
        %815 = vmatpush1.bf16.msra.mxu0 0
        %816 = vmatprep.subr.bf16.mxu0 0
        %817 = vmatpush1.bf16.msra.mxu0 0
        %818 = vmatprep.subr.bf16.mxu0 0
        %819 = vmatpush1.bf16.msra.mxu0 0
        %820 = vmatprep.subr.bf16.mxu0 0
        %821 = vmatpush1.bf16.msra.mxu0 0
        %822 = vmatprep.subr.bf16.mxu0 0
        %823 = vmatpush1.bf16.msra.mxu0 0
        %824 = vmatprep.subr.bf16.mxu0 0
        %825 = vmatpush1.bf16.msra.mxu0 0
        %826 = vmatprep.subr.bf16.mxu0 0
        %827 = vmatpush1.bf16.msra.mxu0 0
        %828 = vmatprep.subr.bf16.mxu0 0
        %829 = vmatpush1.bf16.msra.mxu0 0
        %830 = vmatprep.subr.bf16.mxu0 0
        %831 = vmatpush1.bf16.msra.mxu0 0
        %832 = vmatprep.subr.bf16.mxu0 0
        %833 = vmatpush1.bf16.msra.mxu0 0
        %834 = vmatprep.subr.bf16.mxu0 0
        %835 = vmatpush1.bf16.msra.mxu0 0
        %836 = vmatprep.subr.bf16.mxu0 0
        %837 = vmatpush1.bf16.msra.mxu0 0
        %838 = vmatprep.subr.bf16.mxu0 0
        %839 = vmatpush1.bf16.msra.mxu0 0
        %840 = vmatprep.subr.bf16.mxu0 0
        %841 = vmatpush1.bf16.msra.mxu0 0
        %842 = vmatprep.subr.bf16.mxu0 0
        %843 = vmatpush1.bf16.msra.mxu0 0
        %844 = vmatprep.mubr.bf16.mxu0 0
        %845 = vmatmul.mubr.bf16.gmra.mrb[0].mxu0 %v801
        %v846 = vpop.f32.mrb[0].mxu0
        %v847 = vadd.f32 0.0, %v846
        %v848 = vpop.f32.mrb[0].mxu0
        %v849 = vadd.f32 0.0, %v848
        %v850 = vpop.f32.mrb[0].mxu0
        %v851 = vpop.f32.mrb[0].mxu0
        %852 = vdwg.mxu0
        %853 = vmatprep.subr.bf16.mxu0 0
        %854 = vmatpush1.bf16.msra.mxu0 %v810
        %855 = vmatprep.subr.bf16.mxu0 0
        %856 = vmatpush1.bf16.msra.mxu0 0
        %857 = vmatprep.subr.bf16.mxu0 0
        %858 = vmatpush1.bf16.msra.mxu0 0
        %859 = vmatprep.subr.bf16.mxu0 0
        %860 = vmatpush1.bf16.msra.mxu0 0
        %861 = vmatprep.subr.bf16.mxu0 0
        %862 = vmatpush1.bf16.msra.mxu0 0
        %863 = vmatprep.subr.bf16.mxu0 0
        %864 = vmatpush1.bf16.msra.mxu0 0
        %865 = vmatprep.subr.bf16.mxu0 0
        %866 = vmatpush1.bf16.msra.mxu0 0
        %867 = vmatprep.subr.bf16.mxu0 0
        %868 = vmatpush1.bf16.msra.mxu0 0
        %869 = vmatprep.subr.bf16.mxu0 0
        %870 = vmatpush1.bf16.msra.mxu0 0
        %871 = vmatprep.subr.bf16.mxu0 0
        %872 = vmatpush1.bf16.msra.mxu0 0
        %873 = vmatprep.subr.bf16.mxu0 0
        %874 = vmatpush1.bf16.msra.mxu0 0
        %875 = vmatprep.subr.bf16.mxu0 0
        %876 = vmatpush1.bf16.msra.mxu0 0
        %877 = vmatprep.subr.bf16.mxu0 0
        %878 = vmatpush1.bf16.msra.mxu0 0
        %879 = vmatprep.subr.bf16.mxu0 0
        %880 = vmatpush1.bf16.msra.mxu0 0
        %881 = vmatprep.subr.bf16.mxu0 0
        %882 = vmatpush1.bf16.msra.mxu0 0
        %883 = vmatprep.subr.bf16.mxu0 0
        %884 = vmatpush1.bf16.msra.mxu0 0
        %885 = vmatprep.mubr.bf16.mxu0 0
        %886 = vmatmul.mubr.bf16.gmra.mrb[0].mxu0 %v801
        %v887 = vpop.f32.mrb[0].mxu0
        %v888 = vadd.f32 0.0, %v887
        %v889 = vpop.f32.mrb[0].mxu0
        %v890 = vpop.f32.mrb[0].mxu0
        %v891 = vpop.f32.mrb[0].mxu0
        %892 = vdwg.mxu0
        %v893 = vadd.f32 %v786, %v847
        %v894 = vadd.f32 %v787, %v849
        %v895 = vadd.f32 %v788, %v888
        %896 = vrot.lane.b32.xlu0 %v474, 112
        %v897 = vpop.permute.xlu0 %896
        %898 = vrot.lane.b32.xlu0 %v482, 109
        %v899 = vpop.permute.xlu0 %898
        %900 = vrot.lane.b32.xlu0 %v483, 109
        %v901 = vpop.permute.xlu0 %900
        %902 = vrot.lane.b32.xlu0 %v484, 109
        %v903 = vpop.permute.xlu0 %902
        %vm904 = vcmask 891904
        %v905 = vsel %vm904, %v899, %v901
        %v906 = vsel %vm904, %v901, %v903
        %v908 = vsel %vm494, %v897, 0
        %v911 = vsel %vm498, %v905, 0
        %v914 = vsel %vm498, %v906, 0
        %v917 = vsel %vm498, %v903, 0
        %919 = vmatprep.subr.bf16.mxu0 %v914
        %920 = vmatpush1.bf16.msra.mxu0 %v911
        %921 = vmatprep.subr.bf16.mxu0 0
        %922 = vmatpush1.bf16.msra.mxu0 0
        %923 = vmatprep.subr.bf16.mxu0 0
        %924 = vmatpush1.bf16.msra.mxu0 0
        %925 = vmatprep.subr.bf16.mxu0 0
        %926 = vmatpush1.bf16.msra.mxu0 0
        %927 = vmatprep.subr.bf16.mxu0 0
        %928 = vmatpush1.bf16.msra.mxu0 0
        %929 = vmatprep.subr.bf16.mxu0 0
        %930 = vmatpush1.bf16.msra.mxu0 0
        %931 = vmatprep.subr.bf16.mxu0 0
        %932 = vmatpush1.bf16.msra.mxu0 0
        %933 = vmatprep.subr.bf16.mxu0 0
        %934 = vmatpush1.bf16.msra.mxu0 0
        %935 = vmatprep.subr.bf16.mxu0 0
        %936 = vmatpush1.bf16.msra.mxu0 0
        %937 = vmatprep.subr.bf16.mxu0 0
        %938 = vmatpush1.bf16.msra.mxu0 0
        %939 = vmatprep.subr.bf16.mxu0 0
        %940 = vmatpush1.bf16.msra.mxu0 0
        %941 = vmatprep.subr.bf16.mxu0 0
        %942 = vmatpush1.bf16.msra.mxu0 0
        %943 = vmatprep.subr.bf16.mxu0 0
        %944 = vmatpush1.bf16.msra.mxu0 0
        %945 = vmatprep.subr.bf16.mxu0 0
        %946 = vmatpush1.bf16.msra.mxu0 0
        %947 = vmatprep.subr.bf16.mxu0 0
        %948 = vmatpush1.bf16.msra.mxu0 0
        %949 = vmatprep.subr.bf16.mxu0 0
        %950 = vmatpush1.bf16.msra.mxu0 0
        %951 = vmatprep.mubr.bf16.mxu0 0
        %952 = vmatmul.mubr.bf16.gmra.mrb[0].mxu0 %v908
        %v953 = vpop.f32.mrb[0].mxu0
        %v954 = vadd.f32 0.0, %v953
        %v955 = vpop.f32.mrb[0].mxu0
        %v956 = vadd.f32 0.0, %v955
        %v957 = vpop.f32.mrb[0].mxu0
        %v958 = vpop.f32.mrb[0].mxu0
        %959 = vdwg.mxu0
        %960 = vmatprep.subr.bf16.mxu0 0
        %961 = vmatpush1.bf16.msra.mxu0 %v917
        %962 = vmatprep.subr.bf16.mxu0 0
        %963 = vmatpush1.bf16.msra.mxu0 0
        %964 = vmatprep.subr.bf16.mxu0 0
        %965 = vmatpush1.bf16.msra.mxu0 0
        %966 = vmatprep.subr.bf16.mxu0 0
        %967 = vmatpush1.bf16.msra.mxu0 0
        %968 = vmatprep.subr.bf16.mxu0 0
        %969 = vmatpush1.bf16.msra.mxu0 0
        %970 = vmatprep.subr.bf16.mxu0 0
        %971 = vmatpush1.bf16.msra.mxu0 0
        %972 = vmatprep.subr.bf16.mxu0 0
        %973 = vmatpush1.bf16.msra.mxu0 0
        %974 = vmatprep.subr.bf16.mxu0 0
        %975 = vmatpush1.bf16.msra.mxu0 0
        %976 = vmatprep.subr.bf16.mxu0 0
        %977 = vmatpush1.bf16.msra.mxu0 0
        %978 = vmatprep.subr.bf16.mxu0 0
        %979 = vmatpush1.bf16.msra.mxu0 0
        %980 = vmatprep.subr.bf16.mxu0 0
        %981 = vmatpush1.bf16.msra.mxu0 0
        %982 = vmatprep.subr.bf16.mxu0 0
        %983 = vmatpush1.bf16.msra.mxu0 0
        %984 = vmatprep.subr.bf16.mxu0 0
        %985 = vmatpush1.bf16.msra.mxu0 0
        %986 = vmatprep.subr.bf16.mxu0 0
        %987 = vmatpush1.bf16.msra.mxu0 0
        %988 = vmatprep.subr.bf16.mxu0 0
        %989 = vmatpush1.bf16.msra.mxu0 0
        %990 = vmatprep.subr.bf16.mxu0 0
        %991 = vmatpush1.bf16.msra.mxu0 0
        %992 = vmatprep.mubr.bf16.mxu0 0
        %993 = vmatmul.mubr.bf16.gmra.mrb[0].mxu0 %v908
        %v994 = vpop.f32.mrb[0].mxu0
        %v995 = vadd.f32 0.0, %v994
        %v996 = vpop.f32.mrb[0].mxu0
        %v997 = vpop.f32.mrb[0].mxu0
        %v998 = vpop.f32.mrb[0].mxu0
        %999 = vdwg.mxu0
        %v1000 = vadd.f32 %v893, %v954
        %v1001 = vadd.f32 %v894, %v956
        %v1002 = vadd.f32 %v895, %v995
        %1003 = vrot.lane.b32.xlu0 %v474, 108
        %v1004 = vpop.permute.xlu0 %1003
        %1005 = vrot.lane.b32.xlu0 %v482, 108
        %v1006 = vpop.permute.xlu0 %1005
        %1007 = vrot.lane.b32.xlu0 %v483, 108
        %v1008 = vpop.permute.xlu0 %1007
        %1009 = vrot.lane.b32.xlu0 %v484, 108
        %v1010 = vpop.permute.xlu0 %1009
        %vm1011 = vcmask 883712
        %v1012 = vsel %vm1011, %v1006, %v1008
        %v1013 = vsel %vm1011, %v1008, %v1010
        %v1015 = vsel %vm494, %v1004, 0
        %v1018 = vsel %vm498, %v1012, 0
        %v1021 = vsel %vm498, %v1013, 0
        %v1024 = vsel %vm498, %v1010, 0
        %1026 = vmatprep.subr.bf16.mxu0 %v1021
        %1027 = vmatpush1.bf16.msra.mxu0 %v1018
        %1028 = vmatprep.subr.bf16.mxu0 0
        %1029 = vmatpush1.bf16.msra.mxu0 0
        %1030 = vmatprep.subr.bf16.mxu0 0
        %1031 = vmatpush1.bf16.msra.mxu0 0
        %1032 = vmatprep.subr.bf16.mxu0 0
        %1033 = vmatpush1.bf16.msra.mxu0 0
        %1034 = vmatprep.subr.bf16.mxu0 0
        %1035 = vmatpush1.bf16.msra.mxu0 0
        %1036 = vmatprep.subr.bf16.mxu0 0
        %1037 = vmatpush1.bf16.msra.mxu0 0
        %1038 = vmatprep.subr.bf16.mxu0 0
        %1039 = vmatpush1.bf16.msra.mxu0 0
        %1040 = vmatprep.subr.bf16.mxu0 0
        %1041 = vmatpush1.bf16.msra.mxu0 0
        %1042 = vmatprep.subr.bf16.mxu0 0
        %1043 = vmatpush1.bf16.msra.mxu0 0
        %1044 = vmatprep.subr.bf16.mxu0 0
        %1045 = vmatpush1.bf16.msra.mxu0 0
        %1046 = vmatprep.subr.bf16.mxu0 0
        %1047 = vmatpush1.bf16.msra.mxu0 0
        %1048 = vmatprep.subr.bf16.mxu0 0
        %1049 = vmatpush1.bf16.msra.mxu0 0
        %1050 = vmatprep.subr.bf16.mxu0 0
        %1051 = vmatpush1.bf16.msra.mxu0 0
        %1052 = vmatprep.subr.bf16.mxu0 0
        %1053 = vmatpush1.bf16.msra.mxu0 0
        %1054 = vmatprep.subr.bf16.mxu0 0
        %1055 = vmatpush1.bf16.msra.mxu0 0
        %1056 = vmatprep.subr.bf16.mxu0 0
        %1057 = vmatpush1.bf16.msra.mxu0 0
        %1058 = vmatprep.mubr.bf16.mxu0 0
        %1059 = vmatmul.mubr.bf16.gmra.mrb[0].mxu0 %v1015
        %v1060 = vpop.f32.mrb[0].mxu0
        %v1061 = vadd.f32 0.0, %v1060
        %v1062 = vpop.f32.mrb[0].mxu0
        %v1063 = vadd.f32 0.0, %v1062
        %v1064 = vpop.f32.mrb[0].mxu0
        %v1065 = vpop.f32.mrb[0].mxu0
        %1066 = vdwg.mxu0
        %1067 = vmatprep.subr.bf16.mxu0 0
        %1068 = vmatpush1.bf16.msra.mxu0 %v1024
        %1069 = vmatprep.subr.bf16.mxu0 0
        %1070 = vmatpush1.bf16.msra.mxu0 0
        %1071 = vmatprep.subr.bf16.mxu0 0
        %1072 = vmatpush1.bf16.msra.mxu0 0
        %1073 = vmatprep.subr.bf16.mxu0 0
        %1074 = vmatpush1.bf16.msra.mxu0 0
        %1075 = vmatprep.subr.bf16.mxu0 0
        %1076 = vmatpush1.bf16.msra.mxu0 0
        %1077 = vmatprep.subr.bf16.mxu0 0
        %1078 = vmatpush1.bf16.msra.mxu0 0
        %1079 = vmatprep.subr.bf16.mxu0 0
        %1080 = vmatpush1.bf16.msra.mxu0 0
        %1081 = vmatprep.subr.bf16.mxu0 0
        %1082 = vmatpush1.bf16.msra.mxu0 0
        %1083 = vmatprep.subr.bf16.mxu0 0
        %1084 = vmatpush1.bf16.msra.mxu0 0
        %1085 = vmatprep.subr.bf16.mxu0 0
        %1086 = vmatpush1.bf16.msra.mxu0 0
        %1087 = vmatprep.subr.bf16.mxu0 0
        %1088 = vmatpush1.bf16.msra.mxu0 0
        %1089 = vmatprep.subr.bf16.mxu0 0
        %1090 = vmatpush1.bf16.msra.mxu0 0
        %1091 = vmatprep.subr.bf16.mxu0 0
        %1092 = vmatpush1.bf16.msra.mxu0 0
        %1093 = vmatprep.subr.bf16.mxu0 0
        %1094 = vmatpush1.bf16.msra.mxu0 0
        %1095 = vmatprep.subr.bf16.mxu0 0
        %1096 = vmatpush1.bf16.msra.mxu0 0
        %1097 = vmatprep.subr.bf16.mxu0 0
        %1098 = vmatpush1.bf16.msra.mxu0 0
        %1099 = vmatprep.mubr.bf16.mxu0 0
        %1100 = vmatmul.mubr.bf16.gmra.mrb[0].mxu0 %v1015
        %v1101 = vpop.f32.mrb[0].mxu0
        %v1102 = vadd.f32 0.0, %v1101
        %v1103 = vpop.f32.mrb[0].mxu0
        %v1104 = vpop.f32.mrb[0].mxu0
        %v1105 = vpop.f32.mrb[0].mxu0
        %1106 = vdwg.mxu0
        %v1107 = vadd.f32 %v1000, %v1061
        %v1108 = vadd.f32 %v1001, %v1063
        %v1109 = vadd.f32 %v1002, %v1102
        %1110 = vrot.lane.b32.xlu0 %v474, 104
        %v1111 = vpop.permute.xlu0 %1110
        %1112 = vrot.lane.b32.xlu0 %v482, 92
        %v1113 = vpop.permute.xlu0 %1112
        %1114 = vrot.lane.b32.xlu0 %v483, 92
        %v1115 = vpop.permute.xlu0 %1114
        %1116 = vrot.lane.b32.xlu0 %v484, 92
        %v1117 = vpop.permute.xlu0 %1116
        %vm1118 = vcmask 752640
        %v1119 = vsel %vm1118, %v1113, %v1115
        %v1120 = vsel %vm1118, %v1115, %v1117
        %v1122 = vsel %vm494, %v1111, 0
        %v1125 = vsel %vm498, %v1119, 0
        %v1128 = vsel %vm498, %v1120, 0
        %v1131 = vsel %vm498, %v1117, 0
        %1133 = vmatprep.subr.bf16.mxu0 %v1128
        %1134 = vmatpush1.bf16.msra.mxu0 %v1125
        %1135 = vmatprep.subr.bf16.mxu0 0
        %1136 = vmatpush1.bf16.msra.mxu0 0
        %1137 = vmatprep.subr.bf16.mxu0 0
        %1138 = vmatpush1.bf16.msra.mxu0 0
        %1139 = vmatprep.subr.bf16.mxu0 0
        %1140 = vmatpush1.bf16.msra.mxu0 0
        %1141 = vmatprep.subr.bf16.mxu0 0
        %1142 = vmatpush1.bf16.msra.mxu0 0
        %1143 = vmatprep.subr.bf16.mxu0 0
        %1144 = vmatpush1.bf16.msra.mxu0 0
        %1145 = vmatprep.subr.bf16.mxu0 0
        %1146 = vmatpush1.bf16.msra.mxu0 0
        %1147 = vmatprep.subr.bf16.mxu0 0
        %1148 = vmatpush1.bf16.msra.mxu0 0
        %1149 = vmatprep.subr.bf16.mxu0 0
        %1150 = vmatpush1.bf16.msra.mxu0 0
        %1151 = vmatprep.subr.bf16.mxu0 0
        %1152 = vmatpush1.bf16.msra.mxu0 0
        %1153 = vmatprep.subr.bf16.mxu0 0
        %1154 = vmatpush1.bf16.msra.mxu0 0
        %1155 = vmatprep.subr.bf16.mxu0 0
        %1156 = vmatpush1.bf16.msra.mxu0 0
        %1157 = vmatprep.subr.bf16.mxu0 0
        %1158 = vmatpush1.bf16.msra.mxu0 0
        %1159 = vmatprep.subr.bf16.mxu0 0
        %1160 = vmatpush1.bf16.msra.mxu0 0
        %1161 = vmatprep.subr.bf16.mxu0 0
        %1162 = vmatpush1.bf16.msra.mxu0 0
        %1163 = vmatprep.subr.bf16.mxu0 0
        %1164 = vmatpush1.bf16.msra.mxu0 0
        %1165 = vmatprep.mubr.bf16.mxu0 0
        %1166 = vmatmul.mubr.bf16.gmra.mrb[0].mxu0 %v1122
        %v1167 = vpop.f32.mrb[0].mxu0
        %v1168 = vadd.f32 0.0, %v1167
        %v1169 = vpop.f32.mrb[0].mxu0
        %v1170 = vadd.f32 0.0, %v1169
        %v1171 = vpop.f32.mrb[0].mxu0
        %v1172 = vpop.f32.mrb[0].mxu0
        %1173 = vdwg.mxu0
        %1174 = vmatprep.subr.bf16.mxu0 0
        %1175 = vmatpush1.bf16.msra.mxu0 %v1131
        %1176 = vmatprep.subr.bf16.mxu0 0
        %1177 = vmatpush1.bf16.msra.mxu0 0
        %1178 = vmatprep.subr.bf16.mxu0 0
        %1179 = vmatpush1.bf16.msra.mxu0 0
        %1180 = vmatprep.subr.bf16.mxu0 0
        %1181 = vmatpush1.bf16.msra.mxu0 0
        %1182 = vmatprep.subr.bf16.mxu0 0
        %1183 = vmatpush1.bf16.msra.mxu0 0
        %1184 = vmatprep.subr.bf16.mxu0 0
        %1185 = vmatpush1.bf16.msra.mxu0 0
        %1186 = vmatprep.subr.bf16.mxu0 0
        %1187 = vmatpush1.bf16.msra.mxu0 0
        %1188 = vmatprep.subr.bf16.mxu0 0
        %1189 = vmatpush1.bf16.msra.mxu0 0
        %1190 = vmatprep.subr.bf16.mxu0 0
        %1191 = vmatpush1.bf16.msra.mxu0 0
        %1192 = vmatprep.subr.bf16.mxu0 0
        %1193 = vmatpush1.bf16.msra.mxu0 0
        %1194 = vmatprep.subr.bf16.mxu0 0
        %1195 = vmatpush1.bf16.msra.mxu0 0
        %1196 = vmatprep.subr.bf16.mxu0 0
        %1197 = vmatpush1.bf16.msra.mxu0 0
        %1198 = vmatprep.subr.bf16.mxu0 0
        %1199 = vmatpush1.bf16.msra.mxu0 0
        %1200 = vmatprep.subr.bf16.mxu0 0
        %1201 = vmatpush1.bf16.msra.mxu0 0
        %1202 = vmatprep.subr.bf16.mxu0 0
        %1203 = vmatpush1.bf16.msra.mxu0 0
        %1204 = vmatprep.subr.bf16.mxu0 0
        %1205 = vmatpush1.bf16.msra.mxu0 0
        %1206 = vmatprep.mubr.bf16.mxu0 0
        %1207 = vmatmul.mubr.bf16.gmra.mrb[0].mxu0 %v1122
        %v1208 = vpop.f32.mrb[0].mxu0
        %v1209 = vadd.f32 0.0, %v1208
        %v1210 = vpop.f32.mrb[0].mxu0
        %v1211 = vpop.f32.mrb[0].mxu0
        %v1212 = vpop.f32.mrb[0].mxu0
        %1213 = vdwg.mxu0
        %v1214 = vadd.f32 %v1107, %v1168
        %v1215 = vadd.f32 %v1108, %v1170
        %v1216 = vadd.f32 %v1109, %v1209
        %1217 = vrot.lane.b32.xlu0 %v474, 100
        %v1218 = vpop.permute.xlu0 %1217
        %1219 = vrot.lane.b32.xlu0 %v482, 91
        %v1220 = vpop.permute.xlu0 %1219
        %1221 = vrot.lane.b32.xlu0 %v483, 91
        %v1222 = vpop.permute.xlu0 %1221
        %1223 = vrot.lane.b32.xlu0 %v484, 91
        %v1224 = vpop.permute.xlu0 %1223
        %vm1225 = vcmask 744448
        %v1226 = vsel %vm1225, %v1220, %v1222
        %v1227 = vsel %vm1225, %v1222, %v1224
        %v1229 = vsel %vm494, %v1218, 0
        %v1232 = vsel %vm498, %v1226, 0
        %v1235 = vsel %vm498, %v1227, 0
        %v1238 = vsel %vm498, %v1224, 0
        %1240 = vmatprep.subr.bf16.mxu0 %v1235
        %1241 = vmatpush1.bf16.msra.mxu0 %v1232
        %1242 = vmatprep.subr.bf16.mxu0 0
        %1243 = vmatpush1.bf16.msra.mxu0 0
        %1244 = vmatprep.subr.bf16.mxu0 0
        %1245 = vmatpush1.bf16.msra.mxu0 0
        %1246 = vmatprep.subr.bf16.mxu0 0
        %1247 = vmatpush1.bf16.msra.mxu0 0
        %1248 = vmatprep.subr.bf16.mxu0 0
        %1249 = vmatpush1.bf16.msra.mxu0 0
        %1250 = vmatprep.subr.bf16.mxu0 0
        %1251 = vmatpush1.bf16.msra.mxu0 0
        %1252 = vmatprep.subr.bf16.mxu0 0
        %1253 = vmatpush1.bf16.msra.mxu0 0
        %1254 = vmatprep.subr.bf16.mxu0 0
        %1255 = vmatpush1.bf16.msra.mxu0 0
        %1256 = vmatprep.subr.bf16.mxu0 0
        %1257 = vmatpush1.bf16.msra.mxu0 0
        %1258 = vmatprep.subr.bf16.mxu0 0
        %1259 = vmatpush1.bf16.msra.mxu0 0
        %1260 = vmatprep.subr.bf16.mxu0 0
        %1261 = vmatpush1.bf16.msra.mxu0 0
        %1262 = vmatprep.subr.bf16.mxu0 0
        %1263 = vmatpush1.bf16.msra.mxu0 0
        %1264 = vmatprep.subr.bf16.mxu0 0
        %1265 = vmatpush1.bf16.msra.mxu0 0
        %1266 = vmatprep.subr.bf16.mxu0 0
        %1267 = vmatpush1.bf16.msra.mxu0 0
        %1268 = vmatprep.subr.bf16.mxu0 0
        %1269 = vmatpush1.bf16.msra.mxu0 0
        %1270 = vmatprep.subr.bf16.mxu0 0
        %1271 = vmatpush1.bf16.msra.mxu0 0
        %1272 = vmatprep.mubr.bf16.mxu0 0
        %1273 = vmatmul.mubr.bf16.gmra.mrb[0].mxu0 %v1229
        %v1274 = vpop.f32.mrb[0].mxu0
        %v1275 = vadd.f32 0.0, %v1274
        %v1276 = vpop.f32.mrb[0].mxu0
        %v1277 = vadd.f32 0.0, %v1276
        %v1278 = vpop.f32.mrb[0].mxu0
        %v1279 = vpop.f32.mrb[0].mxu0
        %1280 = vdwg.mxu0
        %1281 = vmatprep.subr.bf16.mxu0 0
        %1282 = vmatpush1.bf16.msra.mxu0 %v1238
        %1283 = vmatprep.subr.bf16.mxu0 0
        %1284 = vmatpush1.bf16.msra.mxu0 0
        %1285 = vmatprep.subr.bf16.mxu0 0
        %1286 = vmatpush1.bf16.msra.mxu0 0
        %1287 = vmatprep.subr.bf16.mxu0 0
        %1288 = vmatpush1.bf16.msra.mxu0 0
        %1289 = vmatprep.subr.bf16.mxu0 0
        %1290 = vmatpush1.bf16.msra.mxu0 0
        %1291 = vmatprep.subr.bf16.mxu0 0
        %1292 = vmatpush1.bf16.msra.mxu0 0
        %1293 = vmatprep.subr.bf16.mxu0 0
        %1294 = vmatpush1.bf16.msra.mxu0 0
        %1295 = vmatprep.subr.bf16.mxu0 0
        %1296 = vmatpush1.bf16.msra.mxu0 0
        %1297 = vmatprep.subr.bf16.mxu0 0
        %1298 = vmatpush1.bf16.msra.mxu0 0
        %1299 = vmatprep.subr.bf16.mxu0 0
        %1300 = vmatpush1.bf16.msra.mxu0 0
        %1301 = vmatprep.subr.bf16.mxu0 0
        %1302 = vmatpush1.bf16.msra.mxu0 0
        %1303 = vmatprep.subr.bf16.mxu0 0
        %1304 = vmatpush1.bf16.msra.mxu0 0
        %1305 = vmatprep.subr.bf16.mxu0 0
        %1306 = vmatpush1.bf16.msra.mxu0 0
        %1307 = vmatprep.subr.bf16.mxu0 0
        %1308 = vmatpush1.bf16.msra.mxu0 0
        %1309 = vmatprep.subr.bf16.mxu0 0
        %1310 = vmatpush1.bf16.msra.mxu0 0
        %1311 = vmatprep.subr.bf16.mxu0 0
        %1312 = vmatpush1.bf16.msra.mxu0 0
        %1313 = vmatprep.mubr.bf16.mxu0 0
        %1314 = vmatmul.mubr.bf16.gmra.mrb[0].mxu0 %v1229
        %v1315 = vpop.f32.mrb[0].mxu0
        %v1316 = vadd.f32 0.0, %v1315
        %v1317 = vpop.f32.mrb[0].mxu0
        %v1318 = vpop.f32.mrb[0].mxu0
        %v1319 = vpop.f32.mrb[0].mxu0
        %1320 = vdwg.mxu0
        %v1321 = vadd.f32 %v1214, %v1275
        %v1322 = vadd.f32 %v1215, %v1277
        %v1323 = vadd.f32 %v1216, %v1316
        %1324 = vrot.lane.b32.xlu0 %v474, 96
        %v1325 = vpop.permute.xlu0 %1324
        %1326 = vrot.lane.b32.xlu0 %v482, 90
        %v1327 = vpop.permute.xlu0 %1326
        %1328 = vrot.lane.b32.xlu0 %v483, 90
        %v1329 = vpop.permute.xlu0 %1328
        %1330 = vrot.lane.b32.xlu0 %v484, 90
        %v1331 = vpop.permute.xlu0 %1330
        %vm1332 = vcmask 736256
        %v1333 = vsel %vm1332, %v1327, %v1329
        %v1334 = vsel %vm1332, %v1329, %v1331
        %v1336 = vsel %vm494, %v1325, 0
        %v1339 = vsel %vm498, %v1333, 0
        %v1342 = vsel %vm498, %v1334, 0
        %v1345 = vsel %vm498, %v1331, 0
        %1347 = vmatprep.subr.bf16.mxu0 %v1342
        %1348 = vmatpush1.bf16.msra.mxu0 %v1339
        %1349 = vmatprep.subr.bf16.mxu0 0
        %1350 = vmatpush1.bf16.msra.mxu0 0
        %1351 = vmatprep.subr.bf16.mxu0 0
        %1352 = vmatpush1.bf16.msra.mxu0 0
        %1353 = vmatprep.subr.bf16.mxu0 0
        %1354 = vmatpush1.bf16.msra.mxu0 0
        %1355 = vmatprep.subr.bf16.mxu0 0
        %1356 = vmatpush1.bf16.msra.mxu0 0
        %1357 = vmatprep.subr.bf16.mxu0 0
        %1358 = vmatpush1.bf16.msra.mxu0 0
        %1359 = vmatprep.subr.bf16.mxu0 0
        %1360 = vmatpush1.bf16.msra.mxu0 0
        %1361 = vmatprep.subr.bf16.mxu0 0
        %1362 = vmatpush1.bf16.msra.mxu0 0
        %1363 = vmatprep.subr.bf16.mxu0 0
        %1364 = vmatpush1.bf16.msra.mxu0 0
        %1365 = vmatprep.subr.bf16.mxu0 0
        %1366 = vmatpush1.bf16.msra.mxu0 0
        %1367 = vmatprep.subr.bf16.mxu0 0
        %1368 = vmatpush1.bf16.msra.mxu0 0
        %1369 = vmatprep.subr.bf16.mxu0 0
        %1370 = vmatpush1.bf16.msra.mxu0 0
        %1371 = vmatprep.subr.bf16.mxu0 0
        %1372 = vmatpush1.bf16.msra.mxu0 0
        %1373 = vmatprep.subr.bf16.mxu0 0
        %1374 = vmatpush1.bf16.msra.mxu0 0
        %1375 = vmatprep.subr.bf16.mxu0 0
        %1376 = vmatpush1.bf16.msra.mxu0 0
        %1377 = vmatprep.subr.bf16.mxu0 0
        %1378 = vmatpush1.bf16.msra.mxu0 0
        %1379 = vmatprep.mubr.bf16.mxu0 0
        %1380 = vmatmul.mubr.bf16.gmra.mrb[0].mxu0 %v1336
        %v1381 = vpop.f32.mrb[0].mxu0
        %v1382 = vadd.f32 0.0, %v1381
        %v1383 = vpop.f32.mrb[0].mxu0
        %v1384 = vadd.f32 0.0, %v1383
        %v1385 = vpop.f32.mrb[0].mxu0
        %v1386 = vpop.f32.mrb[0].mxu0
        %1387 = vdwg.mxu0
        %1388 = vmatprep.subr.bf16.mxu0 0
        %1389 = vmatpush1.bf16.msra.mxu0 %v1345
        %1390 = vmatprep.subr.bf16.mxu0 0
        %1391 = vmatpush1.bf16.msra.mxu0 0
        %1392 = vmatprep.subr.bf16.mxu0 0
        %1393 = vmatpush1.bf16.msra.mxu0 0
        %1394 = vmatprep.subr.bf16.mxu0 0
        %1395 = vmatpush1.bf16.msra.mxu0 0
        %1396 = vmatprep.subr.bf16.mxu0 0
        %1397 = vmatpush1.bf16.msra.mxu0 0
        %1398 = vmatprep.subr.bf16.mxu0 0
        %1399 = vmatpush1.bf16.msra.mxu0 0
        %1400 = vmatprep.subr.bf16.mxu0 0
        %1401 = vmatpush1.bf16.msra.mxu0 0
        %1402 = vmatprep.subr.bf16.mxu0 0
        %1403 = vmatpush1.bf16.msra.mxu0 0
        %1404 = vmatprep.subr.bf16.mxu0 0
        %1405 = vmatpush1.bf16.msra.mxu0 0
        %1406 = vmatprep.subr.bf16.mxu0 0
        %1407 = vmatpush1.bf16.msra.mxu0 0
        %1408 = vmatprep.subr.bf16.mxu0 0
        %1409 = vmatpush1.bf16.msra.mxu0 0
        %1410 = vmatprep.subr.bf16.mxu0 0
        %1411 = vmatpush1.bf16.msra.mxu0 0
        %1412 = vmatprep.subr.bf16.mxu0 0
        %1413 = vmatpush1.bf16.msra.mxu0 0
        %1414 = vmatprep.subr.bf16.mxu0 0
        %1415 = vmatpush1.bf16.msra.mxu0 0
        %1416 = vmatprep.subr.bf16.mxu0 0
        %1417 = vmatpush1.bf16.msra.mxu0 0
        %1418 = vmatprep.subr.bf16.mxu0 0
        %1419 = vmatpush1.bf16.msra.mxu0 0
        %1420 = vmatprep.mubr.bf16.mxu0 0
        %1421 = vmatmul.mubr.bf16.gmra.mrb[0].mxu0 %v1336
        %v1422 = vpop.f32.mrb[0].mxu0
        %v1423 = vadd.f32 0.0, %v1422
        %v1424 = vpop.f32.mrb[0].mxu0
        %v1425 = vpop.f32.mrb[0].mxu0
        %v1426 = vpop.f32.mrb[0].mxu0
        %1427 = vdwg.mxu0
        %v1428 = vadd.f32 %v1321, %v1382
        %v1429 = vadd.f32 %v1322, %v1384
        %v1430 = vadd.f32 %v1323, %v1423
        %v1431 = vld [vmem:[#allocation12] sm:$0xff]
        %v1432 = vmul.f32 %v1428, %v429
        %v1433 = vmul.f32 %v1429, %v430
        %v1434 = vmul.f32 %v1430, %v431
        %v1435 = vadd.f32 %v1432, %v1433
        %vm1436 = vcmask 261120
        %v1437 = vsel %vm1436, %v1434, 0.0
        %v1438 = vadd.f32 %v1435, %v1437
        %1439 = vadd.xlane.f32.xlu0 %v1438
        %v1440 = vpop.xlane.xlu0 %1439
        %v1441 = vmul.f32 %v1432, %v1428
        %v1442 = vmul.f32 %v1433, %v1429
        %v1443 = vmul.f32 %v1434, %v1430
        %v1444 = vadd.f32 %v1441, %v1442
        %v1445 = vsel %vm1436, %v1443, 0.0
        %v1446 = vadd.f32 %v1444, %v1445
        %1447 = vadd.xlane.f32.xlu0 %v1446
        %v1448 = vpop.xlane.xlu0 %1447
        %v1449 = vmul.f32 %v1431, 2.0
        %v1450 = vmul.f32 %v1449, %v1440
        %v1451 = vadd.f32 %v1448, %v1450
        %v1452 = vmul.f32 %v1431, %v1431
        %v1453 = vmul.f32 %v1452, 256.0
        %v1454 = vadd.f32 %v1451, %v1453
        %v1455 = vmul.f32 %v1431, 256.0
        %v1456 = vadd.f32 %v1440, %v1455
        %1458 = vrot.lane.b32.xlu0 %v1454, 1
        %v1459 = vpop.permute.xlu0 %1458
        %vm1461 = vcmask 7168
        %v1462 = vsel %vm1461, %v1456, %v1459
        %v1463 = vld [vmem:[#allocation14] sm:$0xff]
        %vm1464 = vcmask 64512
        %v1466 = vsel %vm1464, %v1463, 0
        %1468 = vmatprep.subr.mxu0 0.0
        %1469 = vmatpush1.msra.mxu0 %v1462
        %1470 = vmatprep.subr.mxu0 0.0
        %1471 = vmatpush1.msra.mxu0 0.0
        %1472 = vmatprep.subr.mxu0 0.0
        %1473 = vmatpush1.msra.mxu0 0.0
        %1474 = vmatprep.subr.mxu0 0.0
        %1475 = vmatpush1.msra.mxu0 0.0
        %1476 = vmatprep.subr.mxu0 0.0
        %1477 = vmatpush1.msra.mxu0 0.0
        %1478 = vmatprep.subr.mxu0 0.0
        %1479 = vmatpush1.msra.mxu0 0.0
        %1480 = vmatprep.subr.mxu0 0.0
        %1481 = vmatpush1.msra.mxu0 0.0
        %1482 = vmatprep.subr.mxu0 0.0
        %1483 = vmatpush1.msra.mxu0 0.0
        %1484 = vmatprep.subr.mxu0 0.0
        %1485 = vmatpush1.msra.mxu0 0.0
        %1486 = vmatprep.subr.mxu0 0.0
        %1487 = vmatpush1.msra.mxu0 0.0
        %1488 = vmatprep.subr.mxu0 0.0
        %1489 = vmatpush1.msra.mxu0 0.0
        %1490 = vmatprep.subr.mxu0 0.0
        %1491 = vmatpush1.msra.mxu0 0.0
        %1492 = vmatprep.subr.mxu0 0.0
        %1493 = vmatpush1.msra.mxu0 0.0
        %1494 = vmatprep.subr.mxu0 0.0
        %1495 = vmatpush1.msra.mxu0 0.0
        %1496 = vmatprep.subr.mxu0 0.0
        %1497 = vmatpush1.msra.mxu0 0.0
        %1498 = vmatprep.subr.mxu0 0.0
        %1499 = vmatpush1.msra.mxu0 0.0
        %1500 = vmatprep.subr.mxu0 0.0
        %1501 = vmatpush1.msra.mxu0 0.0
        %1502 = vmatprep.subr.mxu0 0.0
        %1503 = vmatpush1.msra.mxu0 0.0
        %1504 = vmatprep.subr.mxu0 0.0
        %1505 = vmatpush1.msra.mxu0 0.0
        %1506 = vmatprep.subr.mxu0 0.0
        %1507 = vmatpush1.msra.mxu0 0.0
        %1508 = vmatprep.subr.mxu0 0.0
        %1509 = vmatpush1.msra.mxu0 0.0
        %1510 = vmatprep.subr.mxu0 0.0
        %1511 = vmatpush1.msra.mxu0 0.0
        %1512 = vmatprep.subr.mxu0 0.0
        %1513 = vmatpush1.msra.mxu0 0.0
        %1514 = vmatprep.subr.mxu0 0.0
        %1515 = vmatpush1.msra.mxu0 0.0
        %1516 = vmatprep.subr.mxu0 0.0
        %1517 = vmatpush1.msra.mxu0 0.0
        %1518 = vmatprep.subr.mxu0 0.0
        %1519 = vmatpush1.msra.mxu0 0.0
        %1520 = vmatprep.subr.mxu0 0.0
        %1521 = vmatpush1.msra.mxu0 0.0
        %1522 = vmatprep.subr.mxu0 0.0
        %1523 = vmatpush1.msra.mxu0 0.0
        %1524 = vmatprep.subr.mxu0 0.0
        %1525 = vmatpush1.msra.mxu0 0.0
        %1526 = vmatprep.subr.mxu0 0.0
        %1527 = vmatpush1.msra.mxu0 0.0
        %1528 = vmatprep.subr.mxu0 0.0
        %1529 = vmatpush1.msra.mxu0 0.0
        %1530 = vmatprep.subr.mxu0 0.0
        %1531 = vmatpush1.msra.mxu0 0.0
        %1532 = vmatprep.mubr.f32.mxu0 0.0
        %1533 = vmatmul.mubr.f32.gmra.mrb[0].mxu0 %v1466
        %v1534 = vpop.f32.mrb[0].mxu0
        %v1535 = vadd.f32 0.0, %v1534
        %v1536 = vpop.f32.mrb[0].mxu0
        %1537 = vdwg.mxu0
        %v1538 = vmul.f32 %v1535, 0.001953125
        %v1539 = vmul.f32 %v1538, %v1538
        %1541 = vrot.lane.b32.xlu0 %v1539, 1
        %v1542 = vpop.permute.xlu0 %1541
        %v1544 = vsub.f32 %v1538, %v1542
        %v1545 = vadd.f32 %v1544, 1e-05
        %v1546 = vrsqrt.pop %v1545
        %v1547 = vmul.f32 %v1431, %v1546
        %v1548 = vsub.f32 %v1431, %v1538
        %1550 = vrot.lane.b32.xlu0 %v1547, 127
        %v1551 = vpop.permute.xlu0 %1550
        %v1553 = vmul.f32 %v1548, %v1551
        %1555 = vrot.lane.b32.xlu0 %v1553, 2
        %v1556 = vpop.permute.xlu0 %1555
        %v1558 = vadd.f32 %v1431, %v1556
        %1559 = vset.pattern.permute.xlu0 1
        %1560 = vperm.xlu0 %1559, %v1547
        %v1561 = vpop.permute.xlu0 %1560
        %v1563 = vmul.f32 %v1428, %v1561
        %v1564 = vmul.f32 %v1429, %v1561
        %v1565 = vmul.f32 %v1430, %v1561
        %1567 = vset.pattern.permute.xlu0 2
        %1568 = vperm.xlu0 %1567, %v1558
        %v1569 = vpop.permute.xlu0 %1568
        %v1571 = vadd.f32 %v1563, %v1569
        %v1572 = vadd.f32 %v1564, %v1569
        %v1573 = vadd.f32 %v1565, %v1569
        %v1574 = vxor.u32 %v1571, 2147483648
        %v1575 = vxor.u32 %v1572, 2147483648
        %v1576 = vxor.u32 %v1573, 2147483648
        %v1577 = vmul.f32 %v1574, 1.442695
        %v1578 = vpow.pop %v1577
        %v1579 = vmul.f32 %v1575, 1.442695
        %v1580 = vpow.pop %v1579
        %v1581 = vmul.f32 %v1576, 1.442695
        %v1582 = vpow.pop %v1581
        %v1583 = vadd.f32 %v1578, 1.0
        %v1584 = vadd.f32 %v1580, 1.0
        %v1585 = vadd.f32 %v1582, 1.0
        %v1586 = vrcp.pop %v1583
        %v1587 = vmul.f32 1.0, %v1586
        %v1588 = vrcp.pop %v1584
        %v1589 = vmul.f32 1.0, %v1588
        %v1590 = vrcp.pop %v1585
        %v1591 = vmul.f32 1.0, %v1590
        %v1592 = vmul.f32 %v1571, %v1587
        %v1593 = vmul.f32 %v1572, %v1589
        %v1594 = vmul.f32 %v1573, %v1591
        %v1595 = vmul.f32 %v1592, %v429
        %v1596 = vmul.f32 %v1593, %v430
        %v1597 = vmul.f32 %v1594, %v431
        %v1598 = vpack.c.bf16 %v1595, %v1595
        %v1599 = vpack.c.bf16 %v1596, %v1596
        %v1600 = vpack.c.bf16 %v1597, %v1597
        %v1604 = vunpack.c.l.b16 %v1598
        %v1605 = vunpack.c.l.b16 %v1599
        %v1606 = vunpack.c.l.b16 %v1600
        %v1607 = vpack.c.b16 %v1605, %v1604
        %v1608 = vpack.c.b16 %v1606, %v1606
        %1609 = vrot.lane.b32.xlu0 %v1607, 19
        %v1610 = vpop.permute.xlu0 %1609
        %1611 = vrot.lane.b32.xlu0 %v1608, 19
        %v1612 = vpop.permute.xlu0 %1611
        %v1613 = vrot.slane %v1610, 4
        %v1614 = vsel %vm458, %v1613, %v1610
        %v1615 = vsel %vm458, %v1613, %v1612
        %vm1618 = vcmask 1043608
        %vm1619 = vcmask 1047556
        %vm1620 = vmor %vm1619, %vm1618
        %1621 = vst.msk [vmem:[#allocation2] sm:$0xff] %vm1620, %v1614
        %vm1622 = vcmask 412672
        %1623 = vst.msk [vmem:[#allocation2 + $0x8] sm:$0xf] %vm1622, %v1615
        %v1624 = vld [vmem:[#allocation8] sm:$0xf]
        %v1625 = vld [vmem:[#allocation2] sm:$0xff]
        %v1626 = vld [vmem:[#allocation2 + $0x8] sm:$0xf]
        %v1628 = vunpack.c.l.b16 %v1624
        %v1629 = vpack.c.b16 %v1628, %v1628
        %1630 = vrot.lane.b32.xlu0 %v1629, 120
        %v1631 = vpop.permute.xlu0 %1630
        %v1634 = vunpack.c.l.b16 %v1625
        %v1635 = vunpack.c.h.b16 %v1625
        %v1636 = vunpack.c.l.b16 %v1626
        %v1637 = vpack.c.b16 %v1634, %v1634
        %v1638 = vpack.c.b16 %v1635, %v1635
        %v1639 = vpack.c.b16 %v1636, %v1636
        %1640 = vrot.lane.b32.xlu0 %v1637, 127
        %v1641 = vpop.permute.xlu0 %1640
        %1642 = vrot.lane.b32.xlu0 %v1638, 127
        %v1643 = vpop.permute.xlu0 %1642
        %1644 = vrot.lane.b32.xlu0 %v1639, 127
        %v1645 = vpop.permute.xlu0 %1644
        %v1646 = vsel %vm491, %v1641, %v1643
        %v1647 = vsel %vm491, %v1643, %v1645
        %v1649 = vsel %vm1464, %v1631, 0
        %vm1651 = vcmask 1043456
        %v1653 = vsel %vm1651, %v1646, 0
        %v1656 = vsel %vm1651, %v1647, 0
        %v1659 = vsel %vm1651, %v1645, 0
        %1661 = vmatprep.subr.bf16.mxu0 %v1656
        %1662 = vmatpush1.bf16.msra.mxu0 %v1653
        %1663 = vmatprep.subr.bf16.mxu0 0
        %1664 = vmatpush1.bf16.msra.mxu0 0
        %1665 = vmatprep.subr.bf16.mxu0 0
        %1666 = vmatpush1.bf16.msra.mxu0 0
        %1667 = vmatprep.subr.bf16.mxu0 0
        %1668 = vmatpush1.bf16.msra.mxu0 0
        %1669 = vmatprep.subr.bf16.mxu0 0
        %1670 = vmatpush1.bf16.msra.mxu0 0
        %1671 = vmatprep.subr.bf16.mxu0 0
        %1672 = vmatpush1.bf16.msra.mxu0 0
        %1673 = vmatprep.subr.bf16.mxu0 0
        %1674 = vmatpush1.bf16.msra.mxu0 0
        %1675 = vmatprep.subr.bf16.mxu0 0
        %1676 = vmatpush1.bf16.msra.mxu0 0
        %1677 = vmatprep.subr.bf16.mxu0 0
        %1678 = vmatpush1.bf16.msra.mxu0 0
        %1679 = vmatprep.subr.bf16.mxu0 0
        %1680 = vmatpush1.bf16.msra.mxu0 0
        %1681 = vmatprep.subr.bf16.mxu0 0
        %1682 = vmatpush1.bf16.msra.mxu0 0
        %1683 = vmatprep.subr.bf16.mxu0 0
        %1684 = vmatpush1.bf16.msra.mxu0 0
        %1685 = vmatprep.subr.bf16.mxu0 0
        %1686 = vmatpush1.bf16.msra.mxu0 0
        %1687 = vmatprep.subr.bf16.mxu0 0
        %1688 = vmatpush1.bf16.msra.mxu0 0
        %1689 = vmatprep.subr.bf16.mxu0 0
        %1690 = vmatpush1.bf16.msra.mxu0 0
        %1691 = vmatprep.subr.bf16.mxu0 0
        %1692 = vmatpush1.bf16.msra.mxu0 0
        %1693 = vmatprep.mubr.bf16.mxu0 0
        %1694 = vmatmul.mubr.bf16.gmra.mrb[0].mxu0 %v1649
        %v1695 = vpop.f32.mrb[0].mxu0
        %v1696 = vadd.f32 0.0, %v1695
        %v1697 = vpop.f32.mrb[0].mxu0
        %v1698 = vadd.f32 0.0, %v1697
        %v1699 = vpop.f32.mrb[0].mxu0
        %v1700 = vpop.f32.mrb[0].mxu0
        %1701 = vdwg.mxu0
        %1702 = vmatprep.subr.bf16.mxu0 0
        %1703 = vmatpush1.bf16.msra.mxu0 %v1659
        %1704 = vmatprep.subr.bf16.mxu0 0
        %1705 = vmatpush1.bf16.msra.mxu0 0
        %1706 = vmatprep.subr.bf16.mxu0 0
        %1707 = vmatpush1.bf16.msra.mxu0 0
        %1708 = vmatprep.subr.bf16.mxu0 0
        %1709 = vmatpush1.bf16.msra.mxu0 0
        %1710 = vmatprep.subr.bf16.mxu0 0
        %1711 = vmatpush1.bf16.msra.mxu0 0
        %1712 = vmatprep.subr.bf16.mxu0 0
        %1713 = vmatpush1.bf16.msra.mxu0 0
        %1714 = vmatprep.subr.bf16.mxu0 0
        %1715 = vmatpush1.bf16.msra.mxu0 0
        %1716 = vmatprep.subr.bf16.mxu0 0
        %1717 = vmatpush1.bf16.msra.mxu0 0
        %1718 = vmatprep.subr.bf16.mxu0 0
        %1719 = vmatpush1.bf16.msra.mxu0 0
        %1720 = vmatprep.subr.bf16.mxu0 0
        %1721 = vmatpush1.bf16.msra.mxu0 0
        %1722 = vmatprep.subr.bf16.mxu0 0
        %1723 = vmatpush1.bf16.msra.mxu0 0
        %1724 = vmatprep.subr.bf16.mxu0 0
        %1725 = vmatpush1.bf16.msra.mxu0 0
        %1726 = vmatprep.subr.bf16.mxu0 0
        %1727 = vmatpush1.bf16.msra.mxu0 0
        %1728 = vmatprep.subr.bf16.mxu0 0
        %1729 = vmatpush1.bf16.msra.mxu0 0
        %1730 = vmatprep.subr.bf16.mxu0 0
        %1731 = vmatpush1.bf16.msra.mxu0 0
        %1732 = vmatprep.subr.bf16.mxu0 0
        %1733 = vmatpush1.bf16.msra.mxu0 0
        %1734 = vmatprep.mubr.bf16.mxu0 0
        %1735 = vmatmul.mubr.bf16.gmra.mrb[0].mxu0 %v1649
        %v1736 = vpop.f32.mrb[0].mxu0
        %v1737 = vadd.f32 0.0, %v1736
        %v1738 = vpop.f32.mrb[0].mxu0
        %v1739 = vpop.f32.mrb[0].mxu0
        %v1740 = vpop.f32.mrb[0].mxu0
        %1741 = vdwg.mxu0
        %v1743 = vsel %vm1464, %v1624, 0
        %v1746 = vsel %vm1651, %v1637, 0
        %v1749 = vsel %vm1651, %v1638, 0
        %v1752 = vsel %vm1651, %v1639, 0
        %1754 = vmatprep.subr.bf16.mxu0 %v1749
        %1755 = vmatpush1.bf16.msra.mxu0 %v1746
        %1756 = vmatprep.subr.bf16.mxu0 0
        %1757 = vmatpush1.bf16.msra.mxu0 0
        %1758 = vmatprep.subr.bf16.mxu0 0
        %1759 = vmatpush1.bf16.msra.mxu0 0
        %1760 = vmatprep.subr.bf16.mxu0 0
        %1761 = vmatpush1.bf16.msra.mxu0 0
        %1762 = vmatprep.subr.bf16.mxu0 0
        %1763 = vmatpush1.bf16.msra.mxu0 0
        %1764 = vmatprep.subr.bf16.mxu0 0
        %1765 = vmatpush1.bf16.msra.mxu0 0
        %1766 = vmatprep.subr.bf16.mxu0 0
        %1767 = vmatpush1.bf16.msra.mxu0 0
        %1768 = vmatprep.subr.bf16.mxu0 0
        %1769 = vmatpush1.bf16.msra.mxu0 0
        %1770 = vmatprep.subr.bf16.mxu0 0
        %1771 = vmatpush1.bf16.msra.mxu0 0
        %1772 = vmatprep.subr.bf16.mxu0 0
        %1773 = vmatpush1.bf16.msra.mxu0 0
        %1774 = vmatprep.subr.bf16.mxu0 0
        %1775 = vmatpush1.bf16.msra.mxu0 0
        %1776 = vmatprep.subr.bf16.mxu0 0
        %1777 = vmatpush1.bf16.msra.mxu0 0
        %1778 = vmatprep.subr.bf16.mxu0 0
        %1779 = vmatpush1.bf16.msra.mxu0 0
        %1780 = vmatprep.subr.bf16.mxu0 0
        %1781 = vmatpush1.bf16.msra.mxu0 0
        %1782 = vmatprep.subr.bf16.mxu0 0
        %1783 = vmatpush1.bf16.msra.mxu0 0
        %1784 = vmatprep.subr.bf16.mxu0 0
        %1785 = vmatpush1.bf16.msra.mxu0 0
        %1786 = vmatprep.mubr.bf16.mxu0 0
        %1787 = vmatmul.mubr.bf16.gmra.mrb[0].mxu0 %v1743
        %v1788 = vpop.f32.mrb[0].mxu0
        %v1789 = vadd.f32 %v1696, %v1788
        %v1790 = vpop.f32.mrb[0].mxu0
        %v1791 = vadd.f32 %v1698, %v1790
        %v1792 = vpop.f32.mrb[0].mxu0
        %v1793 = vpop.f32.mrb[0].mxu0
        %1794 = vdwg.mxu0
        %1795 = vmatprep.subr.bf16.mxu0 0
        %1796 = vmatpush1.bf16.msra.mxu0 %v1752
        %1797 = vmatprep.subr.bf16.mxu0 0
        %1798 = vmatpush1.bf16.msra.mxu0 0
        %1799 = vmatprep.subr.bf16.mxu0 0
        %1800 = vmatpush1.bf16.msra.mxu0 0
        %1801 = vmatprep.subr.bf16.mxu0 0
        %1802 = vmatpush1.bf16.msra.mxu0 0
        %1803 = vmatprep.subr.bf16.mxu0 0
        %1804 = vmatpush1.bf16.msra.mxu0 0
        %1805 = vmatprep.subr.bf16.mxu0 0
        %1806 = vmatpush1.bf16.msra.mxu0 0
        %1807 = vmatprep.subr.bf16.mxu0 0
        %1808 = vmatpush1.bf16.msra.mxu0 0
        %1809 = vmatprep.subr.bf16.mxu0 0
        %1810 = vmatpush1.bf16.msra.mxu0 0
        %1811 = vmatprep.subr.bf16.mxu0 0
        %1812 = vmatpush1.bf16.msra.mxu0 0
        %1813 = vmatprep.subr.bf16.mxu0 0
        %1814 = vmatpush1.bf16.msra.mxu0 0
        %1815 = vmatprep.subr.bf16.mxu0 0
        %1816 = vmatpush1.bf16.msra.mxu0 0
        %1817 = vmatprep.subr.bf16.mxu0 0
        %1818 = vmatpush1.bf16.msra.mxu0 0
        %1819 = vmatprep.subr.bf16.mxu0 0
        %1820 = vmatpush1.bf16.msra.mxu0 0
        %1821 = vmatprep.subr.bf16.mxu0 0
        %1822 = vmatpush1.bf16.msra.mxu0 0
        %1823 = vmatprep.subr.bf16.mxu0 0
        %1824 = vmatpush1.bf16.msra.mxu0 0
        %1825 = vmatprep.subr.bf16.mxu0 0
        %1826 = vmatpush1.bf16.msra.mxu0 0
        %1827 = vmatprep.mubr.bf16.mxu0 0
        %1828 = vmatmul.mubr.bf16.gmra.mrb[0].mxu0 %v1743
        %v1829 = vpop.f32.mrb[0].mxu0
        %v1830 = vadd.f32 %v1737, %v1829
        %v1831 = vpop.f32.mrb[0].mxu0
        %v1832 = vpop.f32.mrb[0].mxu0
        %v1833 = vpop.f32.mrb[0].mxu0
        %1834 = vdwg.mxu0
        %1835 = vrot.lane.b32.xlu0 %v1629, 112
        %v1836 = vpop.permute.xlu0 %1835
        %1837 = vrot.lane.b32.xlu0 %v1637, 126
        %v1838 = vpop.permute.xlu0 %1837
        %1839 = vrot.lane.b32.xlu0 %v1638, 126
        %v1840 = vpop.permute.xlu0 %1839
        %1841 = vrot.lane.b32.xlu0 %v1639, 126
        %v1842 = vpop.permute.xlu0 %1841
        %v1843 = vsel %vm690, %v1838, %v1840
        %v1844 = vsel %vm690, %v1840, %v1842
        %v1846 = vsel %vm1464, %v1836, 0
        %v1849 = vsel %vm1651, %v1843, 0
        %v1852 = vsel %vm1651, %v1844, 0
        %v1855 = vsel %vm1651, %v1842, 0
        %1857 = vmatprep.subr.bf16.mxu0 %v1852
        %1858 = vmatpush1.bf16.msra.mxu0 %v1849
        %1859 = vmatprep.subr.bf16.mxu0 0
        %1860 = vmatpush1.bf16.msra.mxu0 0
        %1861 = vmatprep.subr.bf16.mxu0 0
        %1862 = vmatpush1.bf16.msra.mxu0 0
        %1863 = vmatprep.subr.bf16.mxu0 0
        %1864 = vmatpush1.bf16.msra.mxu0 0
        %1865 = vmatprep.subr.bf16.mxu0 0
        %1866 = vmatpush1.bf16.msra.mxu0 0
        %1867 = vmatprep.subr.bf16.mxu0 0
        %1868 = vmatpush1.bf16.msra.mxu0 0
        %1869 = vmatprep.subr.bf16.mxu0 0
        %1870 = vmatpush1.bf16.msra.mxu0 0
        %1871 = vmatprep.subr.bf16.mxu0 0
        %1872 = vmatpush1.bf16.msra.mxu0 0
        %1873 = vmatprep.subr.bf16.mxu0 0
        %1874 = vmatpush1.bf16.msra.mxu0 0
        %1875 = vmatprep.subr.bf16.mxu0 0
        %1876 = vmatpush1.bf16.msra.mxu0 0
        %1877 = vmatprep.subr.bf16.mxu0 0
        %1878 = vmatpush1.bf16.msra.mxu0 0
        %1879 = vmatprep.subr.bf16.mxu0 0
        %1880 = vmatpush1.bf16.msra.mxu0 0
        %1881 = vmatprep.subr.bf16.mxu0 0
        %1882 = vmatpush1.bf16.msra.mxu0 0
        %1883 = vmatprep.subr.bf16.mxu0 0
        %1884 = vmatpush1.bf16.msra.mxu0 0
        %1885 = vmatprep.subr.bf16.mxu0 0
        %1886 = vmatpush1.bf16.msra.mxu0 0
        %1887 = vmatprep.subr.bf16.mxu0 0
        %1888 = vmatpush1.bf16.msra.mxu0 0
        %1889 = vmatprep.mubr.bf16.mxu0 0
        %1890 = vmatmul.mubr.bf16.gmra.mrb[0].mxu0 %v1846
        %v1891 = vpop.f32.mrb[0].mxu0
        %v1892 = vadd.f32 0.0, %v1891
        %v1893 = vpop.f32.mrb[0].mxu0
        %v1894 = vadd.f32 0.0, %v1893
        %v1895 = vpop.f32.mrb[0].mxu0
        %v1896 = vpop.f32.mrb[0].mxu0
        %1897 = vdwg.mxu0
        %1898 = vmatprep.subr.bf16.mxu0 0
        %1899 = vmatpush1.bf16.msra.mxu0 %v1855
        %1900 = vmatprep.subr.bf16.mxu0 0
        %1901 = vmatpush1.bf16.msra.mxu0 0
        %1902 = vmatprep.subr.bf16.mxu0 0
        %1903 = vmatpush1.bf16.msra.mxu0 0
        %1904 = vmatprep.subr.bf16.mxu0 0
        %1905 = vmatpush1.bf16.msra.mxu0 0
        %1906 = vmatprep.subr.bf16.mxu0 0
        %1907 = vmatpush1.bf16.msra.mxu0 0
        %1908 = vmatprep.subr.bf16.mxu0 0
        %1909 = vmatpush1.bf16.msra.mxu0 0
        %1910 = vmatprep.subr.bf16.mxu0 0
        %1911 = vmatpush1.bf16.msra.mxu0 0
        %1912 = vmatprep.subr.bf16.mxu0 0
        %1913 = vmatpush1.bf16.msra.mxu0 0
        %1914 = vmatprep.subr.bf16.mxu0 0
        %1915 = vmatpush1.bf16.msra.mxu0 0
        %1916 = vmatprep.subr.bf16.mxu0 0
        %1917 = vmatpush1.bf16.msra.mxu0 0
        %1918 = vmatprep.subr.bf16.mxu0 0
        %1919 = vmatpush1.bf16.msra.mxu0 0
        %1920 = vmatprep.subr.bf16.mxu0 0
        %1921 = vmatpush1.bf16.msra.mxu0 0
        %1922 = vmatprep.subr.bf16.mxu0 0
        %1923 = vmatpush1.bf16.msra.mxu0 0
        %1924 = vmatprep.subr.bf16.mxu0 0
        %1925 = vmatpush1.bf16.msra.mxu0 0
        %1926 = vmatprep.subr.bf16.mxu0 0
        %1927 = vmatpush1.bf16.msra.mxu0 0
        %1928 = vmatprep.subr.bf16.mxu0 0
        %1929 = vmatpush1.bf16.msra.mxu0 0
        %1930 = vmatprep.mubr.bf16.mxu0 0
        %1931 = vmatmul.mubr.bf16.gmra.mrb[0].mxu0 %v1846
        %v1932 = vpop.f32.mrb[0].mxu0
        %v1933 = vadd.f32 0.0, %v1932
        %v1934 = vpop.f32.mrb[0].mxu0
        %v1935 = vpop.f32.mrb[0].mxu0
        %v1936 = vpop.f32.mrb[0].mxu0
        %1937 = vdwg.mxu0
        %v1938 = vadd.f32 %v1789, %v1892
        %v1939 = vadd.f32 %v1791, %v1894
        %v1940 = vadd.f32 %v1830, %v1933
        %1941 = vrot.lane.b32.xlu0 %v1629, 104
        %v1942 = vpop.permute.xlu0 %1941
        %1943 = vrot.lane.b32.xlu0 %v1637, 110
        %v1944 = vpop.permute.xlu0 %1943
        %1945 = vrot.lane.b32.xlu0 %v1638, 110
        %v1946 = vpop.permute.xlu0 %1945
        %1947 = vrot.lane.b32.xlu0 %v1639, 110
        %v1948 = vpop.permute.xlu0 %1947
        %v1949 = vsel %vm797, %v1944, %v1946
        %v1950 = vsel %vm797, %v1946, %v1948
        %v1952 = vsel %vm1464, %v1942, 0
        %v1955 = vsel %vm1651, %v1949, 0
        %v1958 = vsel %vm1651, %v1950, 0
        %v1961 = vsel %vm1651, %v1948, 0
        %1963 = vmatprep.subr.bf16.mxu0 %v1958
        %1964 = vmatpush1.bf16.msra.mxu0 %v1955
        %1965 = vmatprep.subr.bf16.mxu0 0
        %1966 = vmatpush1.bf16.msra.mxu0 0
        %1967 = vmatprep.subr.bf16.mxu0 0
        %1968 = vmatpush1.bf16.msra.mxu0 0
        %1969 = vmatprep.subr.bf16.mxu0 0
        %1970 = vmatpush1.bf16.msra.mxu0 0
        %1971 = vmatprep.subr.bf16.mxu0 0
        %1972 = vmatpush1.bf16.msra.mxu0 0
        %1973 = vmatprep.subr.bf16.mxu0 0
        %1974 = vmatpush1.bf16.msra.mxu0 0
        %1975 = vmatprep.subr.bf16.mxu0 0
        %1976 = vmatpush1.bf16.msra.mxu0 0
        %1977 = vmatprep.subr.bf16.mxu0 0
        %1978 = vmatpush1.bf16.msra.mxu0 0
        %1979 = vmatprep.subr.bf16.mxu0 0
        %1980 = vmatpush1.bf16.msra.mxu0 0
        %1981 = vmatprep.subr.bf16.mxu0 0
        %1982 = vmatpush1.bf16.msra.mxu0 0
        %1983 = vmatprep.subr.bf16.mxu0 0
        %1984 = vmatpush1.bf16.msra.mxu0 0
        %1985 = vmatprep.subr.bf16.mxu0 0
        %1986 = vmatpush1.bf16.msra.mxu0 0
        %1987 = vmatprep.subr.bf16.mxu0 0
        %1988 = vmatpush1.bf16.msra.mxu0 0
        %1989 = vmatprep.subr.bf16.mxu0 0
        %1990 = vmatpush1.bf16.msra.mxu0 0
        %1991 = vmatprep.subr.bf16.mxu0 0
        %1992 = vmatpush1.bf16.msra.mxu0 0
        %1993 = vmatprep.subr.bf16.mxu0 0
        %1994 = vmatpush1.bf16.msra.mxu0 0
        %1995 = vmatprep.mubr.bf16.mxu0 0
        %1996 = vmatmul.mubr.bf16.gmra.mrb[0].mxu0 %v1952
        %v1997 = vpop.f32.mrb[0].mxu0
        %v1998 = vadd.f32 0.0, %v1997
        %v1999 = vpop.f32.mrb[0].mxu0
        %v2000 = vadd.f32 0.0, %v1999
        %v2001 = vpop.f32.mrb[0].mxu0
        %v2002 = vpop.f32.mrb[0].mxu0
        %2003 = vdwg.mxu0
        %2004 = vmatprep.subr.bf16.mxu0 0
        %2005 = vmatpush1.bf16.msra.mxu0 %v1961
        %2006 = vmatprep.subr.bf16.mxu0 0
        %2007 = vmatpush1.bf16.msra.mxu0 0
        %2008 = vmatprep.subr.bf16.mxu0 0
        %2009 = vmatpush1.bf16.msra.mxu0 0
        %2010 = vmatprep.subr.bf16.mxu0 0
        %2011 = vmatpush1.bf16.msra.mxu0 0
        %2012 = vmatprep.subr.bf16.mxu0 0
        %2013 = vmatpush1.bf16.msra.mxu0 0
        %2014 = vmatprep.subr.bf16.mxu0 0
        %2015 = vmatpush1.bf16.msra.mxu0 0
        %2016 = vmatprep.subr.bf16.mxu0 0
        %2017 = vmatpush1.bf16.msra.mxu0 0
        %2018 = vmatprep.subr.bf16.mxu0 0
        %2019 = vmatpush1.bf16.msra.mxu0 0
        %2020 = vmatprep.subr.bf16.mxu0 0
        %2021 = vmatpush1.bf16.msra.mxu0 0
        %2022 = vmatprep.subr.bf16.mxu0 0
        %2023 = vmatpush1.bf16.msra.mxu0 0
        %2024 = vmatprep.subr.bf16.mxu0 0
        %2025 = vmatpush1.bf16.msra.mxu0 0
        %2026 = vmatprep.subr.bf16.mxu0 0
        %2027 = vmatpush1.bf16.msra.mxu0 0
        %2028 = vmatprep.subr.bf16.mxu0 0
        %2029 = vmatpush1.bf16.msra.mxu0 0
        %2030 = vmatprep.subr.bf16.mxu0 0
        %2031 = vmatpush1.bf16.msra.mxu0 0
        %2032 = vmatprep.subr.bf16.mxu0 0
        %2033 = vmatpush1.bf16.msra.mxu0 0
        %2034 = vmatprep.subr.bf16.mxu0 0
        %2035 = vmatpush1.bf16.msra.mxu0 0
        %2036 = vmatprep.mubr.bf16.mxu0 0
        %2037 = vmatmul.mubr.bf16.gmra.mrb[0].mxu0 %v1952
        %v2038 = vpop.f32.mrb[0].mxu0
        %v2039 = vadd.f32 0.0, %v2038
        %v2040 = vpop.f32.mrb[0].mxu0
        %v2041 = vpop.f32.mrb[0].mxu0
        %v2042 = vpop.f32.mrb[0].mxu0
        %2043 = vdwg.mxu0
        %v2044 = vadd.f32 %v1938, %v1998
        %v2045 = vadd.f32 %v1939, %v2000
        %v2046 = vadd.f32 %v1940, %v2039
        %2047 = vrot.lane.b32.xlu0 %v1629, 96
        %v2048 = vpop.permute.xlu0 %2047
        %2049 = vrot.lane.b32.xlu0 %v1637, 109
        %v2050 = vpop.permute.xlu0 %2049
        %2051 = vrot.lane.b32.xlu0 %v1638, 109
        %v2052 = vpop.permute.xlu0 %2051
        %2053 = vrot.lane.b32.xlu0 %v1639, 109
        %v2054 = vpop.permute.xlu0 %2053
        %v2055 = vsel %vm904, %v2050, %v2052
        %v2056 = vsel %vm904, %v2052, %v2054
        %v2058 = vsel %vm1464, %v2048, 0
        %v2061 = vsel %vm1651, %v2055, 0
        %v2064 = vsel %vm1651, %v2056, 0
        %v2067 = vsel %vm1651, %v2054, 0
        %2069 = vmatprep.subr.bf16.mxu0 %v2064
        %2070 = vmatpush1.bf16.msra.mxu0 %v2061
        %2071 = vmatprep.subr.bf16.mxu0 0
        %2072 = vmatpush1.bf16.msra.mxu0 0
        %2073 = vmatprep.subr.bf16.mxu0 0
        %2074 = vmatpush1.bf16.msra.mxu0 0
        %2075 = vmatprep.subr.bf16.mxu0 0
        %2076 = vmatpush1.bf16.msra.mxu0 0
        %2077 = vmatprep.subr.bf16.mxu0 0
        %2078 = vmatpush1.bf16.msra.mxu0 0
        %2079 = vmatprep.subr.bf16.mxu0 0
        %2080 = vmatpush1.bf16.msra.mxu0 0
        %2081 = vmatprep.subr.bf16.mxu0 0
        %2082 = vmatpush1.bf16.msra.mxu0 0
        %2083 = vmatprep.subr.bf16.mxu0 0
        %2084 = vmatpush1.bf16.msra.mxu0 0
        %2085 = vmatprep.subr.bf16.mxu0 0
        %2086 = vmatpush1.bf16.msra.mxu0 0
        %2087 = vmatprep.subr.bf16.mxu0 0
        %2088 = vmatpush1.bf16.msra.mxu0 0
        %2089 = vmatprep.subr.bf16.mxu0 0
        %2090 = vmatpush1.bf16.msra.mxu0 0
        %2091 = vmatprep.subr.bf16.mxu0 0
        %2092 = vmatpush1.bf16.msra.mxu0 0
        %2093 = vmatprep.subr.bf16.mxu0 0
        %2094 = vmatpush1.bf16.msra.mxu0 0
        %2095 = vmatprep.subr.bf16.mxu0 0
        %2096 = vmatpush1.bf16.msra.mxu0 0
        %2097 = vmatprep.subr.bf16.mxu0 0
        %2098 = vmatpush1.bf16.msra.mxu0 0
        %2099 = vmatprep.subr.bf16.mxu0 0
        %2100 = vmatpush1.bf16.msra.mxu0 0
        %2101 = vmatprep.mubr.bf16.mxu0 0
        %2102 = vmatmul.mubr.bf16.gmra.mrb[0].mxu0 %v2058
        %v2103 = vpop.f32.mrb[0].mxu0
        %v2104 = vadd.f32 0.0, %v2103
        %v2105 = vpop.f32.mrb[0].mxu0
        %v2106 = vadd.f32 0.0, %v2105
        %v2107 = vpop.f32.mrb[0].mxu0
        %v2108 = vpop.f32.mrb[0].mxu0
        %2109 = vdwg.mxu0
        %2110 = vmatprep.subr.bf16.mxu0 0
        %2111 = vmatpush1.bf16.msra.mxu0 %v2067
        %2112 = vmatprep.subr.bf16.mxu0 0
        %2113 = vmatpush1.bf16.msra.mxu0 0
        %2114 = vmatprep.subr.bf16.mxu0 0
        %2115 = vmatpush1.bf16.msra.mxu0 0
        %2116 = vmatprep.subr.bf16.mxu0 0
        %2117 = vmatpush1.bf16.msra.mxu0 0
        %2118 = vmatprep.subr.bf16.mxu0 0
        %2119 = vmatpush1.bf16.msra.mxu0 0
        %2120 = vmatprep.subr.bf16.mxu0 0
        %2121 = vmatpush1.bf16.msra.mxu0 0
        %2122 = vmatprep.subr.bf16.mxu0 0
        %2123 = vmatpush1.bf16.msra.mxu0 0
        %2124 = vmatprep.subr.bf16.mxu0 0
        %2125 = vmatpush1.bf16.msra.mxu0 0
        %2126 = vmatprep.subr.bf16.mxu0 0
        %2127 = vmatpush1.bf16.msra.mxu0 0
        %2128 = vmatprep.subr.bf16.mxu0 0
        %2129 = vmatpush1.bf16.msra.mxu0 0
        %2130 = vmatprep.subr.bf16.mxu0 0
        %2131 = vmatpush1.bf16.msra.mxu0 0
        %2132 = vmatprep.subr.bf16.mxu0 0
        %2133 = vmatpush1.bf16.msra.mxu0 0
        %2134 = vmatprep.subr.bf16.mxu0 0
        %2135 = vmatpush1.bf16.msra.mxu0 0
        %2136 = vmatprep.subr.bf16.mxu0 0
        %2137 = vmatpush1.bf16.msra.mxu0 0
        %2138 = vmatprep.subr.bf16.mxu0 0
        %2139 = vmatpush1.bf16.msra.mxu0 0
        %2140 = vmatprep.subr.bf16.mxu0 0
        %2141 = vmatpush1.bf16.msra.mxu0 0
        %2142 = vmatprep.mubr.bf16.mxu0 0
        %2143 = vmatmul.mubr.bf16.gmra.mrb[0].mxu0 %v2058
        %v2144 = vpop.f32.mrb[0].mxu0
        %v2145 = vadd.f32 0.0, %v2144
        %v2146 = vpop.f32.mrb[0].mxu0
        %v2147 = vpop.f32.mrb[0].mxu0
        %v2148 = vpop.f32.mrb[0].mxu0
        %2149 = vdwg.mxu0
        %v2150 = vadd.f32 %v2044, %v2104
        %v2151 = vadd.f32 %v2045, %v2106
        %v2152 = vadd.f32 %v2046, %v2145
        %2153 = vrot.lane.b32.xlu0 %v1629, 88
        %v2154 = vpop.permute.xlu0 %2153
        %2155 = vrot.lane.b32.xlu0 %v1637, 108
        %v2156 = vpop.permute.xlu0 %2155
        %2157 = vrot.lane.b32.xlu0 %v1638, 108
        %v2158 = vpop.permute.xlu0 %2157
        %2159 = vrot.lane.b32.xlu0 %v1639, 108
        %v2160 = vpop.permute.xlu0 %2159
        %v2161 = vsel %vm1011, %v2156, %v2158
        %v2162 = vsel %vm1011, %v2158, %v2160
        %v2164 = vsel %vm1464, %v2154, 0
        %v2167 = vsel %vm1651, %v2161, 0
        %v2170 = vsel %vm1651, %v2162, 0
        %v2173 = vsel %vm1651, %v2160, 0
        %2175 = vmatprep.subr.bf16.mxu0 %v2170
        %2176 = vmatpush1.bf16.msra.mxu0 %v2167
        %2177 = vmatprep.subr.bf16.mxu0 0
        %2178 = vmatpush1.bf16.msra.mxu0 0
        %2179 = vmatprep.subr.bf16.mxu0 0
        %2180 = vmatpush1.bf16.msra.mxu0 0
        %2181 = vmatprep.subr.bf16.mxu0 0
        %2182 = vmatpush1.bf16.msra.mxu0 0
        %2183 = vmatprep.subr.bf16.mxu0 0
        %2184 = vmatpush1.bf16.msra.mxu0 0
        %2185 = vmatprep.subr.bf16.mxu0 0
        %2186 = vmatpush1.bf16.msra.mxu0 0
        %2187 = vmatprep.subr.bf16.mxu0 0
        %2188 = vmatpush1.bf16.msra.mxu0 0
        %2189 = vmatprep.subr.bf16.mxu0 0
        %2190 = vmatpush1.bf16.msra.mxu0 0
        %2191 = vmatprep.subr.bf16.mxu0 0
        %2192 = vmatpush1.bf16.msra.mxu0 0
        %2193 = vmatprep.subr.bf16.mxu0 0
        %2194 = vmatpush1.bf16.msra.mxu0 0
        %2195 = vmatprep.subr.bf16.mxu0 0
        %2196 = vmatpush1.bf16.msra.mxu0 0
        %2197 = vmatprep.subr.bf16.mxu0 0
        %2198 = vmatpush1.bf16.msra.mxu0 0
        %2199 = vmatprep.subr.bf16.mxu0 0
        %2200 = vmatpush1.bf16.msra.mxu0 0
        %2201 = vmatprep.subr.bf16.mxu0 0
        %2202 = vmatpush1.bf16.msra.mxu0 0
        %2203 = vmatprep.subr.bf16.mxu0 0
        %2204 = vmatpush1.bf16.msra.mxu0 0
        %2205 = vmatprep.subr.bf16.mxu0 0
        %2206 = vmatpush1.bf16.msra.mxu0 0
        %2207 = vmatprep.mubr.bf16.mxu0 0
        %2208 = vmatmul.mubr.bf16.gmra.mrb[0].mxu0 %v2164
        %v2209 = vpop.f32.mrb[0].mxu0
        %v2210 = vadd.f32 0.0, %v2209
        %v2211 = vpop.f32.mrb[0].mxu0
        %v2212 = vadd.f32 0.0, %v2211
        %v2213 = vpop.f32.mrb[0].mxu0
        %v2214 = vpop.f32.mrb[0].mxu0
        %2215 = vdwg.mxu0
        %2216 = vmatprep.subr.bf16.mxu0 0
        %2217 = vmatpush1.bf16.msra.mxu0 %v2173
        %2218 = vmatprep.subr.bf16.mxu0 0
        %2219 = vmatpush1.bf16.msra.mxu0 0
        %2220 = vmatprep.subr.bf16.mxu0 0
        %2221 = vmatpush1.bf16.msra.mxu0 0
        %2222 = vmatprep.subr.bf16.mxu0 0
        %2223 = vmatpush1.bf16.msra.mxu0 0
        %2224 = vmatprep.subr.bf16.mxu0 0
        %2225 = vmatpush1.bf16.msra.mxu0 0
        %2226 = vmatprep.subr.bf16.mxu0 0
        %2227 = vmatpush1.bf16.msra.mxu0 0
        %2228 = vmatprep.subr.bf16.mxu0 0
        %2229 = vmatpush1.bf16.msra.mxu0 0
        %2230 = vmatprep.subr.bf16.mxu0 0
        %2231 = vmatpush1.bf16.msra.mxu0 0
        %2232 = vmatprep.subr.bf16.mxu0 0
        %2233 = vmatpush1.bf16.msra.mxu0 0
        %2234 = vmatprep.subr.bf16.mxu0 0
        %2235 = vmatpush1.bf16.msra.mxu0 0
        %2236 = vmatprep.subr.bf16.mxu0 0
        %2237 = vmatpush1.bf16.msra.mxu0 0
        %2238 = vmatprep.subr.bf16.mxu0 0
        %2239 = vmatpush1.bf16.msra.mxu0 0
        %2240 = vmatprep.subr.bf16.mxu0 0
        %2241 = vmatpush1.bf16.msra.mxu0 0
        %2242 = vmatprep.subr.bf16.mxu0 0
        %2243 = vmatpush1.bf16.msra.mxu0 0
        %2244 = vmatprep.subr.bf16.mxu0 0
        %2245 = vmatpush1.bf16.msra.mxu0 0
        %2246 = vmatprep.subr.bf16.mxu0 0
        %2247 = vmatpush1.bf16.msra.mxu0 0
        %2248 = vmatprep.mubr.bf16.mxu0 0
        %2249 = vmatmul.mubr.bf16.gmra.mrb[0].mxu0 %v2164
        %v2250 = vpop.f32.mrb[0].mxu0
        %v2251 = vadd.f32 0.0, %v2250
        %v2252 = vpop.f32.mrb[0].mxu0
        %v2253 = vpop.f32.mrb[0].mxu0
        %v2254 = vpop.f32.mrb[0].mxu0
        %2255 = vdwg.mxu0
        %v2256 = vadd.f32 %v2150, %v2210
        %v2257 = vadd.f32 %v2151, %v2212
        %v2258 = vadd.f32 %v2152, %v2251
        %2259 = vrot.lane.b32.xlu0 %v1629, 80
        %v2260 = vpop.permute.xlu0 %2259
        %2261 = vrot.lane.b32.xlu0 %v1637, 92
        %v2262 = vpop.permute.xlu0 %2261
        %2263 = vrot.lane.b32.xlu0 %v1638, 92
        %v2264 = vpop.permute.xlu0 %2263
        %2265 = vrot.lane.b32.xlu0 %v1639, 92
        %v2266 = vpop.permute.xlu0 %2265
        %v2267 = vsel %vm1118, %v2262, %v2264
        %v2268 = vsel %vm1118, %v2264, %v2266
        %v2270 = vsel %vm1464, %v2260, 0
        %v2273 = vsel %vm1651, %v2267, 0
        %v2276 = vsel %vm1651, %v2268, 0
        %v2279 = vsel %vm1651, %v2266, 0
        %2281 = vmatprep.subr.bf16.mxu0 %v2276
        %2282 = vmatpush1.bf16.msra.mxu0 %v2273
        %2283 = vmatprep.subr.bf16.mxu0 0
        %2284 = vmatpush1.bf16.msra.mxu0 0
        %2285 = vmatprep.subr.bf16.mxu0 0
        %2286 = vmatpush1.bf16.msra.mxu0 0
        %2287 = vmatprep.subr.bf16.mxu0 0
        %2288 = vmatpush1.bf16.msra.mxu0 0
        %2289 = vmatprep.subr.bf16.mxu0 0
        %2290 = vmatpush1.bf16.msra.mxu0 0
        %2291 = vmatprep.subr.bf16.mxu0 0
        %2292 = vmatpush1.bf16.msra.mxu0 0
        %2293 = vmatprep.subr.bf16.mxu0 0
        %2294 = vmatpush1.bf16.msra.mxu0 0
        %2295 = vmatprep.subr.bf16.mxu0 0
        %2296 = vmatpush1.bf16.msra.mxu0 0
        %2297 = vmatprep.subr.bf16.mxu0 0
        %2298 = vmatpush1.bf16.msra.mxu0 0
        %2299 = vmatprep.subr.bf16.mxu0 0
        %2300 = vmatpush1.bf16.msra.mxu0 0
        %2301 = vmatprep.subr.bf16.mxu0 0
        %2302 = vmatpush1.bf16.msra.mxu0 0
        %2303 = vmatprep.subr.bf16.mxu0 0
        %2304 = vmatpush1.bf16.msra.mxu0 0
        %2305 = vmatprep.subr.bf16.mxu0 0
        %2306 = vmatpush1.bf16.msra.mxu0 0
        %2307 = vmatprep.subr.bf16.mxu0 0
        %2308 = vmatpush1.bf16.msra.mxu0 0
        %2309 = vmatprep.subr.bf16.mxu0 0
        %2310 = vmatpush1.bf16.msra.mxu0 0
        %2311 = vmatprep.subr.bf16.mxu0 0
        %2312 = vmatpush1.bf16.msra.mxu0 0
        %2313 = vmatprep.mubr.bf16.mxu0 0
        %2314 = vmatmul.mubr.bf16.gmra.mrb[0].mxu0 %v2270
        %v2315 = vpop.f32.mrb[0].mxu0
        %v2316 = vadd.f32 0.0, %v2315
        %v2317 = vpop.f32.mrb[0].mxu0
        %v2318 = vadd.f32 0.0, %v2317
        %v2319 = vpop.f32.mrb[0].mxu0
        %v2320 = vpop.f32.mrb[0].mxu0
        %2321 = vdwg.mxu0
        %2322 = vmatprep.subr.bf16.mxu0 0
        %2323 = vmatpush1.bf16.msra.mxu0 %v2279
        %2324 = vmatprep.subr.bf16.mxu0 0
        %2325 = vmatpush1.bf16.msra.mxu0 0
        %2326 = vmatprep.subr.bf16.mxu0 0
        %2327 = vmatpush1.bf16.msra.mxu0 0
        %2328 = vmatprep.subr.bf16.mxu0 0
        %2329 = vmatpush1.bf16.msra.mxu0 0
        %2330 = vmatprep.subr.bf16.mxu0 0
        %2331 = vmatpush1.bf16.msra.mxu0 0
        %2332 = vmatprep.subr.bf16.mxu0 0
        %2333 = vmatpush1.bf16.msra.mxu0 0
        %2334 = vmatprep.subr.bf16.mxu0 0
        %2335 = vmatpush1.bf16.msra.mxu0 0
        %2336 = vmatprep.subr.bf16.mxu0 0
        %2337 = vmatpush1.bf16.msra.mxu0 0
        %2338 = vmatprep.subr.bf16.mxu0 0
        %2339 = vmatpush1.bf16.msra.mxu0 0
        %2340 = vmatprep.subr.bf16.mxu0 0
        %2341 = vmatpush1.bf16.msra.mxu0 0
        %2342 = vmatprep.subr.bf16.mxu0 0
        %2343 = vmatpush1.bf16.msra.mxu0 0
        %2344 = vmatprep.subr.bf16.mxu0 0
        %2345 = vmatpush1.bf16.msra.mxu0 0
        %2346 = vmatprep.subr.bf16.mxu0 0
        %2347 = vmatpush1.bf16.msra.mxu0 0
        %2348 = vmatprep.subr.bf16.mxu0 0
        %2349 = vmatpush1.bf16.msra.mxu0 0
        %2350 = vmatprep.subr.bf16.mxu0 0
        %2351 = vmatpush1.bf16.msra.mxu0 0
        %2352 = vmatprep.subr.bf16.mxu0 0
        %2353 = vmatpush1.bf16.msra.mxu0 0
        %2354 = vmatprep.mubr.bf16.mxu0 0
        %2355 = vmatmul.mubr.bf16.gmra.mrb[0].mxu0 %v2270
        %v2356 = vpop.f32.mrb[0].mxu0
        %v2357 = vadd.f32 0.0, %v2356
        %v2358 = vpop.f32.mrb[0].mxu0
        %v2359 = vpop.f32.mrb[0].mxu0
        %v2360 = vpop.f32.mrb[0].mxu0
        %2361 = vdwg.mxu0
        %v2362 = vadd.f32 %v2256, %v2316
        %v2363 = vadd.f32 %v2257, %v2318
        %v2364 = vadd.f32 %v2258, %v2357
        %2365 = vrot.lane.b32.xlu0 %v1629, 72
        %v2366 = vpop.permute.xlu0 %2365
        %2367 = vrot.lane.b32.xlu0 %v1637, 91
        %v2368 = vpop.permute.xlu0 %2367
        %2369 = vrot.lane.b32.xlu0 %v1638, 91
        %v2370 = vpop.permute.xlu0 %2369
        %2371 = vrot.lane.b32.xlu0 %v1639, 91
        %v2372 = vpop.permute.xlu0 %2371
        %v2373 = vsel %vm1225, %v2368, %v2370
        %v2374 = vsel %vm1225, %v2370, %v2372
        %v2376 = vsel %vm1464, %v2366, 0
        %v2379 = vsel %vm1651, %v2373, 0
        %v2382 = vsel %vm1651, %v2374, 0
        %v2385 = vsel %vm1651, %v2372, 0
        %2387 = vmatprep.subr.bf16.mxu0 %v2382
        %2388 = vmatpush1.bf16.msra.mxu0 %v2379
        %2389 = vmatprep.subr.bf16.mxu0 0
        %2390 = vmatpush1.bf16.msra.mxu0 0
        %2391 = vmatprep.subr.bf16.mxu0 0
        %2392 = vmatpush1.bf16.msra.mxu0 0
        %2393 = vmatprep.subr.bf16.mxu0 0
        %2394 = vmatpush1.bf16.msra.mxu0 0
        %2395 = vmatprep.subr.bf16.mxu0 0
        %2396 = vmatpush1.bf16.msra.mxu0 0
        %2397 = vmatprep.subr.bf16.mxu0 0
        %2398 = vmatpush1.bf16.msra.mxu0 0
        %2399 = vmatprep.subr.bf16.mxu0 0
        %2400 = vmatpush1.bf16.msra.mxu0 0
        %2401 = vmatprep.subr.bf16.mxu0 0
        %2402 = vmatpush1.bf16.msra.mxu0 0
        %2403 = vmatprep.subr.bf16.mxu0 0
        %2404 = vmatpush1.bf16.msra.mxu0 0
        %2405 = vmatprep.subr.bf16.mxu0 0
        %2406 = vmatpush1.bf16.msra.mxu0 0
        %2407 = vmatprep.subr.bf16.mxu0 0
        %2408 = vmatpush1.bf16.msra.mxu0 0
        %2409 = vmatprep.subr.bf16.mxu0 0
        %2410 = vmatpush1.bf16.msra.mxu0 0
        %2411 = vmatprep.subr.bf16.mxu0 0
        %2412 = vmatpush1.bf16.msra.mxu0 0
        %2413 = vmatprep.subr.bf16.mxu0 0
        %2414 = vmatpush1.bf16.msra.mxu0 0
        %2415 = vmatprep.subr.bf16.mxu0 0
        %2416 = vmatpush1.bf16.msra.mxu0 0
        %2417 = vmatprep.subr.bf16.mxu0 0
        %2418 = vmatpush1.bf16.msra.mxu0 0
        %2419 = vmatprep.mubr.bf16.mxu0 0
        %2420 = vmatmul.mubr.bf16.gmra.mrb[0].mxu0 %v2376
        %v2421 = vpop.f32.mrb[0].mxu0
        %v2422 = vadd.f32 0.0, %v2421
        %v2423 = vpop.f32.mrb[0].mxu0
        %v2424 = vadd.f32 0.0, %v2423
        %v2425 = vpop.f32.mrb[0].mxu0
        %v2426 = vpop.f32.mrb[0].mxu0
        %2427 = vdwg.mxu0
        %2428 = vmatprep.subr.bf16.mxu0 0
        %2429 = vmatpush1.bf16.msra.mxu0 %v2385
        %2430 = vmatprep.subr.bf16.mxu0 0
        %2431 = vmatpush1.bf16.msra.mxu0 0
        %2432 = vmatprep.subr.bf16.mxu0 0
        %2433 = vmatpush1.bf16.msra.mxu0 0
        %2434 = vmatprep.subr.bf16.mxu0 0
        %2435 = vmatpush1.bf16.msra.mxu0 0
        %2436 = vmatprep.subr.bf16.mxu0 0
        %2437 = vmatpush1.bf16.msra.mxu0 0
        %2438 = vmatprep.subr.bf16.mxu0 0
        %2439 = vmatpush1.bf16.msra.mxu0 0
        %2440 = vmatprep.subr.bf16.mxu0 0
        %2441 = vmatpush1.bf16.msra.mxu0 0
        %2442 = vmatprep.subr.bf16.mxu0 0
        %2443 = vmatpush1.bf16.msra.mxu0 0
        %2444 = vmatprep.subr.bf16.mxu0 0
        %2445 = vmatpush1.bf16.msra.mxu0 0
        %2446 = vmatprep.subr.bf16.mxu0 0
        %2447 = vmatpush1.bf16.msra.mxu0 0
        %2448 = vmatprep.subr.bf16.mxu0 0
        %2449 = vmatpush1.bf16.msra.mxu0 0
        %2450 = vmatprep.subr.bf16.mxu0 0
        %2451 = vmatpush1.bf16.msra.mxu0 0
        %2452 = vmatprep.subr.bf16.mxu0 0
        %2453 = vmatpush1.bf16.msra.mxu0 0
        %2454 = vmatprep.subr.bf16.mxu0 0
        %2455 = vmatpush1.bf16.msra.mxu0 0
        %2456 = vmatprep.subr.bf16.mxu0 0
        %2457 = vmatpush1.bf16.msra.mxu0 0
        %2458 = vmatprep.subr.bf16.mxu0 0
        %2459 = vmatpush1.bf16.msra.mxu0 0
        %2460 = vmatprep.mubr.bf16.mxu0 0
        %2461 = vmatmul.mubr.bf16.gmra.mrb[0].mxu0 %v2376
        %v2462 = vpop.f32.mrb[0].mxu0
        %v2463 = vadd.f32 0.0, %v2462
        %v2464 = vpop.f32.mrb[0].mxu0
        %v2465 = vpop.f32.mrb[0].mxu0
        %v2466 = vpop.f32.mrb[0].mxu0
        %2467 = vdwg.mxu0
        %v2468 = vadd.f32 %v2362, %v2422
        %v2469 = vadd.f32 %v2363, %v2424
        %v2470 = vadd.f32 %v2364, %v2463
        %2471 = vrot.lane.b32.xlu0 %v1629, 64
        %v2472 = vpop.permute.xlu0 %2471
        %2473 = vrot.lane.b32.xlu0 %v1637, 90
        %v2474 = vpop.permute.xlu0 %2473
        %2475 = vrot.lane.b32.xlu0 %v1638, 90
        %v2476 = vpop.permute.xlu0 %2475
        %2477 = vrot.lane.b32.xlu0 %v1639, 90
        %v2478 = vpop.permute.xlu0 %2477
        %v2479 = vsel %vm1332, %v2474, %v2476
        %v2480 = vsel %vm1332, %v2476, %v2478
        %v2482 = vsel %vm1464, %v2472, 0
        %v2485 = vsel %vm1651, %v2479, 0
        %v2488 = vsel %vm1651, %v2480, 0
        %v2491 = vsel %vm1651, %v2478, 0
        %2493 = vmatprep.subr.bf16.mxu0 %v2488
        %2494 = vmatpush1.bf16.msra.mxu0 %v2485
        %2495 = vmatprep.subr.bf16.mxu0 0
        %2496 = vmatpush1.bf16.msra.mxu0 0
        %2497 = vmatprep.subr.bf16.mxu0 0
        %2498 = vmatpush1.bf16.msra.mxu0 0
        %2499 = vmatprep.subr.bf16.mxu0 0
        %2500 = vmatpush1.bf16.msra.mxu0 0
        %2501 = vmatprep.subr.bf16.mxu0 0
        %2502 = vmatpush1.bf16.msra.mxu0 0
        %2503 = vmatprep.subr.bf16.mxu0 0
        %2504 = vmatpush1.bf16.msra.mxu0 0
        %2505 = vmatprep.subr.bf16.mxu0 0
        %2506 = vmatpush1.bf16.msra.mxu0 0
        %2507 = vmatprep.subr.bf16.mxu0 0
        %2508 = vmatpush1.bf16.msra.mxu0 0
        %2509 = vmatprep.subr.bf16.mxu0 0
        %2510 = vmatpush1.bf16.msra.mxu0 0
        %2511 = vmatprep.subr.bf16.mxu0 0
        %2512 = vmatpush1.bf16.msra.mxu0 0
        %2513 = vmatprep.subr.bf16.mxu0 0
        %2514 = vmatpush1.bf16.msra.mxu0 0
        %2515 = vmatprep.subr.bf16.mxu0 0
        %2516 = vmatpush1.bf16.msra.mxu0 0
        %2517 = vmatprep.subr.bf16.mxu0 0
        %2518 = vmatpush1.bf16.msra.mxu0 0
        %2519 = vmatprep.subr.bf16.mxu0 0
        %2520 = vmatpush1.bf16.msra.mxu0 0
        %2521 = vmatprep.subr.bf16.mxu0 0
        %2522 = vmatpush1.bf16.msra.mxu0 0
        %2523 = vmatprep.subr.bf16.mxu0 0
        %2524 = vmatpush1.bf16.msra.mxu0 0
        %2525 = vmatprep.mubr.bf16.mxu0 0
        %2526 = vmatmul.mubr.bf16.gmra.mrb[0].mxu0 %v2482
        %v2527 = vpop.f32.mrb[0].mxu0
        %v2528 = vadd.f32 0.0, %v2527
        %v2529 = vpop.f32.mrb[0].mxu0
        %v2530 = vadd.f32 0.0, %v2529
        %v2531 = vpop.f32.mrb[0].mxu0
        %v2532 = vpop.f32.mrb[0].mxu0
        %2533 = vdwg.mxu0
        %2534 = vmatprep.subr.bf16.mxu0 0
        %2535 = vmatpush1.bf16.msra.mxu0 %v2491
        %2536 = vmatprep.subr.bf16.mxu0 0
        %2537 = vmatpush1.bf16.msra.mxu0 0
        %2538 = vmatprep.subr.bf16.mxu0 0
        %2539 = vmatpush1.bf16.msra.mxu0 0
        %2540 = vmatprep.subr.bf16.mxu0 0
        %2541 = vmatpush1.bf16.msra.mxu0 0
        %2542 = vmatprep.subr.bf16.mxu0 0
        %2543 = vmatpush1.bf16.msra.mxu0 0
        %2544 = vmatprep.subr.bf16.mxu0 0
        %2545 = vmatpush1.bf16.msra.mxu0 0
        %2546 = vmatprep.subr.bf16.mxu0 0
        %2547 = vmatpush1.bf16.msra.mxu0 0
        %2548 = vmatprep.subr.bf16.mxu0 0
        %2549 = vmatpush1.bf16.msra.mxu0 0
        %2550 = vmatprep.subr.bf16.mxu0 0
        %2551 = vmatpush1.bf16.msra.mxu0 0
        %2552 = vmatprep.subr.bf16.mxu0 0
        %2553 = vmatpush1.bf16.msra.mxu0 0
        %2554 = vmatprep.subr.bf16.mxu0 0
        %2555 = vmatpush1.bf16.msra.mxu0 0
        %2556 = vmatprep.subr.bf16.mxu0 0
        %2557 = vmatpush1.bf16.msra.mxu0 0
        %2558 = vmatprep.subr.bf16.mxu0 0
        %2559 = vmatpush1.bf16.msra.mxu0 0
        %2560 = vmatprep.subr.bf16.mxu0 0
        %2561 = vmatpush1.bf16.msra.mxu0 0
        %2562 = vmatprep.subr.bf16.mxu0 0
        %2563 = vmatpush1.bf16.msra.mxu0 0
        %2564 = vmatprep.subr.bf16.mxu0 0
        %2565 = vmatpush1.bf16.msra.mxu0 0
        %2566 = vmatprep.mubr.bf16.mxu0 0
        %2567 = vmatmul.mubr.bf16.gmra.mrb[0].mxu0 %v2482
        %v2568 = vpop.f32.mrb[0].mxu0
        %v2569 = vadd.f32 0.0, %v2568
        %v2570 = vpop.f32.mrb[0].mxu0
        %v2571 = vpop.f32.mrb[0].mxu0
        %v2572 = vpop.f32.mrb[0].mxu0
        %2573 = vdwg.mxu0
        %v2574 = vadd.f32 %v2468, %v2528
        %v2575 = vadd.f32 %v2469, %v2530
        %v2576 = vadd.f32 %v2470, %v2569
        %v2577 = vld [vmem:[#allocation12] sm:$0xff]
        %v2578 = vmul.f32 %v2574, %v429
        %v2579 = vmul.f32 %v2575, %v430
        %v2580 = vmul.f32 %v2576, %v431
        %v2581 = vadd.f32 %v2578, %v2579
        %v2582 = vsel %vm1436, %v2580, 0.0
        %v2583 = vadd.f32 %v2581, %v2582
        %2584 = vadd.xlane.f32.xlu0 %v2583
        %v2585 = vpop.xlane.xlu0 %2584
        %v2586 = vmul.f32 %v2578, %v2574
        %v2587 = vmul.f32 %v2579, %v2575
        %v2588 = vmul.f32 %v2580, %v2576
        %v2589 = vadd.f32 %v2586, %v2587
        %v2590 = vsel %vm1436, %v2588, 0.0
        %v2591 = vadd.f32 %v2589, %v2590
        %2592 = vadd.xlane.f32.xlu0 %v2591
        %v2593 = vpop.xlane.xlu0 %2592
        %v2594 = vmul.f32 %v2577, 2.0
        %v2595 = vmul.f32 %v2594, %v2585
        %v2596 = vadd.f32 %v2593, %v2595
        %v2597 = vmul.f32 %v2577, %v2577
        %v2598 = vmul.f32 %v2597, 256.0
        %v2599 = vadd.f32 %v2596, %v2598
        %v2600 = vmul.f32 %v2577, 256.0
        %v2601 = vadd.f32 %v2585, %v2600
        %2603 = vrot.lane.b32.xlu0 %v2601, 125
        %v2604 = vpop.permute.xlu0 %2603
        %2607 = vrot.lane.b32.xlu0 %v2599, 126
        %v2608 = vpop.permute.xlu0 %2607
        %v2610 = vsel %vm1461, %v2604, %v2608
        %v2611 = vld [vmem:[#allocation14] sm:$0xff]
        %v2613 = vsel %vm1464, %v2611, 0
        %2615 = vmatprep.subr.mxu0 0.0
        %2616 = vmatpush1.msra.mxu0 %v2610
        %2617 = vmatprep.subr.mxu0 0.0
        %2618 = vmatpush1.msra.mxu0 0.0
        %2619 = vmatprep.subr.mxu0 0.0
        %2620 = vmatpush1.msra.mxu0 0.0
        %2621 = vmatprep.subr.mxu0 0.0
        %2622 = vmatpush1.msra.mxu0 0.0
        %2623 = vmatprep.subr.mxu0 0.0
        %2624 = vmatpush1.msra.mxu0 0.0
        %2625 = vmatprep.subr.mxu0 0.0
        %2626 = vmatpush1.msra.mxu0 0.0
        %2627 = vmatprep.subr.mxu0 0.0
        %2628 = vmatpush1.msra.mxu0 0.0
        %2629 = vmatprep.subr.mxu0 0.0
        %2630 = vmatpush1.msra.mxu0 0.0
        %2631 = vmatprep.subr.mxu0 0.0
        %2632 = vmatpush1.msra.mxu0 0.0
        %2633 = vmatprep.subr.mxu0 0.0
        %2634 = vmatpush1.msra.mxu0 0.0
        %2635 = vmatprep.subr.mxu0 0.0
        %2636 = vmatpush1.msra.mxu0 0.0
        %2637 = vmatprep.subr.mxu0 0.0
        %2638 = vmatpush1.msra.mxu0 0.0
        %2639 = vmatprep.subr.mxu0 0.0
        %2640 = vmatpush1.msra.mxu0 0.0
        %2641 = vmatprep.subr.mxu0 0.0
        %2642 = vmatpush1.msra.mxu0 0.0
        %2643 = vmatprep.subr.mxu0 0.0
        %2644 = vmatpush1.msra.mxu0 0.0
        %2645 = vmatprep.subr.mxu0 0.0
        %2646 = vmatpush1.msra.mxu0 0.0
        %2647 = vmatprep.subr.mxu0 0.0
        %2648 = vmatpush1.msra.mxu0 0.0
        %2649 = vmatprep.subr.mxu0 0.0
        %2650 = vmatpush1.msra.mxu0 0.0
        %2651 = vmatprep.subr.mxu0 0.0
        %2652 = vmatpush1.msra.mxu0 0.0
        %2653 = vmatprep.subr.mxu0 0.0
        %2654 = vmatpush1.msra.mxu0 0.0
        %2655 = vmatprep.subr.mxu0 0.0
        %2656 = vmatpush1.msra.mxu0 0.0
        %2657 = vmatprep.subr.mxu0 0.0
        %2658 = vmatpush1.msra.mxu0 0.0
        %2659 = vmatprep.subr.mxu0 0.0
        %2660 = vmatpush1.msra.mxu0 0.0
        %2661 = vmatprep.subr.mxu0 0.0
        %2662 = vmatpush1.msra.mxu0 0.0
        %2663 = vmatprep.subr.mxu0 0.0
        %2664 = vmatpush1.msra.mxu0 0.0
        %2665 = vmatprep.subr.mxu0 0.0
        %2666 = vmatpush1.msra.mxu0 0.0
        %2667 = vmatprep.subr.mxu0 0.0
        %2668 = vmatpush1.msra.mxu0 0.0
        %2669 = vmatprep.subr.mxu0 0.0
        %2670 = vmatpush1.msra.mxu0 0.0
        %2671 = vmatprep.subr.mxu0 0.0
        %2672 = vmatpush1.msra.mxu0 0.0
        %2673 = vmatprep.subr.mxu0 0.0
        %2674 = vmatpush1.msra.mxu0 0.0
        %2675 = vmatprep.subr.mxu0 0.0
        %2676 = vmatpush1.msra.mxu0 0.0
        %2677 = vmatprep.subr.mxu0 0.0
        %2678 = vmatpush1.msra.mxu0 0.0
        %2679 = vmatprep.mubr.f32.mxu0 0.0
        %2680 = vmatmul.mubr.f32.gmra.mrb[0].mxu0 %v2613
        %v2681 = vpop.f32.mrb[0].mxu0
        %v2682 = vadd.f32 0.0, %v2681
        %v2683 = vpop.f32.mrb[0].mxu0
        %2684 = vdwg.mxu0
        %v2685 = vmul.f32 %v2682, 0.001953125
        %v2686 = vmul.f32 %v2685, %v2685
        %2688 = vrot.lane.b32.xlu0 %v2686, 1
        %v2689 = vpop.permute.xlu0 %2688
        %v2691 = vsub.f32 %v2685, %v2689
        %v2692 = vadd.f32 %v2691, 1e-05
        %v2693 = vrsqrt.pop %v2692
        %2695 = vrot.lane.b32.xlu0 %v2693, 3
        %v2696 = vpop.permute.xlu0 %2695
        %v2698 = vmul.f32 %v2577, %v2696
        %2700 = vrot.lane.b32.xlu0 %v2685, 3
        %v2701 = vpop.permute.xlu0 %2700
        %v2703 = vsub.f32 %v2577, %v2701
        %2705 = vrot.lane.b32.xlu0 %v2698, 127
        %v2706 = vpop.permute.xlu0 %2705
        %v2708 = vmul.f32 %v2703, %v2706
        %2710 = vrot.lane.b32.xlu0 %v2708, 2
        %v2711 = vpop.permute.xlu0 %2710
        %v2713 = vadd.f32 %v2577, %v2711
        %2714 = vset.pattern.permute.xlu0 4
        %2715 = vperm.xlu0 %2714, %v2698
        %v2716 = vpop.permute.xlu0 %2715
        %v2718 = vmul.f32 %v2574, %v2716
        %v2719 = vmul.f32 %v2575, %v2716
        %v2720 = vmul.f32 %v2576, %v2716
        %2722 = vset.pattern.permute.xlu0 5
        %2723 = vperm.xlu0 %2722, %v2713
        %v2724 = vpop.permute.xlu0 %2723
        %v2726 = vadd.f32 %v2718, %v2724
        %v2727 = vadd.f32 %v2719, %v2724
        %v2728 = vadd.f32 %v2720, %v2724
        %v2729 = vxor.u32 %v2726, 2147483648
        %v2730 = vxor.u32 %v2727, 2147483648
        %v2731 = vxor.u32 %v2728, 2147483648
        %v2732 = vmul.f32 %v2729, 1.442695
        %v2733 = vpow.pop %v2732
        %v2734 = vmul.f32 %v2730, 1.442695
        %v2735 = vpow.pop %v2734
        %v2736 = vmul.f32 %v2731, 1.442695
        %v2737 = vpow.pop %v2736
        %v2738 = vadd.f32 %v2733, 1.0
        %v2739 = vadd.f32 %v2735, 1.0
        %v2740 = vadd.f32 %v2737, 1.0
        %v2741 = vrcp.pop %v2738
        %v2742 = vmul.f32 1.0, %v2741
        %v2743 = vrcp.pop %v2739
        %v2744 = vmul.f32 1.0, %v2743
        %v2745 = vrcp.pop %v2740
        %v2746 = vmul.f32 1.0, %v2745
        %v2747 = vmul.f32 %v2726, %v2742
        %v2748 = vmul.f32 %v2727, %v2744
        %v2749 = vmul.f32 %v2728, %v2746
        %v2750 = vmul.f32 %v2747, %v429
        %v2751 = vmul.f32 %v2748, %v430
        %v2752 = vmul.f32 %v2749, %v431
        %v2753 = vpack.c.bf16 %v2750, %v2750
        %v2754 = vpack.c.bf16 %v2751, %v2751
        %v2755 = vpack.c.bf16 %v2752, %v2752
        %v2759 = vunpack.c.l.b16 %v2753
        %v2760 = vunpack.c.l.b16 %v2754
        %v2761 = vunpack.c.l.b16 %v2755
        %v2762 = vpack.c.b16 %v2760, %v2759
        %v2763 = vpack.c.b16 %v2761, %v2761
        %2764 = vrot.lane.b32.xlu0 %v2762, 19
        %v2765 = vpop.permute.xlu0 %2764
        %2766 = vrot.lane.b32.xlu0 %v2763, 19
        %v2767 = vpop.permute.xlu0 %2766
        %v2768 = vrot.slane %v2765, 4
        %v2769 = vsel %vm458, %v2768, %v2765
        %v2770 = vsel %vm458, %v2768, %v2767
        %2773 = vst.msk [vmem:[#allocation2] sm:$0xff] %vm1620, %v2769
        %2774 = vst.msk [vmem:[#allocation2 + $0x8] sm:$0xf] %vm1622, %v2770
        %v2775 = vld [vmem:[#allocation9] sm:$0xf]
        %v2776 = vld [vmem:[#allocation2] sm:$0xff]
        %v2777 = vld [vmem:[#allocation2 + $0x8] sm:$0xf]
        %v2779 = vunpack.c.l.b16 %v2775
        %v2780 = vpack.c.b16 %v2779, %v2779
        %2781 = vrot.lane.b32.xlu0 %v2780, 120
        %v2782 = vpop.permute.xlu0 %2781
        %v2785 = vunpack.c.l.b16 %v2776
        %v2786 = vunpack.c.h.b16 %v2776
        %v2787 = vunpack.c.l.b16 %v2777
        %v2788 = vpack.c.b16 %v2785, %v2785
        %v2789 = vpack.c.b16 %v2786, %v2786
        %v2790 = vpack.c.b16 %v2787, %v2787
        %2791 = vrot.lane.b32.xlu0 %v2788, 127
        %v2792 = vpop.permute.xlu0 %2791
        %2793 = vrot.lane.b32.xlu0 %v2789, 127
        %v2794 = vpop.permute.xlu0 %2793
        %2795 = vrot.lane.b32.xlu0 %v2790, 127
        %v2796 = vpop.permute.xlu0 %2795
        %v2797 = vsel %vm491, %v2792, %v2794
        %v2798 = vsel %vm491, %v2794, %v2796
        %v2800 = vsel %vm1464, %v2782, 0
        %v2803 = vsel %vm1651, %v2797, 0
        %v2806 = vsel %vm1651, %v2798, 0
        %v2809 = vsel %vm1651, %v2796, 0
        %2811 = vmatprep.subr.bf16.mxu0 %v2806
        %2812 = vmatpush1.bf16.msra.mxu0 %v2803
        %2813 = vmatprep.subr.bf16.mxu0 0
        %2814 = vmatpush1.bf16.msra.mxu0 0
        %2815 = vmatprep.subr.bf16.mxu0 0
        %2816 = vmatpush1.bf16.msra.mxu0 0
        %2817 = vmatprep.subr.bf16.mxu0 0
        %2818 = vmatpush1.bf16.msra.mxu0 0
        %2819 = vmatprep.subr.bf16.mxu0 0
        %2820 = vmatpush1.bf16.msra.mxu0 0
        %2821 = vmatprep.subr.bf16.mxu0 0
        %2822 = vmatpush1.bf16.msra.mxu0 0
        %2823 = vmatprep.subr.bf16.mxu0 0
        %2824 = vmatpush1.bf16.msra.mxu0 0
        %2825 = vmatprep.subr.bf16.mxu0 0
        %2826 = vmatpush1.bf16.msra.mxu0 0
        %2827 = vmatprep.subr.bf16.mxu0 0
        %2828 = vmatpush1.bf16.msra.mxu0 0
        %2829 = vmatprep.subr.bf16.mxu0 0
        %2830 = vmatpush1.bf16.msra.mxu0 0
        %2831 = vmatprep.subr.bf16.mxu0 0
        %2832 = vmatpush1.bf16.msra.mxu0 0
        %2833 = vmatprep.subr.bf16.mxu0 0
        %2834 = vmatpush1.bf16.msra.mxu0 0
        %2835 = vmatprep.subr.bf16.mxu0 0
        %2836 = vmatpush1.bf16.msra.mxu0 0
        %2837 = vmatprep.subr.bf16.mxu0 0
        %2838 = vmatpush1.bf16.msra.mxu0 0
        %2839 = vmatprep.subr.bf16.mxu0 0
        %2840 = vmatpush1.bf16.msra.mxu0 0
        %2841 = vmatprep.subr.bf16.mxu0 0
        %2842 = vmatpush1.bf16.msra.mxu0 0
        %2843 = vmatprep.mubr.bf16.mxu0 0
        %2844 = vmatmul.mubr.bf16.gmra.mrb[0].mxu0 %v2800
        %v2845 = vpop.f32.mrb[0].mxu0
        %v2846 = vadd.f32 0.0, %v2845
        %v2847 = vpop.f32.mrb[0].mxu0
        %v2848 = vadd.f32 0.0, %v2847
        %v2849 = vpop.f32.mrb[0].mxu0
        %v2850 = vpop.f32.mrb[0].mxu0
        %2851 = vdwg.mxu0
        %2852 = vmatprep.subr.bf16.mxu0 0
        %2853 = vmatpush1.bf16.msra.mxu0 %v2809
        %2854 = vmatprep.subr.bf16.mxu0 0
        %2855 = vmatpush1.bf16.msra.mxu0 0
        %2856 = vmatprep.subr.bf16.mxu0 0
        %2857 = vmatpush1.bf16.msra.mxu0 0
        %2858 = vmatprep.subr.bf16.mxu0 0
        %2859 = vmatpush1.bf16.msra.mxu0 0
        %2860 = vmatprep.subr.bf16.mxu0 0
        %2861 = vmatpush1.bf16.msra.mxu0 0
        %2862 = vmatprep.subr.bf16.mxu0 0
        %2863 = vmatpush1.bf16.msra.mxu0 0
        %2864 = vmatprep.subr.bf16.mxu0 0
        %2865 = vmatpush1.bf16.msra.mxu0 0
        %2866 = vmatprep.subr.bf16.mxu0 0
        %2867 = vmatpush1.bf16.msra.mxu0 0
        %2868 = vmatprep.subr.bf16.mxu0 0
        %2869 = vmatpush1.bf16.msra.mxu0 0
        %2870 = vmatprep.subr.bf16.mxu0 0
        %2871 = vmatpush1.bf16.msra.mxu0 0
        %2872 = vmatprep.subr.bf16.mxu0 0
        %2873 = vmatpush1.bf16.msra.mxu0 0
        %2874 = vmatprep.subr.bf16.mxu0 0
        %2875 = vmatpush1.bf16.msra.mxu0 0
        %2876 = vmatprep.subr.bf16.mxu0 0
        %2877 = vmatpush1.bf16.msra.mxu0 0
        %2878 = vmatprep.subr.bf16.mxu0 0
        %2879 = vmatpush1.bf16.msra.mxu0 0
        %2880 = vmatprep.subr.bf16.mxu0 0
        %2881 = vmatpush1.bf16.msra.mxu0 0
        %2882 = vmatprep.subr.bf16.mxu0 0
        %2883 = vmatpush1.bf16.msra.mxu0 0
        %2884 = vmatprep.mubr.bf16.mxu0 0
        %2885 = vmatmul.mubr.bf16.gmra.mrb[0].mxu0 %v2800
        %v2886 = vpop.f32.mrb[0].mxu0
        %v2887 = vadd.f32 0.0, %v2886
        %v2888 = vpop.f32.mrb[0].mxu0
        %v2889 = vpop.f32.mrb[0].mxu0
        %v2890 = vpop.f32.mrb[0].mxu0
        %2891 = vdwg.mxu0
        %v2893 = vsel %vm1464, %v2775, 0
        %v2896 = vsel %vm1651, %v2788, 0
        %v2899 = vsel %vm1651, %v2789, 0
        %v2902 = vsel %vm1651, %v2790, 0
        %2904 = vmatprep.subr.bf16.mxu0 %v2899
        %2905 = vmatpush1.bf16.msra.mxu0 %v2896
        %2906 = vmatprep.subr.bf16.mxu0 0
        %2907 = vmatpush1.bf16.msra.mxu0 0
        %2908 = vmatprep.subr.bf16.mxu0 0
        %2909 = vmatpush1.bf16.msra.mxu0 0
        %2910 = vmatprep.subr.bf16.mxu0 0
        %2911 = vmatpush1.bf16.msra.mxu0 0
        %2912 = vmatprep.subr.bf16.mxu0 0
        %2913 = vmatpush1.bf16.msra.mxu0 0
        %2914 = vmatprep.subr.bf16.mxu0 0
        %2915 = vmatpush1.bf16.msra.mxu0 0
        %2916 = vmatprep.subr.bf16.mxu0 0
        %2917 = vmatpush1.bf16.msra.mxu0 0
        %2918 = vmatprep.subr.bf16.mxu0 0
        %2919 = vmatpush1.bf16.msra.mxu0 0
        %2920 = vmatprep.subr.bf16.mxu0 0
        %2921 = vmatpush1.bf16.msra.mxu0 0
        %2922 = vmatprep.subr.bf16.mxu0 0
        %2923 = vmatpush1.bf16.msra.mxu0 0
        %2924 = vmatprep.subr.bf16.mxu0 0
        %2925 = vmatpush1.bf16.msra.mxu0 0
        %2926 = vmatprep.subr.bf16.mxu0 0
        %2927 = vmatpush1.bf16.msra.mxu0 0
        %2928 = vmatprep.subr.bf16.mxu0 0
        %2929 = vmatpush1.bf16.msra.mxu0 0
        %2930 = vmatprep.subr.bf16.mxu0 0
        %2931 = vmatpush1.bf16.msra.mxu0 0
        %2932 = vmatprep.subr.bf16.mxu0 0
        %2933 = vmatpush1.bf16.msra.mxu0 0
        %2934 = vmatprep.subr.bf16.mxu0 0
        %2935 = vmatpush1.bf16.msra.mxu0 0
        %2936 = vmatprep.mubr.bf16.mxu0 0
        %2937 = vmatmul.mubr.bf16.gmra.mrb[0].mxu0 %v2893
        %v2938 = vpop.f32.mrb[0].mxu0
        %v2939 = vadd.f32 %v2846, %v2938
        %v2940 = vpop.f32.mrb[0].mxu0
        %v2941 = vadd.f32 %v2848, %v2940
        %v2942 = vpop.f32.mrb[0].mxu0
        %v2943 = vpop.f32.mrb[0].mxu0
        %2944 = vdwg.mxu0
        %2945 = vmatprep.subr.bf16.mxu0 0
        %2946 = vmatpush1.bf16.msra.mxu0 %v2902
        %2947 = vmatprep.subr.bf16.mxu0 0
        %2948 = vmatpush1.bf16.msra.mxu0 0
        %2949 = vmatprep.subr.bf16.mxu0 0
        %2950 = vmatpush1.bf16.msra.mxu0 0
        %2951 = vmatprep.subr.bf16.mxu0 0
        %2952 = vmatpush1.bf16.msra.mxu0 0
        %2953 = vmatprep.subr.bf16.mxu0 0
        %2954 = vmatpush1.bf16.msra.mxu0 0
        %2955 = vmatprep.subr.bf16.mxu0 0
        %2956 = vmatpush1.bf16.msra.mxu0 0
        %2957 = vmatprep.subr.bf16.mxu0 0
        %2958 = vmatpush1.bf16.msra.mxu0 0
        %2959 = vmatprep.subr.bf16.mxu0 0
        %2960 = vmatpush1.bf16.msra.mxu0 0
        %2961 = vmatprep.subr.bf16.mxu0 0
        %2962 = vmatpush1.bf16.msra.mxu0 0
        %2963 = vmatprep.subr.bf16.mxu0 0
        %2964 = vmatpush1.bf16.msra.mxu0 0
        %2965 = vmatprep.subr.bf16.mxu0 0
        %2966 = vmatpush1.bf16.msra.mxu0 0
        %2967 = vmatprep.subr.bf16.mxu0 0
        %2968 = vmatpush1.bf16.msra.mxu0 0
        %2969 = vmatprep.subr.bf16.mxu0 0
        %2970 = vmatpush1.bf16.msra.mxu0 0
        %2971 = vmatprep.subr.bf16.mxu0 0
        %2972 = vmatpush1.bf16.msra.mxu0 0
        %2973 = vmatprep.subr.bf16.mxu0 0
        %2974 = vmatpush1.bf16.msra.mxu0 0
        %2975 = vmatprep.subr.bf16.mxu0 0
        %2976 = vmatpush1.bf16.msra.mxu0 0
        %2977 = vmatprep.mubr.bf16.mxu0 0
        %2978 = vmatmul.mubr.bf16.gmra.mrb[0].mxu0 %v2893
        %v2979 = vpop.f32.mrb[0].mxu0
        %v2980 = vadd.f32 %v2887, %v2979
        %v2981 = vpop.f32.mrb[0].mxu0
        %v2982 = vpop.f32.mrb[0].mxu0
        %v2983 = vpop.f32.mrb[0].mxu0
        %2984 = vdwg.mxu0
        %2985 = vrot.lane.b32.xlu0 %v2780, 112
        %v2986 = vpop.permute.xlu0 %2985
        %2987 = vrot.lane.b32.xlu0 %v2788, 126
        %v2988 = vpop.permute.xlu0 %2987
        %2989 = vrot.lane.b32.xlu0 %v2789, 126
        %v2990 = vpop.permute.xlu0 %2989
        %2991 = vrot.lane.b32.xlu0 %v2790, 126
        %v2992 = vpop.permute.xlu0 %2991
        %v2993 = vsel %vm690, %v2988, %v2990
        %v2994 = vsel %vm690, %v2990, %v2992
        %v2996 = vsel %vm1464, %v2986, 0
        %v2999 = vsel %vm1651, %v2993, 0
        %v3002 = vsel %vm1651, %v2994, 0
        %v3005 = vsel %vm1651, %v2992, 0
        %3007 = vmatprep.subr.bf16.mxu0 %v3002
        %3008 = vmatpush1.bf16.msra.mxu0 %v2999
        %3009 = vmatprep.subr.bf16.mxu0 0
        %3010 = vmatpush1.bf16.msra.mxu0 0
        %3011 = vmatprep.subr.bf16.mxu0 0
        %3012 = vmatpush1.bf16.msra.mxu0 0
        %3013 = vmatprep.subr.bf16.mxu0 0
        %3014 = vmatpush1.bf16.msra.mxu0 0
        %3015 = vmatprep.subr.bf16.mxu0 0
        %3016 = vmatpush1.bf16.msra.mxu0 0
        %3017 = vmatprep.subr.bf16.mxu0 0
        %3018 = vmatpush1.bf16.msra.mxu0 0
        %3019 = vmatprep.subr.bf16.mxu0 0
        %3020 = vmatpush1.bf16.msra.mxu0 0
        %3021 = vmatprep.subr.bf16.mxu0 0
        %3022 = vmatpush1.bf16.msra.mxu0 0
        %3023 = vmatprep.subr.bf16.mxu0 0
        %3024 = vmatpush1.bf16.msra.mxu0 0
        %3025 = vmatprep.subr.bf16.mxu0 0
        %3026 = vmatpush1.bf16.msra.mxu0 0
        %3027 = vmatprep.subr.bf16.mxu0 0
        %3028 = vmatpush1.bf16.msra.mxu0 0
        %3029 = vmatprep.subr.bf16.mxu0 0
        %3030 = vmatpush1.bf16.msra.mxu0 0
        %3031 = vmatprep.subr.bf16.mxu0 0
        %3032 = vmatpush1.bf16.msra.mxu0 0
        %3033 = vmatprep.subr.bf16.mxu0 0
        %3034 = vmatpush1.bf16.msra.mxu0 0
        %3035 = vmatprep.subr.bf16.mxu0 0
        %3036 = vmatpush1.bf16.msra.mxu0 0
        %3037 = vmatprep.subr.bf16.mxu0 0
        %3038 = vmatpush1.bf16.msra.mxu0 0
        %3039 = vmatprep.mubr.bf16.mxu0 0
        %3040 = vmatmul.mubr.bf16.gmra.mrb[0].mxu0 %v2996
        %v3041 = vpop.f32.mrb[0].mxu0
        %v3042 = vadd.f32 0.0, %v3041
        %v3043 = vpop.f32.mrb[0].mxu0
        %v3044 = vadd.f32 0.0, %v3043
        %v3045 = vpop.f32.mrb[0].mxu0
        %v3046 = vpop.f32.mrb[0].mxu0
        %3047 = vdwg.mxu0
        %3048 = vmatprep.subr.bf16.mxu0 0
        %3049 = vmatpush1.bf16.msra.mxu0 %v3005
        %3050 = vmatprep.subr.bf16.mxu0 0
        %3051 = vmatpush1.bf16.msra.mxu0 0
        %3052 = vmatprep.subr.bf16.mxu0 0
        %3053 = vmatpush1.bf16.msra.mxu0 0
        %3054 = vmatprep.subr.bf16.mxu0 0
        %3055 = vmatpush1.bf16.msra.mxu0 0
        %3056 = vmatprep.subr.bf16.mxu0 0
        %3057 = vmatpush1.bf16.msra.mxu0 0
        %3058 = vmatprep.subr.bf16.mxu0 0
        %3059 = vmatpush1.bf16.msra.mxu0 0
        %3060 = vmatprep.subr.bf16.mxu0 0
        %3061 = vmatpush1.bf16.msra.mxu0 0
        %3062 = vmatprep.subr.bf16.mxu0 0
        %3063 = vmatpush1.bf16.msra.mxu0 0
        %3064 = vmatprep.subr.bf16.mxu0 0
        %3065 = vmatpush1.bf16.msra.mxu0 0
        %3066 = vmatprep.subr.bf16.mxu0 0
        %3067 = vmatpush1.bf16.msra.mxu0 0
        %3068 = vmatprep.subr.bf16.mxu0 0
        %3069 = vmatpush1.bf16.msra.mxu0 0
        %3070 = vmatprep.subr.bf16.mxu0 0
        %3071 = vmatpush1.bf16.msra.mxu0 0
        %3072 = vmatprep.subr.bf16.mxu0 0
        %3073 = vmatpush1.bf16.msra.mxu0 0
        %3074 = vmatprep.subr.bf16.mxu0 0
        %3075 = vmatpush1.bf16.msra.mxu0 0
        %3076 = vmatprep.subr.bf16.mxu0 0
        %3077 = vmatpush1.bf16.msra.mxu0 0
        %3078 = vmatprep.subr.bf16.mxu0 0
        %3079 = vmatpush1.bf16.msra.mxu0 0
        %3080 = vmatprep.mubr.bf16.mxu0 0
        %3081 = vmatmul.mubr.bf16.gmra.mrb[0].mxu0 %v2996
        %v3082 = vpop.f32.mrb[0].mxu0
        %v3083 = vadd.f32 0.0, %v3082
        %v3084 = vpop.f32.mrb[0].mxu0
        %v3085 = vpop.f32.mrb[0].mxu0
        %v3086 = vpop.f32.mrb[0].mxu0
        %3087 = vdwg.mxu0
        %v3088 = vadd.f32 %v2939, %v3042
        %v3089 = vadd.f32 %v2941, %v3044
        %v3090 = vadd.f32 %v2980, %v3083
        %3091 = vrot.lane.b32.xlu0 %v2780, 104
        %v3092 = vpop.permute.xlu0 %3091
        %3093 = vrot.lane.b32.xlu0 %v2788, 110
        %v3094 = vpop.permute.xlu0 %3093
        %3095 = vrot.lane.b32.xlu0 %v2789, 110
        %v3096 = vpop.permute.xlu0 %3095
        %3097 = vrot.lane.b32.xlu0 %v2790, 110
        %v3098 = vpop.permute.xlu0 %3097
        %v3099 = vsel %vm797, %v3094, %v3096
        %v3100 = vsel %vm797, %v3096, %v3098
        %v3102 = vsel %vm1464, %v3092, 0
        %v3105 = vsel %vm1651, %v3099, 0
        %v3108 = vsel %vm1651, %v3100, 0
        %v3111 = vsel %vm1651, %v3098, 0
        %3113 = vmatprep.subr.bf16.mxu0 %v3108
        %3114 = vmatpush1.bf16.msra.mxu0 %v3105
        %3115 = vmatprep.subr.bf16.mxu0 0
        %3116 = vmatpush1.bf16.msra.mxu0 0
        %3117 = vmatprep.subr.bf16.mxu0 0
        %3118 = vmatpush1.bf16.msra.mxu0 0
        %3119 = vmatprep.subr.bf16.mxu0 0
        %3120 = vmatpush1.bf16.msra.mxu0 0
        %3121 = vmatprep.subr.bf16.mxu0 0
        %3122 = vmatpush1.bf16.msra.mxu0 0
        %3123 = vmatprep.subr.bf16.mxu0 0
        %3124 = vmatpush1.bf16.msra.mxu0 0
        %3125 = vmatprep.subr.bf16.mxu0 0
        %3126 = vmatpush1.bf16.msra.mxu0 0
        %3127 = vmatprep.subr.bf16.mxu0 0
        %3128 = vmatpush1.bf16.msra.mxu0 0
        %3129 = vmatprep.subr.bf16.mxu0 0
        %3130 = vmatpush1.bf16.msra.mxu0 0
        %3131 = vmatprep.subr.bf16.mxu0 0
        %3132 = vmatpush1.bf16.msra.mxu0 0
        %3133 = vmatprep.subr.bf16.mxu0 0
        %3134 = vmatpush1.bf16.msra.mxu0 0
        %3135 = vmatprep.subr.bf16.mxu0 0
        %3136 = vmatpush1.bf16.msra.mxu0 0
        %3137 = vmatprep.subr.bf16.mxu0 0
        %3138 = vmatpush1.bf16.msra.mxu0 0
        %3139 = vmatprep.subr.bf16.mxu0 0
        %3140 = vmatpush1.bf16.msra.mxu0 0
        %3141 = vmatprep.subr.bf16.mxu0 0
        %3142 = vmatpush1.bf16.msra.mxu0 0
        %3143 = vmatprep.subr.bf16.mxu0 0
        %3144 = vmatpush1.bf16.msra.mxu0 0
        %3145 = vmatprep.mubr.bf16.mxu0 0
        %3146 = vmatmul.mubr.bf16.gmra.mrb[0].mxu0 %v3102
        %v3147 = vpop.f32.mrb[0].mxu0
        %v3148 = vadd.f32 0.0, %v3147
        %v3149 = vpop.f32.mrb[0].mxu0
        %v3150 = vadd.f32 0.0, %v3149
        %v3151 = vpop.f32.mrb[0].mxu0
        %v3152 = vpop.f32.mrb[0].mxu0
        %3153 = vdwg.mxu0
        %3154 = vmatprep.subr.bf16.mxu0 0
        %3155 = vmatpush1.bf16.msra.mxu0 %v3111
        %3156 = vmatprep.subr.bf16.mxu0 0
        %3157 = vmatpush1.bf16.msra.mxu0 0
        %3158 = vmatprep.subr.bf16.mxu0 0
        %3159 = vmatpush1.bf16.msra.mxu0 0
        %3160 = vmatprep.subr.bf16.mxu0 0
        %3161 = vmatpush1.bf16.msra.mxu0 0
        %3162 = vmatprep.subr.bf16.mxu0 0
        %3163 = vmatpush1.bf16.msra.mxu0 0
        %3164 = vmatprep.subr.bf16.mxu0 0
        %3165 = vmatpush1.bf16.msra.mxu0 0
        %3166 = vmatprep.subr.bf16.mxu0 0
        %3167 = vmatpush1.bf16.msra.mxu0 0
        %3168 = vmatprep.subr.bf16.mxu0 0
        %3169 = vmatpush1.bf16.msra.mxu0 0
        %3170 = vmatprep.subr.bf16.mxu0 0
        %3171 = vmatpush1.bf16.msra.mxu0 0
        %3172 = vmatprep.subr.bf16.mxu0 0
        %3173 = vmatpush1.bf16.msra.mxu0 0
        %3174 = vmatprep.subr.bf16.mxu0 0
        %3175 = vmatpush1.bf16.msra.mxu0 0
        %3176 = vmatprep.subr.bf16.mxu0 0
        %3177 = vmatpush1.bf16.msra.mxu0 0
        %3178 = vmatprep.subr.bf16.mxu0 0
        %3179 = vmatpush1.bf16.msra.mxu0 0
        %3180 = vmatprep.subr.bf16.mxu0 0
        %3181 = vmatpush1.bf16.msra.mxu0 0
        %3182 = vmatprep.subr.bf16.mxu0 0
        %3183 = vmatpush1.bf16.msra.mxu0 0
        %3184 = vmatprep.subr.bf16.mxu0 0
        %3185 = vmatpush1.bf16.msra.mxu0 0
        %3186 = vmatprep.mubr.bf16.mxu0 0
        %3187 = vmatmul.mubr.bf16.gmra.mrb[0].mxu0 %v3102
        %v3188 = vpop.f32.mrb[0].mxu0
        %v3189 = vadd.f32 0.0, %v3188
        %v3190 = vpop.f32.mrb[0].mxu0
        %v3191 = vpop.f32.mrb[0].mxu0
        %v3192 = vpop.f32.mrb[0].mxu0
        %3193 = vdwg.mxu0
        %v3194 = vadd.f32 %v3088, %v3148
        %v3195 = vadd.f32 %v3089, %v3150
        %v3196 = vadd.f32 %v3090, %v3189
        %3197 = vrot.lane.b32.xlu0 %v2780, 96
        %v3198 = vpop.permute.xlu0 %3197
        %3199 = vrot.lane.b32.xlu0 %v2788, 109
        %v3200 = vpop.permute.xlu0 %3199
        %3201 = vrot.lane.b32.xlu0 %v2789, 109
        %v3202 = vpop.permute.xlu0 %3201
        %3203 = vrot.lane.b32.xlu0 %v2790, 109
        %v3204 = vpop.permute.xlu0 %3203
        %v3205 = vsel %vm904, %v3200, %v3202
        %v3206 = vsel %vm904, %v3202, %v3204
        %v3208 = vsel %vm1464, %v3198, 0
        %v3211 = vsel %vm1651, %v3205, 0
        %v3214 = vsel %vm1651, %v3206, 0
        %v3217 = vsel %vm1651, %v3204, 0
        %3219 = vmatprep.subr.bf16.mxu0 %v3214
        %3220 = vmatpush1.bf16.msra.mxu0 %v3211
        %3221 = vmatprep.subr.bf16.mxu0 0
        %3222 = vmatpush1.bf16.msra.mxu0 0
        %3223 = vmatprep.subr.bf16.mxu0 0
        %3224 = vmatpush1.bf16.msra.mxu0 0
        %3225 = vmatprep.subr.bf16.mxu0 0
        %3226 = vmatpush1.bf16.msra.mxu0 0
        %3227 = vmatprep.subr.bf16.mxu0 0
        %3228 = vmatpush1.bf16.msra.mxu0 0
        %3229 = vmatprep.subr.bf16.mxu0 0
        %3230 = vmatpush1.bf16.msra.mxu0 0
        %3231 = vmatprep.subr.bf16.mxu0 0
        %3232 = vmatpush1.bf16.msra.mxu0 0
        %3233 = vmatprep.subr.bf16.mxu0 0
        %3234 = vmatpush1.bf16.msra.mxu0 0
        %3235 = vmatprep.subr.bf16.mxu0 0
        %3236 = vmatpush1.bf16.msra.mxu0 0
        %3237 = vmatprep.subr.bf16.mxu0 0
        %3238 = vmatpush1.bf16.msra.mxu0 0
        %3239 = vmatprep.subr.bf16.mxu0 0
        %3240 = vmatpush1.bf16.msra.mxu0 0
        %3241 = vmatprep.subr.bf16.mxu0 0
        %3242 = vmatpush1.bf16.msra.mxu0 0
        %3243 = vmatprep.subr.bf16.mxu0 0
        %3244 = vmatpush1.bf16.msra.mxu0 0
        %3245 = vmatprep.subr.bf16.mxu0 0
        %3246 = vmatpush1.bf16.msra.mxu0 0
        %3247 = vmatprep.subr.bf16.mxu0 0
        %3248 = vmatpush1.bf16.msra.mxu0 0
        %3249 = vmatprep.subr.bf16.mxu0 0
        %3250 = vmatpush1.bf16.msra.mxu0 0
        %3251 = vmatprep.mubr.bf16.mxu0 0
        %3252 = vmatmul.mubr.bf16.gmra.mrb[0].mxu0 %v3208
        %v3253 = vpop.f32.mrb[0].mxu0
        %v3254 = vadd.f32 0.0, %v3253
        %v3255 = vpop.f32.mrb[0].mxu0
        %v3256 = vadd.f32 0.0, %v3255
        %v3257 = vpop.f32.mrb[0].mxu0
        %v3258 = vpop.f32.mrb[0].mxu0
        %3259 = vdwg.mxu0
        %3260 = vmatprep.subr.bf16.mxu0 0
        %3261 = vmatpush1.bf16.msra.mxu0 %v3217
        %3262 = vmatprep.subr.bf16.mxu0 0
        %3263 = vmatpush1.bf16.msra.mxu0 0
        %3264 = vmatprep.subr.bf16.mxu0 0
        %3265 = vmatpush1.bf16.msra.mxu0 0
        %3266 = vmatprep.subr.bf16.mxu0 0
        %3267 = vmatpush1.bf16.msra.mxu0 0
        %3268 = vmatprep.subr.bf16.mxu0 0
        %3269 = vmatpush1.bf16.msra.mxu0 0
        %3270 = vmatprep.subr.bf16.mxu0 0
        %3271 = vmatpush1.bf16.msra.mxu0 0
        %3272 = vmatprep.subr.bf16.mxu0 0
        %3273 = vmatpush1.bf16.msra.mxu0 0
        %3274 = vmatprep.subr.bf16.mxu0 0
        %3275 = vmatpush1.bf16.msra.mxu0 0
        %3276 = vmatprep.subr.bf16.mxu0 0
        %3277 = vmatpush1.bf16.msra.mxu0 0
        %3278 = vmatprep.subr.bf16.mxu0 0
        %3279 = vmatpush1.bf16.msra.mxu0 0
        %3280 = vmatprep.subr.bf16.mxu0 0
        %3281 = vmatpush1.bf16.msra.mxu0 0
        %3282 = vmatprep.subr.bf16.mxu0 0
        %3283 = vmatpush1.bf16.msra.mxu0 0
        %3284 = vmatprep.subr.bf16.mxu0 0
        %3285 = vmatpush1.bf16.msra.mxu0 0
        %3286 = vmatprep.subr.bf16.mxu0 0
        %3287 = vmatpush1.bf16.msra.mxu0 0
        %3288 = vmatprep.subr.bf16.mxu0 0
        %3289 = vmatpush1.bf16.msra.mxu0 0
        %3290 = vmatprep.subr.bf16.mxu0 0
        %3291 = vmatpush1.bf16.msra.mxu0 0
        %3292 = vmatprep.mubr.bf16.mxu0 0
        %3293 = vmatmul.mubr.bf16.gmra.mrb[0].mxu0 %v3208
        %v3294 = vpop.f32.mrb[0].mxu0
        %v3295 = vadd.f32 0.0, %v3294
        %v3296 = vpop.f32.mrb[0].mxu0
        %v3297 = vpop.f32.mrb[0].mxu0
        %v3298 = vpop.f32.mrb[0].mxu0
        %3299 = vdwg.mxu0
        %v3300 = vadd.f32 %v3194, %v3254
        %v3301 = vadd.f32 %v3195, %v3256
        %v3302 = vadd.f32 %v3196, %v3295
        %3303 = vrot.lane.b32.xlu0 %v2780, 88
        %v3304 = vpop.permute.xlu0 %3303
        %3305 = vrot.lane.b32.xlu0 %v2788, 108
        %v3306 = vpop.permute.xlu0 %3305
        %3307 = vrot.lane.b32.xlu0 %v2789, 108
        %v3308 = vpop.permute.xlu0 %3307
        %3309 = vrot.lane.b32.xlu0 %v2790, 108
        %v3310 = vpop.permute.xlu0 %3309
        %v3311 = vsel %vm1011, %v3306, %v3308
        %v3312 = vsel %vm1011, %v3308, %v3310
        %v3314 = vsel %vm1464, %v3304, 0
        %v3317 = vsel %vm1651, %v3311, 0
        %v3320 = vsel %vm1651, %v3312, 0
        %v3323 = vsel %vm1651, %v3310, 0
        %3325 = vmatprep.subr.bf16.mxu0 %v3320
        %3326 = vmatpush1.bf16.msra.mxu0 %v3317
        %3327 = vmatprep.subr.bf16.mxu0 0
        %3328 = vmatpush1.bf16.msra.mxu0 0
        %3329 = vmatprep.subr.bf16.mxu0 0
        %3330 = vmatpush1.bf16.msra.mxu0 0
        %3331 = vmatprep.subr.bf16.mxu0 0
        %3332 = vmatpush1.bf16.msra.mxu0 0
        %3333 = vmatprep.subr.bf16.mxu0 0
        %3334 = vmatpush1.bf16.msra.mxu0 0
        %3335 = vmatprep.subr.bf16.mxu0 0
        %3336 = vmatpush1.bf16.msra.mxu0 0
        %3337 = vmatprep.subr.bf16.mxu0 0
        %3338 = vmatpush1.bf16.msra.mxu0 0
        %3339 = vmatprep.subr.bf16.mxu0 0
        %3340 = vmatpush1.bf16.msra.mxu0 0
        %3341 = vmatprep.subr.bf16.mxu0 0
        %3342 = vmatpush1.bf16.msra.mxu0 0
        %3343 = vmatprep.subr.bf16.mxu0 0
        %3344 = vmatpush1.bf16.msra.mxu0 0
        %3345 = vmatprep.subr.bf16.mxu0 0
        %3346 = vmatpush1.bf16.msra.mxu0 0
        %3347 = vmatprep.subr.bf16.mxu0 0
        %3348 = vmatpush1.bf16.msra.mxu0 0
        %3349 = vmatprep.subr.bf16.mxu0 0
        %3350 = vmatpush1.bf16.msra.mxu0 0
        %3351 = vmatprep.subr.bf16.mxu0 0
        %3352 = vmatpush1.bf16.msra.mxu0 0
        %3353 = vmatprep.subr.bf16.mxu0 0
        %3354 = vmatpush1.bf16.msra.mxu0 0
        %3355 = vmatprep.subr.bf16.mxu0 0
        %3356 = vmatpush1.bf16.msra.mxu0 0
        %3357 = vmatprep.mubr.bf16.mxu0 0
        %3358 = vmatmul.mubr.bf16.gmra.mrb[0].mxu0 %v3314
        %v3359 = vpop.f32.mrb[0].mxu0
        %v3360 = vadd.f32 0.0, %v3359
        %v3361 = vpop.f32.mrb[0].mxu0
        %v3362 = vadd.f32 0.0, %v3361
        %v3363 = vpop.f32.mrb[0].mxu0
        %v3364 = vpop.f32.mrb[0].mxu0
        %3365 = vdwg.mxu0
        %3366 = vmatprep.subr.bf16.mxu0 0
        %3367 = vmatpush1.bf16.msra.mxu0 %v3323
        %3368 = vmatprep.subr.bf16.mxu0 0
        %3369 = vmatpush1.bf16.msra.mxu0 0
        %3370 = vmatprep.subr.bf16.mxu0 0
        %3371 = vmatpush1.bf16.msra.mxu0 0
        %3372 = vmatprep.subr.bf16.mxu0 0
        %3373 = vmatpush1.bf16.msra.mxu0 0
        %3374 = vmatprep.subr.bf16.mxu0 0
        %3375 = vmatpush1.bf16.msra.mxu0 0
        %3376 = vmatprep.subr.bf16.mxu0 0
        %3377 = vmatpush1.bf16.msra.mxu0 0
        %3378 = vmatprep.subr.bf16.mxu0 0
        %3379 = vmatpush1.bf16.msra.mxu0 0
        %3380 = vmatprep.subr.bf16.mxu0 0
        %3381 = vmatpush1.bf16.msra.mxu0 0
        %3382 = vmatprep.subr.bf16.mxu0 0
        %3383 = vmatpush1.bf16.msra.mxu0 0
        %3384 = vmatprep.subr.bf16.mxu0 0
        %3385 = vmatpush1.bf16.msra.mxu0 0
        %3386 = vmatprep.subr.bf16.mxu0 0
        %3387 = vmatpush1.bf16.msra.mxu0 0
        %3388 = vmatprep.subr.bf16.mxu0 0
        %3389 = vmatpush1.bf16.msra.mxu0 0
        %3390 = vmatprep.subr.bf16.mxu0 0
        %3391 = vmatpush1.bf16.msra.mxu0 0
        %3392 = vmatprep.subr.bf16.mxu0 0
        %3393 = vmatpush1.bf16.msra.mxu0 0
        %3394 = vmatprep.subr.bf16.mxu0 0
        %3395 = vmatpush1.bf16.msra.mxu0 0
        %3396 = vmatprep.subr.bf16.mxu0 0
        %3397 = vmatpush1.bf16.msra.mxu0 0
        %3398 = vmatprep.mubr.bf16.mxu0 0
        %3399 = vmatmul.mubr.bf16.gmra.mrb[0].mxu0 %v3314
        %v3400 = vpop.f32.mrb[0].mxu0
        %v3401 = vadd.f32 0.0, %v3400
        %v3402 = vpop.f32.mrb[0].mxu0
        %v3403 = vpop.f32.mrb[0].mxu0
        %v3404 = vpop.f32.mrb[0].mxu0
        %3405 = vdwg.mxu0
        %v3406 = vadd.f32 %v3300, %v3360
        %v3407 = vadd.f32 %v3301, %v3362
        %v3408 = vadd.f32 %v3302, %v3401
        %3409 = vrot.lane.b32.xlu0 %v2780, 80
        %v3410 = vpop.permute.xlu0 %3409
        %3411 = vrot.lane.b32.xlu0 %v2788, 92
        %v3412 = vpop.permute.xlu0 %3411
        %3413 = vrot.lane.b32.xlu0 %v2789, 92
        %v3414 = vpop.permute.xlu0 %3413
        %3415 = vrot.lane.b32.xlu0 %v2790, 92
        %v3416 = vpop.permute.xlu0 %3415
        %v3417 = vsel %vm1118, %v3412, %v3414
        %v3418 = vsel %vm1118, %v3414, %v3416
        %v3420 = vsel %vm1464, %v3410, 0
        %v3423 = vsel %vm1651, %v3417, 0
        %v3426 = vsel %vm1651, %v3418, 0
        %v3429 = vsel %vm1651, %v3416, 0
        %3431 = vmatprep.subr.bf16.mxu0 %v3426
        %3432 = vmatpush1.bf16.msra.mxu0 %v3423
        %3433 = vmatprep.subr.bf16.mxu0 0
        %3434 = vmatpush1.bf16.msra.mxu0 0
        %3435 = vmatprep.subr.bf16.mxu0 0
        %3436 = vmatpush1.bf16.msra.mxu0 0
        %3437 = vmatprep.subr.bf16.mxu0 0
        %3438 = vmatpush1.bf16.msra.mxu0 0
        %3439 = vmatprep.subr.bf16.mxu0 0
        %3440 = vmatpush1.bf16.msra.mxu0 0
        %3441 = vmatprep.subr.bf16.mxu0 0
        %3442 = vmatpush1.bf16.msra.mxu0 0
        %3443 = vmatprep.subr.bf16.mxu0 0
        %3444 = vmatpush1.bf16.msra.mxu0 0
        %3445 = vmatprep.subr.bf16.mxu0 0
        %3446 = vmatpush1.bf16.msra.mxu0 0
        %3447 = vmatprep.subr.bf16.mxu0 0
        %3448 = vmatpush1.bf16.msra.mxu0 0
        %3449 = vmatprep.subr.bf16.mxu0 0
        %3450 = vmatpush1.bf16.msra.mxu0 0
        %3451 = vmatprep.subr.bf16.mxu0 0
        %3452 = vmatpush1.bf16.msra.mxu0 0
        %3453 = vmatprep.subr.bf16.mxu0 0
        %3454 = vmatpush1.bf16.msra.mxu0 0
        %3455 = vmatprep.subr.bf16.mxu0 0
        %3456 = vmatpush1.bf16.msra.mxu0 0
        %3457 = vmatprep.subr.bf16.mxu0 0
        %3458 = vmatpush1.bf16.msra.mxu0 0
        %3459 = vmatprep.subr.bf16.mxu0 0
        %3460 = vmatpush1.bf16.msra.mxu0 0
        %3461 = vmatprep.subr.bf16.mxu0 0
        %3462 = vmatpush1.bf16.msra.mxu0 0
        %3463 = vmatprep.mubr.bf16.mxu0 0
        %3464 = vmatmul.mubr.bf16.gmra.mrb[0].mxu0 %v3420
        %v3465 = vpop.f32.mrb[0].mxu0
        %v3466 = vadd.f32 0.0, %v3465
        %v3467 = vpop.f32.mrb[0].mxu0
        %v3468 = vadd.f32 0.0, %v3467
        %v3469 = vpop.f32.mrb[0].mxu0
        %v3470 = vpop.f32.mrb[0].mxu0
        %3471 = vdwg.mxu0
        %3472 = vmatprep.subr.bf16.mxu0 0
        %3473 = vmatpush1.bf16.msra.mxu0 %v3429
        %3474 = vmatprep.subr.bf16.mxu0 0
        %3475 = vmatpush1.bf16.msra.mxu0 0
        %3476 = vmatprep.subr.bf16.mxu0 0
        %3477 = vmatpush1.bf16.msra.mxu0 0
        %3478 = vmatprep.subr.bf16.mxu0 0
        %3479 = vmatpush1.bf16.msra.mxu0 0
        %3480 = vmatprep.subr.bf16.mxu0 0
        %3481 = vmatpush1.bf16.msra.mxu0 0
        %3482 = vmatprep.subr.bf16.mxu0 0
        %3483 = vmatpush1.bf16.msra.mxu0 0
        %3484 = vmatprep.subr.bf16.mxu0 0
        %3485 = vmatpush1.bf16.msra.mxu0 0
        %3486 = vmatprep.subr.bf16.mxu0 0
        %3487 = vmatpush1.bf16.msra.mxu0 0
        %3488 = vmatprep.subr.bf16.mxu0 0
        %3489 = vmatpush1.bf16.msra.mxu0 0
        %3490 = vmatprep.subr.bf16.mxu0 0
        %3491 = vmatpush1.bf16.msra.mxu0 0
        %3492 = vmatprep.subr.bf16.mxu0 0
        %3493 = vmatpush1.bf16.msra.mxu0 0
        %3494 = vmatprep.subr.bf16.mxu0 0
        %3495 = vmatpush1.bf16.msra.mxu0 0
        %3496 = vmatprep.subr.bf16.mxu0 0
        %3497 = vmatpush1.bf16.msra.mxu0 0
        %3498 = vmatprep.subr.bf16.mxu0 0
        %3499 = vmatpush1.bf16.msra.mxu0 0
        %3500 = vmatprep.subr.bf16.mxu0 0
        %3501 = vmatpush1.bf16.msra.mxu0 0
        %3502 = vmatprep.subr.bf16.mxu0 0
        %3503 = vmatpush1.bf16.msra.mxu0 0
        %3504 = vmatprep.mubr.bf16.mxu0 0
        %3505 = vmatmul.mubr.bf16.gmra.mrb[0].mxu0 %v3420
        %v3506 = vpop.f32.mrb[0].mxu0
        %v3507 = vadd.f32 0.0, %v3506
        %v3508 = vpop.f32.mrb[0].mxu0
        %v3509 = vpop.f32.mrb[0].mxu0
        %v3510 = vpop.f32.mrb[0].mxu0
        %3511 = vdwg.mxu0
        %v3512 = vadd.f32 %v3406, %v3466
        %v3513 = vadd.f32 %v3407, %v3468
        %v3514 = vadd.f32 %v3408, %v3507
        %3515 = vrot.lane.b32.xlu0 %v2780, 72
        %v3516 = vpop.permute.xlu0 %3515
        %3517 = vrot.lane.b32.xlu0 %v2788, 91
        %v3518 = vpop.permute.xlu0 %3517
        %3519 = vrot.lane.b32.xlu0 %v2789, 91
        %v3520 = vpop.permute.xlu0 %3519
        %3521 = vrot.lane.b32.xlu0 %v2790, 91
        %v3522 = vpop.permute.xlu0 %3521
        %v3523 = vsel %vm1225, %v3518, %v3520
        %v3524 = vsel %vm1225, %v3520, %v3522
        %v3526 = vsel %vm1464, %v3516, 0
        %v3529 = vsel %vm1651, %v3523, 0
        %v3532 = vsel %vm1651, %v3524, 0
        %v3535 = vsel %vm1651, %v3522, 0
        %3537 = vmatprep.subr.bf16.mxu0 %v3532
        %3538 = vmatpush1.bf16.msra.mxu0 %v3529
        %3539 = vmatprep.subr.bf16.mxu0 0
        %3540 = vmatpush1.bf16.msra.mxu0 0
        %3541 = vmatprep.subr.bf16.mxu0 0
        %3542 = vmatpush1.bf16.msra.mxu0 0
        %3543 = vmatprep.subr.bf16.mxu0 0
        %3544 = vmatpush1.bf16.msra.mxu0 0
        %3545 = vmatprep.subr.bf16.mxu0 0
        %3546 = vmatpush1.bf16.msra.mxu0 0
        %3547 = vmatprep.subr.bf16.mxu0 0
        %3548 = vmatpush1.bf16.msra.mxu0 0
        %3549 = vmatprep.subr.bf16.mxu0 0
        %3550 = vmatpush1.bf16.msra.mxu0 0
        %3551 = vmatprep.subr.bf16.mxu0 0
        %3552 = vmatpush1.bf16.msra.mxu0 0
        %3553 = vmatprep.subr.bf16.mxu0 0
        %3554 = vmatpush1.bf16.msra.mxu0 0
        %3555 = vmatprep.subr.bf16.mxu0 0
        %3556 = vmatpush1.bf16.msra.mxu0 0
        %3557 = vmatprep.subr.bf16.mxu0 0
        %3558 = vmatpush1.bf16.msra.mxu0 0
        %3559 = vmatprep.subr.bf16.mxu0 0
        %3560 = vmatpush1.bf16.msra.mxu0 0
        %3561 = vmatprep.subr.bf16.mxu0 0
        %3562 = vmatpush1.bf16.msra.mxu0 0
        %3563 = vmatprep.subr.bf16.mxu0 0
        %3564 = vmatpush1.bf16.msra.mxu0 0
        %3565 = vmatprep.subr.bf16.mxu0 0
        %3566 = vmatpush1.bf16.msra.mxu0 0
        %3567 = vmatprep.subr.bf16.mxu0 0
        %3568 = vmatpush1.bf16.msra.mxu0 0
        %3569 = vmatprep.mubr.bf16.mxu0 0
        %3570 = vmatmul.mubr.bf16.gmra.mrb[0].mxu0 %v3526
        %v3571 = vpop.f32.mrb[0].mxu0
        %v3572 = vadd.f32 0.0, %v3571
        %v3573 = vpop.f32.mrb[0].mxu0
        %v3574 = vadd.f32 0.0, %v3573
        %v3575 = vpop.f32.mrb[0].mxu0
        %v3576 = vpop.f32.mrb[0].mxu0
        %3577 = vdwg.mxu0
        %3578 = vmatprep.subr.bf16.mxu0 0
        %3579 = vmatpush1.bf16.msra.mxu0 %v3535
        %3580 = vmatprep.subr.bf16.mxu0 0
        %3581 = vmatpush1.bf16.msra.mxu0 0
        %3582 = vmatprep.subr.bf16.mxu0 0
        %3583 = vmatpush1.bf16.msra.mxu0 0
        %3584 = vmatprep.subr.bf16.mxu0 0
        %3585 = vmatpush1.bf16.msra.mxu0 0
        %3586 = vmatprep.subr.bf16.mxu0 0
        %3587 = vmatpush1.bf16.msra.mxu0 0
        %3588 = vmatprep.subr.bf16.mxu0 0
        %3589 = vmatpush1.bf16.msra.mxu0 0
        %3590 = vmatprep.subr.bf16.mxu0 0
        %3591 = vmatpush1.bf16.msra.mxu0 0
        %3592 = vmatprep.subr.bf16.mxu0 0
        %3593 = vmatpush1.bf16.msra.mxu0 0
        %3594 = vmatprep.subr.bf16.mxu0 0
        %3595 = vmatpush1.bf16.msra.mxu0 0
        %3596 = vmatprep.subr.bf16.mxu0 0
        %3597 = vmatpush1.bf16.msra.mxu0 0
        %3598 = vmatprep.subr.bf16.mxu0 0
        %3599 = vmatpush1.bf16.msra.mxu0 0
        %3600 = vmatprep.subr.bf16.mxu0 0
        %3601 = vmatpush1.bf16.msra.mxu0 0
        %3602 = vmatprep.subr.bf16.mxu0 0
        %3603 = vmatpush1.bf16.msra.mxu0 0
        %3604 = vmatprep.subr.bf16.mxu0 0
        %3605 = vmatpush1.bf16.msra.mxu0 0
        %3606 = vmatprep.subr.bf16.mxu0 0
        %3607 = vmatpush1.bf16.msra.mxu0 0
        %3608 = vmatprep.subr.bf16.mxu0 0
        %3609 = vmatpush1.bf16.msra.mxu0 0
        %3610 = vmatprep.mubr.bf16.mxu0 0
        %3611 = vmatmul.mubr.bf16.gmra.mrb[0].mxu0 %v3526
        %v3612 = vpop.f32.mrb[0].mxu0
        %v3613 = vadd.f32 0.0, %v3612
        %v3614 = vpop.f32.mrb[0].mxu0
        %v3615 = vpop.f32.mrb[0].mxu0
        %v3616 = vpop.f32.mrb[0].mxu0
        %3617 = vdwg.mxu0
        %v3618 = vadd.f32 %v3512, %v3572
        %v3619 = vadd.f32 %v3513, %v3574
        %v3620 = vadd.f32 %v3514, %v3613
        %3621 = vrot.lane.b32.xlu0 %v2780, 64
        %v3622 = vpop.permute.xlu0 %3621
        %3623 = vrot.lane.b32.xlu0 %v2788, 90
        %v3624 = vpop.permute.xlu0 %3623
        %3625 = vrot.lane.b32.xlu0 %v2789, 90
        %v3626 = vpop.permute.xlu0 %3625
        %3627 = vrot.lane.b32.xlu0 %v2790, 90
        %v3628 = vpop.permute.xlu0 %3627
        %v3629 = vsel %vm1332, %v3624, %v3626
        %v3630 = vsel %vm1332, %v3626, %v3628
        %v3632 = vsel %vm1464, %v3622, 0
        %v3635 = vsel %vm1651, %v3629, 0
        %v3638 = vsel %vm1651, %v3630, 0
        %v3641 = vsel %vm1651, %v3628, 0
        %3643 = vmatprep.subr.bf16.mxu0 %v3638
        %3644 = vmatpush1.bf16.msra.mxu0 %v3635
        %3645 = vmatprep.subr.bf16.mxu0 0
        %3646 = vmatpush1.bf16.msra.mxu0 0
        %3647 = vmatprep.subr.bf16.mxu0 0
        %3648 = vmatpush1.bf16.msra.mxu0 0
        %3649 = vmatprep.subr.bf16.mxu0 0
        %3650 = vmatpush1.bf16.msra.mxu0 0
        %3651 = vmatprep.subr.bf16.mxu0 0
        %3652 = vmatpush1.bf16.msra.mxu0 0
        %3653 = vmatprep.subr.bf16.mxu0 0
        %3654 = vmatpush1.bf16.msra.mxu0 0
        %3655 = vmatprep.subr.bf16.mxu0 0
        %3656 = vmatpush1.bf16.msra.mxu0 0
        %3657 = vmatprep.subr.bf16.mxu0 0
        %3658 = vmatpush1.bf16.msra.mxu0 0
        %3659 = vmatprep.subr.bf16.mxu0 0
        %3660 = vmatpush1.bf16.msra.mxu0 0
        %3661 = vmatprep.subr.bf16.mxu0 0
        %3662 = vmatpush1.bf16.msra.mxu0 0
        %3663 = vmatprep.subr.bf16.mxu0 0
        %3664 = vmatpush1.bf16.msra.mxu0 0
        %3665 = vmatprep.subr.bf16.mxu0 0
        %3666 = vmatpush1.bf16.msra.mxu0 0
        %3667 = vmatprep.subr.bf16.mxu0 0
        %3668 = vmatpush1.bf16.msra.mxu0 0
        %3669 = vmatprep.subr.bf16.mxu0 0
        %3670 = vmatpush1.bf16.msra.mxu0 0
        %3671 = vmatprep.subr.bf16.mxu0 0
        %3672 = vmatpush1.bf16.msra.mxu0 0
        %3673 = vmatprep.subr.bf16.mxu0 0
        %3674 = vmatpush1.bf16.msra.mxu0 0
        %3675 = vmatprep.mubr.bf16.mxu0 0
        %3676 = vmatmul.mubr.bf16.gmra.mrb[0].mxu0 %v3632
        %v3677 = vpop.f32.mrb[0].mxu0
        %v3678 = vadd.f32 0.0, %v3677
        %v3679 = vpop.f32.mrb[0].mxu0
        %v3680 = vadd.f32 0.0, %v3679
        %v3681 = vpop.f32.mrb[0].mxu0
        %v3682 = vpop.f32.mrb[0].mxu0
        %3683 = vdwg.mxu0
        %3684 = vmatprep.subr.bf16.mxu0 0
        %3685 = vmatpush1.bf16.msra.mxu0 %v3641
        %3686 = vmatprep.subr.bf16.mxu0 0
        %3687 = vmatpush1.bf16.msra.mxu0 0
        %3688 = vmatprep.subr.bf16.mxu0 0
        %3689 = vmatpush1.bf16.msra.mxu0 0
        %3690 = vmatprep.subr.bf16.mxu0 0
        %3691 = vmatpush1.bf16.msra.mxu0 0
        %3692 = vmatprep.subr.bf16.mxu0 0
        %3693 = vmatpush1.bf16.msra.mxu0 0
        %3694 = vmatprep.subr.bf16.mxu0 0
        %3695 = vmatpush1.bf16.msra.mxu0 0
        %3696 = vmatprep.subr.bf16.mxu0 0
        %3697 = vmatpush1.bf16.msra.mxu0 0
        %3698 = vmatprep.subr.bf16.mxu0 0
        %3699 = vmatpush1.bf16.msra.mxu0 0
        %3700 = vmatprep.subr.bf16.mxu0 0
        %3701 = vmatpush1.bf16.msra.mxu0 0
        %3702 = vmatprep.subr.bf16.mxu0 0
        %3703 = vmatpush1.bf16.msra.mxu0 0
        %3704 = vmatprep.subr.bf16.mxu0 0
        %3705 = vmatpush1.bf16.msra.mxu0 0
        %3706 = vmatprep.subr.bf16.mxu0 0
        %3707 = vmatpush1.bf16.msra.mxu0 0
        %3708 = vmatprep.subr.bf16.mxu0 0
        %3709 = vmatpush1.bf16.msra.mxu0 0
        %3710 = vmatprep.subr.bf16.mxu0 0
        %3711 = vmatpush1.bf16.msra.mxu0 0
        %3712 = vmatprep.subr.bf16.mxu0 0
        %3713 = vmatpush1.bf16.msra.mxu0 0
        %3714 = vmatprep.subr.bf16.mxu0 0
        %3715 = vmatpush1.bf16.msra.mxu0 0
        %3716 = vmatprep.mubr.bf16.mxu0 0
        %3717 = vmatmul.mubr.bf16.gmra.mrb[0].mxu0 %v3632
        %v3718 = vpop.f32.mrb[0].mxu0
        %v3719 = vadd.f32 0.0, %v3718
        %v3720 = vpop.f32.mrb[0].mxu0
        %v3721 = vpop.f32.mrb[0].mxu0
        %v3722 = vpop.f32.mrb[0].mxu0
        %3723 = vdwg.mxu0
        %v3724 = vadd.f32 %v3618, %v3678
        %v3725 = vadd.f32 %v3619, %v3680
        %v3726 = vadd.f32 %v3620, %v3719
        %v3727 = vld [vmem:[#allocation12] sm:$0xff]
        %v3728 = vmul.f32 %v3724, %v429
        %v3729 = vmul.f32 %v3725, %v430
        %v3730 = vmul.f32 %v3726, %v431
        %v3731 = vadd.f32 %v3728, %v3729
        %v3732 = vsel %vm1436, %v3730, 0.0
        %v3733 = vadd.f32 %v3731, %v3732
        %3734 = vadd.xlane.f32.xlu0 %v3733
        %v3735 = vpop.xlane.xlu0 %3734
        %v3736 = vmul.f32 %v3728, %v3724
        %v3737 = vmul.f32 %v3729, %v3725
        %v3738 = vmul.f32 %v3730, %v3726
        %v3739 = vadd.f32 %v3736, %v3737
        %v3740 = vsel %vm1436, %v3738, 0.0
        %v3741 = vadd.f32 %v3739, %v3740
        %3742 = vadd.xlane.f32.xlu0 %v3741
        %v3743 = vpop.xlane.xlu0 %3742
        %v3744 = vmul.f32 %v3727, 2.0
        %v3745 = vmul.f32 %v3744, %v3735
        %v3746 = vadd.f32 %v3743, %v3745
        %v3747 = vmul.f32 %v3727, %v3727
        %v3748 = vmul.f32 %v3747, 256.0
        %v3749 = vadd.f32 %v3746, %v3748
        %v3750 = vmul.f32 %v3727, 256.0
        %v3751 = vadd.f32 %v3735, %v3750
        %3753 = vrot.lane.b32.xlu0 %v3751, 122
        %v3754 = vpop.permute.xlu0 %3753
        %3757 = vrot.lane.b32.xlu0 %v3749, 123
        %v3758 = vpop.permute.xlu0 %3757
        %v3760 = vsel %vm1461, %v3754, %v3758
        %v3761 = vld [vmem:[#allocation14] sm:$0xff]
        %v3763 = vsel %vm1464, %v3761, 0
        %3765 = vmatprep.subr.mxu0 0.0
        %3766 = vmatpush1.msra.mxu0 %v3760
        %3767 = vmatprep.subr.mxu0 0.0
        %3768 = vmatpush1.msra.mxu0 0.0
        %3769 = vmatprep.subr.mxu0 0.0
        %3770 = vmatpush1.msra.mxu0 0.0
        %3771 = vmatprep.subr.mxu0 0.0
        %3772 = vmatpush1.msra.mxu0 0.0
        %3773 = vmatprep.subr.mxu0 0.0
        %3774 = vmatpush1.msra.mxu0 0.0
        %3775 = vmatprep.subr.mxu0 0.0
        %3776 = vmatpush1.msra.mxu0 0.0
        %3777 = vmatprep.subr.mxu0 0.0
        %3778 = vmatpush1.msra.mxu0 0.0
        %3779 = vmatprep.subr.mxu0 0.0
        %3780 = vmatpush1.msra.mxu0 0.0
        %3781 = vmatprep.subr.mxu0 0.0
        %3782 = vmatpush1.msra.mxu0 0.0
        %3783 = vmatprep.subr.mxu0 0.0
        %3784 = vmatpush1.msra.mxu0 0.0
        %3785 = vmatprep.subr.mxu0 0.0
        %3786 = vmatpush1.msra.mxu0 0.0
        %3787 = vmatprep.subr.mxu0 0.0
        %3788 = vmatpush1.msra.mxu0 0.0
        %3789 = vmatprep.subr.mxu0 0.0
        %3790 = vmatpush1.msra.mxu0 0.0
        %3791 = vmatprep.subr.mxu0 0.0
        %3792 = vmatpush1.msra.mxu0 0.0
        %3793 = vmatprep.subr.mxu0 0.0
        %3794 = vmatpush1.msra.mxu0 0.0
        %3795 = vmatprep.subr.mxu0 0.0
        %3796 = vmatpush1.msra.mxu0 0.0
        %3797 = vmatprep.subr.mxu0 0.0
        %3798 = vmatpush1.msra.mxu0 0.0
        %3799 = vmatprep.subr.mxu0 0.0
        %3800 = vmatpush1.msra.mxu0 0.0
        %3801 = vmatprep.subr.mxu0 0.0
        %3802 = vmatpush1.msra.mxu0 0.0
        %3803 = vmatprep.subr.mxu0 0.0
        %3804 = vmatpush1.msra.mxu0 0.0
        %3805 = vmatprep.subr.mxu0 0.0
        %3806 = vmatpush1.msra.mxu0 0.0
        %3807 = vmatprep.subr.mxu0 0.0
        %3808 = vmatpush1.msra.mxu0 0.0
        %3809 = vmatprep.subr.mxu0 0.0
        %3810 = vmatpush1.msra.mxu0 0.0
        %3811 = vmatprep.subr.mxu0 0.0
        %3812 = vmatpush1.msra.mxu0 0.0
        %3813 = vmatprep.subr.mxu0 0.0
        %3814 = vmatpush1.msra.mxu0 0.0
        %3815 = vmatprep.subr.mxu0 0.0
        %3816 = vmatpush1.msra.mxu0 0.0
        %3817 = vmatprep.subr.mxu0 0.0
        %3818 = vmatpush1.msra.mxu0 0.0
        %3819 = vmatprep.subr.mxu0 0.0
        %3820 = vmatpush1.msra.mxu0 0.0
        %3821 = vmatprep.subr.mxu0 0.0
        %3822 = vmatpush1.msra.mxu0 0.0
        %3823 = vmatprep.subr.mxu0 0.0
        %3824 = vmatpush1.msra.mxu0 0.0
        %3825 = vmatprep.subr.mxu0 0.0
        %3826 = vmatpush1.msra.mxu0 0.0
        %3827 = vmatprep.subr.mxu0 0.0
        %3828 = vmatpush1.msra.mxu0 0.0
        %3829 = vmatprep.mubr.f32.mxu0 0.0
        %3830 = vmatmul.mubr.f32.gmra.mrb[0].mxu0 %v3763
        %v3831 = vpop.f32.mrb[0].mxu0
        %v3832 = vadd.f32 0.0, %v3831
        %v3833 = vpop.f32.mrb[0].mxu0
        %3834 = vdwg.mxu0
        %v3835 = vmul.f32 %v3832, 0.001953125
        %v3836 = vmul.f32 %v3835, %v3835
        %3838 = vrot.lane.b32.xlu0 %v3836, 1
        %v3839 = vpop.permute.xlu0 %3838
        %v3841 = vsub.f32 %v3835, %v3839
        %v3842 = vadd.f32 %v3841, 1e-05
        %v3843 = vrsqrt.pop %v3842
        %3845 = vrot.lane.b32.xlu0 %v3843, 6
        %v3846 = vpop.permute.xlu0 %3845
        %v3848 = vmul.f32 %v3727, %v3846
        %3850 = vrot.lane.b32.xlu0 %v3835, 6
        %v3851 = vpop.permute.xlu0 %3850
        %v3853 = vsub.f32 %v3727, %v3851
        %3855 = vrot.lane.b32.xlu0 %v3848, 127
        %v3856 = vpop.permute.xlu0 %3855
        %v3858 = vmul.f32 %v3853, %v3856
        %3860 = vrot.lane.b32.xlu0 %v3858, 2
        %v3861 = vpop.permute.xlu0 %3860
        %v3863 = vadd.f32 %v3727, %v3861
        %3864 = vset.pattern.permute.xlu0 7
        %3865 = vperm.xlu0 %3864, %v3848
        %v3866 = vpop.permute.xlu0 %3865
        %v3868 = vmul.f32 %v3724, %v3866
        %v3869 = vmul.f32 %v3725, %v3866
        %v3870 = vmul.f32 %v3726, %v3866
        %3872 = vset.pattern.permute.xlu0 8
        %3873 = vperm.xlu0 %3872, %v3863
        %v3874 = vpop.permute.xlu0 %3873
        %v3876 = vadd.f32 %v3868, %v3874
        %v3877 = vadd.f32 %v3869, %v3874
        %v3878 = vadd.f32 %v3870, %v3874
        %v3879 = vxor.u32 %v3876, 2147483648
        %v3880 = vxor.u32 %v3877, 2147483648
        %v3881 = vxor.u32 %v3878, 2147483648
        %v3882 = vmul.f32 %v3879, 1.442695
        %v3883 = vpow.pop %v3882
        %v3884 = vmul.f32 %v3880, 1.442695
        %v3885 = vpow.pop %v3884
        %v3886 = vmul.f32 %v3881, 1.442695
        %v3887 = vpow.pop %v3886
        %v3888 = vadd.f32 %v3883, 1.0
        %v3889 = vadd.f32 %v3885, 1.0
        %v3890 = vadd.f32 %v3887, 1.0
        %v3891 = vrcp.pop %v3888
        %v3892 = vmul.f32 1.0, %v3891
        %v3893 = vrcp.pop %v3889
        %v3894 = vmul.f32 1.0, %v3893
        %v3895 = vrcp.pop %v3890
        %v3896 = vmul.f32 1.0, %v3895
        %v3897 = vmul.f32 %v3876, %v3892
        %v3898 = vmul.f32 %v3877, %v3894
        %v3899 = vmul.f32 %v3878, %v3896
        %v3900 = vld [vmem:[#allocation11] sm:$0xf]
        %v3901 = vld [vmem:[%s315] sm:$0x3f]
        %v3903 = vcombine.high %v3901, %v3901
        %v3905 = vunpack.c.l.s4 1983009808
        %v3906 = vunpack.c.0.s8 %v3905
        %v3907 = vlaneseq
        %v3908 = vshrl.u32 %v3907, 7
        %v3909 = vsub.s32 %v3906, %v3908
        %v3910 = vrot.slane %v3901, %v3909
        %v3912 = vunpack.c.l.s4 1983009808
        %v3913 = vunpack.c.0.s8 %v3912
        %v3914 = vlaneseq
        %v3915 = vshrl.u32 %v3914, 7
        %v3916 = vsub.s32 %v3913, %v3915
        %v3917 = vrot.slane %v3903, %v3916
        %v3918 = vcombine.high %v3910, %v3910
        %v3920 = vsel %vm494, %v3900, 0
        %v3923 = vsel %vm498, %v3910, 0
        %v3926 = vsel %vm498, %v3918, 0
        %v3929 = vsel %vm498, %v3917, 0
        %3931 = vmatprep.subr.bf16.mxu0 %v3926
        %3932 = vmatpush1.bf16.msra.mxu0 %v3923
        %3933 = vmatprep.subr.bf16.mxu0 0
        %3934 = vmatpush1.bf16.msra.mxu0 0
        %3935 = vmatprep.subr.bf16.mxu0 0
        %3936 = vmatpush1.bf16.msra.mxu0 0
        %3937 = vmatprep.subr.bf16.mxu0 0
        %3938 = vmatpush1.bf16.msra.mxu0 0
        %3939 = vmatprep.subr.bf16.mxu0 0
        %3940 = vmatpush1.bf16.msra.mxu0 0
        %3941 = vmatprep.subr.bf16.mxu0 0
        %3942 = vmatpush1.bf16.msra.mxu0 0
        %3943 = vmatprep.subr.bf16.mxu0 0
        %3944 = vmatpush1.bf16.msra.mxu0 0
        %3945 = vmatprep.subr.bf16.mxu0 0
        %3946 = vmatpush1.bf16.msra.mxu0 0
        %3947 = vmatprep.subr.bf16.mxu0 0
        %3948 = vmatpush1.bf16.msra.mxu0 0
        %3949 = vmatprep.subr.bf16.mxu0 0
        %3950 = vmatpush1.bf16.msra.mxu0 0
        %3951 = vmatprep.subr.bf16.mxu0 0
        %3952 = vmatpush1.bf16.msra.mxu0 0
        %3953 = vmatprep.subr.bf16.mxu0 0
        %3954 = vmatpush1.bf16.msra.mxu0 0
        %3955 = vmatprep.subr.bf16.mxu0 0
        %3956 = vmatpush1.bf16.msra.mxu0 0
        %3957 = vmatprep.subr.bf16.mxu0 0
        %3958 = vmatpush1.bf16.msra.mxu0 0
        %3959 = vmatprep.subr.bf16.mxu0 0
        %3960 = vmatpush1.bf16.msra.mxu0 0
        %3961 = vmatprep.subr.bf16.mxu0 0
        %3962 = vmatpush1.bf16.msra.mxu0 0
        %3963 = vmatprep.mubr.bf16.mxu0 0
        %3964 = vmatmul.mubr.bf16.gmra.mrb[0].mxu0 %v3920
        %v3965 = vpop.f32.mrb[0].mxu0
        %v3966 = vadd.f32 0.0, %v3965
        %v3967 = vpop.f32.mrb[0].mxu0
        %v3968 = vadd.f32 0.0, %v3967
        %v3969 = vpop.f32.mrb[0].mxu0
        %v3970 = vpop.f32.mrb[0].mxu0
        %3971 = vdwg.mxu0
        %3972 = vmatprep.subr.bf16.mxu0 0
        %3973 = vmatpush1.bf16.msra.mxu0 %v3929
        %3974 = vmatprep.subr.bf16.mxu0 0
        %3975 = vmatpush1.bf16.msra.mxu0 0
        %3976 = vmatprep.subr.bf16.mxu0 0
        %3977 = vmatpush1.bf16.msra.mxu0 0
        %3978 = vmatprep.subr.bf16.mxu0 0
        %3979 = vmatpush1.bf16.msra.mxu0 0
        %3980 = vmatprep.subr.bf16.mxu0 0
        %3981 = vmatpush1.bf16.msra.mxu0 0
        %3982 = vmatprep.subr.bf16.mxu0 0
        %3983 = vmatpush1.bf16.msra.mxu0 0
        %3984 = vmatprep.subr.bf16.mxu0 0
        %3985 = vmatpush1.bf16.msra.mxu0 0
        %3986 = vmatprep.subr.bf16.mxu0 0
        %3987 = vmatpush1.bf16.msra.mxu0 0
        %3988 = vmatprep.subr.bf16.mxu0 0
        %3989 = vmatpush1.bf16.msra.mxu0 0
        %3990 = vmatprep.subr.bf16.mxu0 0
        %3991 = vmatpush1.bf16.msra.mxu0 0
        %3992 = vmatprep.subr.bf16.mxu0 0
        %3993 = vmatpush1.bf16.msra.mxu0 0
        %3994 = vmatprep.subr.bf16.mxu0 0
        %3995 = vmatpush1.bf16.msra.mxu0 0
        %3996 = vmatprep.subr.bf16.mxu0 0
        %3997 = vmatpush1.bf16.msra.mxu0 0
        %3998 = vmatprep.subr.bf16.mxu0 0
        %3999 = vmatpush1.bf16.msra.mxu0 0
        %4000 = vmatprep.subr.bf16.mxu0 0
        %4001 = vmatpush1.bf16.msra.mxu0 0
        %4002 = vmatprep.subr.bf16.mxu0 0
        %4003 = vmatpush1.bf16.msra.mxu0 0
        %4004 = vmatprep.mubr.bf16.mxu0 0
        %4005 = vmatmul.mubr.bf16.gmra.mrb[0].mxu0 %v3920
        %v4006 = vpop.f32.mrb[0].mxu0
        %v4007 = vadd.f32 0.0, %v4006
        %v4008 = vpop.f32.mrb[0].mxu0
        %v4009 = vpop.f32.mrb[0].mxu0
        %v4010 = vpop.f32.mrb[0].mxu0
        %4011 = vdwg.mxu0
        %v4012 = vld [vmem:[#allocation12] sm:$0xff]
        %v4013 = vmul.f32 %v3966, %v429
        %v4014 = vmul.f32 %v3968, %v430
        %v4015 = vmul.f32 %v4007, %v431
        %v4016 = vadd.f32 %v4013, %v4014
        %v4017 = vsel %vm1436, %v4015, 0.0
        %v4018 = vadd.f32 %v4016, %v4017
        %4019 = vadd.xlane.f32.xlu0 %v4018
        %v4020 = vpop.xlane.xlu0 %4019
        %v4021 = vmul.f32 %v4013, %v3966
        %v4022 = vmul.f32 %v4014, %v3968
        %v4023 = vmul.f32 %v4015, %v4007
        %v4024 = vadd.f32 %v4021, %v4022
        %v4025 = vsel %vm1436, %v4023, 0.0
        %v4026 = vadd.f32 %v4024, %v4025
        %4027 = vadd.xlane.f32.xlu0 %v4026
        %v4028 = vpop.xlane.xlu0 %4027
        %v4029 = vsel %vm1461, %v4020, %v4028
        %4030 = vmatprep.subr.mxu0 0.0
        %4031 = vmatpush1.msra.mxu0 %v4029
        %4032 = vmatprep.subr.mxu0 0.0
        %4033 = vmatpush1.msra.mxu0 0.0
        %4034 = vmatprep.subr.mxu0 0.0
        %4035 = vmatpush1.msra.mxu0 0.0
        %4036 = vmatprep.subr.mxu0 0.0
        %4037 = vmatpush1.msra.mxu0 0.0
        %4038 = vmatprep.subr.mxu0 0.0
        %4039 = vmatpush1.msra.mxu0 0.0
        %4040 = vmatprep.subr.mxu0 0.0
        %4041 = vmatpush1.msra.mxu0 0.0
        %4042 = vmatprep.subr.mxu0 0.0
        %4043 = vmatpush1.msra.mxu0 0.0
        %4044 = vmatprep.subr.mxu0 0.0
        %4045 = vmatpush1.msra.mxu0 0.0
        %4046 = vmatprep.subr.mxu0 0.0
        %4047 = vmatpush1.msra.mxu0 0.0
        %4048 = vmatprep.subr.mxu0 0.0
        %4049 = vmatpush1.msra.mxu0 0.0
        %4050 = vmatprep.subr.mxu0 0.0
        %4051 = vmatpush1.msra.mxu0 0.0
        %4052 = vmatprep.subr.mxu0 0.0
        %4053 = vmatpush1.msra.mxu0 0.0
        %4054 = vmatprep.subr.mxu0 0.0
        %4055 = vmatpush1.msra.mxu0 0.0
        %4056 = vmatprep.subr.mxu0 0.0
        %4057 = vmatpush1.msra.mxu0 0.0
        %4058 = vmatprep.subr.mxu0 0.0
        %4059 = vmatpush1.msra.mxu0 0.0
        %4060 = vmatprep.subr.mxu0 0.0
        %4061 = vmatpush1.msra.mxu0 0.0
        %4062 = vmatprep.subr.mxu0 0.0
        %4063 = vmatpush1.msra.mxu0 0.0
        %4064 = vmatprep.subr.mxu0 0.0
        %4065 = vmatpush1.msra.mxu0 0.0
        %4066 = vmatprep.subr.mxu0 0.0
        %4067 = vmatpush1.msra.mxu0 0.0
        %4068 = vmatprep.subr.mxu0 0.0
        %4069 = vmatpush1.msra.mxu0 0.0
        %4070 = vmatprep.subr.mxu0 0.0
        %4071 = vmatpush1.msra.mxu0 0.0
        %4072 = vmatprep.subr.mxu0 0.0
        %4073 = vmatpush1.msra.mxu0 0.0
        %4074 = vmatprep.subr.mxu0 0.0
        %4075 = vmatpush1.msra.mxu0 0.0
        %4076 = vmatprep.subr.mxu0 0.0
        %4077 = vmatpush1.msra.mxu0 0.0
        %4078 = vmatprep.subr.mxu0 0.0
        %4079 = vmatpush1.msra.mxu0 0.0
        %4080 = vmatprep.subr.mxu0 0.0
        %4081 = vmatpush1.msra.mxu0 0.0
        %4082 = vmatprep.subr.mxu0 0.0
        %4083 = vmatpush1.msra.mxu0 0.0
        %4084 = vmatprep.subr.mxu0 0.0
        %4085 = vmatpush1.msra.mxu0 0.0
        %4086 = vmatprep.subr.mxu0 0.0
        %4087 = vmatpush1.msra.mxu0 0.0
        %4088 = vmatprep.subr.mxu0 0.0
        %4089 = vmatpush1.msra.mxu0 0.0
        %4090 = vmatprep.subr.mxu0 0.0
        %4091 = vmatpush1.msra.mxu0 0.0
        %4092 = vmatprep.subr.mxu0 0.0
        %4093 = vmatpush1.msra.mxu0 0.0
        %4094 = vmatprep.mubr.f32.mxu0 0.0
        %4095 = vmatmul.mubr.f32.gmra.mrb[0].mxu0 %v3763
        %v4096 = vpop.f32.mrb[0].mxu0
        %v4097 = vadd.f32 0.0, %v4096
        %v4098 = vpop.f32.mrb[0].mxu0
        %4099 = vdwg.mxu0
        %v4100 = vmul.f32 %v4097, 0.001953125
        %v4101 = vmul.f32 %v4100, %v4100
        %4103 = vrot.lane.b32.xlu0 %v4101, 1
        %v4104 = vpop.permute.xlu0 %4103
        %v4106 = vsub.f32 %v4100, %v4104
        %v4107 = vadd.f32 %v4106, 1e-05
        %v4108 = vrsqrt.pop %v4107
        %4110 = vrot.lane.b32.xlu0 %v4108, 8
        %v4111 = vpop.permute.xlu0 %4110
        %v4113 = vmul.f32 %v4012, %v4111
        %4115 = vrot.lane.b32.xlu0 %v4113, 119
        %v4116 = vpop.permute.xlu0 %4115
        %v4118 = vmul.f32 %v4100, %v4116
        %4120 = vrot.lane.b32.xlu0 %v4118, 10
        %v4121 = vpop.permute.xlu0 %4120
        %v4123 = vsub.f32 %v4012, %v4121
        %4124 = vset.pattern.permute.xlu0 9
        %4125 = vperm.xlu0 %4124, %v4113
        %v4126 = vpop.permute.xlu0 %4125
        %v4128 = vmul.f32 %v3966, %v4126
        %v4129 = vmul.f32 %v3968, %v4126
        %v4130 = vmul.f32 %v4007, %v4126
        %4132 = vset.pattern.permute.xlu0 10
        %4133 = vperm.xlu0 %4132, %v4123
        %v4134 = vpop.permute.xlu0 %4133
        %v4136 = vadd.f32 %v4128, %v4134
        %v4137 = vadd.f32 %v4129, %v4134
        %v4138 = vadd.f32 %v4130, %v4134
        %v4139 = vadd.f32 %v3897, %v4136
        %v4140 = vadd.f32 %v3898, %v4137
        %v4141 = vadd.f32 %v3899, %v4138
        %4142 = vst [vmem:[%s369] sm:$0xff] %v4139
        %4143 = vst [vmem:[%s369 + $0x8] sm:$0xff] %v4140
        %4144 = vst.msk [vmem:[%s369 + $0x10] sm:$0xff] %vm1436, %v4141
        %s4145 = sand.u32 %s187, 1
        %s4146 = scalar_lea.sflag [#allocation5], %s4145
        %s4147 = sand.u32 %s187, 1
        %s4148 = smul.addr %s4147, 24
        %s4149 = scalar_lea.vmem [#allocation15], %s4148
        // Predicated region
        $region77: #{tpu_custom_call.1} parent=47 // pred_check
          %p4150 = pneg %p197
        $region78: #{tpu_custom_call.1} parent=47 // pred_check_branch
          %4152 = sbr.rel (%p4150) target = $region80
        $region79: #{tpu_custom_call.1} parent=47 // pred_region
          %s4154 = ssub.s32 384, 384
          %4155 = vsyncadd %s4146, %s4154
          %s4156 = smul.addr %s27, 3
          %s4157 = smul.addr %s4156, 128
          %s4158 = scalar_lea.hbm %s7, %s4157
          %s4160 = sshll.u32 %s4149, 4
          %s4161 = int_to_ptr.vmem [resolvable:$true] %s4160
          %4163 = dma.vmem_to_hbm [thread:$0]  %s4161, 384, %s4158, %s4146
        $region80: #{tpu_custom_call.1} parent=47 // pred_fallthru
          _
      $region48: #{tpu_custom_call.1} parent=5 // pred_fallthru
        _
      %p4164 = scmp.le.s32.totalorder 2, %s22
      // Predicated region
      $region81: #{tpu_custom_call.1} parent=5 // pred_check
        %p4165 = pneg %p4164
      $region82: #{tpu_custom_call.1} parent=5 // pred_check_branch
        %4167 = sbr.rel (%p4165) target = $region84
      $region83: #{tpu_custom_call.1} parent=5 // pred_region
        %s4168 = ssub.s32 %s22, 2
        // Predicated region
        $region85: #{tpu_custom_call.1} parent=83 // pred_check
          %p4169 = pneg %p203
        $region86: #{tpu_custom_call.1} parent=83 // pred_check_branch
          %4171 = sbr.rel (%p4169) target = $region88
        $region87: #{tpu_custom_call.1} parent=83 // pred_region
          %s4172 = sand.u32 %s188, 1
          %s4173 = scalar_lea.sflag [#allocation5], %s4172
          %s4174 = sand.u32 %s188, 1
          %s4175 = smul.addr %s4174, 24
          %s4176 = scalar_lea.vmem [#allocation15], %s4175
          %4177 = dma.done %s4173, 384
        $region88: #{tpu_custom_call.1} parent=83 // pred_fallthru
          _
      $region84: #{tpu_custom_call.1} parent=5 // pred_fallthru
        _
    $region6: #{tpu_custom_call.1} parent=1 // loop_footer
      %s26 = sadd.s32 1, %s22
    $region7: #{tpu_custom_call.1} parent=1 // loop_footer_branch
      %21 = sbr.rel target = $region3
    $region8: #{tpu_custom_call.1} parent=1 // loop_exit
      _
    %4178 = vsyncpa [#allocation4], 1
    %s4179 = scalar_lea.sflag [#allocation4], 1
    %4180 = vsyncpa %s4179, 1
    %4181 = vsyncpa [#allocation7], 1
    %4182 = vsyncpa [#allocation10], 1
    %4183 = vsyncpa [#allocation13], 1
    %4184 = vsyncpa [#allocation5], 1
    %s4185 = scalar_lea.sflag [#allocation5], 1
    %4186 = vsyncpa %s4185, 1

</llo_original>
